<compile_context>
chip_gen: v6e
topology: v6e:2x2x1
jax: 0.10.0
libtpu: 0.0.40
codegen_flags: <defaults>
</compile_context>

<pallas_src>
import functools

import jax
import jax.numpy as jnp
import numpy as np
from jax.experimental import pallas as pl
from jax.experimental.pallas import tpu as pltpu

_LANE = 128
_MAX_UNROLL_T = 32
_MAX_UNROLL_CARRY_BYTES = 16 << 10   # per-carry (Bt*Hp*4) cap for full unroll
_TARGET_BT = 256
_MIN_SPLIT_BT = 128


def _round_up(v, m):
    return (v + m - 1) // m * m


def _vmem_capacity_bytes():
    try:
        return int(pltpu.get_tpu_info().vmem_capacity_bytes)
    except Exception:
        return 64 << 20       # conservative (v7x per-core) default


def rnn_kernel(x_ref, seqlen_ref, wih_ref, b_ref, whh_f_ref, whh_b_ref,
               gamma_ref, beta_ref, wh_ref, bh_ref,
               out_ref, xg_scr, h_scr,
               *, seq_len, batch_tile, hidden, ln_count):
    T, Bt, H = seq_len, batch_tile, hidden
    G = 4 * H
    eps = 1e-5

    # ---- phase 1: fused input projection for BOTH directions, one big MXU
    #      matmul (T*Bt, Dp) x (Dp, 8Hp); biases added once; stored bf16. -----
    xg = jnp.dot(x_ref[...], wih_ref[...],
                 preferred_element_type=jnp.float32) + b_ref[...]
    xg_scr[...] = xg.astype(xg_scr.dtype)

    seqlen = seqlen_ref[...]                      # (Bt, 1) int32, read once

    def rows_at(t):
        if isinstance(t, int):
            return pl.ds(t * Bt, Bt)
        return pl.ds(pl.multiple_of(t * Bt, Bt), Bt)

    def cell(gates, h, c):
        # gate layout [i | f | o | g], each width H -> 1 sigmoid + 1 tanh push
        sig = jax.nn.sigmoid(gates[:, 0:3 * H])
        g = jnp.tanh(gates[:, 3 * H:4 * H])
        i = sig[:, 0:H]
        f = sig[:, H:2 * H]
        o = sig[:, 2 * H:3 * H]
        c_new = f * c + i * g
        h_new = o * jnp.tanh(c_new)
        return h_new, c_new

    def step(t_f, hf, cf, hb, cb):
        t_b = T - 1 - t_f
        rf = rows_at(t_f)
        rb = rows_at(t_b)
        # only the two (Bt,H)x(H,4H) recurrent matmuls stay on the serial path;
        # whh tiles are read from VMEM per step (no vreg-resident weights).
        gates_f = (xg_scr[rf, 0:G].astype(jnp.float32)
                   + jnp.dot(hf.astype(whh_f_ref.dtype), whh_f_ref[...],
                             preferred_element_type=jnp.float32))
        gates_b = (xg_scr[rb, G:2 * G].astype(jnp.float32)
                   + jnp.dot(hb.astype(whh_b_ref.dtype), whh_b_ref[...],
                             preferred_element_type=jnp.float32))
        hf_new, cf_new = cell(gates_f, hf, cf)
        hb_new, cb_new = cell(gates_b, hb, cb)
        vf = seqlen > t_f                          # (Bt,1) bool -> vsel
        vb = seqlen > t_b
        hf = jnp.where(vf, hf_new, hf)
        cf = jnp.where(vf, cf_new, cf)
        hb = jnp.where(vb, hb_new, hb)
        cb = jnp.where(vb, cb_new, cb)
        # padded / out-of-length positions -> exactly 0 in the output buffer
        h_scr[rf, 0:H] = jnp.where(vf, hf_new, 0.0).astype(h_scr.dtype)
        h_scr[rb, H:2 * H] = jnp.where(vb, hb_new, 0.0).astype(h_scr.dtype)
        return hf, cf, hb, cb

    zeros = jnp.zeros((Bt, H), jnp.float32)
    full_unroll = (T <= _MAX_UNROLL_T
                   and Bt * H * 4 <= _MAX_UNROLL_CARRY_BYTES)

    if full_unroll:
        hf = cf = hb = cb = zeros
        for t in range(T):                        # interleaved fwd/bwd
            hf, cf, hb, cb = step(t, hf, cf, hb, cb)
    else:
        def body(t, carry):
            return step(t, *carry)
        jax.lax.fori_loop(0, T, body, (zeros, zeros, zeros, zeros), unroll=2)

    # ---- phase 2: LayerNorm + head, batched over all T*Bt rows --------------
    # Padded hidden columns are exactly 0; divide by the REAL channel count.
    y = h_scr[...].astype(jnp.float32)            # (rows, 2Hp)
    inv_n = 1.0 / float(ln_count)
    s1 = jnp.sum(y, axis=-1, keepdims=True)
    mu = s1 * inv_n
    s2 = jnp.sum(y * y, axis=-1, keepdims=True)
    var = jnp.maximum(s2 * inv_n - mu * mu, 0.0)
    yn = (y - mu) * jax.lax.rsqrt(var + eps)
    yn = yn * gamma_ref[...] + beta_ref[...]      # padded cols zeroed by gamma/beta
    logits = jnp.dot(yn.astype(wh_ref.dtype), wh_ref[...],
                     preferred_element_type=jnp.float32) + bh_ref[...]
    out_ref[...] = logits.astype(out_ref.dtype)   # lane-dense store (Cp = k*128)


def init_params(key, dim, num_classes):
    H = dim
    ks = jax.random.split(key, 10)
    s = 1.0 / float(np.sqrt(H))

    def u(k, shape):
        return jax.random.uniform(k, shape, jnp.float32, -s, s)

    return dict(
        wih_f=u(ks[0], (4 * H, dim)),
        whh_f=u(ks[1], (4 * H, H)),
        bih_f=u(ks[2], (4 * H,)),
        bhh_f=u(ks[3], (4 * H,)),
        wih_b=u(ks[4], (4 * H, dim)),
        whh_b=u(ks[5], (4 * H, H)),
        bih_b=u(ks[6], (4 * H,)),
        bhh_b=u(ks[7], (4 * H,)),
        gamma=jnp.ones((2 * H,), jnp.float32),
        beta=jnp.zeros((2 * H,), jnp.float32),
        w_head=u(ks[8], (num_classes, 2 * H)),
        b_head=u(ks[9], (num_classes,)),
    )


def _pack_gates(w, H, Hp):
    """PyTorch gate layout [i|f|g|o] (axis 0) -> [i|f|o|g], each padded to Hp."""
    i, f, g, o = jnp.split(w, 4, axis=0)

    def padg(a):
        return jnp.zeros((Hp,) + a.shape[1:], a.dtype).at[:H].set(a)

    return jnp.concatenate([padg(i), padg(f), padg(o), padg(g)], axis=0)


@jax.jit
def rnn_forward(x, context_mask, params):
    B, T, D = x.shape
    H = D                                        # hidden_size == dim
    C = params["w_head"].shape[0]

    Hp = _round_up(H, _LANE)
    Dp = _round_up(D, _LANE)
    Cp = _round_up(C, _LANE)

    # ---- batch padding / tiling ("parallel" axis; nb>=2 on v7x when possible)
    Bp = _round_up(B, 8)
    if Bp > _TARGET_BT:
        Bt = _TARGET_BT
    elif Bp >= 2 * _MIN_SPLIT_BT:
        Bt = _round_up((Bp + 1) // 2, 8)
    else:
        Bt = Bp
    nb = -(-Bp // Bt)
    Bp = nb * Bt
    rows = T * Bt

    seqlens = jnp.sum(context_mask.astype(jnp.int32), axis=-1)     # (B,)
    seq_p = jnp.zeros((Bp,), jnp.int32).at[:B].set(seqlens)
    seq_blk = seq_p.reshape(nb, Bt, 1)

    # row layout inside a batch tile is t-major: row = t * Bt + bb
    x_p = jnp.zeros((Bp, T, Dp), jnp.bfloat16).at[:B, :, :D].set(
        x.astype(jnp.bfloat16))
    x_rows = (x_p.transpose(1, 0, 2)             # (T, Bp, Dp)
                  .reshape(T, nb, Bt, Dp)
                  .transpose(1, 0, 2, 3)         # (nb, T, Bt, Dp)
                  .reshape(nb, rows, Dp))

    # ---- fused / permuted / padded weights (MXU path bf16, scalars f32) -----
    def fuse_ih(wih):
        wt = _pack_gates(wih, H, Hp).T           # (D, 4Hp), gates [i|f|o|g]
        return jnp.zeros((Dp, 4 * Hp), jnp.float32).at[:D].set(wt)

    def fuse_hh(whh):
        wt = _pack_gates(whh, H, Hp).T           # (H, 4Hp)
        return jnp.zeros((Hp, 4 * Hp), jnp.float32).at[:H].set(wt)

    wih_all = jnp.concatenate(
        [fuse_ih(params["wih_f"]), fuse_ih(params["wih_b"])],
        axis=1).astype(jnp.bfloat16)                               # (Dp, 8Hp)
    b_all = jnp.concatenate(
        [_pack_gates(params["bih_f"] + params["bhh_f"], H, Hp),
         _pack_gates(params["bih_b"] + params["bhh_b"], H, Hp)])[None, :]
    whh_f = fuse_hh(params["whh_f"]).astype(jnp.bfloat16)          # (Hp, 4Hp)
    whh_b = fuse_hh(params["whh_b"]).astype(jnp.bfloat16)

    gamma = jnp.zeros((1, 2 * Hp), jnp.float32)
    gamma = gamma.at[0, :H].set(params["gamma"][:H])
    gamma = gamma.at[0, Hp:Hp + H].set(params["gamma"][H:])
    beta = jnp.zeros((1, 2 * Hp), jnp.float32)
    beta = beta.at[0, :H].set(params["beta"][:H])
    beta = beta.at[0, Hp:Hp + H].set(params["beta"][H:])

    wh_t = params["w_head"].T                                      # (2H, C)
    wh = jnp.zeros((2 * Hp, Cp), jnp.float32)
    wh = wh.at[:H, :C].set(wh_t[:H]).at[Hp:Hp + H, :C].set(wh_t[H:])
    wh = wh.astype(jnp.bfloat16)
    bh = jnp.zeros((1, Cp), jnp.float32).at[0, :C].set(params["b_head"])

    kernel = functools.partial(rnn_kernel, seq_len=T, batch_tile=Bt,
                               hidden=Hp, ln_count=2 * H)

    def _full(shape):
        return pl.BlockSpec(shape, lambda i, _n=len(shape): (0,) * _n)

    grid_spec = pltpu.PrefetchScalarGridSpec(
        num_scalar_prefetch=0,
        grid=(nb,),
        in_specs=[
            pl.BlockSpec((None, rows, Dp), lambda i: (i, 0, 0)),   # x rows
            pl.BlockSpec((None, Bt, 1), lambda i: (i, 0, 0)),      # seqlens
            _full((Dp, 8 * Hp)),                                   # wih fused
            _full((1, 8 * Hp)),                                    # bias fused
            _full((Hp, 4 * Hp)),                                   # whh fwd
            _full((Hp, 4 * Hp)),                                   # whh bwd
            _full((1, 2 * Hp)),                                    # gamma
            _full((1, 2 * Hp)),                                    # beta
            _full((2 * Hp, Cp)),                                   # head W
            _full((1, Cp)),                                        # head b
        ],
        out_specs=pl.BlockSpec((None, rows, Cp), lambda i: (i, 0, 0)),
        scratch_shapes=[
            pltpu.VMEM((rows, 8 * Hp), jnp.bfloat16),   # hoisted input proj.
            pltpu.VMEM((rows, 2 * Hp), jnp.bfloat16),   # merged fwd|bwd hidden
        ],
    )

    # VMEM budget: double-buffered I/O blocks + (conservatively) double-
    # buffered constant weight blocks + scratch, clamped to physical capacity.
    bf16b, f32b, i32b = 2, 4, 4
    blk_in = rows * Dp * bf16b + Bt * i32b
    blk_w = (Dp * 8 * Hp * bf16b + 8 * Hp * f32b
             + 2 * Hp * 4 * Hp * bf16b + 2 * (2 * Hp) * f32b
             + 2 * Hp * Cp * bf16b + Cp * f32b)
    blk_out = rows * Cp * f32b
    scratch = rows * 8 * Hp * bf16b + rows * 2 * Hp * bf16b
    needed = 2 * (blk_in + blk_out) + 2 * blk_w + scratch
    cap = _vmem_capacity_bytes()
    vmem_limit = int(min(max(needed + (4 << 20), 32 << 20), cap - (2 << 20)))

    out = pl.pallas_call(
        kernel,
        out_shape=jax.ShapeDtypeStruct((nb, rows, Cp), jnp.float32),
        grid_spec=grid_spec,
        compiler_params=pltpu.CompilerParams(
            dimension_semantics=("parallel",),
            vmem_limit_bytes=vmem_limit),
    )(x_rows, seq_blk, wih_all, b_all, whh_f, whh_b, gamma, beta, wh, bh)

    out = (out.reshape(nb, T, Bt, Cp)
              .transpose(0, 2, 1, 3)              # (nb, Bt, T, Cp)
              .reshape(Bp, T, Cp)[:B, :, :C])     # drop batch & lane padding
    return out


def rnn_reference(x, context_mask, params):
    """Pure-JAX f32 reference mirroring the packed bi-LSTM + LN + head."""
    B, T, D = x.shape
    H = D
    mask = context_mask.astype(jnp.float32)

    def cell(xt, h, c, wih, whh, b):
        gates = xt @ wih.T + h @ whh.T + b
        i, f, g, o = jnp.split(gates, 4, axis=-1)
        c = jax.nn.sigmoid(f) * c + jax.nn.sigmoid(i) * jnp.tanh(g)
        h = jax.nn.sigmoid(o) * jnp.tanh(c)
        return h, c

    b_f = params["bih_f"] + params["bhh_f"]
    b_b = params["bih_b"] + params["bhh_b"]

    h = jnp.zeros((B, H)); c = jnp.zeros((B, H))
    fwd = []
    for t in range(T):
        m = mask[:, t][:, None]
        hn, cn = cell(x[:, t], h, c, params["wih_f"], params["whh_f"], b_f)
        h = m * hn + (1 - m) * h
        c = m * cn + (1 - m) * c
        fwd.append(m * hn)

    h = jnp.zeros((B, H)); c = jnp.zeros((B, H))
    bwd = [None] * T
    for t in range(T - 1, -1, -1):
        m = mask[:, t][:, None]
        hn, cn = cell(x[:, t], h, c, params["wih_b"], params["whh_b"], b_b)
        h = m * hn + (1 - m) * h
        c = m * cn + (1 - m) * c
        bwd[t] = m * hn

    y = jnp.concatenate([jnp.stack(fwd, 1), jnp.stack(bwd, 1)], axis=-1)
    mu = y.mean(-1, keepdims=True)
    var = ((y - mu) ** 2).mean(-1, keepdims=True)
    yn = (y - mu) / jnp.sqrt(var + 1e-5) * params["gamma"] + params["beta"]
    return yn @ params["w_head"].T + params["b_head"]


if __name__ == "__main__":
    B, T, D, C = 2, 8, 32, 4   # batch, seq_num, channel(dim), num_classes

    key = jax.random.PRNGKey(0)
    k_x, k_p = jax.random.split(key)
    x = jax.random.normal(k_x, (B, T, D), jnp.float32)
    seqlens = jnp.array([T, 5], jnp.int32)                          # lengths >= 1
    context_mask = (jnp.arange(T)[None, :] < seqlens[:, None]).astype(jnp.int32)

    params = init_params(k_p, D, C)

    out = rnn_forward(x, context_mask, params)
    out = jax.block_until_ready(out)

    ref = rnn_reference(x, context_mask, params)
    # bf16 MXU path + bf16 scratch vs f32 reference -> loosened tolerance
    # (review-approved numerics change; carries/gates/LN stay f32).
    np.testing.assert_allclose(np.asarray(out), np.asarray(ref),
                               rtol=5e-2, atol=5e-2)
    assert out.shape == (B, T, C)
    print("KERNEL_OK")
</pallas_src>

<mosaic_0001>
module attributes {stable_mosaic.version = 11 : i64} {
  func.func @rnn_kernel(%arg0: i32, %arg1: memref<1x64x128xbf16, #tpu.memory_space<vmem>>, %arg2: memref<1x8x1xi32, #tpu.memory_space<vmem>>, %arg3: memref<128x1024xbf16, #tpu.memory_space<vmem>>, %arg4: memref<1x1024xf32, #tpu.memory_space<vmem>>, %arg5: memref<128x512xbf16, #tpu.memory_space<vmem>>, %arg6: memref<128x512xbf16, #tpu.memory_space<vmem>>, %arg7: memref<1x256xf32, #tpu.memory_space<vmem>>, %arg8: memref<1x256xf32, #tpu.memory_space<vmem>>, %arg9: memref<256x128xbf16, #tpu.memory_space<vmem>>, %arg10: memref<1x128xf32, #tpu.memory_space<vmem>>, %arg11: memref<1x64x128xf32, #tpu.memory_space<vmem>>, %arg12: memref<64x1024xbf16, #tpu.memory_space<vmem>>, %arg13: memref<64x256xbf16, #tpu.memory_space<vmem>>) attributes {dimension_semantics = [#tpu.dimension_semantics<parallel>], iteration_bounds = array<i64: 1>, scalar_prefetch = 0 : i64, scratch_operands = 2 : i64, tpu.core_type = #tpu.core_type<tc>, window_params = [{transform_indices = @transform_0, window_bounds = array<i64: 1, 64, 128>}, {transform_indices = @transform_1, window_bounds = array<i64: 1, 8, 1>}, {pipeline_mode = #tpu.pipeline_mode<synchronous>, transform_indices = @transform_2, window_bounds = array<i64: 128, 1024>}, {pipeline_mode = #tpu.pipeline_mode<synchronous>, transform_indices = @transform_3, window_bounds = array<i64: 1, 1024>}, {pipeline_mode = #tpu.pipeline_mode<synchronous>, transform_indices = @transform_4, window_bounds = array<i64: 128, 512>}, {pipeline_mode = #tpu.pipeline_mode<synchronous>, transform_indices = @transform_5, window_bounds = array<i64: 128, 512>}, {pipeline_mode = #tpu.pipeline_mode<synchronous>, transform_indices = @transform_6, window_bounds = array<i64: 1, 256>}, {pipeline_mode = #tpu.pipeline_mode<synchronous>, transform_indices = @transform_7, window_bounds = array<i64: 1, 256>}, {pipeline_mode = #tpu.pipeline_mode<synchronous>, transform_indices = @transform_8, window_bounds = array<i64: 256, 128>}, {pipeline_mode = #tpu.pipeline_mode<synchronous>, transform_indices = @transform_9, window_bounds = array<i64: 1, 128>}, {transform_indices = @transform_10, window_bounds = array<i64: 1, 64, 128>}]} {
    %c0 = arith.constant 0 : index
    %c0_0 = arith.constant 0 : index
    %c0_1 = arith.constant 0 : index
    %0 = vector.load %arg1[%c0, %c0_0, %c0_1] : memref<1x64x128xbf16, #tpu.memory_space<vmem>>, vector<1x64x128xbf16>
    %1 = vector.shape_cast %0 : vector<1x64x128xbf16> to vector<64x128xbf16>
    %c0_2 = arith.constant 0 : index
    %c0_3 = arith.constant 0 : index
    %2 = vector.load %arg3[%c0_2, %c0_3] : memref<128x1024xbf16, #tpu.memory_space<vmem>>, vector<128x1024xbf16>
    %cst = arith.constant dense<0.000000e+00> : vector<64x1024xf32>
    %3 = tpu.matmul %1, %2, %cst {dimension_numbers = #tpu.dot_dimension_numbers<[1], [0], [0], [1], [0, 0, 1, 1], [], []>} : vector<64x128xbf16>, vector<128x1024xbf16>, vector<64x1024xf32> -> vector<64x1024xf32>
    %c0_4 = arith.constant 0 : index
    %c0_5 = arith.constant 0 : index
    %4 = vector.load %arg4[%c0_4, %c0_5] : memref<1x1024xf32, #tpu.memory_space<vmem>>, vector<1x1024xf32>
    %5 = vector.broadcast %4 : vector<1x1024xf32> to vector<64x1024xf32>
    %6 = arith.addf %3, %5 : vector<64x1024xf32>
    %7 = arith.truncf %6 : vector<64x1024xf32> to vector<64x1024xbf16>
    %c0_6 = arith.constant 0 : index
    %c0_7 = arith.constant 0 : index
    %8 = vector.load %arg12[%c0_6, %c0_7] : memref<64x1024xbf16, #tpu.memory_space<vmem>>, vector<64x1024xbf16>
    tpu.vector_store %arg12[%c0_6, %c0_7], %7 {strides = array<i32>} : memref<64x1024xbf16, #tpu.memory_space<vmem>>, vector<64x1024xbf16>,
    %c0_8 = arith.constant 0 : index
    %c0_9 = arith.constant 0 : index
    %c0_10 = arith.constant 0 : index
    %9 = vector.load %arg2[%c0_8, %c0_9, %c0_10] : memref<1x8x1xi32, #tpu.memory_space<vmem>>, vector<1x8x1xi32>
    %10 = vector.shape_cast %9 : vector<1x8x1xi32> to vector<8x1xi32>
    %cst_11 = arith.constant 0.000000e+00 : f32
    %11 = vector.broadcast %cst_11 : f32 to vector<8x128xf32>
    %c0_12 = arith.constant 0 : index
    %c0_13 = arith.constant 0 : index
    %12 = vector.load %arg12[%c0_12, %c0_13] : memref<64x1024xbf16, #tpu.memory_space<vmem>>, vector<8x512xbf16>
    %13 = arith.extf %12 : vector<8x512xbf16> to vector<8x512xf32>
    %14 = arith.truncf %11 : vector<8x128xf32> to vector<8x128xbf16>
    %c0_14 = arith.constant 0 : index
    %c0_15 = arith.constant 0 : index
    %15 = vector.load %arg5[%c0_14, %c0_15] : memref<128x512xbf16, #tpu.memory_space<vmem>>, vector<128x512xbf16>
    %cst_16 = arith.constant dense<0.000000e+00> : vector<8x512xf32>
    %16 = tpu.matmul %14, %15, %cst_16 {dimension_numbers = #tpu.dot_dimension_numbers<[1], [0], [0], [1], [0, 0, 1, 1], [], []>} : vector<8x128xbf16>, vector<128x512xbf16>, vector<8x512xf32> -> vector<8x512xf32>
    %17 = arith.addf %13, %16 : vector<8x512xf32>
    %c56 = arith.constant 56 : index
    %c512 = arith.constant 512 : index
    %18 = vector.load %arg12[%c56, %c512] : memref<64x1024xbf16, #tpu.memory_space<vmem>>, vector<8x512xbf16>
    %19 = arith.extf %18 : vector<8x512xbf16> to vector<8x512xf32>
    %20 = arith.truncf %11 : vector<8x128xf32> to vector<8x128xbf16>
    %c0_17 = arith.constant 0 : index
    %c0_18 = arith.constant 0 : index
    %21 = vector.load %arg6[%c0_17, %c0_18] : memref<128x512xbf16, #tpu.memory_space<vmem>>, vector<128x512xbf16>
    %cst_19 = arith.constant dense<0.000000e+00> : vector<8x512xf32>
    %22 = tpu.matmul %20, %21, %cst_19 {dimension_numbers = #tpu.dot_dimension_numbers<[1], [0], [0], [1], [0, 0, 1, 1], [], []>} : vector<8x128xbf16>, vector<128x512xbf16>, vector<8x512xf32> -> vector<8x512xf32>
    %23 = arith.addf %19, %22 : vector<8x512xf32>
    %24 = vector.extract_strided_slice %17 {offsets = [0, 0], sizes = [8, 384], strides = [1, 1]} : vector<8x512xf32> to vector<8x384xf32>
    %25 = arith.negf %24 : vector<8x384xf32>
    %26 = math.exp %25 : vector<8x384xf32>
    %cst_20 = arith.constant 1.000000e+00 : f32
    %27 = vector.broadcast %cst_20 : f32 to vector<8x384xf32>
    %28 = arith.addf %27, %26 : vector<8x384xf32>
    %29 = arith.divf %27, %28 : vector<8x384xf32>
    %30 = vector.extract_strided_slice %17 {offsets = [0, 384], sizes = [8, 128], strides = [1, 1]} : vector<8x512xf32> to vector<8x128xf32>
    %31 = math.tanh %30 : vector<8x128xf32>
    %32 = vector.extract_strided_slice %29 {offsets = [0, 0], sizes = [8, 128], strides = [1, 1]} : vector<8x384xf32> to vector<8x128xf32>
    %33 = vector.extract_strided_slice %29 {offsets = [0, 128], sizes = [8, 128], strides = [1, 1]} : vector<8x384xf32> to vector<8x128xf32>
    %34 = vector.extract_strided_slice %29 {offsets = [0, 256], sizes = [8, 128], strides = [1, 1]} : vector<8x384xf32> to vector<8x128xf32>
    %35 = arith.mulf %33, %11 : vector<8x128xf32>
    %36 = arith.mulf %32, %31 : vector<8x128xf32>
    %37 = arith.addf %35, %36 : vector<8x128xf32>
    %38 = math.tanh %37 : vector<8x128xf32>
    %39 = arith.mulf %34, %38 : vector<8x128xf32>
    %40 = vector.extract_strided_slice %23 {offsets = [0, 0], sizes = [8, 384], strides = [1, 1]} : vector<8x512xf32> to vector<8x384xf32>
    %41 = arith.negf %40 : vector<8x384xf32>
    %42 = math.exp %41 : vector<8x384xf32>
    %cst_21 = arith.constant 1.000000e+00 : f32
    %43 = vector.broadcast %cst_21 : f32 to vector<8x384xf32>
    %44 = arith.addf %43, %42 : vector<8x384xf32>
    %45 = arith.divf %43, %44 : vector<8x384xf32>
    %46 = vector.extract_strided_slice %23 {offsets = [0, 384], sizes = [8, 128], strides = [1, 1]} : vector<8x512xf32> to vector<8x128xf32>
    %47 = math.tanh %46 : vector<8x128xf32>
    %48 = vector.extract_strided_slice %45 {offsets = [0, 0], sizes = [8, 128], strides = [1, 1]} : vector<8x384xf32> to vector<8x128xf32>
    %49 = vector.extract_strided_slice %45 {offsets = [0, 128], sizes = [8, 128], strides = [1, 1]} : vector<8x384xf32> to vector<8x128xf32>
    %50 = vector.extract_strided_slice %45 {offsets = [0, 256], sizes = [8, 128], strides = [1, 1]} : vector<8x384xf32> to vector<8x128xf32>
    %51 = arith.mulf %49, %11 : vector<8x128xf32>
    %52 = arith.mulf %48, %47 : vector<8x128xf32>
    %53 = arith.addf %51, %52 : vector<8x128xf32>
    %54 = math.tanh %53 : vector<8x128xf32>
    %55 = arith.mulf %50, %54 : vector<8x128xf32>
    %c0_i32 = arith.constant 0 : i32
    %56 = vector.broadcast %c0_i32 : i32 to vector<8x1xi32>
    %57 = arith.cmpi sgt, %10, %56 : vector<8x1xi32>
    %c7_i32 = arith.constant 7 : i32
    %58 = vector.broadcast %c7_i32 : i32 to vector<8x1xi32>
    %59 = arith.cmpi sgt, %10, %58 : vector<8x1xi32>
    %60 = vector.shape_cast %57 : vector<8x1xi1> to vector<8x1xi1>
    %61 = vector.broadcast %60 : vector<8x1xi1> to vector<8x128xi1>
    %62 = arith.select %61, %39, %11 : vector<8x128xi1>, vector<8x128xf32>
    %63 = vector.shape_cast %57 : vector<8x1xi1> to vector<8x1xi1>
    %64 = vector.broadcast %63 : vector<8x1xi1> to vector<8x128xi1>
    %65 = arith.select %64, %37, %11 : vector<8x128xi1>, vector<8x128xf32>
    %66 = vector.shape_cast %59 : vector<8x1xi1> to vector<8x1xi1>
    %67 = vector.broadcast %66 : vector<8x1xi1> to vector<8x128xi1>
    %68 = arith.select %67, %55, %11 : vector<8x128xi1>, vector<8x128xf32>
    %69 = vector.shape_cast %59 : vector<8x1xi1> to vector<8x1xi1>
    %70 = vector.broadcast %69 : vector<8x1xi1> to vector<8x128xi1>
    %71 = arith.select %70, %53, %11 : vector<8x128xi1>, vector<8x128xf32>
    %cst_22 = arith.constant 0.000000e+00 : f32
    %72 = vector.shape_cast %57 : vector<8x1xi1> to vector<8x1xi1>
    %73 = vector.broadcast %72 : vector<8x1xi1> to vector<8x128xi1>
    %74 = vector.broadcast %cst_22 : f32 to vector<8x128xf32>
    %75 = arith.select %73, %39, %74 : vector<8x128xi1>, vector<8x128xf32>
    %76 = arith.truncf %75 : vector<8x128xf32> to vector<8x128xbf16>
    %c0_23 = arith.constant 0 : index
    %c0_24 = arith.constant 0 : index
    %77 = vector.load %arg13[%c0_23, %c0_24] : memref<64x256xbf16, #tpu.memory_space<vmem>>, vector<8x128xbf16>
    tpu.vector_store %arg13[%c0_23, %c0_24], %76 {strides = array<i32>} : memref<64x256xbf16, #tpu.memory_space<vmem>>, vector<8x128xbf16>,
    %cst_25 = arith.constant 0.000000e+00 : f32
    %78 = vector.shape_cast %59 : vector<8x1xi1> to vector<8x1xi1>
    %79 = vector.broadcast %78 : vector<8x1xi1> to vector<8x128xi1>
    %80 = vector.broadcast %cst_25 : f32 to vector<8x128xf32>
    %81 = arith.select %79, %55, %80 : vector<8x128xi1>, vector<8x128xf32>
    %82 = arith.truncf %81 : vector<8x128xf32> to vector<8x128xbf16>
    %c56_26 = arith.constant 56 : index
    %c128 = arith.constant 128 : index
    %83 = vector.load %arg13[%c56_26, %c128] : memref<64x256xbf16, #tpu.memory_space<vmem>>, vector<8x128xbf16>
    tpu.vector_store %arg13[%c56_26, %c128], %82 {strides = array<i32>} : memref<64x256xbf16, #tpu.memory_space<vmem>>, vector<8x128xbf16>,
    %c8 = arith.constant 8 : index
    %c0_27 = arith.constant 0 : index
    %84 = vector.load %arg12[%c8, %c0_27] : memref<64x1024xbf16, #tpu.memory_space<vmem>>, vector<8x512xbf16>
    %85 = arith.extf %84 : vector<8x512xbf16> to vector<8x512xf32>
    %86 = arith.truncf %62 : vector<8x128xf32> to vector<8x128xbf16>
    %c0_28 = arith.constant 0 : index
    %c0_29 = arith.constant 0 : index
    %87 = vector.load %arg5[%c0_28, %c0_29] : memref<128x512xbf16, #tpu.memory_space<vmem>>, vector<128x512xbf16>
    %cst_30 = arith.constant dense<0.000000e+00> : vector<8x512xf32>
    %88 = tpu.matmul %86, %87, %cst_30 {dimension_numbers = #tpu.dot_dimension_numbers<[1], [0], [0], [1], [0, 0, 1, 1], [], []>} : vector<8x128xbf16>, vector<128x512xbf16>, vector<8x512xf32> -> vector<8x512xf32>
    %89 = arith.addf %85, %88 : vector<8x512xf32>
    %c48 = arith.constant 48 : index
    %c512_31 = arith.constant 512 : index
    %90 = vector.load %arg12[%c48, %c512_31] : memref<64x1024xbf16, #tpu.memory_space<vmem>>, vector<8x512xbf16>
    %91 = arith.extf %90 : vector<8x512xbf16> to vector<8x512xf32>
    %92 = arith.truncf %68 : vector<8x128xf32> to vector<8x128xbf16>
    %c0_32 = arith.constant 0 : index
    %c0_33 = arith.constant 0 : index
    %93 = vector.load %arg6[%c0_32, %c0_33] : memref<128x512xbf16, #tpu.memory_space<vmem>>, vector<128x512xbf16>
    %cst_34 = arith.constant dense<0.000000e+00> : vector<8x512xf32>
    %94 = tpu.matmul %92, %93, %cst_34 {dimension_numbers = #tpu.dot_dimension_numbers<[1], [0], [0], [1], [0, 0, 1, 1], [], []>} : vector<8x128xbf16>, vector<128x512xbf16>, vector<8x512xf32> -> vector<8x512xf32>
    %95 = arith.addf %91, %94 : vector<8x512xf32>
    %96 = vector.extract_strided_slice %89 {offsets = [0, 0], sizes = [8, 384], strides = [1, 1]} : vector<8x512xf32> to vector<8x384xf32>
    %97 = arith.negf %96 : vector<8x384xf32>
    %98 = math.exp %97 : vector<8x384xf32>
    %cst_35 = arith.constant 1.000000e+00 : f32
    %99 = vector.broadcast %cst_35 : f32 to vector<8x384xf32>
    %100 = arith.addf %99, %98 : vector<8x384xf32>
    %101 = arith.divf %99, %100 : vector<8x384xf32>
    %102 = vector.extract_strided_slice %89 {offsets = [0, 384], sizes = [8, 128], strides = [1, 1]} : vector<8x512xf32> to vector<8x128xf32>
    %103 = math.tanh %102 : vector<8x128xf32>
    %104 = vector.extract_strided_slice %101 {offsets = [0, 0], sizes = [8, 128], strides = [1, 1]} : vector<8x384xf32> to vector<8x128xf32>
    %105 = vector.extract_strided_slice %101 {offsets = [0, 128], sizes = [8, 128], strides = [1, 1]} : vector<8x384xf32> to vector<8x128xf32>
    %106 = vector.extract_strided_slice %101 {offsets = [0, 256], sizes = [8, 128], strides = [1, 1]} : vector<8x384xf32> to vector<8x128xf32>
    %107 = arith.mulf %105, %65 : vector<8x128xf32>
    %108 = arith.mulf %104, %103 : vector<8x128xf32>
    %109 = arith.addf %107, %108 : vector<8x128xf32>
    %110 = math.tanh %109 : vector<8x128xf32>
    %111 = arith.mulf %106, %110 : vector<8x128xf32>
    %112 = vector.extract_strided_slice %95 {offsets = [0, 0], sizes = [8, 384], strides = [1, 1]} : vector<8x512xf32> to vector<8x384xf32>
    %113 = arith.negf %112 : vector<8x384xf32>
    %114 = math.exp %113 : vector<8x384xf32>
    %cst_36 = arith.constant 1.000000e+00 : f32
    %115 = vector.broadcast %cst_36 : f32 to vector<8x384xf32>
    %116 = arith.addf %115, %114 : vector<8x384xf32>
    %117 = arith.divf %115, %116 : vector<8x384xf32>
    %118 = vector.extract_strided_slice %95 {offsets = [0, 384], sizes = [8, 128], strides = [1, 1]} : vector<8x512xf32> to vector<8x128xf32>
    %119 = math.tanh %118 : vector<8x128xf32>
    %120 = vector.extract_strided_slice %117 {offsets = [0, 0], sizes = [8, 128], strides = [1, 1]} : vector<8x384xf32> to vector<8x128xf32>
    %121 = vector.extract_strided_slice %117 {offsets = [0, 128], sizes = [8, 128], strides = [1, 1]} : vector<8x384xf32> to vector<8x128xf32>
    %122 = vector.extract_strided_slice %117 {offsets = [0, 256], sizes = [8, 128], strides = [1, 1]} : vector<8x384xf32> to vector<8x128xf32>
    %123 = arith.mulf %121, %71 : vector<8x128xf32>
    %124 = arith.mulf %120, %119 : vector<8x128xf32>
    %125 = arith.addf %123, %124 : vector<8x128xf32>
    %126 = math.tanh %125 : vector<8x128xf32>
    %127 = arith.mulf %122, %126 : vector<8x128xf32>
    %c1_i32 = arith.constant 1 : i32
    %128 = vector.broadcast %c1_i32 : i32 to vector<8x1xi32>
    %129 = arith.cmpi sgt, %10, %128 : vector<8x1xi32>
    %c6_i32 = arith.constant 6 : i32
    %130 = vector.broadcast %c6_i32 : i32 to vector<8x1xi32>
    %131 = arith.cmpi sgt, %10, %130 : vector<8x1xi32>
    %132 = vector.shape_cast %129 : vector<8x1xi1> to vector<8x1xi1>
    %133 = vector.broadcast %132 : vector<8x1xi1> to vector<8x128xi1>
    %134 = arith.select %133, %111, %62 : vector<8x128xi1>, vector<8x128xf32>
    %135 = vector.shape_cast %129 : vector<8x1xi1> to vector<8x1xi1>
    %136 = vector.broadcast %135 : vector<8x1xi1> to vector<8x128xi1>
    %137 = arith.select %136, %109, %65 : vector<8x128xi1>, vector<8x128xf32>
    %138 = vector.shape_cast %131 : vector<8x1xi1> to vector<8x1xi1>
    %139 = vector.broadcast %138 : vector<8x1xi1> to vector<8x128xi1>
    %140 = arith.select %139, %127, %68 : vector<8x128xi1>, vector<8x128xf32>
    %141 = vector.shape_cast %131 : vector<8x1xi1> to vector<8x1xi1>
    %142 = vector.broadcast %141 : vector<8x1xi1> to vector<8x128xi1>
    %143 = arith.select %142, %125, %71 : vector<8x128xi1>, vector<8x128xf32>
    %cst_37 = arith.constant 0.000000e+00 : f32
    %144 = vector.shape_cast %129 : vector<8x1xi1> to vector<8x1xi1>
    %145 = vector.broadcast %144 : vector<8x1xi1> to vector<8x128xi1>
    %146 = vector.broadcast %cst_37 : f32 to vector<8x128xf32>
    %147 = arith.select %145, %111, %146 : vector<8x128xi1>, vector<8x128xf32>
    %148 = arith.truncf %147 : vector<8x128xf32> to vector<8x128xbf16>
    %c8_38 = arith.constant 8 : index
    %c0_39 = arith.constant 0 : index
    %149 = vector.load %arg13[%c8_38, %c0_39] : memref<64x256xbf16, #tpu.memory_space<vmem>>, vector<8x128xbf16>
    tpu.vector_store %arg13[%c8_38, %c0_39], %148 {strides = array<i32>} : memref<64x256xbf16, #tpu.memory_space<vmem>>, vector<8x128xbf16>,
    %cst_40 = arith.constant 0.000000e+00 : f32
    %150 = vector.shape_cast %131 : vector<8x1xi1> to vector<8x1xi1>
    %151 = vector.broadcast %150 : vector<8x1xi1> to vector<8x128xi1>
    %152 = vector.broadcast %cst_40 : f32 to vector<8x128xf32>
    %153 = arith.select %151, %127, %152 : vector<8x128xi1>, vector<8x128xf32>
    %154 = arith.truncf %153 : vector<8x128xf32> to vector<8x128xbf16>
    %c48_41 = arith.constant 48 : index
    %c128_42 = arith.constant 128 : index
    %155 = vector.load %arg13[%c48_41, %c128_42] : memref<64x256xbf16, #tpu.memory_space<vmem>>, vector<8x128xbf16>
    tpu.vector_store %arg13[%c48_41, %c128_42], %154 {strides = array<i32>} : memref<64x256xbf16, #tpu.memory_space<vmem>>, vector<8x128xbf16>,
    %c16 = arith.constant 16 : index
    %c0_43 = arith.constant 0 : index
    %156 = vector.load %arg12[%c16, %c0_43] : memref<64x1024xbf16, #tpu.memory_space<vmem>>, vector<8x512xbf16>
    %157 = arith.extf %156 : vector<8x512xbf16> to vector<8x512xf32>
    %158 = arith.truncf %134 : vector<8x128xf32> to vector<8x128xbf16>
    %c0_44 = arith.constant 0 : index
    %c0_45 = arith.constant 0 : index
    %159 = vector.load %arg5[%c0_44, %c0_45] : memref<128x512xbf16, #tpu.memory_space<vmem>>, vector<128x512xbf16>
    %cst_46 = arith.constant dense<0.000000e+00> : vector<8x512xf32>
    %160 = tpu.matmul %158, %159, %cst_46 {dimension_numbers = #tpu.dot_dimension_numbers<[1], [0], [0], [1], [0, 0, 1, 1], [], []>} : vector<8x128xbf16>, vector<128x512xbf16>, vector<8x512xf32> -> vector<8x512xf32>
    %161 = arith.addf %157, %160 : vector<8x512xf32>
    %c40 = arith.constant 40 : index
    %c512_47 = arith.constant 512 : index
    %162 = vector.load %arg12[%c40, %c512_47] : memref<64x1024xbf16, #tpu.memory_space<vmem>>, vector<8x512xbf16>
    %163 = arith.extf %162 : vector<8x512xbf16> to vector<8x512xf32>
    %164 = arith.truncf %140 : vector<8x128xf32> to vector<8x128xbf16>
    %c0_48 = arith.constant 0 : index
    %c0_49 = arith.constant 0 : index
    %165 = vector.load %arg6[%c0_48, %c0_49] : memref<128x512xbf16, #tpu.memory_space<vmem>>, vector<128x512xbf16>
    %cst_50 = arith.constant dense<0.000000e+00> : vector<8x512xf32>
    %166 = tpu.matmul %164, %165, %cst_50 {dimension_numbers = #tpu.dot_dimension_numbers<[1], [0], [0], [1], [0, 0, 1, 1], [], []>} : vector<8x128xbf16>, vector<128x512xbf16>, vector<8x512xf32> -> vector<8x512xf32>
    %167 = arith.addf %163, %166 : vector<8x512xf32>
    %168 = vector.extract_strided_slice %161 {offsets = [0, 0], sizes = [8, 384], strides = [1, 1]} : vector<8x512xf32> to vector<8x384xf32>
    %169 = arith.negf %168 : vector<8x384xf32>
    %170 = math.exp %169 : vector<8x384xf32>
    %cst_51 = arith.constant 1.000000e+00 : f32
    %171 = vector.broadcast %cst_51 : f32 to vector<8x384xf32>
    %172 = arith.addf %171, %170 : vector<8x384xf32>
    %173 = arith.divf %171, %172 : vector<8x384xf32>
    %174 = vector.extract_strided_slice %161 {offsets = [0, 384], sizes = [8, 128], strides = [1, 1]} : vector<8x512xf32> to vector<8x128xf32>
    %175 = math.tanh %174 : vector<8x128xf32>
    %176 = vector.extract_strided_slice %173 {offsets = [0, 0], sizes = [8, 128], strides = [1, 1]} : vector<8x384xf32> to vector<8x128xf32>
    %177 = vector.extract_strided_slice %173 {offsets = [0, 128], sizes = [8, 128], strides = [1, 1]} : vector<8x384xf32> to vector<8x128xf32>
    %178 = vector.extract_strided_slice %173 {offsets = [0, 256], sizes = [8, 128], strides = [1, 1]} : vector<8x384xf32> to vector<8x128xf32>
    %179 = arith.mulf %177, %137 : vector<8x128xf32>
    %180 = arith.mulf %176, %175 : vector<8x128xf32>
    %181 = arith.addf %179, %180 : vector<8x128xf32>
    %182 = math.tanh %181 : vector<8x128xf32>
    %183 = arith.mulf %178, %182 : vector<8x128xf32>
    %184 = vector.extract_strided_slice %167 {offsets = [0, 0], sizes = [8, 384], strides = [1, 1]} : vector<8x512xf32> to vector<8x384xf32>
    %185 = arith.negf %184 : vector<8x384xf32>
    %186 = math.exp %185 : vector<8x384xf32>
    %cst_52 = arith.constant 1.000000e+00 : f32
    %187 = vector.broadcast %cst_52 : f32 to vector<8x384xf32>
    %188 = arith.addf %187, %186 : vector<8x384xf32>
    %189 = arith.divf %187, %188 : vector<8x384xf32>
    %190 = vector.extract_strided_slice %167 {offsets = [0, 384], sizes = [8, 128], strides = [1, 1]} : vector<8x512xf32> to vector<8x128xf32>
    %191 = math.tanh %190 : vector<8x128xf32>
    %192 = vector.extract_strided_slice %189 {offsets = [0, 0], sizes = [8, 128], strides = [1, 1]} : vector<8x384xf32> to vector<8x128xf32>
    %193 = vector.extract_strided_slice %189 {offsets = [0, 128], sizes = [8, 128], strides = [1, 1]} : vector<8x384xf32> to vector<8x128xf32>
    %194 = vector.extract_strided_slice %189 {offsets = [0, 256], sizes = [8, 128], strides = [1, 1]} : vector<8x384xf32> to vector<8x128xf32>
    %195 = arith.mulf %193, %143 : vector<8x128xf32>
    %196 = arith.mulf %192, %191 : vector<8x128xf32>
    %197 = arith.addf %195, %196 : vector<8x128xf32>
    %198 = math.tanh %197 : vector<8x128xf32>
    %199 = arith.mulf %194, %198 : vector<8x128xf32>
    %c2_i32 = arith.constant 2 : i32
    %200 = vector.broadcast %c2_i32 : i32 to vector<8x1xi32>
    %201 = arith.cmpi sgt, %10, %200 : vector<8x1xi32>
    %c5_i32 = arith.constant 5 : i32
    %202 = vector.broadcast %c5_i32 : i32 to vector<8x1xi32>
    %203 = arith.cmpi sgt, %10, %202 : vector<8x1xi32>
    %204 = vector.shape_cast %201 : vector<8x1xi1> to vector<8x1xi1>
    %205 = vector.broadcast %204 : vector<8x1xi1> to vector<8x128xi1>
    %206 = arith.select %205, %183, %134 : vector<8x128xi1>, vector<8x128xf32>
    %207 = vector.shape_cast %201 : vector<8x1xi1> to vector<8x1xi1>
    %208 = vector.broadcast %207 : vector<8x1xi1> to vector<8x128xi1>
    %209 = arith.select %208, %181, %137 : vector<8x128xi1>, vector<8x128xf32>
    %210 = vector.shape_cast %203 : vector<8x1xi1> to vector<8x1xi1>
    %211 = vector.broadcast %210 : vector<8x1xi1> to vector<8x128xi1>
    %212 = arith.select %211, %199, %140 : vector<8x128xi1>, vector<8x128xf32>
    %213 = vector.shape_cast %203 : vector<8x1xi1> to vector<8x1xi1>
    %214 = vector.broadcast %213 : vector<8x1xi1> to vector<8x128xi1>
    %215 = arith.select %214, %197, %143 : vector<8x128xi1>, vector<8x128xf32>
    %cst_53 = arith.constant 0.000000e+00 : f32
    %216 = vector.shape_cast %201 : vector<8x1xi1> to vector<8x1xi1>
    %217 = vector.broadcast %216 : vector<8x1xi1> to vector<8x128xi1>
    %218 = vector.broadcast %cst_53 : f32 to vector<8x128xf32>
    %219 = arith.select %217, %183, %218 : vector<8x128xi1>, vector<8x128xf32>
    %220 = arith.truncf %219 : vector<8x128xf32> to vector<8x128xbf16>
    %c16_54 = arith.constant 16 : index
    %c0_55 = arith.constant 0 : index
    %221 = vector.load %arg13[%c16_54, %c0_55] : memref<64x256xbf16, #tpu.memory_space<vmem>>, vector<8x128xbf16>
    tpu.vector_store %arg13[%c16_54, %c0_55], %220 {strides = array<i32>} : memref<64x256xbf16, #tpu.memory_space<vmem>>, vector<8x128xbf16>,
    %cst_56 = arith.constant 0.000000e+00 : f32
    %222 = vector.shape_cast %203 : vector<8x1xi1> to vector<8x1xi1>
    %223 = vector.broadcast %222 : vector<8x1xi1> to vector<8x128xi1>
    %224 = vector.broadcast %cst_56 : f32 to vector<8x128xf32>
    %225 = arith.select %223, %199, %224 : vector<8x128xi1>, vector<8x128xf32>
    %226 = arith.truncf %225 : vector<8x128xf32> to vector<8x128xbf16>
    %c40_57 = arith.constant 40 : index
    %c128_58 = arith.constant 128 : index
    %227 = vector.load %arg13[%c40_57, %c128_58] : memref<64x256xbf16, #tpu.memory_space<vmem>>, vector<8x128xbf16>
    tpu.vector_store %arg13[%c40_57, %c128_58], %226 {strides = array<i32>} : memref<64x256xbf16, #tpu.memory_space<vmem>>, vector<8x128xbf16>,
    %c24 = arith.constant 24 : index
    %c0_59 = arith.constant 0 : index
    %228 = vector.load %arg12[%c24, %c0_59] : memref<64x1024xbf16, #tpu.memory_space<vmem>>, vector<8x512xbf16>
    %229 = arith.extf %228 : vector<8x512xbf16> to vector<8x512xf32>
    %230 = arith.truncf %206 : vector<8x128xf32> to vector<8x128xbf16>
    %c0_60 = arith.constant 0 : index
    %c0_61 = arith.constant 0 : index
    %231 = vector.load %arg5[%c0_60, %c0_61] : memref<128x512xbf16, #tpu.memory_space<vmem>>, vector<128x512xbf16>
    %cst_62 = arith.constant dense<0.000000e+00> : vector<8x512xf32>
    %232 = tpu.matmul %230, %231, %cst_62 {dimension_numbers = #tpu.dot_dimension_numbers<[1], [0], [0], [1], [0, 0, 1, 1], [], []>} : vector<8x128xbf16>, vector<128x512xbf16>, vector<8x512xf32> -> vector<8x512xf32>
    %233 = arith.addf %229, %232 : vector<8x512xf32>
    %c32 = arith.constant 32 : index
    %c512_63 = arith.constant 512 : index
    %234 = vector.load %arg12[%c32, %c512_63] : memref<64x1024xbf16, #tpu.memory_space<vmem>>, vector<8x512xbf16>
    %235 = arith.extf %234 : vector<8x512xbf16> to vector<8x512xf32>
    %236 = arith.truncf %212 : vector<8x128xf32> to vector<8x128xbf16>
    %c0_64 = arith.constant 0 : index
    %c0_65 = arith.constant 0 : index
    %237 = vector.load %arg6[%c0_64, %c0_65] : memref<128x512xbf16, #tpu.memory_space<vmem>>, vector<128x512xbf16>
    %cst_66 = arith.constant dense<0.000000e+00> : vector<8x512xf32>
    %238 = tpu.matmul %236, %237, %cst_66 {dimension_numbers = #tpu.dot_dimension_numbers<[1], [0], [0], [1], [0, 0, 1, 1], [], []>} : vector<8x128xbf16>, vector<128x512xbf16>, vector<8x512xf32> -> vector<8x512xf32>
    %239 = arith.addf %235, %238 : vector<8x512xf32>
    %240 = vector.extract_strided_slice %233 {offsets = [0, 0], sizes = [8, 384], strides = [1, 1]} : vector<8x512xf32> to vector<8x384xf32>
    %241 = arith.negf %240 : vector<8x384xf32>
    %242 = math.exp %241 : vector<8x384xf32>
    %cst_67 = arith.constant 1.000000e+00 : f32
    %243 = vector.broadcast %cst_67 : f32 to vector<8x384xf32>
    %244 = arith.addf %243, %242 : vector<8x384xf32>
    %245 = arith.divf %243, %244 : vector<8x384xf32>
    %246 = vector.extract_strided_slice %233 {offsets = [0, 384], sizes = [8, 128], strides = [1, 1]} : vector<8x512xf32> to vector<8x128xf32>
    %247 = math.tanh %246 : vector<8x128xf32>
    %248 = vector.extract_strided_slice %245 {offsets = [0, 0], sizes = [8, 128], strides = [1, 1]} : vector<8x384xf32> to vector<8x128xf32>
    %249 = vector.extract_strided_slice %245 {offsets = [0, 128], sizes = [8, 128], strides = [1, 1]} : vector<8x384xf32> to vector<8x128xf32>
    %250 = vector.extract_strided_slice %245 {offsets = [0, 256], sizes = [8, 128], strides = [1, 1]} : vector<8x384xf32> to vector<8x128xf32>
    %251 = arith.mulf %249, %209 : vector<8x128xf32>
    %252 = arith.mulf %248, %247 : vector<8x128xf32>
    %253 = arith.addf %251, %252 : vector<8x128xf32>
    %254 = math.tanh %253 : vector<8x128xf32>
    %255 = arith.mulf %250, %254 : vector<8x128xf32>
    %256 = vector.extract_strided_slice %239 {offsets = [0, 0], sizes = [8, 384], strides = [1, 1]} : vector<8x512xf32> to vector<8x384xf32>
    %257 = arith.negf %256 : vector<8x384xf32>
    %258 = math.exp %257 : vector<8x384xf32>
    %cst_68 = arith.constant 1.000000e+00 : f32
    %259 = vector.broadcast %cst_68 : f32 to vector<8x384xf32>
    %260 = arith.addf %259, %258 : vector<8x384xf32>
    %261 = arith.divf %259, %260 : vector<8x384xf32>
    %262 = vector.extract_strided_slice %239 {offsets = [0, 384], sizes = [8, 128], strides = [1, 1]} : vector<8x512xf32> to vector<8x128xf32>
    %263 = math.tanh %262 : vector<8x128xf32>
    %264 = vector.extract_strided_slice %261 {offsets = [0, 0], sizes = [8, 128], strides = [1, 1]} : vector<8x384xf32> to vector<8x128xf32>
    %265 = vector.extract_strided_slice %261 {offsets = [0, 128], sizes = [8, 128], strides = [1, 1]} : vector<8x384xf32> to vector<8x128xf32>
    %266 = vector.extract_strided_slice %261 {offsets = [0, 256], sizes = [8, 128], strides = [1, 1]} : vector<8x384xf32> to vector<8x128xf32>
    %267 = arith.mulf %265, %215 : vector<8x128xf32>
    %268 = arith.mulf %264, %263 : vector<8x128xf32>
    %269 = arith.addf %267, %268 : vector<8x128xf32>
    %270 = math.tanh %269 : vector<8x128xf32>
    %271 = arith.mulf %266, %270 : vector<8x128xf32>
    %c3_i32 = arith.constant 3 : i32
    %272 = vector.broadcast %c3_i32 : i32 to vector<8x1xi32>
    %273 = arith.cmpi sgt, %10, %272 : vector<8x1xi32>
    %c4_i32 = arith.constant 4 : i32
    %274 = vector.broadcast %c4_i32 : i32 to vector<8x1xi32>
    %275 = arith.cmpi sgt, %10, %274 : vector<8x1xi32>
    %276 = vector.shape_cast %273 : vector<8x1xi1> to vector<8x1xi1>
    %277 = vector.broadcast %276 : vector<8x1xi1> to vector<8x128xi1>
    %278 = arith.select %277, %255, %206 : vector<8x128xi1>, vector<8x128xf32>
    %279 = vector.shape_cast %273 : vector<8x1xi1> to vector<8x1xi1>
    %280 = vector.broadcast %279 : vector<8x1xi1> to vector<8x128xi1>
    %281 = arith.select %280, %253, %209 : vector<8x128xi1>, vector<8x128xf32>
    %282 = vector.shape_cast %275 : vector<8x1xi1> to vector<8x1xi1>
    %283 = vector.broadcast %282 : vector<8x1xi1> to vector<8x128xi1>
    %284 = arith.select %283, %271, %212 : vector<8x128xi1>, vector<8x128xf32>
    %285 = vector.shape_cast %275 : vector<8x1xi1> to vector<8x1xi1>
    %286 = vector.broadcast %285 : vector<8x1xi1> to vector<8x128xi1>
    %287 = arith.select %286, %269, %215 : vector<8x128xi1>, vector<8x128xf32>
    %cst_69 = arith.constant 0.000000e+00 : f32
    %288 = vector.shape_cast %273 : vector<8x1xi1> to vector<8x1xi1>
    %289 = vector.broadcast %288 : vector<8x1xi1> to vector<8x128xi1>
    %290 = vector.broadcast %cst_69 : f32 to vector<8x128xf32>
    %291 = arith.select %289, %255, %290 : vector<8x128xi1>, vector<8x128xf32>
    %292 = arith.truncf %291 : vector<8x128xf32> to vector<8x128xbf16>
    %c24_70 = arith.constant 24 : index
    %c0_71 = arith.constant 0 : index
    %293 = vector.load %arg13[%c24_70, %c0_71] : memref<64x256xbf16, #tpu.memory_space<vmem>>, vector<8x128xbf16>
    tpu.vector_store %arg13[%c24_70, %c0_71], %292 {strides = array<i32>} : memref<64x256xbf16, #tpu.memory_space<vmem>>, vector<8x128xbf16>,
    %cst_72 = arith.constant 0.000000e+00 : f32
    %294 = vector.shape_cast %275 : vector<8x1xi1> to vector<8x1xi1>
    %295 = vector.broadcast %294 : vector<8x1xi1> to vector<8x128xi1>
    %296 = vector.broadcast %cst_72 : f32 to vector<8x128xf32>
    %297 = arith.select %295, %271, %296 : vector<8x128xi1>, vector<8x128xf32>
    %298 = arith.truncf %297 : vector<8x128xf32> to vector<8x128xbf16>
    %c32_73 = arith.constant 32 : index
    %c128_74 = arith.constant 128 : index
    %299 = vector.load %arg13[%c32_73, %c128_74] : memref<64x256xbf16, #tpu.memory_space<vmem>>, vector<8x128xbf16>
    tpu.vector_store %arg13[%c32_73, %c128_74], %298 {strides = array<i32>} : memref<64x256xbf16, #tpu.memory_space<vmem>>, vector<8x128xbf16>,
    %c32_75 = arith.constant 32 : index
    %c0_76 = arith.constant 0 : index
    %300 = vector.load %arg12[%c32_75, %c0_76] : memref<64x1024xbf16, #tpu.memory_space<vmem>>, vector<8x512xbf16>
    %301 = arith.extf %300 : vector<8x512xbf16> to vector<8x512xf32>
    %302 = arith.truncf %278 : vector<8x128xf32> to vector<8x128xbf16>
    %c0_77 = arith.constant 0 : index
    %c0_78 = arith.constant 0 : index
    %303 = vector.load %arg5[%c0_77, %c0_78] : memref<128x512xbf16, #tpu.memory_space<vmem>>, vector<128x512xbf16>
    %cst_79 = arith.constant dense<0.000000e+00> : vector<8x512xf32>
    %304 = tpu.matmul %302, %303, %cst_79 {dimension_numbers = #tpu.dot_dimension_numbers<[1], [0], [0], [1], [0, 0, 1, 1], [], []>} : vector<8x128xbf16>, vector<128x512xbf16>, vector<8x512xf32> -> vector<8x512xf32>
    %305 = arith.addf %301, %304 : vector<8x512xf32>
    %c24_80 = arith.constant 24 : index
    %c512_81 = arith.constant 512 : index
    %306 = vector.load %arg12[%c24_80, %c512_81] : memref<64x1024xbf16, #tpu.memory_space<vmem>>, vector<8x512xbf16>
    %307 = arith.extf %306 : vector<8x512xbf16> to vector<8x512xf32>
    %308 = arith.truncf %284 : vector<8x128xf32> to vector<8x128xbf16>
    %c0_82 = arith.constant 0 : index
    %c0_83 = arith.constant 0 : index
    %309 = vector.load %arg6[%c0_82, %c0_83] : memref<128x512xbf16, #tpu.memory_space<vmem>>, vector<128x512xbf16>
    %cst_84 = arith.constant dense<0.000000e+00> : vector<8x512xf32>
    %310 = tpu.matmul %308, %309, %cst_84 {dimension_numbers = #tpu.dot_dimension_numbers<[1], [0], [0], [1], [0, 0, 1, 1], [], []>} : vector<8x128xbf16>, vector<128x512xbf16>, vector<8x512xf32> -> vector<8x512xf32>
    %311 = arith.addf %307, %310 : vector<8x512xf32>
    %312 = vector.extract_strided_slice %305 {offsets = [0, 0], sizes = [8, 384], strides = [1, 1]} : vector<8x512xf32> to vector<8x384xf32>
    %313 = arith.negf %312 : vector<8x384xf32>
    %314 = math.exp %313 : vector<8x384xf32>
    %cst_85 = arith.constant 1.000000e+00 : f32
    %315 = vector.broadcast %cst_85 : f32 to vector<8x384xf32>
    %316 = arith.addf %315, %314 : vector<8x384xf32>
    %317 = arith.divf %315, %316 : vector<8x384xf32>
    %318 = vector.extract_strided_slice %305 {offsets = [0, 384], sizes = [8, 128], strides = [1, 1]} : vector<8x512xf32> to vector<8x128xf32>
    %319 = math.tanh %318 : vector<8x128xf32>
    %320 = vector.extract_strided_slice %317 {offsets = [0, 0], sizes = [8, 128], strides = [1, 1]} : vector<8x384xf32> to vector<8x128xf32>
    %321 = vector.extract_strided_slice %317 {offsets = [0, 128], sizes = [8, 128], strides = [1, 1]} : vector<8x384xf32> to vector<8x128xf32>
    %322 = vector.extract_strided_slice %317 {offsets = [0, 256], sizes = [8, 128], strides = [1, 1]} : vector<8x384xf32> to vector<8x128xf32>
    %323 = arith.mulf %321, %281 : vector<8x128xf32>
    %324 = arith.mulf %320, %319 : vector<8x128xf32>
    %325 = arith.addf %323, %324 : vector<8x128xf32>
    %326 = math.tanh %325 : vector<8x128xf32>
    %327 = arith.mulf %322, %326 : vector<8x128xf32>
    %328 = vector.extract_strided_slice %311 {offsets = [0, 0], sizes = [8, 384], strides = [1, 1]} : vector<8x512xf32> to vector<8x384xf32>
    %329 = arith.negf %328 : vector<8x384xf32>
    %330 = math.exp %329 : vector<8x384xf32>
    %cst_86 = arith.constant 1.000000e+00 : f32
    %331 = vector.broadcast %cst_86 : f32 to vector<8x384xf32>
    %332 = arith.addf %331, %330 : vector<8x384xf32>
    %333 = arith.divf %331, %332 : vector<8x384xf32>
    %334 = vector.extract_strided_slice %311 {offsets = [0, 384], sizes = [8, 128], strides = [1, 1]} : vector<8x512xf32> to vector<8x128xf32>
    %335 = math.tanh %334 : vector<8x128xf32>
    %336 = vector.extract_strided_slice %333 {offsets = [0, 0], sizes = [8, 128], strides = [1, 1]} : vector<8x384xf32> to vector<8x128xf32>
    %337 = vector.extract_strided_slice %333 {offsets = [0, 128], sizes = [8, 128], strides = [1, 1]} : vector<8x384xf32> to vector<8x128xf32>
    %338 = vector.extract_strided_slice %333 {offsets = [0, 256], sizes = [8, 128], strides = [1, 1]} : vector<8x384xf32> to vector<8x128xf32>
    %339 = arith.mulf %337, %287 : vector<8x128xf32>
    %340 = arith.mulf %336, %335 : vector<8x128xf32>
    %341 = arith.addf %339, %340 : vector<8x128xf32>
    %342 = math.tanh %341 : vector<8x128xf32>
    %343 = arith.mulf %338, %342 : vector<8x128xf32>
    %c4_i32_87 = arith.constant 4 : i32
    %344 = vector.broadcast %c4_i32_87 : i32 to vector<8x1xi32>
    %345 = arith.cmpi sgt, %10, %344 : vector<8x1xi32>
    %c3_i32_88 = arith.constant 3 : i32
    %346 = vector.broadcast %c3_i32_88 : i32 to vector<8x1xi32>
    %347 = arith.cmpi sgt, %10, %346 : vector<8x1xi32>
    %348 = vector.shape_cast %345 : vector<8x1xi1> to vector<8x1xi1>
    %349 = vector.broadcast %348 : vector<8x1xi1> to vector<8x128xi1>
    %350 = arith.select %349, %327, %278 : vector<8x128xi1>, vector<8x128xf32>
    %351 = vector.shape_cast %345 : vector<8x1xi1> to vector<8x1xi1>
    %352 = vector.broadcast %351 : vector<8x1xi1> to vector<8x128xi1>
    %353 = arith.select %352, %325, %281 : vector<8x128xi1>, vector<8x128xf32>
    %354 = vector.shape_cast %347 : vector<8x1xi1> to vector<8x1xi1>
    %355 = vector.broadcast %354 : vector<8x1xi1> to vector<8x128xi1>
    %356 = arith.select %355, %343, %284 : vector<8x128xi1>, vector<8x128xf32>
    %357 = vector.shape_cast %347 : vector<8x1xi1> to vector<8x1xi1>
    %358 = vector.broadcast %357 : vector<8x1xi1> to vector<8x128xi1>
    %359 = arith.select %358, %341, %287 : vector<8x128xi1>, vector<8x128xf32>
    %cst_89 = arith.constant 0.000000e+00 : f32
    %360 = vector.shape_cast %345 : vector<8x1xi1> to vector<8x1xi1>
    %361 = vector.broadcast %360 : vector<8x1xi1> to vector<8x128xi1>
    %362 = vector.broadcast %cst_89 : f32 to vector<8x128xf32>
    %363 = arith.select %361, %327, %362 : vector<8x128xi1>, vector<8x128xf32>
    %364 = arith.truncf %363 : vector<8x128xf32> to vector<8x128xbf16>
    %c32_90 = arith.constant 32 : index
    %c0_91 = arith.constant 0 : index
    %365 = vector.load %arg13[%c32_90, %c0_91] : memref<64x256xbf16, #tpu.memory_space<vmem>>, vector<8x128xbf16>
    tpu.vector_store %arg13[%c32_90, %c0_91], %364 {strides = array<i32>} : memref<64x256xbf16, #tpu.memory_space<vmem>>, vector<8x128xbf16>,
    %cst_92 = arith.constant 0.000000e+00 : f32
    %366 = vector.shape_cast %347 : vector<8x1xi1> to vector<8x1xi1>
    %367 = vector.broadcast %366 : vector<8x1xi1> to vector<8x128xi1>
    %368 = vector.broadcast %cst_92 : f32 to vector<8x128xf32>
    %369 = arith.select %367, %343, %368 : vector<8x128xi1>, vector<8x128xf32>
    %370 = arith.truncf %369 : vector<8x128xf32> to vector<8x128xbf16>
    %c24_93 = arith.constant 24 : index
    %c128_94 = arith.constant 128 : index
    %371 = vector.load %arg13[%c24_93, %c128_94] : memref<64x256xbf16, #tpu.memory_space<vmem>>, vector<8x128xbf16>
    tpu.vector_store %arg13[%c24_93, %c128_94], %370 {strides = array<i32>} : memref<64x256xbf16, #tpu.memory_space<vmem>>, vector<8x128xbf16>,
    %c40_95 = arith.constant 40 : index
    %c0_96 = arith.constant 0 : index
    %372 = vector.load %arg12[%c40_95, %c0_96] : memref<64x1024xbf16, #tpu.memory_space<vmem>>, vector<8x512xbf16>
    %373 = arith.extf %372 : vector<8x512xbf16> to vector<8x512xf32>
    %374 = arith.truncf %350 : vector<8x128xf32> to vector<8x128xbf16>
    %c0_97 = arith.constant 0 : index
    %c0_98 = arith.constant 0 : index
    %375 = vector.load %arg5[%c0_97, %c0_98] : memref<128x512xbf16, #tpu.memory_space<vmem>>, vector<128x512xbf16>
    %cst_99 = arith.constant dense<0.000000e+00> : vector<8x512xf32>
    %376 = tpu.matmul %374, %375, %cst_99 {dimension_numbers = #tpu.dot_dimension_numbers<[1], [0], [0], [1], [0, 0, 1, 1], [], []>} : vector<8x128xbf16>, vector<128x512xbf16>, vector<8x512xf32> -> vector<8x512xf32>
    %377 = arith.addf %373, %376 : vector<8x512xf32>
    %c16_100 = arith.constant 16 : index
    %c512_101 = arith.constant 512 : index
    %378 = vector.load %arg12[%c16_100, %c512_101] : memref<64x1024xbf16, #tpu.memory_space<vmem>>, vector<8x512xbf16>
    %379 = arith.extf %378 : vector<8x512xbf16> to vector<8x512xf32>
    %380 = arith.truncf %356 : vector<8x128xf32> to vector<8x128xbf16>
    %c0_102 = arith.constant 0 : index
    %c0_103 = arith.constant 0 : index
    %381 = vector.load %arg6[%c0_102, %c0_103] : memref<128x512xbf16, #tpu.memory_space<vmem>>, vector<128x512xbf16>
    %cst_104 = arith.constant dense<0.000000e+00> : vector<8x512xf32>
    %382 = tpu.matmul %380, %381, %cst_104 {dimension_numbers = #tpu.dot_dimension_numbers<[1], [0], [0], [1], [0, 0, 1, 1], [], []>} : vector<8x128xbf16>, vector<128x512xbf16>, vector<8x512xf32> -> vector<8x512xf32>
    %383 = arith.addf %379, %382 : vector<8x512xf32>
    %384 = vector.extract_strided_slice %377 {offsets = [0, 0], sizes = [8, 384], strides = [1, 1]} : vector<8x512xf32> to vector<8x384xf32>
    %385 = arith.negf %384 : vector<8x384xf32>
    %386 = math.exp %385 : vector<8x384xf32>
    %cst_105 = arith.constant 1.000000e+00 : f32
    %387 = vector.broadcast %cst_105 : f32 to vector<8x384xf32>
    %388 = arith.addf %387, %386 : vector<8x384xf32>
    %389 = arith.divf %387, %388 : vector<8x384xf32>
    %390 = vector.extract_strided_slice %377 {offsets = [0, 384], sizes = [8, 128], strides = [1, 1]} : vector<8x512xf32> to vector<8x128xf32>
    %391 = math.tanh %390 : vector<8x128xf32>
    %392 = vector.extract_strided_slice %389 {offsets = [0, 0], sizes = [8, 128], strides = [1, 1]} : vector<8x384xf32> to vector<8x128xf32>
    %393 = vector.extract_strided_slice %389 {offsets = [0, 128], sizes = [8, 128], strides = [1, 1]} : vector<8x384xf32> to vector<8x128xf32>
    %394 = vector.extract_strided_slice %389 {offsets = [0, 256], sizes = [8, 128], strides = [1, 1]} : vector<8x384xf32> to vector<8x128xf32>
    %395 = arith.mulf %393, %353 : vector<8x128xf32>
    %396 = arith.mulf %392, %391 : vector<8x128xf32>
    %397 = arith.addf %395, %396 : vector<8x128xf32>
    %398 = math.tanh %397 : vector<8x128xf32>
    %399 = arith.mulf %394, %398 : vector<8x128xf32>
    %400 = vector.extract_strided_slice %383 {offsets = [0, 0], sizes = [8, 384], strides = [1, 1]} : vector<8x512xf32> to vector<8x384xf32>
    %401 = arith.negf %400 : vector<8x384xf32>
    %402 = math.exp %401 : vector<8x384xf32>
    %cst_106 = arith.constant 1.000000e+00 : f32
    %403 = vector.broadcast %cst_106 : f32 to vector<8x384xf32>
    %404 = arith.addf %403, %402 : vector<8x384xf32>
    %405 = arith.divf %403, %404 : vector<8x384xf32>
    %406 = vector.extract_strided_slice %383 {offsets = [0, 384], sizes = [8, 128], strides = [1, 1]} : vector<8x512xf32> to vector<8x128xf32>
    %407 = math.tanh %406 : vector<8x128xf32>
    %408 = vector.extract_strided_slice %405 {offsets = [0, 0], sizes = [8, 128], strides = [1, 1]} : vector<8x384xf32> to vector<8x128xf32>
    %409 = vector.extract_strided_slice %405 {offsets = [0, 128], sizes = [8, 128], strides = [1, 1]} : vector<8x384xf32> to vector<8x128xf32>
    %410 = vector.extract_strided_slice %405 {offsets = [0, 256], sizes = [8, 128], strides = [1, 1]} : vector<8x384xf32> to vector<8x128xf32>
    %411 = arith.mulf %409, %359 : vector<8x128xf32>
    %412 = arith.mulf %408, %407 : vector<8x128xf32>
    %413 = arith.addf %411, %412 : vector<8x128xf32>
    %414 = math.tanh %413 : vector<8x128xf32>
    %415 = arith.mulf %410, %414 : vector<8x128xf32>
    %c5_i32_107 = arith.constant 5 : i32
    %416 = vector.broadcast %c5_i32_107 : i32 to vector<8x1xi32>
    %417 = arith.cmpi sgt, %10, %416 : vector<8x1xi32>
    %c2_i32_108 = arith.constant 2 : i32
    %418 = vector.broadcast %c2_i32_108 : i32 to vector<8x1xi32>
    %419 = arith.cmpi sgt, %10, %418 : vector<8x1xi32>
    %420 = vector.shape_cast %417 : vector<8x1xi1> to vector<8x1xi1>
    %421 = vector.broadcast %420 : vector<8x1xi1> to vector<8x128xi1>
    %422 = arith.select %421, %399, %350 : vector<8x128xi1>, vector<8x128xf32>
    %423 = vector.shape_cast %417 : vector<8x1xi1> to vector<8x1xi1>
    %424 = vector.broadcast %423 : vector<8x1xi1> to vector<8x128xi1>
    %425 = arith.select %424, %397, %353 : vector<8x128xi1>, vector<8x128xf32>
    %426 = vector.shape_cast %419 : vector<8x1xi1> to vector<8x1xi1>
    %427 = vector.broadcast %426 : vector<8x1xi1> to vector<8x128xi1>
    %428 = arith.select %427, %415, %356 : vector<8x128xi1>, vector<8x128xf32>
    %429 = vector.shape_cast %419 : vector<8x1xi1> to vector<8x1xi1>
    %430 = vector.broadcast %429 : vector<8x1xi1> to vector<8x128xi1>
    %431 = arith.select %430, %413, %359 : vector<8x128xi1>, vector<8x128xf32>
    %cst_109 = arith.constant 0.000000e+00 : f32
    %432 = vector.shape_cast %417 : vector<8x1xi1> to vector<8x1xi1>
    %433 = vector.broadcast %432 : vector<8x1xi1> to vector<8x128xi1>
    %434 = vector.broadcast %cst_109 : f32 to vector<8x128xf32>
    %435 = arith.select %433, %399, %434 : vector<8x128xi1>, vector<8x128xf32>
    %436 = arith.truncf %435 : vector<8x128xf32> to vector<8x128xbf16>
    %c40_110 = arith.constant 40 : index
    %c0_111 = arith.constant 0 : index
    %437 = vector.load %arg13[%c40_110, %c0_111] : memref<64x256xbf16, #tpu.memory_space<vmem>>, vector<8x128xbf16>
    tpu.vector_store %arg13[%c40_110, %c0_111], %436 {strides = array<i32>} : memref<64x256xbf16, #tpu.memory_space<vmem>>, vector<8x128xbf16>,
    %cst_112 = arith.constant 0.000000e+00 : f32
    %438 = vector.shape_cast %419 : vector<8x1xi1> to vector<8x1xi1>
    %439 = vector.broadcast %438 : vector<8x1xi1> to vector<8x128xi1>
    %440 = vector.broadcast %cst_112 : f32 to vector<8x128xf32>
    %441 = arith.select %439, %415, %440 : vector<8x128xi1>, vector<8x128xf32>
    %442 = arith.truncf %441 : vector<8x128xf32> to vector<8x128xbf16>
    %c16_113 = arith.constant 16 : index
    %c128_114 = arith.constant 128 : index
    %443 = vector.load %arg13[%c16_113, %c128_114] : memref<64x256xbf16, #tpu.memory_space<vmem>>, vector<8x128xbf16>
    tpu.vector_store %arg13[%c16_113, %c128_114], %442 {strides = array<i32>} : memref<64x256xbf16, #tpu.memory_space<vmem>>, vector<8x128xbf16>,
    %c48_115 = arith.constant 48 : index
    %c0_116 = arith.constant 0 : index
    %444 = vector.load %arg12[%c48_115, %c0_116] : memref<64x1024xbf16, #tpu.memory_space<vmem>>, vector<8x512xbf16>
    %445 = arith.extf %444 : vector<8x512xbf16> to vector<8x512xf32>
    %446 = arith.truncf %422 : vector<8x128xf32> to vector<8x128xbf16>
    %c0_117 = arith.constant 0 : index
    %c0_118 = arith.constant 0 : index
    %447 = vector.load %arg5[%c0_117, %c0_118] : memref<128x512xbf16, #tpu.memory_space<vmem>>, vector<128x512xbf16>
    %cst_119 = arith.constant dense<0.000000e+00> : vector<8x512xf32>
    %448 = tpu.matmul %446, %447, %cst_119 {dimension_numbers = #tpu.dot_dimension_numbers<[1], [0], [0], [1], [0, 0, 1, 1], [], []>} : vector<8x128xbf16>, vector<128x512xbf16>, vector<8x512xf32> -> vector<8x512xf32>
    %449 = arith.addf %445, %448 : vector<8x512xf32>
    %c8_120 = arith.constant 8 : index
    %c512_121 = arith.constant 512 : index
    %450 = vector.load %arg12[%c8_120, %c512_121] : memref<64x1024xbf16, #tpu.memory_space<vmem>>, vector<8x512xbf16>
    %451 = arith.extf %450 : vector<8x512xbf16> to vector<8x512xf32>
    %452 = arith.truncf %428 : vector<8x128xf32> to vector<8x128xbf16>
    %c0_122 = arith.constant 0 : index
    %c0_123 = arith.constant 0 : index
    %453 = vector.load %arg6[%c0_122, %c0_123] : memref<128x512xbf16, #tpu.memory_space<vmem>>, vector<128x512xbf16>
    %cst_124 = arith.constant dense<0.000000e+00> : vector<8x512xf32>
    %454 = tpu.matmul %452, %453, %cst_124 {dimension_numbers = #tpu.dot_dimension_numbers<[1], [0], [0], [1], [0, 0, 1, 1], [], []>} : vector<8x128xbf16>, vector<128x512xbf16>, vector<8x512xf32> -> vector<8x512xf32>
    %455 = arith.addf %451, %454 : vector<8x512xf32>
    %456 = vector.extract_strided_slice %449 {offsets = [0, 0], sizes = [8, 384], strides = [1, 1]} : vector<8x512xf32> to vector<8x384xf32>
    %457 = arith.negf %456 : vector<8x384xf32>
    %458 = math.exp %457 : vector<8x384xf32>
    %cst_125 = arith.constant 1.000000e+00 : f32
    %459 = vector.broadcast %cst_125 : f32 to vector<8x384xf32>
    %460 = arith.addf %459, %458 : vector<8x384xf32>
    %461 = arith.divf %459, %460 : vector<8x384xf32>
    %462 = vector.extract_strided_slice %449 {offsets = [0, 384], sizes = [8, 128], strides = [1, 1]} : vector<8x512xf32> to vector<8x128xf32>
    %463 = math.tanh %462 : vector<8x128xf32>
    %464 = vector.extract_strided_slice %461 {offsets = [0, 0], sizes = [8, 128], strides = [1, 1]} : vector<8x384xf32> to vector<8x128xf32>
    %465 = vector.extract_strided_slice %461 {offsets = [0, 128], sizes = [8, 128], strides = [1, 1]} : vector<8x384xf32> to vector<8x128xf32>
    %466 = vector.extract_strided_slice %461 {offsets = [0, 256], sizes = [8, 128], strides = [1, 1]} : vector<8x384xf32> to vector<8x128xf32>
    %467 = arith.mulf %465, %425 : vector<8x128xf32>
    %468 = arith.mulf %464, %463 : vector<8x128xf32>
    %469 = arith.addf %467, %468 : vector<8x128xf32>
    %470 = math.tanh %469 : vector<8x128xf32>
    %471 = arith.mulf %466, %470 : vector<8x128xf32>
    %472 = vector.extract_strided_slice %455 {offsets = [0, 0], sizes = [8, 384], strides = [1, 1]} : vector<8x512xf32> to vector<8x384xf32>
    %473 = arith.negf %472 : vector<8x384xf32>
    %474 = math.exp %473 : vector<8x384xf32>
    %cst_126 = arith.constant 1.000000e+00 : f32
    %475 = vector.broadcast %cst_126 : f32 to vector<8x384xf32>
    %476 = arith.addf %475, %474 : vector<8x384xf32>
    %477 = arith.divf %475, %476 : vector<8x384xf32>
    %478 = vector.extract_strided_slice %455 {offsets = [0, 384], sizes = [8, 128], strides = [1, 1]} : vector<8x512xf32> to vector<8x128xf32>
    %479 = math.tanh %478 : vector<8x128xf32>
    %480 = vector.extract_strided_slice %477 {offsets = [0, 0], sizes = [8, 128], strides = [1, 1]} : vector<8x384xf32> to vector<8x128xf32>
    %481 = vector.extract_strided_slice %477 {offsets = [0, 128], sizes = [8, 128], strides = [1, 1]} : vector<8x384xf32> to vector<8x128xf32>
    %482 = vector.extract_strided_slice %477 {offsets = [0, 256], sizes = [8, 128], strides = [1, 1]} : vector<8x384xf32> to vector<8x128xf32>
    %483 = arith.mulf %481, %431 : vector<8x128xf32>
    %484 = arith.mulf %480, %479 : vector<8x128xf32>
    %485 = arith.addf %483, %484 : vector<8x128xf32>
    %486 = math.tanh %485 : vector<8x128xf32>
    %487 = arith.mulf %482, %486 : vector<8x128xf32>
    %c6_i32_127 = arith.constant 6 : i32
    %488 = vector.broadcast %c6_i32_127 : i32 to vector<8x1xi32>
    %489 = arith.cmpi sgt, %10, %488 : vector<8x1xi32>
    %c1_i32_128 = arith.constant 1 : i32
    %490 = vector.broadcast %c1_i32_128 : i32 to vector<8x1xi32>
    %491 = arith.cmpi sgt, %10, %490 : vector<8x1xi32>
    %492 = vector.shape_cast %489 : vector<8x1xi1> to vector<8x1xi1>
    %493 = vector.broadcast %492 : vector<8x1xi1> to vector<8x128xi1>
    %494 = arith.select %493, %471, %422 : vector<8x128xi1>, vector<8x128xf32>
    %495 = vector.shape_cast %489 : vector<8x1xi1> to vector<8x1xi1>
    %496 = vector.broadcast %495 : vector<8x1xi1> to vector<8x128xi1>
    %497 = arith.select %496, %469, %425 : vector<8x128xi1>, vector<8x128xf32>
    %498 = vector.shape_cast %491 : vector<8x1xi1> to vector<8x1xi1>
    %499 = vector.broadcast %498 : vector<8x1xi1> to vector<8x128xi1>
    %500 = arith.select %499, %487, %428 : vector<8x128xi1>, vector<8x128xf32>
    %501 = vector.shape_cast %491 : vector<8x1xi1> to vector<8x1xi1>
    %502 = vector.broadcast %501 : vector<8x1xi1> to vector<8x128xi1>
    %503 = arith.select %502, %485, %431 : vector<8x128xi1>, vector<8x128xf32>
    %cst_129 = arith.constant 0.000000e+00 : f32
    %504 = vector.shape_cast %489 : vector<8x1xi1> to vector<8x1xi1>
    %505 = vector.broadcast %504 : vector<8x1xi1> to vector<8x128xi1>
    %506 = vector.broadcast %cst_129 : f32 to vector<8x128xf32>
    %507 = arith.select %505, %471, %506 : vector<8x128xi1>, vector<8x128xf32>
    %508 = arith.truncf %507 : vector<8x128xf32> to vector<8x128xbf16>
    %c48_130 = arith.constant 48 : index
    %c0_131 = arith.constant 0 : index
    %509 = vector.load %arg13[%c48_130, %c0_131] : memref<64x256xbf16, #tpu.memory_space<vmem>>, vector<8x128xbf16>
    tpu.vector_store %arg13[%c48_130, %c0_131], %508 {strides = array<i32>} : memref<64x256xbf16, #tpu.memory_space<vmem>>, vector<8x128xbf16>,
    %cst_132 = arith.constant 0.000000e+00 : f32
    %510 = vector.shape_cast %491 : vector<8x1xi1> to vector<8x1xi1>
    %511 = vector.broadcast %510 : vector<8x1xi1> to vector<8x128xi1>
    %512 = vector.broadcast %cst_132 : f32 to vector<8x128xf32>
    %513 = arith.select %511, %487, %512 : vector<8x128xi1>, vector<8x128xf32>
    %514 = arith.truncf %513 : vector<8x128xf32> to vector<8x128xbf16>
    %c8_133 = arith.constant 8 : index
    %c128_134 = arith.constant 128 : index
    %515 = vector.load %arg13[%c8_133, %c128_134] : memref<64x256xbf16, #tpu.memory_space<vmem>>, vector<8x128xbf16>
    tpu.vector_store %arg13[%c8_133, %c128_134], %514 {strides = array<i32>} : memref<64x256xbf16, #tpu.memory_space<vmem>>, vector<8x128xbf16>,
    %c56_135 = arith.constant 56 : index
    %c0_136 = arith.constant 0 : index
    %516 = vector.load %arg12[%c56_135, %c0_136] : memref<64x1024xbf16, #tpu.memory_space<vmem>>, vector<8x512xbf16>
    %517 = arith.extf %516 : vector<8x512xbf16> to vector<8x512xf32>
    %518 = arith.truncf %494 : vector<8x128xf32> to vector<8x128xbf16>
    %c0_137 = arith.constant 0 : index
    %c0_138 = arith.constant 0 : index
    %519 = vector.load %arg5[%c0_137, %c0_138] : memref<128x512xbf16, #tpu.memory_space<vmem>>, vector<128x512xbf16>
    %cst_139 = arith.constant dense<0.000000e+00> : vector<8x512xf32>
    %520 = tpu.matmul %518, %519, %cst_139 {dimension_numbers = #tpu.dot_dimension_numbers<[1], [0], [0], [1], [0, 0, 1, 1], [], []>} : vector<8x128xbf16>, vector<128x512xbf16>, vector<8x512xf32> -> vector<8x512xf32>
    %521 = arith.addf %517, %520 : vector<8x512xf32>
    %c0_140 = arith.constant 0 : index
    %c512_141 = arith.constant 512 : index
    %522 = vector.load %arg12[%c0_140, %c512_141] : memref<64x1024xbf16, #tpu.memory_space<vmem>>, vector<8x512xbf16>
    %523 = arith.extf %522 : vector<8x512xbf16> to vector<8x512xf32>
    %524 = arith.truncf %500 : vector<8x128xf32> to vector<8x128xbf16>
    %c0_142 = arith.constant 0 : index
    %c0_143 = arith.constant 0 : index
    %525 = vector.load %arg6[%c0_142, %c0_143] : memref<128x512xbf16, #tpu.memory_space<vmem>>, vector<128x512xbf16>
    %cst_144 = arith.constant dense<0.000000e+00> : vector<8x512xf32>
    %526 = tpu.matmul %524, %525, %cst_144 {dimension_numbers = #tpu.dot_dimension_numbers<[1], [0], [0], [1], [0, 0, 1, 1], [], []>} : vector<8x128xbf16>, vector<128x512xbf16>, vector<8x512xf32> -> vector<8x512xf32>
    %527 = arith.addf %523, %526 : vector<8x512xf32>
    %528 = vector.extract_strided_slice %521 {offsets = [0, 0], sizes = [8, 384], strides = [1, 1]} : vector<8x512xf32> to vector<8x384xf32>
    %529 = arith.negf %528 : vector<8x384xf32>
    %530 = math.exp %529 : vector<8x384xf32>
    %cst_145 = arith.constant 1.000000e+00 : f32
    %531 = vector.broadcast %cst_145 : f32 to vector<8x384xf32>
    %532 = arith.addf %531, %530 : vector<8x384xf32>
    %533 = arith.divf %531, %532 : vector<8x384xf32>
    %534 = vector.extract_strided_slice %521 {offsets = [0, 384], sizes = [8, 128], strides = [1, 1]} : vector<8x512xf32> to vector<8x128xf32>
    %535 = math.tanh %534 : vector<8x128xf32>
    %536 = vector.extract_strided_slice %533 {offsets = [0, 0], sizes = [8, 128], strides = [1, 1]} : vector<8x384xf32> to vector<8x128xf32>
    %537 = vector.extract_strided_slice %533 {offsets = [0, 128], sizes = [8, 128], strides = [1, 1]} : vector<8x384xf32> to vector<8x128xf32>
    %538 = vector.extract_strided_slice %533 {offsets = [0, 256], sizes = [8, 128], strides = [1, 1]} : vector<8x384xf32> to vector<8x128xf32>
    %539 = arith.mulf %537, %497 : vector<8x128xf32>
    %540 = arith.mulf %536, %535 : vector<8x128xf32>
    %541 = arith.addf %539, %540 : vector<8x128xf32>
    %542 = math.tanh %541 : vector<8x128xf32>
    %543 = arith.mulf %538, %542 : vector<8x128xf32>
    %544 = vector.extract_strided_slice %527 {offsets = [0, 0], sizes = [8, 384], strides = [1, 1]} : vector<8x512xf32> to vector<8x384xf32>
    %545 = arith.negf %544 : vector<8x384xf32>
    %546 = math.exp %545 : vector<8x384xf32>
    %cst_146 = arith.constant 1.000000e+00 : f32
    %547 = vector.broadcast %cst_146 : f32 to vector<8x384xf32>
    %548 = arith.addf %547, %546 : vector<8x384xf32>
    %549 = arith.divf %547, %548 : vector<8x384xf32>
    %550 = vector.extract_strided_slice %527 {offsets = [0, 384], sizes = [8, 128], strides = [1, 1]} : vector<8x512xf32> to vector<8x128xf32>
    %551 = math.tanh %550 : vector<8x128xf32>
    %552 = vector.extract_strided_slice %549 {offsets = [0, 0], sizes = [8, 128], strides = [1, 1]} : vector<8x384xf32> to vector<8x128xf32>
    %553 = vector.extract_strided_slice %549 {offsets = [0, 128], sizes = [8, 128], strides = [1, 1]} : vector<8x384xf32> to vector<8x128xf32>
    %554 = vector.extract_strided_slice %549 {offsets = [0, 256], sizes = [8, 128], strides = [1, 1]} : vector<8x384xf32> to vector<8x128xf32>
    %555 = arith.mulf %553, %503 : vector<8x128xf32>
    %556 = arith.mulf %552, %551 : vector<8x128xf32>
    %557 = arith.addf %555, %556 : vector<8x128xf32>
    %558 = math.tanh %557 : vector<8x128xf32>
    %559 = arith.mulf %554, %558 : vector<8x128xf32>
    %c7_i32_147 = arith.constant 7 : i32
    %560 = vector.broadcast %c7_i32_147 : i32 to vector<8x1xi32>
    %561 = arith.cmpi sgt, %10, %560 : vector<8x1xi32>
    %c0_i32_148 = arith.constant 0 : i32
    %562 = vector.broadcast %c0_i32_148 : i32 to vector<8x1xi32>
    %563 = arith.cmpi sgt, %10, %562 : vector<8x1xi32>
    %cst_149 = arith.constant 0.000000e+00 : f32
    %564 = vector.shape_cast %561 : vector<8x1xi1> to vector<8x1xi1>
    %565 = vector.broadcast %564 : vector<8x1xi1> to vector<8x128xi1>
    %566 = vector.broadcast %cst_149 : f32 to vector<8x128xf32>
    %567 = arith.select %565, %543, %566 : vector<8x128xi1>, vector<8x128xf32>
    %568 = arith.truncf %567 : vector<8x128xf32> to vector<8x128xbf16>
    %c56_150 = arith.constant 56 : index
    %c0_151 = arith.constant 0 : index
    %569 = vector.load %arg13[%c56_150, %c0_151] : memref<64x256xbf16, #tpu.memory_space<vmem>>, vector<8x128xbf16>
    tpu.vector_store %arg13[%c56_150, %c0_151], %568 {strides = array<i32>} : memref<64x256xbf16, #tpu.memory_space<vmem>>, vector<8x128xbf16>,
    %cst_152 = arith.constant 0.000000e+00 : f32
    %570 = vector.shape_cast %563 : vector<8x1xi1> to vector<8x1xi1>
    %571 = vector.broadcast %570 : vector<8x1xi1> to vector<8x128xi1>
    %572 = vector.broadcast %cst_152 : f32 to vector<8x128xf32>
    %573 = arith.select %571, %559, %572 : vector<8x128xi1>, vector<8x128xf32>
    %574 = arith.truncf %573 : vector<8x128xf32> to vector<8x128xbf16>
    %c0_153 = arith.constant 0 : index
    %c128_154 = arith.constant 128 : index
    %575 = vector.load %arg13[%c0_153, %c128_154] : memref<64x256xbf16, #tpu.memory_space<vmem>>, vector<8x128xbf16>
    tpu.vector_store %arg13[%c0_153, %c128_154], %574 {strides = array<i32>} : memref<64x256xbf16, #tpu.memory_space<vmem>>, vector<8x128xbf16>,
    %c0_155 = arith.constant 0 : index
    %c0_156 = arith.constant 0 : index
    %576 = vector.load %arg13[%c0_155, %c0_156] : memref<64x256xbf16, #tpu.memory_space<vmem>>, vector<64x256xbf16>
    %577 = arith.extf %576 : vector<64x256xbf16> to vector<64x256xf32>
    %cst_157 = arith.constant dense<0.000000e+00> : vector<64xf32>
    %578 = vector.multi_reduction <add>, %577, %cst_157 [1] : vector<64x256xf32> to vector<64xf32>
    %579 = vector.shape_cast %578 : vector<64xf32> to vector<64x1xf32>
    %cst_158 = arith.constant 1.562500e-02 : f32
    %580 = vector.broadcast %cst_158 : f32 to vector<64x1xf32>
    %581 = arith.mulf %579, %580 : vector<64x1xf32>
    %582 = arith.mulf %577, %577 : vector<64x256xf32>
    %cst_159 = arith.constant dense<0.000000e+00> : vector<64xf32>
    %583 = vector.multi_reduction <add>, %582, %cst_159 [1] : vector<64x256xf32> to vector<64xf32>
    %584 = vector.shape_cast %583 : vector<64xf32> to vector<64x1xf32>
    %cst_160 = arith.constant 1.562500e-02 : f32
    %585 = vector.broadcast %cst_160 : f32 to vector<64x1xf32>
    %586 = arith.mulf %584, %585 : vector<64x1xf32>
    %587 = arith.mulf %581, %581 : vector<64x1xf32>
    %588 = arith.subf %586, %587 : vector<64x1xf32>
    %cst_161 = arith.constant 0.000000e+00 : f32
    %589 = vector.broadcast %cst_161 : f32 to vector<64x1xf32>
    %590 = arith.maximumf %588, %589 : vector<64x1xf32>
    %591 = vector.broadcast %581 : vector<64x1xf32> to vector<64x256xf32>
    %592 = arith.subf %577, %591 : vector<64x256xf32>
    %cst_162 = arith.constant 9.99999974E-6 : f32
    %593 = vector.broadcast %cst_162 : f32 to vector<64x1xf32>
    %594 = arith.addf %590, %593 : vector<64x1xf32>
    %595 = math.rsqrt %594 : vector<64x1xf32>
    %596 = vector.broadcast %595 : vector<64x1xf32> to vector<64x256xf32>
    %597 = arith.mulf %592, %596 : vector<64x256xf32>
    %c0_163 = arith.constant 0 : index
    %c0_164 = arith.constant 0 : index
    %598 = vector.load %arg7[%c0_163, %c0_164] : memref<1x256xf32, #tpu.memory_space<vmem>>, vector<1x256xf32>
    %599 = vector.broadcast %598 : vector<1x256xf32> to vector<64x256xf32>
    %600 = arith.mulf %597, %599 : vector<64x256xf32>
    %c0_165 = arith.constant 0 : index
    %c0_166 = arith.constant 0 : index
    %601 = vector.load %arg8[%c0_165, %c0_166] : memref<1x256xf32, #tpu.memory_space<vmem>>, vector<1x256xf32>
    %602 = vector.broadcast %601 : vector<1x256xf32> to vector<64x256xf32>
    %603 = arith.addf %600, %602 : vector<64x256xf32>
    %604 = arith.truncf %603 : vector<64x256xf32> to vector<64x256xbf16>
    %c0_167 = arith.constant 0 : index
    %c0_168 = arith.constant 0 : index
    %605 = vector.load %arg9[%c0_167, %c0_168] : memref<256x128xbf16, #tpu.memory_space<vmem>>, vector<256x128xbf16>
    %cst_169 = arith.constant dense<0.000000e+00> : vector<64x128xf32>
    %606 = tpu.matmul %604, %605, %cst_169 {dimension_numbers = #tpu.dot_dimension_numbers<[1], [0], [0], [1], [0, 0, 1, 1], [], []>} : vector<64x256xbf16>, vector<256x128xbf16>, vector<64x128xf32> -> vector<64x128xf32>
    %c0_170 = arith.constant 0 : index
    %c0_171 = arith.constant 0 : index
    %607 = vector.load %arg10[%c0_170, %c0_171] : memref<1x128xf32, #tpu.memory_space<vmem>>, vector<1x128xf32>
    %608 = vector.broadcast %607 : vector<1x128xf32> to vector<64x128xf32>
    %609 = arith.addf %606, %608 : vector<64x128xf32>
    %c0_172 = arith.constant 0 : index
    %c0_173 = arith.constant 0 : index
    %c0_174 = arith.constant 0 : index
    %610 = vector.load %arg11[%c0_172, %c0_173, %c0_174] : memref<1x64x128xf32, #tpu.memory_space<vmem>>, vector<1x64x128xf32>
    %611 = vector.shape_cast %610 : vector<1x64x128xf32> to vector<64x128xf32>
    %612 = vector.shape_cast %609 : vector<64x128xf32> to vector<1x64x128xf32>
    tpu.vector_store %arg11[%c0_172, %c0_173, %c0_174], %612 {strides = array<i32>} : memref<1x64x128xf32, #tpu.memory_space<vmem>>, vector<1x64x128xf32>,
    return
  }
  func.func @transform_0(%arg0: i32) -> (i32, i32, i32) {
    %c0_i32 = arith.constant 0 : i32
    %c0_i32_0 = arith.constant 0 : i32
    %c0_i32_1 = arith.constant 0 : i32
    return %arg0, %c0_i32, %c0_i32_0 : i32, i32, i32
  }
  func.func @transform_1(%arg0: i32) -> (i32, i32, i32) {
    %c0_i32 = arith.constant 0 : i32
    %c0_i32_0 = arith.constant 0 : i32
    %c0_i32_1 = arith.constant 0 : i32
    return %arg0, %c0_i32, %c0_i32_0 : i32, i32, i32
  }
  func.func @transform_2(%arg0: i32) -> (i32, i32) {
    %c0_i32 = arith.constant 0 : i32
    %c0_i32_0 = arith.constant 0 : i32
    %c0_i32_1 = arith.constant 0 : i32
    return %c0_i32, %c0_i32_0 : i32, i32
  }
  func.func @transform_3(%arg0: i32) -> (i32, i32) {
    %c0_i32 = arith.constant 0 : i32
    %c0_i32_0 = arith.constant 0 : i32
    %c0_i32_1 = arith.constant 0 : i32
    return %c0_i32, %c0_i32_0 : i32, i32
  }
  func.func @transform_4(%arg0: i32) -> (i32, i32) {
    %c0_i32 = arith.constant 0 : i32
    %c0_i32_0 = arith.constant 0 : i32
    %c0_i32_1 = arith.constant 0 : i32
    return %c0_i32, %c0_i32_0 : i32, i32
  }
  func.func @transform_5(%arg0: i32) -> (i32, i32) {
    %c0_i32 = arith.constant 0 : i32
    %c0_i32_0 = arith.constant 0 : i32
    %c0_i32_1 = arith.constant 0 : i32
    return %c0_i32, %c0_i32_0 : i32, i32
  }
  func.func @transform_6(%arg0: i32) -> (i32, i32) {
    %c0_i32 = arith.constant 0 : i32
    %c0_i32_0 = arith.constant 0 : i32
    %c0_i32_1 = arith.constant 0 : i32
    return %c0_i32, %c0_i32_0 : i32, i32
  }
  func.func @transform_7(%arg0: i32) -> (i32, i32) {
    %c0_i32 = arith.constant 0 : i32
    %c0_i32_0 = arith.constant 0 : i32
    %c0_i32_1 = arith.constant 0 : i32
    return %c0_i32, %c0_i32_0 : i32, i32
  }
  func.func @transform_8(%arg0: i32) -> (i32, i32) {
    %c0_i32 = arith.constant 0 : i32
    %c0_i32_0 = arith.constant 0 : i32
    %c0_i32_1 = arith.constant 0 : i32
    return %c0_i32, %c0_i32_0 : i32, i32
  }
  func.func @transform_9(%arg0: i32) -> (i32, i32) {
    %c0_i32 = arith.constant 0 : i32
    %c0_i32_0 = arith.constant 0 : i32
    %c0_i32_1 = arith.constant 0 : i32
    return %c0_i32, %c0_i32_0 : i32, i32
  }
  func.func @transform_10(%arg0: i32) -> (i32, i32, i32) {
    %c0_i32 = arith.constant 0 : i32
    %c0_i32_0 = arith.constant 0 : i32
    %c0_i32_1 = arith.constant 0 : i32
    return %arg0, %c0_i32, %c0_i32_0 : i32, i32, i32
  }
}

</mosaic_0001>

<llo_original>
// kernel: custom-call
$region0: #{custom-call}
  %s0 = inlined_call_operand.vmem [shape: f32[1024], index: 0, kind: output, shape index: {}]

// kernel: rnn_forward.1
$region0: #{rnn_forward.1}
  #allocation0 [shape = 'u32[]', space=smem, size = 0x4, offset = 0x4, fixed_abs, tag = 'smem constant byte address 0x4 - core index']
  #allocation1 [shape = 'u32[144,128]{1,0:T(1,128)}', space=vmem, size = 0x12000, scoped, tag = 'internal scratch']
  #allocation2 [shape = 'bf16[64,1024]{1,0:T(8,128)(2,1)}', space=vmem, size = 0x20000, scoped, tag = 'scratch operand']
  #allocation3 [shape = 'bf16[64,256]{1,0:T(8,128)(2,1)}', space=vmem, size = 0x8000, scoped, tag = 'scratch operand']
  %s0 = inlined_call_operand.vmem [shape: bf16[1,64,128], index: 0, kind: input, shape index: {}]
  %s1 = inlined_call_operand.vmem [shape: s32[1,8,1], index: 1, kind: input, shape index: {}]
  %s2 = inlined_call_operand.vmem [shape: bf16[128,1024], index: 2, kind: input, shape index: {}]
  %s3 = inlined_call_operand.vmem [shape: f32[1,1024], index: 3, kind: input, shape index: {}]
  %s4 = inlined_call_operand.vmem [shape: bf16[128,512], index: 4, kind: input, shape index: {}]
  %s5 = inlined_call_operand.vmem [shape: bf16[128,512], index: 5, kind: input, shape index: {}]
  %s6 = inlined_call_operand.vmem [shape: f32[1,256], index: 6, kind: input, shape index: {}]
  %s7 = inlined_call_operand.vmem [shape: f32[1,256], index: 7, kind: input, shape index: {}]
  %s8 = inlined_call_operand.vmem [shape: bf16[256,128], index: 8, kind: input, shape index: {}]
  %s9 = inlined_call_operand.vmem [shape: f32[1,128], index: 9, kind: input, shape index: {}]
  %s10 = inlined_call_operand.vmem [shape: f32[1,64,128], index: 10, kind: output, shape index: {}]
  %s11 = sld [smem:[#allocation0]]
  $region50: #{rnn_forward.1} parent=0
    _
  %s13 = ssub.s32 1, %s11
  %s14 = scalar_select 0, %s13, %s11
  // Predicated region
  $region2: #{rnn_forward.1} parent=0 // pred_check
    _
  $region3: #{rnn_forward.1} parent=0 // pred_check_branch
    %16 = sbr.rel (0) target = $region5
  $region4: #{rnn_forward.1} parent=0 // pred_region
    _
  $region5: #{rnn_forward.1} parent=0 // pred_fallthru
    _
  // Predicated region
  $region6: #{rnn_forward.1} parent=0 // pred_check
    _
  $region7: #{rnn_forward.1} parent=0 // pred_check_branch
    %18 = sbr.rel (0) target = $region9
  $region8: #{rnn_forward.1} parent=0 // pred_region
    _
  $region9: #{rnn_forward.1} parent=0 // pred_fallthru
    _
  // Predicated region
  $region10: #{rnn_forward.1} parent=0 // pred_check
    _
  $region11: #{rnn_forward.1} parent=0 // pred_check_branch
    %20 = sbr.rel (0) target = $region13
  $region12: #{rnn_forward.1} parent=0 // pred_region
    _
  $region13: #{rnn_forward.1} parent=0 // pred_fallthru
    _
  // Predicated region
  $region14: #{rnn_forward.1} parent=0 // pred_check
    _
  $region15: #{rnn_forward.1} parent=0 // pred_check_branch
    %22 = sbr.rel (0) target = $region17
  $region16: #{rnn_forward.1} parent=0 // pred_region
    _
  $region17: #{rnn_forward.1} parent=0 // pred_fallthru
    _
  // Predicated region
  $region18: #{rnn_forward.1} parent=0 // pred_check
    _
  $region19: #{rnn_forward.1} parent=0 // pred_check_branch
    %24 = sbr.rel (0) target = $region21
  $region20: #{rnn_forward.1} parent=0 // pred_region
    _
  $region21: #{rnn_forward.1} parent=0 // pred_fallthru
    _
  // Predicated region
  $region22: #{rnn_forward.1} parent=0 // pred_check
    _
  $region23: #{rnn_forward.1} parent=0 // pred_check_branch
    %26 = sbr.rel (0) target = $region25
  $region24: #{rnn_forward.1} parent=0 // pred_region
    _
  $region25: #{rnn_forward.1} parent=0 // pred_fallthru
    _
  // Predicated region
  $region26: #{rnn_forward.1} parent=0 // pred_check
    _
  $region27: #{rnn_forward.1} parent=0 // pred_check_branch
    %28 = sbr.rel (0) target = $region29
  $region28: #{rnn_forward.1} parent=0 // pred_region
    _
  $region29: #{rnn_forward.1} parent=0 // pred_fallthru
    _
  // Predicated region
  $region30: #{rnn_forward.1} parent=0 // pred_check
    _
  $region31: #{rnn_forward.1} parent=0 // pred_check_branch
    %30 = sbr.rel (0) target = $region33
  $region32: #{rnn_forward.1} parent=0 // pred_region
    _
  $region33: #{rnn_forward.1} parent=0 // pred_fallthru
    _
  // Predicated region
  $region34: #{rnn_forward.1} parent=0 // pred_check
    _
  $region35: #{rnn_forward.1} parent=0 // pred_check_branch
    %32 = sbr.rel (0) target = $region37
  $region36: #{rnn_forward.1} parent=0 // pred_region
    _
  $region37: #{rnn_forward.1} parent=0 // pred_fallthru
    _
  // Predicated region
  $region38: #{rnn_forward.1} parent=0 // pred_check
    _
  $region39: #{rnn_forward.1} parent=0 // pred_check_branch
    %34 = sbr.rel (0) target = $region41
  $region40: #{rnn_forward.1} parent=0 // pred_region
    _
  $region41: #{rnn_forward.1} parent=0 // pred_fallthru
    _
  %v36 = vld [vmem:[%s0] sm:$0xf]
  %v37 = vld [vmem:[%s0 + $0x4] sm:$0xf]
  %v38 = vld [vmem:[%s0 + $0x8] sm:$0xf]
  %v39 = vld [vmem:[%s0 + $0xc] sm:$0xf]
  %v40 = vld [vmem:[%s0 + $0x10] sm:$0xf]
  %v41 = vld [vmem:[%s0 + $0x14] sm:$0xf]
  %v42 = vld [vmem:[%s0 + $0x18] sm:$0xf]
  %v43 = vld [vmem:[%s0 + $0x1c] sm:$0xf]
  %v44 = vld [vmem:[%s2] sm:$0xff]
  %v45 = vld [vmem:[%s2 + $0x8] sm:$0xff]
  %v46 = vld [vmem:[%s2 + $0x10] sm:$0xff]
  %v47 = vld [vmem:[%s2 + $0x18] sm:$0xff]
  %v48 = vld [vmem:[%s2 + $0x20] sm:$0xff]
  %v49 = vld [vmem:[%s2 + $0x28] sm:$0xff]
  %v50 = vld [vmem:[%s2 + $0x30] sm:$0xff]
  %v51 = vld [vmem:[%s2 + $0x38] sm:$0xff]
  %v52 = vld [vmem:[%s2 + $0x40] sm:$0xff]
  %v53 = vld [vmem:[%s2 + $0x48] sm:$0xff]
  %v54 = vld [vmem:[%s2 + $0x50] sm:$0xff]
  %v55 = vld [vmem:[%s2 + $0x58] sm:$0xff]
  %v56 = vld [vmem:[%s2 + $0x60] sm:$0xff]
  %v57 = vld [vmem:[%s2 + $0x68] sm:$0xff]
  %v58 = vld [vmem:[%s2 + $0x70] sm:$0xff]
  %v59 = vld [vmem:[%s2 + $0x78] sm:$0xff]
  %v60 = vld [vmem:[%s2 + $0x80] sm:$0xff]
  %v61 = vld [vmem:[%s2 + $0x88] sm:$0xff]
  %v62 = vld [vmem:[%s2 + $0x90] sm:$0xff]
  %v63 = vld [vmem:[%s2 + $0x98] sm:$0xff]
  %v64 = vld [vmem:[%s2 + $0xa0] sm:$0xff]
  %v65 = vld [vmem:[%s2 + $0xa8] sm:$0xff]
  %v66 = vld [vmem:[%s2 + $0xb0] sm:$0xff]
  %v67 = vld [vmem:[%s2 + $0xb8] sm:$0xff]
  %v68 = vld [vmem:[%s2 + $0xc0] sm:$0xff]
  %v69 = vld [vmem:[%s2 + $0xc8] sm:$0xff]
  %v70 = vld [vmem:[%s2 + $0xd0] sm:$0xff]
  %v71 = vld [vmem:[%s2 + $0xd8] sm:$0xff]
  %v72 = vld [vmem:[%s2 + $0xe0] sm:$0xff]
  %v73 = vld [vmem:[%s2 + $0xe8] sm:$0xff]
  %v74 = vld [vmem:[%s2 + $0xf0] sm:$0xff]
  %v75 = vld [vmem:[%s2 + $0xf8] sm:$0xff]
  %v76 = vld [vmem:[%s2 + $0x100] sm:$0xff]
  %v77 = vld [vmem:[%s2 + $0x108] sm:$0xff]
  %v78 = vld [vmem:[%s2 + $0x110] sm:$0xff]
  %v79 = vld [vmem:[%s2 + $0x118] sm:$0xff]
  %v80 = vld [vmem:[%s2 + $0x120] sm:$0xff]
  %v81 = vld [vmem:[%s2 + $0x128] sm:$0xff]
  %v82 = vld [vmem:[%s2 + $0x130] sm:$0xff]
  %v83 = vld [vmem:[%s2 + $0x138] sm:$0xff]
  %v84 = vld [vmem:[%s2 + $0x140] sm:$0xff]
  %v85 = vld [vmem:[%s2 + $0x148] sm:$0xff]
  %v86 = vld [vmem:[%s2 + $0x150] sm:$0xff]
  %v87 = vld [vmem:[%s2 + $0x158] sm:$0xff]
  %v88 = vld [vmem:[%s2 + $0x160] sm:$0xff]
  %v89 = vld [vmem:[%s2 + $0x168] sm:$0xff]
  %v90 = vld [vmem:[%s2 + $0x170] sm:$0xff]
  %v91 = vld [vmem:[%s2 + $0x178] sm:$0xff]
  %v92 = vld [vmem:[%s2 + $0x180] sm:$0xff]
  %v93 = vld [vmem:[%s2 + $0x188] sm:$0xff]
  %v94 = vld [vmem:[%s2 + $0x190] sm:$0xff]
  %v95 = vld [vmem:[%s2 + $0x198] sm:$0xff]
  %v96 = vld [vmem:[%s2 + $0x1a0] sm:$0xff]
  %v97 = vld [vmem:[%s2 + $0x1a8] sm:$0xff]
  %v98 = vld [vmem:[%s2 + $0x1b0] sm:$0xff]
  %v99 = vld [vmem:[%s2 + $0x1b8] sm:$0xff]
  %v100 = vld [vmem:[%s2 + $0x1c0] sm:$0xff]
  %v101 = vld [vmem:[%s2 + $0x1c8] sm:$0xff]
  %v102 = vld [vmem:[%s2 + $0x1d0] sm:$0xff]
  %v103 = vld [vmem:[%s2 + $0x1d8] sm:$0xff]
  %v104 = vld [vmem:[%s2 + $0x1e0] sm:$0xff]
  %v105 = vld [vmem:[%s2 + $0x1e8] sm:$0xff]
  %v106 = vld [vmem:[%s2 + $0x1f0] sm:$0xff]
  %v107 = vld [vmem:[%s2 + $0x1f8] sm:$0xff]
  %v108 = vld [vmem:[%s3] sm:$0xff]
  %v110 = vlaneseq
  %v111 = vshrl.u32 %v110, 7
  %v112 = vsub.s32 0, %v111
  %v113 = vrot.slane %v108, %v112
  %v114 = vlaneseq
  %v115 = vshrl.u32 %v114, 7
  %v116 = vsub.s32 1, %v115
  %v117 = vrot.slane %v108, %v116
  %v118 = vlaneseq
  %v119 = vshrl.u32 %v118, 7
  %v120 = vsub.s32 2, %v119
  %v121 = vrot.slane %v108, %v120
  %v122 = vlaneseq
  %v123 = vshrl.u32 %v122, 7
  %v124 = vsub.s32 3, %v123
  %v125 = vrot.slane %v108, %v124
  %v126 = vlaneseq
  %v127 = vshrl.u32 %v126, 7
  %v128 = vsub.s32 4, %v127
  %v129 = vrot.slane %v108, %v128
  %v130 = vlaneseq
  %v131 = vshrl.u32 %v130, 7
  %v132 = vsub.s32 5, %v131
  %v133 = vrot.slane %v108, %v132
  %v134 = vlaneseq
  %v135 = vshrl.u32 %v134, 7
  %v136 = vsub.s32 6, %v135
  %v137 = vrot.slane %v108, %v136
  %v138 = vlaneseq
  %v139 = vshrl.u32 %v138, 7
  %v140 = vsub.s32 7, %v139
  %v141 = vrot.slane %v108, %v140
  %v158 = vunpack.c.l.b16 %v36
  %v159 = vunpack.c.l.b16 %v37
  %v160 = vunpack.c.l.b16 %v38
  %v161 = vunpack.c.l.b16 %v39
  %v162 = vunpack.c.l.b16 %v40
  %v163 = vunpack.c.l.b16 %v41
  %v164 = vunpack.c.l.b16 %v42
  %v165 = vunpack.c.l.b16 %v43
  %v166 = vpack.c.b16 %v159, %v158
  %v167 = vpack.c.b16 %v161, %v160
  %v168 = vpack.c.b16 %v163, %v162
  %v169 = vpack.c.b16 %v165, %v164
  %v238 = vunpack.c.l.b16 %v44
  %v239 = vunpack.c.h.b16 %v44
  %v240 = vunpack.c.l.b16 %v45
  %v241 = vunpack.c.h.b16 %v45
  %v242 = vunpack.c.l.b16 %v46
  %v243 = vunpack.c.h.b16 %v46
  %v244 = vunpack.c.l.b16 %v47
  %v245 = vunpack.c.h.b16 %v47
  %v246 = vunpack.c.l.b16 %v48
  %v247 = vunpack.c.h.b16 %v48
  %v248 = vunpack.c.l.b16 %v49
  %v249 = vunpack.c.h.b16 %v49
  %v250 = vunpack.c.l.b16 %v50
  %v251 = vunpack.c.h.b16 %v50
  %v252 = vunpack.c.l.b16 %v51
  %v253 = vunpack.c.h.b16 %v51
  %v254 = vunpack.c.l.b16 %v52
  %v255 = vunpack.c.h.b16 %v52
  %v256 = vunpack.c.l.b16 %v53
  %v257 = vunpack.c.h.b16 %v53
  %v258 = vunpack.c.l.b16 %v54
  %v259 = vunpack.c.h.b16 %v54
  %v260 = vunpack.c.l.b16 %v55
  %v261 = vunpack.c.h.b16 %v55
  %v262 = vunpack.c.l.b16 %v56
  %v263 = vunpack.c.h.b16 %v56
  %v264 = vunpack.c.l.b16 %v57
  %v265 = vunpack.c.h.b16 %v57
  %v266 = vunpack.c.l.b16 %v58
  %v267 = vunpack.c.h.b16 %v58
  %v268 = vunpack.c.l.b16 %v59
  %v269 = vunpack.c.h.b16 %v59
  %v270 = vunpack.c.l.b16 %v60
  %v271 = vunpack.c.h.b16 %v60
  %v272 = vunpack.c.l.b16 %v61
  %v273 = vunpack.c.h.b16 %v61
  %v274 = vunpack.c.l.b16 %v62
  %v275 = vunpack.c.h.b16 %v62
  %v276 = vunpack.c.l.b16 %v63
  %v277 = vunpack.c.h.b16 %v63
  %v278 = vunpack.c.l.b16 %v64
  %v279 = vunpack.c.h.b16 %v64
  %v280 = vunpack.c.l.b16 %v65
  %v281 = vunpack.c.h.b16 %v65
  %v282 = vunpack.c.l.b16 %v66
  %v283 = vunpack.c.h.b16 %v66
  %v284 = vunpack.c.l.b16 %v67
  %v285 = vunpack.c.h.b16 %v67
  %v286 = vunpack.c.l.b16 %v68
  %v287 = vunpack.c.h.b16 %v68
  %v288 = vunpack.c.l.b16 %v69
  %v289 = vunpack.c.h.b16 %v69
  %v290 = vunpack.c.l.b16 %v70
  %v291 = vunpack.c.h.b16 %v70
  %v292 = vunpack.c.l.b16 %v71
  %v293 = vunpack.c.h.b16 %v71
  %v294 = vunpack.c.l.b16 %v72
  %v295 = vunpack.c.h.b16 %v72
  %v296 = vunpack.c.l.b16 %v73
  %v297 = vunpack.c.h.b16 %v73
  %v298 = vunpack.c.l.b16 %v74
  %v299 = vunpack.c.h.b16 %v74
  %v300 = vunpack.c.l.b16 %v75
  %v301 = vunpack.c.h.b16 %v75
  %v302 = vunpack.c.l.b16 %v76
  %v303 = vunpack.c.h.b16 %v76
  %v304 = vunpack.c.l.b16 %v77
  %v305 = vunpack.c.h.b16 %v77
  %v306 = vunpack.c.l.b16 %v78
  %v307 = vunpack.c.h.b16 %v78
  %v308 = vunpack.c.l.b16 %v79
  %v309 = vunpack.c.h.b16 %v79
  %v310 = vunpack.c.l.b16 %v80
  %v311 = vunpack.c.h.b16 %v80
  %v312 = vunpack.c.l.b16 %v81
  %v313 = vunpack.c.h.b16 %v81
  %v314 = vunpack.c.l.b16 %v82
  %v315 = vunpack.c.h.b16 %v82
  %v316 = vunpack.c.l.b16 %v83
  %v317 = vunpack.c.h.b16 %v83
  %v318 = vunpack.c.l.b16 %v84
  %v319 = vunpack.c.h.b16 %v84
  %v320 = vunpack.c.l.b16 %v85
  %v321 = vunpack.c.h.b16 %v85
  %v322 = vunpack.c.l.b16 %v86
  %v323 = vunpack.c.h.b16 %v86
  %v324 = vunpack.c.l.b16 %v87
  %v325 = vunpack.c.h.b16 %v87
  %v326 = vunpack.c.l.b16 %v88
  %v327 = vunpack.c.h.b16 %v88
  %v328 = vunpack.c.l.b16 %v89
  %v329 = vunpack.c.h.b16 %v89
  %v330 = vunpack.c.l.b16 %v90
  %v331 = vunpack.c.h.b16 %v90
  %v332 = vunpack.c.l.b16 %v91
  %v333 = vunpack.c.h.b16 %v91
  %v334 = vunpack.c.l.b16 %v92
  %v335 = vunpack.c.h.b16 %v92
  %v336 = vunpack.c.l.b16 %v93
  %v337 = vunpack.c.h.b16 %v93
  %v338 = vunpack.c.l.b16 %v94
  %v339 = vunpack.c.h.b16 %v94
  %v340 = vunpack.c.l.b16 %v95
  %v341 = vunpack.c.h.b16 %v95
  %v342 = vunpack.c.l.b16 %v96
  %v343 = vunpack.c.h.b16 %v96
  %v344 = vunpack.c.l.b16 %v97
  %v345 = vunpack.c.h.b16 %v97
  %v346 = vunpack.c.l.b16 %v98
  %v347 = vunpack.c.h.b16 %v98
  %v348 = vunpack.c.l.b16 %v99
  %v349 = vunpack.c.h.b16 %v99
  %v350 = vunpack.c.l.b16 %v100
  %v351 = vunpack.c.h.b16 %v100
  %v352 = vunpack.c.l.b16 %v101
  %v353 = vunpack.c.h.b16 %v101
  %v354 = vunpack.c.l.b16 %v102
  %v355 = vunpack.c.h.b16 %v102
  %v356 = vunpack.c.l.b16 %v103
  %v357 = vunpack.c.h.b16 %v103
  %v358 = vunpack.c.l.b16 %v104
  %v359 = vunpack.c.h.b16 %v104
  %v360 = vunpack.c.l.b16 %v105
  %v361 = vunpack.c.h.b16 %v105
  %v362 = vunpack.c.l.b16 %v106
  %v363 = vunpack.c.h.b16 %v106
  %v364 = vunpack.c.l.b16 %v107
  %v365 = vunpack.c.h.b16 %v107
  %v366 = vpack.c.b16 %v246, %v238
  %v367 = vpack.c.b16 %v247, %v239
  %v368 = vpack.c.b16 %v248, %v240
  %v369 = vpack.c.b16 %v249, %v241
  %v370 = vpack.c.b16 %v250, %v242
  %v371 = vpack.c.b16 %v251, %v243
  %v372 = vpack.c.b16 %v252, %v244
  %v373 = vpack.c.b16 %v253, %v245
  %v374 = vpack.c.b16 %v262, %v254
  %v375 = vpack.c.b16 %v263, %v255
  %v376 = vpack.c.b16 %v264, %v256
  %v377 = vpack.c.b16 %v265, %v257
  %v378 = vpack.c.b16 %v266, %v258
  %v379 = vpack.c.b16 %v267, %v259
  %v380 = vpack.c.b16 %v268, %v260
  %v381 = vpack.c.b16 %v269, %v261
  %v382 = vpack.c.b16 %v278, %v270
  %v383 = vpack.c.b16 %v279, %v271
  %v384 = vpack.c.b16 %v280, %v272
  %v385 = vpack.c.b16 %v281, %v273
  %v386 = vpack.c.b16 %v282, %v274
  %v387 = vpack.c.b16 %v283, %v275
  %v388 = vpack.c.b16 %v284, %v276
  %v389 = vpack.c.b16 %v285, %v277
  %v390 = vpack.c.b16 %v294, %v286
  %v391 = vpack.c.b16 %v295, %v287
  %v392 = vpack.c.b16 %v296, %v288
  %v393 = vpack.c.b16 %v297, %v289
  %v394 = vpack.c.b16 %v298, %v290
  %v395 = vpack.c.b16 %v299, %v291
  %v396 = vpack.c.b16 %v300, %v292
  %v397 = vpack.c.b16 %v301, %v293
  %v398 = vpack.c.b16 %v310, %v302
  %v399 = vpack.c.b16 %v311, %v303
  %v400 = vpack.c.b16 %v312, %v304
  %v401 = vpack.c.b16 %v313, %v305
  %v402 = vpack.c.b16 %v314, %v306
  %v403 = vpack.c.b16 %v315, %v307
  %v404 = vpack.c.b16 %v316, %v308
  %v405 = vpack.c.b16 %v317, %v309
  %v406 = vpack.c.b16 %v326, %v318
  %v407 = vpack.c.b16 %v327, %v319
  %v408 = vpack.c.b16 %v328, %v320
  %v409 = vpack.c.b16 %v329, %v321
  %v410 = vpack.c.b16 %v330, %v322
  %v411 = vpack.c.b16 %v331, %v323
  %v412 = vpack.c.b16 %v332, %v324
  %v413 = vpack.c.b16 %v333, %v325
  %v414 = vpack.c.b16 %v342, %v334
  %v415 = vpack.c.b16 %v343, %v335
  %v416 = vpack.c.b16 %v344, %v336
  %v417 = vpack.c.b16 %v345, %v337
  %v418 = vpack.c.b16 %v346, %v338
  %v419 = vpack.c.b16 %v347, %v339
  %v420 = vpack.c.b16 %v348, %v340
  %v421 = vpack.c.b16 %v349, %v341
  %v422 = vpack.c.b16 %v358, %v350
  %v423 = vpack.c.b16 %v359, %v351
  %v424 = vpack.c.b16 %v360, %v352
  %v425 = vpack.c.b16 %v361, %v353
  %v426 = vpack.c.b16 %v362, %v354
  %v427 = vpack.c.b16 %v363, %v355
  %v428 = vpack.c.b16 %v364, %v356
  %v429 = vpack.c.b16 %v365, %v357
  %494 = vmatprep.subr.bf16.mxu0 %v423
  %495 = vmatpush1.bf16.msra.mxu0 %v422
  %496 = vmatprep.subr.bf16.mxu0 %v415
  %497 = vmatpush1.bf16.msra.mxu0 %v414
  %498 = vmatprep.subr.bf16.mxu0 %v407
  %499 = vmatpush1.bf16.msra.mxu0 %v406
  %500 = vmatprep.subr.bf16.mxu0 %v399
  %501 = vmatpush1.bf16.msra.mxu0 %v398
  %502 = vmatprep.subr.bf16.mxu0 %v391
  %503 = vmatpush1.bf16.msra.mxu0 %v390
  %504 = vmatprep.subr.bf16.mxu0 %v383
  %505 = vmatpush1.bf16.msra.mxu0 %v382
  %506 = vmatprep.subr.bf16.mxu0 %v375
  %507 = vmatpush1.bf16.msra.mxu0 %v374
  %508 = vmatprep.subr.bf16.mxu0 %v367
  %509 = vmatpush1.bf16.msra.mxu0 %v366
  %510 = vmatprep.subr.bf16.mxu0 0
  %511 = vmatpush2.bf16.msra.mxu0 0
  %512 = vmatprep.subr.bf16.mxu0 0
  %513 = vmatpush2.bf16.msra.mxu0 0
  %514 = vmatprep.subr.bf16.mxu0 0
  %515 = vmatpush2.bf16.msra.mxu0 0
  %516 = vmatprep.subr.bf16.mxu0 0
  %517 = vmatpush2.bf16.msra.mxu0 0
  %518 = vmatprep.subr.bf16.mxu0 0
  %519 = vmatpush2.bf16.msra.mxu0 0
  %520 = vmatprep.subr.bf16.mxu0 0
  %521 = vmatpush2.bf16.msra.mxu0 0
  %522 = vmatprep.subr.bf16.mxu0 0
  %523 = vmatpush2.bf16.msra.mxu0 0
  %524 = vmatprep.subr.bf16.mxu0 0
  %525 = vmatpush2.bf16.msra.mxu0 0
  %526 = vmatprep.mubr.bf16.mxu0 0
  %527 = vmatmul.mubr.bf16.gmra.mxu0 %v166
  %v528 = vpop.f32.mrf.mxu0
  %v529 = vadd.f32 %v113, %v528
  %v530 = vpop.f32.mrf.mxu0
  %v531 = vadd.f32 %v117, %v530
  %v532 = vpop.f32.mrf.mxu0
  %v533 = vadd.f32 %v113, %v532
  %v534 = vpop.f32.mrf.mxu0
  %v535 = vadd.f32 %v117, %v534
  %536 = vmatprep.mubr.bf16.mxu0 0
  %537 = vmatmul.mubr.bf16.gmra.mxu0 %v167
  %v538 = vpop.f32.mrf.mxu0
  %v539 = vadd.f32 %v113, %v538
  %v540 = vpop.f32.mrf.mxu0
  %v541 = vadd.f32 %v117, %v540
  %v542 = vpop.f32.mrf.mxu0
  %v543 = vadd.f32 %v113, %v542
  %v544 = vpop.f32.mrf.mxu0
  %v545 = vadd.f32 %v117, %v544
  %546 = vmatprep.mubr.bf16.mxu0 0
  %547 = vmatmul.mubr.bf16.gmra.mxu0 %v168
  %v548 = vpop.f32.mrf.mxu0
  %v549 = vadd.f32 %v113, %v548
  %v550 = vpop.f32.mrf.mxu0
  %v551 = vadd.f32 %v117, %v550
  %v552 = vpop.f32.mrf.mxu0
  %v553 = vadd.f32 %v113, %v552
  %v554 = vpop.f32.mrf.mxu0
  %v555 = vadd.f32 %v117, %v554
  %556 = vmatprep.mubr.bf16.mxu0 0
  %557 = vmatmul.mubr.bf16.gmra.mxu0 %v169
  %v558 = vpop.f32.mrf.mxu0
  %v559 = vadd.f32 %v113, %v558
  %v560 = vpop.f32.mrf.mxu0
  %v561 = vadd.f32 %v117, %v560
  %v562 = vpop.f32.mrf.mxu0
  %v563 = vadd.f32 %v113, %v562
  %v564 = vpop.f32.mrf.mxu0
  %v565 = vadd.f32 %v117, %v564
  %566 = vdwg.mxu0
  %567 = vmatprep.subr.bf16.mxu0 %v425
  %568 = vmatpush1.bf16.msra.mxu0 %v424
  %569 = vmatprep.subr.bf16.mxu0 %v417
  %570 = vmatpush1.bf16.msra.mxu0 %v416
  %571 = vmatprep.subr.bf16.mxu0 %v409
  %572 = vmatpush1.bf16.msra.mxu0 %v408
  %573 = vmatprep.subr.bf16.mxu0 %v401
  %574 = vmatpush1.bf16.msra.mxu0 %v400
  %575 = vmatprep.subr.bf16.mxu0 %v393
  %576 = vmatpush1.bf16.msra.mxu0 %v392
  %577 = vmatprep.subr.bf16.mxu0 %v385
  %578 = vmatpush1.bf16.msra.mxu0 %v384
  %579 = vmatprep.subr.bf16.mxu0 %v377
  %580 = vmatpush1.bf16.msra.mxu0 %v376
  %581 = vmatprep.subr.bf16.mxu0 %v369
  %582 = vmatpush1.bf16.msra.mxu0 %v368
  %583 = vmatprep.subr.bf16.mxu0 0
  %584 = vmatpush2.bf16.msra.mxu0 0
  %585 = vmatprep.subr.bf16.mxu0 0
  %586 = vmatpush2.bf16.msra.mxu0 0
  %587 = vmatprep.subr.bf16.mxu0 0
  %588 = vmatpush2.bf16.msra.mxu0 0
  %589 = vmatprep.subr.bf16.mxu0 0
  %590 = vmatpush2.bf16.msra.mxu0 0
  %591 = vmatprep.subr.bf16.mxu0 0
  %592 = vmatpush2.bf16.msra.mxu0 0
  %593 = vmatprep.subr.bf16.mxu0 0
  %594 = vmatpush2.bf16.msra.mxu0 0
  %595 = vmatprep.subr.bf16.mxu0 0
  %596 = vmatpush2.bf16.msra.mxu0 0
  %597 = vmatprep.subr.bf16.mxu0 0
  %598 = vmatpush2.bf16.msra.mxu0 0
  %599 = vmatprep.mubr.bf16.mxu0 0
  %600 = vmatmul.mubr.bf16.gmra.mxu0 %v166
  %v601 = vpop.f32.mrf.mxu0
  %v602 = vadd.f32 %v121, %v601
  %v603 = vpop.f32.mrf.mxu0
  %v604 = vadd.f32 %v125, %v603
  %v605 = vpop.f32.mrf.mxu0
  %v606 = vadd.f32 %v121, %v605
  %v607 = vpop.f32.mrf.mxu0
  %v608 = vadd.f32 %v125, %v607
  %609 = vmatprep.mubr.bf16.mxu0 0
  %610 = vmatmul.mubr.bf16.gmra.mxu0 %v167
  %v611 = vpop.f32.mrf.mxu0
  %v612 = vadd.f32 %v121, %v611
  %v613 = vpop.f32.mrf.mxu0
  %v614 = vadd.f32 %v125, %v613
  %v615 = vpop.f32.mrf.mxu0
  %v616 = vadd.f32 %v121, %v615
  %v617 = vpop.f32.mrf.mxu0
  %v618 = vadd.f32 %v125, %v617
  %619 = vmatprep.mubr.bf16.mxu0 0
  %620 = vmatmul.mubr.bf16.gmra.mxu0 %v168
  %v621 = vpop.f32.mrf.mxu0
  %v622 = vadd.f32 %v121, %v621
  %v623 = vpop.f32.mrf.mxu0
  %v624 = vadd.f32 %v125, %v623
  %v625 = vpop.f32.mrf.mxu0
  %v626 = vadd.f32 %v121, %v625
  %v627 = vpop.f32.mrf.mxu0
  %v628 = vadd.f32 %v125, %v627
  %629 = vmatprep.mubr.bf16.mxu0 0
  %630 = vmatmul.mubr.bf16.gmra.mxu0 %v169
  %v631 = vpop.f32.mrf.mxu0
  %v632 = vadd.f32 %v121, %v631
  %v633 = vpop.f32.mrf.mxu0
  %v634 = vadd.f32 %v125, %v633
  %v635 = vpop.f32.mrf.mxu0
  %v636 = vadd.f32 %v121, %v635
  %v637 = vpop.f32.mrf.mxu0
  %v638 = vadd.f32 %v125, %v637
  %639 = vdwg.mxu0
  %640 = vmatprep.subr.bf16.mxu0 %v427
  %641 = vmatpush1.bf16.msra.mxu0 %v426
  %642 = vmatprep.subr.bf16.mxu0 %v419
  %643 = vmatpush1.bf16.msra.mxu0 %v418
  %644 = vmatprep.subr.bf16.mxu0 %v411
  %645 = vmatpush1.bf16.msra.mxu0 %v410
  %646 = vmatprep.subr.bf16.mxu0 %v403
  %647 = vmatpush1.bf16.msra.mxu0 %v402
  %648 = vmatprep.subr.bf16.mxu0 %v395
  %649 = vmatpush1.bf16.msra.mxu0 %v394
  %650 = vmatprep.subr.bf16.mxu0 %v387
  %651 = vmatpush1.bf16.msra.mxu0 %v386
  %652 = vmatprep.subr.bf16.mxu0 %v379
  %653 = vmatpush1.bf16.msra.mxu0 %v378
  %654 = vmatprep.subr.bf16.mxu0 %v371
  %655 = vmatpush1.bf16.msra.mxu0 %v370
  %656 = vmatprep.subr.bf16.mxu0 0
  %657 = vmatpush2.bf16.msra.mxu0 0
  %658 = vmatprep.subr.bf16.mxu0 0
  %659 = vmatpush2.bf16.msra.mxu0 0
  %660 = vmatprep.subr.bf16.mxu0 0
  %661 = vmatpush2.bf16.msra.mxu0 0
  %662 = vmatprep.subr.bf16.mxu0 0
  %663 = vmatpush2.bf16.msra.mxu0 0
  %664 = vmatprep.subr.bf16.mxu0 0
  %665 = vmatpush2.bf16.msra.mxu0 0
  %666 = vmatprep.subr.bf16.mxu0 0
  %667 = vmatpush2.bf16.msra.mxu0 0
  %668 = vmatprep.subr.bf16.mxu0 0
  %669 = vmatpush2.bf16.msra.mxu0 0
  %670 = vmatprep.subr.bf16.mxu0 0
  %671 = vmatpush2.bf16.msra.mxu0 0
  %672 = vmatprep.mubr.bf16.mxu0 0
  %673 = vmatmul.mubr.bf16.gmra.mxu0 %v166
  %v674 = vpop.f32.mrf.mxu0
  %v675 = vadd.f32 %v129, %v674
  %v676 = vpop.f32.mrf.mxu0
  %v677 = vadd.f32 %v133, %v676
  %v678 = vpop.f32.mrf.mxu0
  %v679 = vadd.f32 %v129, %v678
  %v680 = vpop.f32.mrf.mxu0
  %v681 = vadd.f32 %v133, %v680
  %682 = vmatprep.mubr.bf16.mxu0 0
  %683 = vmatmul.mubr.bf16.gmra.mxu0 %v167
  %v684 = vpop.f32.mrf.mxu0
  %v685 = vadd.f32 %v129, %v684
  %v686 = vpop.f32.mrf.mxu0
  %v687 = vadd.f32 %v133, %v686
  %v688 = vpop.f32.mrf.mxu0
  %v689 = vadd.f32 %v129, %v688
  %v690 = vpop.f32.mrf.mxu0
  %v691 = vadd.f32 %v133, %v690
  %692 = vmatprep.mubr.bf16.mxu0 0
  %693 = vmatmul.mubr.bf16.gmra.mxu0 %v168
  %v694 = vpop.f32.mrf.mxu0
  %v695 = vadd.f32 %v129, %v694
  %v696 = vpop.f32.mrf.mxu0
  %v697 = vadd.f32 %v133, %v696
  %v698 = vpop.f32.mrf.mxu0
  %v699 = vadd.f32 %v129, %v698
  %v700 = vpop.f32.mrf.mxu0
  %v701 = vadd.f32 %v133, %v700
  %702 = vmatprep.mubr.bf16.mxu0 0
  %703 = vmatmul.mubr.bf16.gmra.mxu0 %v169
  %v704 = vpop.f32.mrf.mxu0
  %v705 = vadd.f32 %v129, %v704
  %v706 = vpop.f32.mrf.mxu0
  %v707 = vadd.f32 %v133, %v706
  %v708 = vpop.f32.mrf.mxu0
  %v709 = vadd.f32 %v129, %v708
  %v710 = vpop.f32.mrf.mxu0
  %v711 = vadd.f32 %v133, %v710
  %712 = vdwg.mxu0
  %713 = vmatprep.subr.bf16.mxu0 %v429
  %714 = vmatpush1.bf16.msra.mxu0 %v428
  %715 = vmatprep.subr.bf16.mxu0 %v421
  %716 = vmatpush1.bf16.msra.mxu0 %v420
  %717 = vmatprep.subr.bf16.mxu0 %v413
  %718 = vmatpush1.bf16.msra.mxu0 %v412
  %719 = vmatprep.subr.bf16.mxu0 %v405
  %720 = vmatpush1.bf16.msra.mxu0 %v404
  %721 = vmatprep.subr.bf16.mxu0 %v397
  %722 = vmatpush1.bf16.msra.mxu0 %v396
  %723 = vmatprep.subr.bf16.mxu0 %v389
  %724 = vmatpush1.bf16.msra.mxu0 %v388
  %725 = vmatprep.subr.bf16.mxu0 %v381
  %726 = vmatpush1.bf16.msra.mxu0 %v380
  %727 = vmatprep.subr.bf16.mxu0 %v373
  %728 = vmatpush1.bf16.msra.mxu0 %v372
  %729 = vmatprep.subr.bf16.mxu0 0
  %730 = vmatpush2.bf16.msra.mxu0 0
  %731 = vmatprep.subr.bf16.mxu0 0
  %732 = vmatpush2.bf16.msra.mxu0 0
  %733 = vmatprep.subr.bf16.mxu0 0
  %734 = vmatpush2.bf16.msra.mxu0 0
  %735 = vmatprep.subr.bf16.mxu0 0
  %736 = vmatpush2.bf16.msra.mxu0 0
  %737 = vmatprep.subr.bf16.mxu0 0
  %738 = vmatpush2.bf16.msra.mxu0 0
  %739 = vmatprep.subr.bf16.mxu0 0
  %740 = vmatpush2.bf16.msra.mxu0 0
  %741 = vmatprep.subr.bf16.mxu0 0
  %742 = vmatpush2.bf16.msra.mxu0 0
  %743 = vmatprep.subr.bf16.mxu0 0
  %744 = vmatpush2.bf16.msra.mxu0 0
  %745 = vmatprep.mubr.bf16.mxu0 0
  %746 = vmatmul.mubr.bf16.gmra.mxu0 %v166
  %v747 = vpop.f32.mrf.mxu0
  %v748 = vadd.f32 %v137, %v747
  %v749 = vpop.f32.mrf.mxu0
  %v750 = vadd.f32 %v141, %v749
  %v751 = vpop.f32.mrf.mxu0
  %v752 = vadd.f32 %v137, %v751
  %v753 = vpop.f32.mrf.mxu0
  %v754 = vadd.f32 %v141, %v753
  %755 = vmatprep.mubr.bf16.mxu0 0
  %756 = vmatmul.mubr.bf16.gmra.mxu0 %v167
  %v757 = vpop.f32.mrf.mxu0
  %v758 = vadd.f32 %v137, %v757
  %v759 = vpop.f32.mrf.mxu0
  %v760 = vadd.f32 %v141, %v759
  %v761 = vpop.f32.mrf.mxu0
  %v762 = vadd.f32 %v137, %v761
  %v763 = vpop.f32.mrf.mxu0
  %v764 = vadd.f32 %v141, %v763
  %765 = vmatprep.mubr.bf16.mxu0 0
  %766 = vmatmul.mubr.bf16.gmra.mxu0 %v168
  %v767 = vpop.f32.mrf.mxu0
  %v768 = vadd.f32 %v137, %v767
  %v769 = vpop.f32.mrf.mxu0
  %v770 = vadd.f32 %v141, %v769
  %v771 = vpop.f32.mrf.mxu0
  %v772 = vadd.f32 %v137, %v771
  %v773 = vpop.f32.mrf.mxu0
  %v774 = vadd.f32 %v141, %v773
  %775 = vmatprep.mubr.bf16.mxu0 0
  %776 = vmatmul.mubr.bf16.gmra.mxu0 %v169
  %v777 = vpop.f32.mrf.mxu0
  %v778 = vadd.f32 %v137, %v777
  %v779 = vpop.f32.mrf.mxu0
  %v780 = vadd.f32 %v141, %v779
  %v781 = vpop.f32.mrf.mxu0
  %v782 = vadd.f32 %v137, %v781
  %v783 = vpop.f32.mrf.mxu0
  %v784 = vadd.f32 %v141, %v783
  %785 = vdwg.mxu0
  %v786 = vpack.c.bf16 %v533, %v529
  %v787 = vpack.c.bf16 %v535, %v531
  %v788 = vpack.c.bf16 %v606, %v602
  %v789 = vpack.c.bf16 %v608, %v604
  %v790 = vpack.c.bf16 %v679, %v675
  %v791 = vpack.c.bf16 %v681, %v677
  %v792 = vpack.c.bf16 %v752, %v748
  %v793 = vpack.c.bf16 %v754, %v750
  %v794 = vpack.c.bf16 %v543, %v539
  %v795 = vpack.c.bf16 %v545, %v541
  %v796 = vpack.c.bf16 %v616, %v612
  %v797 = vpack.c.bf16 %v618, %v614
  %v798 = vpack.c.bf16 %v689, %v685
  %v799 = vpack.c.bf16 %v691, %v687
  %v800 = vpack.c.bf16 %v762, %v758
  %v801 = vpack.c.bf16 %v764, %v760
  %v802 = vpack.c.bf16 %v553, %v549
  %v803 = vpack.c.bf16 %v555, %v551
  %v804 = vpack.c.bf16 %v626, %v622
  %v805 = vpack.c.bf16 %v628, %v624
  %v806 = vpack.c.bf16 %v699, %v695
  %v807 = vpack.c.bf16 %v701, %v697
  %v808 = vpack.c.bf16 %v772, %v768
  %v809 = vpack.c.bf16 %v774, %v770
  %v810 = vpack.c.bf16 %v563, %v559
  %v811 = vpack.c.bf16 %v565, %v561
  %v812 = vpack.c.bf16 %v636, %v632
  %v813 = vpack.c.bf16 %v638, %v634
  %v814 = vpack.c.bf16 %v709, %v705
  %v815 = vpack.c.bf16 %v711, %v707
  %v816 = vpack.c.bf16 %v782, %v778
  %v817 = vpack.c.bf16 %v784, %v780
  %v850 = vunpack.c.l.b16 %v786
  %v851 = vunpack.c.l.b16 %v787
  %v852 = vunpack.c.l.b16 %v788
  %v853 = vunpack.c.l.b16 %v789
  %v854 = vunpack.c.l.b16 %v790
  %v855 = vunpack.c.l.b16 %v791
  %v856 = vunpack.c.l.b16 %v792
  %v857 = vunpack.c.l.b16 %v793
  %v858 = vunpack.c.h.b16 %v786
  %v859 = vunpack.c.h.b16 %v787
  %v860 = vunpack.c.h.b16 %v788
  %v861 = vunpack.c.h.b16 %v789
  %v862 = vunpack.c.h.b16 %v790
  %v863 = vunpack.c.h.b16 %v791
  %v864 = vunpack.c.h.b16 %v792
  %v865 = vunpack.c.h.b16 %v793
  %v866 = vunpack.c.l.b16 %v794
  %v867 = vunpack.c.l.b16 %v795
  %v868 = vunpack.c.l.b16 %v796
  %v869 = vunpack.c.l.b16 %v797
  %v870 = vunpack.c.l.b16 %v798
  %v871 = vunpack.c.l.b16 %v799
  %v872 = vunpack.c.l.b16 %v800
  %v873 = vunpack.c.l.b16 %v801
  %v874 = vunpack.c.h.b16 %v794
  %v875 = vunpack.c.h.b16 %v795
  %v876 = vunpack.c.h.b16 %v796
  %v877 = vunpack.c.h.b16 %v797
  %v878 = vunpack.c.h.b16 %v798
  %v879 = vunpack.c.h.b16 %v799
  %v880 = vunpack.c.h.b16 %v800
  %v881 = vunpack.c.h.b16 %v801
  %v882 = vunpack.c.l.b16 %v802
  %v883 = vunpack.c.l.b16 %v803
  %v884 = vunpack.c.l.b16 %v804
  %v885 = vunpack.c.l.b16 %v805
  %v886 = vunpack.c.l.b16 %v806
  %v887 = vunpack.c.l.b16 %v807
  %v888 = vunpack.c.l.b16 %v808
  %v889 = vunpack.c.l.b16 %v809
  %v890 = vunpack.c.h.b16 %v802
  %v891 = vunpack.c.h.b16 %v803
  %v892 = vunpack.c.h.b16 %v804
  %v893 = vunpack.c.h.b16 %v805
  %v894 = vunpack.c.h.b16 %v806
  %v895 = vunpack.c.h.b16 %v807
  %v896 = vunpack.c.h.b16 %v808
  %v897 = vunpack.c.h.b16 %v809
  %v898 = vunpack.c.l.b16 %v810
  %v899 = vunpack.c.l.b16 %v811
  %v900 = vunpack.c.l.b16 %v812
  %v901 = vunpack.c.l.b16 %v813
  %v902 = vunpack.c.l.b16 %v814
  %v903 = vunpack.c.l.b16 %v815
  %v904 = vunpack.c.l.b16 %v816
  %v905 = vunpack.c.l.b16 %v817
  %v906 = vunpack.c.h.b16 %v810
  %v907 = vunpack.c.h.b16 %v811
  %v908 = vunpack.c.h.b16 %v812
  %v909 = vunpack.c.h.b16 %v813
  %v910 = vunpack.c.h.b16 %v814
  %v911 = vunpack.c.h.b16 %v815
  %v912 = vunpack.c.h.b16 %v816
  %v913 = vunpack.c.h.b16 %v817
  %v914 = vpack.c.b16 %v851, %v850
  %v915 = vpack.c.b16 %v853, %v852
  %v916 = vpack.c.b16 %v855, %v854
  %v917 = vpack.c.b16 %v857, %v856
  %v918 = vpack.c.b16 %v859, %v858
  %v919 = vpack.c.b16 %v861, %v860
  %v920 = vpack.c.b16 %v863, %v862
  %v921 = vpack.c.b16 %v865, %v864
  %v922 = vpack.c.b16 %v867, %v866
  %v923 = vpack.c.b16 %v869, %v868
  %v924 = vpack.c.b16 %v871, %v870
  %v925 = vpack.c.b16 %v873, %v872
  %v926 = vpack.c.b16 %v875, %v874
  %v927 = vpack.c.b16 %v877, %v876
  %v928 = vpack.c.b16 %v879, %v878
  %v929 = vpack.c.b16 %v881, %v880
  %v930 = vpack.c.b16 %v883, %v882
  %v931 = vpack.c.b16 %v885, %v884
  %v932 = vpack.c.b16 %v887, %v886
  %v933 = vpack.c.b16 %v889, %v888
  %v934 = vpack.c.b16 %v891, %v890
  %v935 = vpack.c.b16 %v893, %v892
  %v936 = vpack.c.b16 %v895, %v894
  %v937 = vpack.c.b16 %v897, %v896
  %v938 = vpack.c.b16 %v899, %v898
  %v939 = vpack.c.b16 %v901, %v900
  %v940 = vpack.c.b16 %v903, %v902
  %v941 = vpack.c.b16 %v905, %v904
  %v942 = vpack.c.b16 %v907, %v906
  %v943 = vpack.c.b16 %v909, %v908
  %v944 = vpack.c.b16 %v911, %v910
  %v945 = vpack.c.b16 %v913, %v912
  %978 = vst [vmem:[#allocation2] sm:$0xff] %v914
  %979 = vst [vmem:[#allocation2 + $0x8] sm:$0xff] %v915
  %980 = vst [vmem:[#allocation2 + $0x10] sm:$0xff] %v916
  %981 = vst [vmem:[#allocation2 + $0x18] sm:$0xff] %v917
  %982 = vst [vmem:[#allocation2 + $0x20] sm:$0xff] %v918
  %983 = vst [vmem:[#allocation2 + $0x28] sm:$0xff] %v919
  %984 = vst [vmem:[#allocation2 + $0x30] sm:$0xff] %v920
  %985 = vst [vmem:[#allocation2 + $0x38] sm:$0xff] %v921
  %986 = vst [vmem:[#allocation2 + $0x40] sm:$0xff] %v922
  %987 = vst [vmem:[#allocation2 + $0x48] sm:$0xff] %v923
  %988 = vst [vmem:[#allocation2 + $0x50] sm:$0xff] %v924
  %989 = vst [vmem:[#allocation2 + $0x58] sm:$0xff] %v925
  %990 = vst [vmem:[#allocation2 + $0x60] sm:$0xff] %v926
  %991 = vst [vmem:[#allocation2 + $0x68] sm:$0xff] %v927
  %992 = vst [vmem:[#allocation2 + $0x70] sm:$0xff] %v928
  %993 = vst [vmem:[#allocation2 + $0x78] sm:$0xff] %v929
  %994 = vst [vmem:[#allocation2 + $0x80] sm:$0xff] %v930
  %995 = vst [vmem:[#allocation2 + $0x88] sm:$0xff] %v931
  %996 = vst [vmem:[#allocation2 + $0x90] sm:$0xff] %v932
  %997 = vst [vmem:[#allocation2 + $0x98] sm:$0xff] %v933
  %998 = vst [vmem:[#allocation2 + $0xa0] sm:$0xff] %v934
  %999 = vst [vmem:[#allocation2 + $0xa8] sm:$0xff] %v935
  %1000 = vst [vmem:[#allocation2 + $0xb0] sm:$0xff] %v936
  %1001 = vst [vmem:[#allocation2 + $0xb8] sm:$0xff] %v937
  %1002 = vst [vmem:[#allocation2 + $0xc0] sm:$0xff] %v938
  %1003 = vst [vmem:[#allocation2 + $0xc8] sm:$0xff] %v939
  %1004 = vst [vmem:[#allocation2 + $0xd0] sm:$0xff] %v940
  %1005 = vst [vmem:[#allocation2 + $0xd8] sm:$0xff] %v941
  %1006 = vst [vmem:[#allocation2 + $0xe0] sm:$0xff] %v942
  %1007 = vst [vmem:[#allocation2 + $0xe8] sm:$0xff] %v943
  %1008 = vst [vmem:[#allocation2 + $0xf0] sm:$0xff] %v944
  %1009 = vst [vmem:[#allocation2 + $0xf8] sm:$0xff] %v945
  %v1010 = vld [vmem:[%s1] sm:$0xff]
  %v1011 = vld [vmem:[#allocation2] sm:$0xff]
  %v1012 = vld [vmem:[#allocation2 + $0x8] sm:$0xff]
  %v1013 = vunpack.c.l.bf16 %v1011
  %v1014 = vunpack.c.h.bf16 %v1011
  %v1015 = vunpack.c.l.bf16 %v1012
  %v1016 = vunpack.c.h.bf16 %v1012
  %v1017 = vld [vmem:[%s4] sm:$0xff]
  %v1018 = vld [vmem:[%s4 + $0x8] sm:$0xff]
  %v1019 = vld [vmem:[%s4 + $0x10] sm:$0xff]
  %v1020 = vld [vmem:[%s4 + $0x18] sm:$0xff]
  %v1021 = vld [vmem:[%s4 + $0x20] sm:$0xff]
  %v1022 = vld [vmem:[%s4 + $0x28] sm:$0xff]
  %v1023 = vld [vmem:[%s4 + $0x30] sm:$0xff]
  %v1024 = vld [vmem:[%s4 + $0x38] sm:$0xff]
  %v1025 = vld [vmem:[%s4 + $0x40] sm:$0xff]
  %v1026 = vld [vmem:[%s4 + $0x48] sm:$0xff]
  %v1027 = vld [vmem:[%s4 + $0x50] sm:$0xff]
  %v1028 = vld [vmem:[%s4 + $0x58] sm:$0xff]
  %v1029 = vld [vmem:[%s4 + $0x60] sm:$0xff]
  %v1030 = vld [vmem:[%s4 + $0x68] sm:$0xff]
  %v1031 = vld [vmem:[%s4 + $0x70] sm:$0xff]
  %v1032 = vld [vmem:[%s4 + $0x78] sm:$0xff]
  %v1033 = vld [vmem:[%s4 + $0x80] sm:$0xff]
  %v1034 = vld [vmem:[%s4 + $0x88] sm:$0xff]
  %v1035 = vld [vmem:[%s4 + $0x90] sm:$0xff]
  %v1036 = vld [vmem:[%s4 + $0x98] sm:$0xff]
  %v1037 = vld [vmem:[%s4 + $0xa0] sm:$0xff]
  %v1038 = vld [vmem:[%s4 + $0xa8] sm:$0xff]
  %v1039 = vld [vmem:[%s4 + $0xb0] sm:$0xff]
  %v1040 = vld [vmem:[%s4 + $0xb8] sm:$0xff]
  %v1041 = vld [vmem:[%s4 + $0xc0] sm:$0xff]
  %v1042 = vld [vmem:[%s4 + $0xc8] sm:$0xff]
  %v1043 = vld [vmem:[%s4 + $0xd0] sm:$0xff]
  %v1044 = vld [vmem:[%s4 + $0xd8] sm:$0xff]
  %v1045 = vld [vmem:[%s4 + $0xe0] sm:$0xff]
  %v1046 = vld [vmem:[%s4 + $0xe8] sm:$0xff]
  %v1047 = vld [vmem:[%s4 + $0xf0] sm:$0xff]
  %v1048 = vld [vmem:[%s4 + $0xf8] sm:$0xff]
  %v1081 = vunpack.c.l.b16 %v1017
  %v1082 = vunpack.c.h.b16 %v1017
  %v1083 = vunpack.c.l.b16 %v1018
  %v1084 = vunpack.c.h.b16 %v1018
  %v1085 = vunpack.c.l.b16 %v1019
  %v1086 = vunpack.c.h.b16 %v1019
  %v1087 = vunpack.c.l.b16 %v1020
  %v1088 = vunpack.c.h.b16 %v1020
  %v1089 = vunpack.c.l.b16 %v1021
  %v1090 = vunpack.c.h.b16 %v1021
  %v1091 = vunpack.c.l.b16 %v1022
  %v1092 = vunpack.c.h.b16 %v1022
  %v1093 = vunpack.c.l.b16 %v1023
  %v1094 = vunpack.c.h.b16 %v1023
  %v1095 = vunpack.c.l.b16 %v1024
  %v1096 = vunpack.c.h.b16 %v1024
  %v1097 = vunpack.c.l.b16 %v1025
  %v1098 = vunpack.c.h.b16 %v1025
  %v1099 = vunpack.c.l.b16 %v1026
  %v1100 = vunpack.c.h.b16 %v1026
  %v1101 = vunpack.c.l.b16 %v1027
  %v1102 = vunpack.c.h.b16 %v1027
  %v1103 = vunpack.c.l.b16 %v1028
  %v1104 = vunpack.c.h.b16 %v1028
  %v1105 = vunpack.c.l.b16 %v1029
  %v1106 = vunpack.c.h.b16 %v1029
  %v1107 = vunpack.c.l.b16 %v1030
  %v1108 = vunpack.c.h.b16 %v1030
  %v1109 = vunpack.c.l.b16 %v1031
  %v1110 = vunpack.c.h.b16 %v1031
  %v1111 = vunpack.c.l.b16 %v1032
  %v1112 = vunpack.c.h.b16 %v1032
  %v1113 = vunpack.c.l.b16 %v1033
  %v1114 = vunpack.c.h.b16 %v1033
  %v1115 = vunpack.c.l.b16 %v1034
  %v1116 = vunpack.c.h.b16 %v1034
  %v1117 = vunpack.c.l.b16 %v1035
  %v1118 = vunpack.c.h.b16 %v1035
  %v1119 = vunpack.c.l.b16 %v1036
  %v1120 = vunpack.c.h.b16 %v1036
  %v1121 = vunpack.c.l.b16 %v1037
  %v1122 = vunpack.c.h.b16 %v1037
  %v1123 = vunpack.c.l.b16 %v1038
  %v1124 = vunpack.c.h.b16 %v1038
  %v1125 = vunpack.c.l.b16 %v1039
  %v1126 = vunpack.c.h.b16 %v1039
  %v1127 = vunpack.c.l.b16 %v1040
  %v1128 = vunpack.c.h.b16 %v1040
  %v1129 = vunpack.c.l.b16 %v1041
  %v1130 = vunpack.c.h.b16 %v1041
  %v1131 = vunpack.c.l.b16 %v1042
  %v1132 = vunpack.c.h.b16 %v1042
  %v1133 = vunpack.c.l.b16 %v1043
  %v1134 = vunpack.c.h.b16 %v1043
  %v1135 = vunpack.c.l.b16 %v1044
  %v1136 = vunpack.c.h.b16 %v1044
  %v1137 = vunpack.c.l.b16 %v1045
  %v1138 = vunpack.c.h.b16 %v1045
  %v1139 = vunpack.c.l.b16 %v1046
  %v1140 = vunpack.c.h.b16 %v1046
  %v1141 = vunpack.c.l.b16 %v1047
  %v1142 = vunpack.c.h.b16 %v1047
  %v1143 = vunpack.c.l.b16 %v1048
  %v1144 = vunpack.c.h.b16 %v1048
  %v1145 = vpack.c.b16 %v1085, %v1081
  %v1146 = vpack.c.b16 %v1086, %v1082
  %v1147 = vpack.c.b16 %v1087, %v1083
  %v1148 = vpack.c.b16 %v1088, %v1084
  %v1149 = vpack.c.b16 %v1093, %v1089
  %v1150 = vpack.c.b16 %v1094, %v1090
  %v1151 = vpack.c.b16 %v1095, %v1091
  %v1152 = vpack.c.b16 %v1096, %v1092
  %v1153 = vpack.c.b16 %v1101, %v1097
  %v1154 = vpack.c.b16 %v1102, %v1098
  %v1155 = vpack.c.b16 %v1103, %v1099
  %v1156 = vpack.c.b16 %v1104, %v1100
  %v1157 = vpack.c.b16 %v1109, %v1105
  %v1158 = vpack.c.b16 %v1110, %v1106
  %v1159 = vpack.c.b16 %v1111, %v1107
  %v1160 = vpack.c.b16 %v1112, %v1108
  %v1161 = vpack.c.b16 %v1117, %v1113
  %v1162 = vpack.c.b16 %v1118, %v1114
  %v1163 = vpack.c.b16 %v1119, %v1115
  %v1164 = vpack.c.b16 %v1120, %v1116
  %v1165 = vpack.c.b16 %v1125, %v1121
  %v1166 = vpack.c.b16 %v1126, %v1122
  %v1167 = vpack.c.b16 %v1127, %v1123
  %v1168 = vpack.c.b16 %v1128, %v1124
  %v1169 = vpack.c.b16 %v1133, %v1129
  %v1170 = vpack.c.b16 %v1134, %v1130
  %v1171 = vpack.c.b16 %v1135, %v1131
  %v1172 = vpack.c.b16 %v1136, %v1132
  %v1173 = vpack.c.b16 %v1141, %v1137
  %v1174 = vpack.c.b16 %v1142, %v1138
  %v1175 = vpack.c.b16 %v1143, %v1139
  %v1176 = vpack.c.b16 %v1144, %v1140
  %1209 = vmatprep.subr.bf16.mxu0 %v1174
  %1210 = vmatpush1.bf16.msra.mxu0 %v1173
  %1211 = vmatprep.subr.bf16.mxu0 %v1170
  %1212 = vmatpush1.bf16.msra.mxu0 %v1169
  %1213 = vmatprep.subr.bf16.mxu0 %v1166
  %1214 = vmatpush1.bf16.msra.mxu0 %v1165
  %1215 = vmatprep.subr.bf16.mxu0 %v1162
  %1216 = vmatpush1.bf16.msra.mxu0 %v1161
  %1217 = vmatprep.subr.bf16.mxu0 %v1158
  %1218 = vmatpush1.bf16.msra.mxu0 %v1157
  %1219 = vmatprep.subr.bf16.mxu0 %v1154
  %1220 = vmatpush1.bf16.msra.mxu0 %v1153
  %1221 = vmatprep.subr.bf16.mxu0 %v1150
  %1222 = vmatpush1.bf16.msra.mxu0 %v1149
  %1223 = vmatprep.subr.bf16.mxu0 %v1146
  %1224 = vmatpush1.bf16.msra.mxu0 %v1145
  %1225 = vmatprep.subr.bf16.mxu0 0
  %1226 = vmatpush2.bf16.msra.mxu0 0
  %1227 = vmatprep.subr.bf16.mxu0 0
  %1228 = vmatpush2.bf16.msra.mxu0 0
  %1229 = vmatprep.subr.bf16.mxu0 0
  %1230 = vmatpush2.bf16.msra.mxu0 0
  %1231 = vmatprep.subr.bf16.mxu0 0
  %1232 = vmatpush2.bf16.msra.mxu0 0
  %1233 = vmatprep.subr.bf16.mxu0 0
  %1234 = vmatpush2.bf16.msra.mxu0 0
  %1235 = vmatprep.subr.bf16.mxu0 0
  %1236 = vmatpush2.bf16.msra.mxu0 0
  %1237 = vmatprep.subr.bf16.mxu0 0
  %1238 = vmatpush2.bf16.msra.mxu0 0
  %1239 = vmatprep.subr.bf16.mxu0 0
  %1240 = vmatpush2.bf16.msra.mxu0 0
  %1241 = vmatprep.mubr.bf16.mxu0 0
  %1242 = vmatmul.mubr.bf16.gmra.mxu0 0
  %v1243 = vpop.f32.mrf.mxu0
  %v1244 = vadd.f32 0.0, %v1243
  %v1245 = vpop.f32.mrf.mxu0
  %v1246 = vadd.f32 0.0, %v1245
  %v1247 = vpop.f32.mrf.mxu0
  %v1248 = vpop.f32.mrf.mxu0
  %1249 = vdwg.mxu0
  %1250 = vmatprep.subr.bf16.mxu0 %v1176
  %1251 = vmatpush1.bf16.msra.mxu0 %v1175
  %1252 = vmatprep.subr.bf16.mxu0 %v1172
  %1253 = vmatpush1.bf16.msra.mxu0 %v1171
  %1254 = vmatprep.subr.bf16.mxu0 %v1168
  %1255 = vmatpush1.bf16.msra.mxu0 %v1167
  %1256 = vmatprep.subr.bf16.mxu0 %v1164
  %1257 = vmatpush1.bf16.msra.mxu0 %v1163
  %1258 = vmatprep.subr.bf16.mxu0 %v1160
  %1259 = vmatpush1.bf16.msra.mxu0 %v1159
  %1260 = vmatprep.subr.bf16.mxu0 %v1156
  %1261 = vmatpush1.bf16.msra.mxu0 %v1155
  %1262 = vmatprep.subr.bf16.mxu0 %v1152
  %1263 = vmatpush1.bf16.msra.mxu0 %v1151
  %1264 = vmatprep.subr.bf16.mxu0 %v1148
  %1265 = vmatpush1.bf16.msra.mxu0 %v1147
  %1266 = vmatprep.subr.bf16.mxu0 0
  %1267 = vmatpush2.bf16.msra.mxu0 0
  %1268 = vmatprep.subr.bf16.mxu0 0
  %1269 = vmatpush2.bf16.msra.mxu0 0
  %1270 = vmatprep.subr.bf16.mxu0 0
  %1271 = vmatpush2.bf16.msra.mxu0 0
  %1272 = vmatprep.subr.bf16.mxu0 0
  %1273 = vmatpush2.bf16.msra.mxu0 0
  %1274 = vmatprep.subr.bf16.mxu0 0
  %1275 = vmatpush2.bf16.msra.mxu0 0
  %1276 = vmatprep.subr.bf16.mxu0 0
  %1277 = vmatpush2.bf16.msra.mxu0 0
  %1278 = vmatprep.subr.bf16.mxu0 0
  %1279 = vmatpush2.bf16.msra.mxu0 0
  %1280 = vmatprep.subr.bf16.mxu0 0
  %1281 = vmatpush2.bf16.msra.mxu0 0
  %1282 = vmatprep.mubr.bf16.mxu0 0
  %1283 = vmatmul.mubr.bf16.gmra.mxu0 0
  %v1284 = vpop.f32.mrf.mxu0
  %v1285 = vadd.f32 0.0, %v1284
  %v1286 = vpop.f32.mrf.mxu0
  %v1287 = vadd.f32 0.0, %v1286
  %v1288 = vpop.f32.mrf.mxu0
  %v1289 = vpop.f32.mrf.mxu0
  %1290 = vdwg.mxu0
  %v1291 = vadd.f32 %v1013, %v1244
  %v1292 = vadd.f32 %v1014, %v1246
  %v1293 = vadd.f32 %v1015, %v1285
  %v1294 = vadd.f32 %v1016, %v1287
  %v1295 = vld [vmem:[#allocation2 + $0xf0] sm:$0xff]
  %v1296 = vld [vmem:[#allocation2 + $0xf8] sm:$0xff]
  %v1297 = vunpack.c.l.bf16 %v1295
  %v1298 = vunpack.c.h.bf16 %v1295
  %v1299 = vunpack.c.l.bf16 %v1296
  %v1300 = vunpack.c.h.bf16 %v1296
  %v1301 = vld [vmem:[%s5] sm:$0xff]
  %v1302 = vld [vmem:[%s5 + $0x8] sm:$0xff]
  %v1303 = vld [vmem:[%s5 + $0x10] sm:$0xff]
  %v1304 = vld [vmem:[%s5 + $0x18] sm:$0xff]
  %v1305 = vld [vmem:[%s5 + $0x20] sm:$0xff]
  %v1306 = vld [vmem:[%s5 + $0x28] sm:$0xff]
  %v1307 = vld [vmem:[%s5 + $0x30] sm:$0xff]
  %v1308 = vld [vmem:[%s5 + $0x38] sm:$0xff]
  %v1309 = vld [vmem:[%s5 + $0x40] sm:$0xff]
  %v1310 = vld [vmem:[%s5 + $0x48] sm:$0xff]
  %v1311 = vld [vmem:[%s5 + $0x50] sm:$0xff]
  %v1312 = vld [vmem:[%s5 + $0x58] sm:$0xff]
  %v1313 = vld [vmem:[%s5 + $0x60] sm:$0xff]
  %v1314 = vld [vmem:[%s5 + $0x68] sm:$0xff]
  %v1315 = vld [vmem:[%s5 + $0x70] sm:$0xff]
  %v1316 = vld [vmem:[%s5 + $0x78] sm:$0xff]
  %v1317 = vld [vmem:[%s5 + $0x80] sm:$0xff]
  %v1318 = vld [vmem:[%s5 + $0x88] sm:$0xff]
  %v1319 = vld [vmem:[%s5 + $0x90] sm:$0xff]
  %v1320 = vld [vmem:[%s5 + $0x98] sm:$0xff]
  %v1321 = vld [vmem:[%s5 + $0xa0] sm:$0xff]
  %v1322 = vld [vmem:[%s5 + $0xa8] sm:$0xff]
  %v1323 = vld [vmem:[%s5 + $0xb0] sm:$0xff]
  %v1324 = vld [vmem:[%s5 + $0xb8] sm:$0xff]
  %v1325 = vld [vmem:[%s5 + $0xc0] sm:$0xff]
  %v1326 = vld [vmem:[%s5 + $0xc8] sm:$0xff]
  %v1327 = vld [vmem:[%s5 + $0xd0] sm:$0xff]
  %v1328 = vld [vmem:[%s5 + $0xd8] sm:$0xff]
  %v1329 = vld [vmem:[%s5 + $0xe0] sm:$0xff]
  %v1330 = vld [vmem:[%s5 + $0xe8] sm:$0xff]
  %v1331 = vld [vmem:[%s5 + $0xf0] sm:$0xff]
  %v1332 = vld [vmem:[%s5 + $0xf8] sm:$0xff]
  %v1365 = vunpack.c.l.b16 %v1301
  %v1366 = vunpack.c.h.b16 %v1301
  %v1367 = vunpack.c.l.b16 %v1302
  %v1368 = vunpack.c.h.b16 %v1302
  %v1369 = vunpack.c.l.b16 %v1303
  %v1370 = vunpack.c.h.b16 %v1303
  %v1371 = vunpack.c.l.b16 %v1304
  %v1372 = vunpack.c.h.b16 %v1304
  %v1373 = vunpack.c.l.b16 %v1305
  %v1374 = vunpack.c.h.b16 %v1305
  %v1375 = vunpack.c.l.b16 %v1306
  %v1376 = vunpack.c.h.b16 %v1306
  %v1377 = vunpack.c.l.b16 %v1307
  %v1378 = vunpack.c.h.b16 %v1307
  %v1379 = vunpack.c.l.b16 %v1308
  %v1380 = vunpack.c.h.b16 %v1308
  %v1381 = vunpack.c.l.b16 %v1309
  %v1382 = vunpack.c.h.b16 %v1309
  %v1383 = vunpack.c.l.b16 %v1310
  %v1384 = vunpack.c.h.b16 %v1310
  %v1385 = vunpack.c.l.b16 %v1311
  %v1386 = vunpack.c.h.b16 %v1311
  %v1387 = vunpack.c.l.b16 %v1312
  %v1388 = vunpack.c.h.b16 %v1312
  %v1389 = vunpack.c.l.b16 %v1313
  %v1390 = vunpack.c.h.b16 %v1313
  %v1391 = vunpack.c.l.b16 %v1314
  %v1392 = vunpack.c.h.b16 %v1314
  %v1393 = vunpack.c.l.b16 %v1315
  %v1394 = vunpack.c.h.b16 %v1315
  %v1395 = vunpack.c.l.b16 %v1316
  %v1396 = vunpack.c.h.b16 %v1316
  %v1397 = vunpack.c.l.b16 %v1317
  %v1398 = vunpack.c.h.b16 %v1317
  %v1399 = vunpack.c.l.b16 %v1318
  %v1400 = vunpack.c.h.b16 %v1318
  %v1401 = vunpack.c.l.b16 %v1319
  %v1402 = vunpack.c.h.b16 %v1319
  %v1403 = vunpack.c.l.b16 %v1320
  %v1404 = vunpack.c.h.b16 %v1320
  %v1405 = vunpack.c.l.b16 %v1321
  %v1406 = vunpack.c.h.b16 %v1321
  %v1407 = vunpack.c.l.b16 %v1322
  %v1408 = vunpack.c.h.b16 %v1322
  %v1409 = vunpack.c.l.b16 %v1323
  %v1410 = vunpack.c.h.b16 %v1323
  %v1411 = vunpack.c.l.b16 %v1324
  %v1412 = vunpack.c.h.b16 %v1324
  %v1413 = vunpack.c.l.b16 %v1325
  %v1414 = vunpack.c.h.b16 %v1325
  %v1415 = vunpack.c.l.b16 %v1326
  %v1416 = vunpack.c.h.b16 %v1326
  %v1417 = vunpack.c.l.b16 %v1327
  %v1418 = vunpack.c.h.b16 %v1327
  %v1419 = vunpack.c.l.b16 %v1328
  %v1420 = vunpack.c.h.b16 %v1328
  %v1421 = vunpack.c.l.b16 %v1329
  %v1422 = vunpack.c.h.b16 %v1329
  %v1423 = vunpack.c.l.b16 %v1330
  %v1424 = vunpack.c.h.b16 %v1330
  %v1425 = vunpack.c.l.b16 %v1331
  %v1426 = vunpack.c.h.b16 %v1331
  %v1427 = vunpack.c.l.b16 %v1332
  %v1428 = vunpack.c.h.b16 %v1332
  %v1429 = vpack.c.b16 %v1369, %v1365
  %v1430 = vpack.c.b16 %v1370, %v1366
  %v1431 = vpack.c.b16 %v1371, %v1367
  %v1432 = vpack.c.b16 %v1372, %v1368
  %v1433 = vpack.c.b16 %v1377, %v1373
  %v1434 = vpack.c.b16 %v1378, %v1374
  %v1435 = vpack.c.b16 %v1379, %v1375
  %v1436 = vpack.c.b16 %v1380, %v1376
  %v1437 = vpack.c.b16 %v1385, %v1381
  %v1438 = vpack.c.b16 %v1386, %v1382
  %v1439 = vpack.c.b16 %v1387, %v1383
  %v1440 = vpack.c.b16 %v1388, %v1384
  %v1441 = vpack.c.b16 %v1393, %v1389
  %v1442 = vpack.c.b16 %v1394, %v1390
  %v1443 = vpack.c.b16 %v1395, %v1391
  %v1444 = vpack.c.b16 %v1396, %v1392
  %v1445 = vpack.c.b16 %v1401, %v1397
  %v1446 = vpack.c.b16 %v1402, %v1398
  %v1447 = vpack.c.b16 %v1403, %v1399
  %v1448 = vpack.c.b16 %v1404, %v1400
  %v1449 = vpack.c.b16 %v1409, %v1405
  %v1450 = vpack.c.b16 %v1410, %v1406
  %v1451 = vpack.c.b16 %v1411, %v1407
  %v1452 = vpack.c.b16 %v1412, %v1408
  %v1453 = vpack.c.b16 %v1417, %v1413
  %v1454 = vpack.c.b16 %v1418, %v1414
  %v1455 = vpack.c.b16 %v1419, %v1415
  %v1456 = vpack.c.b16 %v1420, %v1416
  %v1457 = vpack.c.b16 %v1425, %v1421
  %v1458 = vpack.c.b16 %v1426, %v1422
  %v1459 = vpack.c.b16 %v1427, %v1423
  %v1460 = vpack.c.b16 %v1428, %v1424
  %1493 = vmatprep.subr.bf16.mxu0 %v1458
  %1494 = vmatpush1.bf16.msra.mxu0 %v1457
  %1495 = vmatprep.subr.bf16.mxu0 %v1454
  %1496 = vmatpush1.bf16.msra.mxu0 %v1453
  %1497 = vmatprep.subr.bf16.mxu0 %v1450
  %1498 = vmatpush1.bf16.msra.mxu0 %v1449
  %1499 = vmatprep.subr.bf16.mxu0 %v1446
  %1500 = vmatpush1.bf16.msra.mxu0 %v1445
  %1501 = vmatprep.subr.bf16.mxu0 %v1442
  %1502 = vmatpush1.bf16.msra.mxu0 %v1441
  %1503 = vmatprep.subr.bf16.mxu0 %v1438
  %1504 = vmatpush1.bf16.msra.mxu0 %v1437
  %1505 = vmatprep.subr.bf16.mxu0 %v1434
  %1506 = vmatpush1.bf16.msra.mxu0 %v1433
  %1507 = vmatprep.subr.bf16.mxu0 %v1430
  %1508 = vmatpush1.bf16.msra.mxu0 %v1429
  %1509 = vmatprep.subr.bf16.mxu0 0
  %1510 = vmatpush2.bf16.msra.mxu0 0
  %1511 = vmatprep.subr.bf16.mxu0 0
  %1512 = vmatpush2.bf16.msra.mxu0 0
  %1513 = vmatprep.subr.bf16.mxu0 0
  %1514 = vmatpush2.bf16.msra.mxu0 0
  %1515 = vmatprep.subr.bf16.mxu0 0
  %1516 = vmatpush2.bf16.msra.mxu0 0
  %1517 = vmatprep.subr.bf16.mxu0 0
  %1518 = vmatpush2.bf16.msra.mxu0 0
  %1519 = vmatprep.subr.bf16.mxu0 0
  %1520 = vmatpush2.bf16.msra.mxu0 0
  %1521 = vmatprep.subr.bf16.mxu0 0
  %1522 = vmatpush2.bf16.msra.mxu0 0
  %1523 = vmatprep.subr.bf16.mxu0 0
  %1524 = vmatpush2.bf16.msra.mxu0 0
  %1525 = vmatprep.mubr.bf16.mxu0 0
  %1526 = vmatmul.mubr.bf16.gmra.mxu0 0
  %v1527 = vpop.f32.mrf.mxu0
  %v1528 = vadd.f32 0.0, %v1527
  %v1529 = vpop.f32.mrf.mxu0
  %v1530 = vadd.f32 0.0, %v1529
  %v1531 = vpop.f32.mrf.mxu0
  %v1532 = vpop.f32.mrf.mxu0
  %1533 = vdwg.mxu0
  %1534 = vmatprep.subr.bf16.mxu0 %v1460
  %1535 = vmatpush1.bf16.msra.mxu0 %v1459
  %1536 = vmatprep.subr.bf16.mxu0 %v1456
  %1537 = vmatpush1.bf16.msra.mxu0 %v1455
  %1538 = vmatprep.subr.bf16.mxu0 %v1452
  %1539 = vmatpush1.bf16.msra.mxu0 %v1451
  %1540 = vmatprep.subr.bf16.mxu0 %v1448
  %1541 = vmatpush1.bf16.msra.mxu0 %v1447
  %1542 = vmatprep.subr.bf16.mxu0 %v1444
  %1543 = vmatpush1.bf16.msra.mxu0 %v1443
  %1544 = vmatprep.subr.bf16.mxu0 %v1440
  %1545 = vmatpush1.bf16.msra.mxu0 %v1439
  %1546 = vmatprep.subr.bf16.mxu0 %v1436
  %1547 = vmatpush1.bf16.msra.mxu0 %v1435
  %1548 = vmatprep.subr.bf16.mxu0 %v1432
  %1549 = vmatpush1.bf16.msra.mxu0 %v1431
  %1550 = vmatprep.subr.bf16.mxu0 0
  %1551 = vmatpush2.bf16.msra.mxu0 0
  %1552 = vmatprep.subr.bf16.mxu0 0
  %1553 = vmatpush2.bf16.msra.mxu0 0
  %1554 = vmatprep.subr.bf16.mxu0 0
  %1555 = vmatpush2.bf16.msra.mxu0 0
  %1556 = vmatprep.subr.bf16.mxu0 0
  %1557 = vmatpush2.bf16.msra.mxu0 0
  %1558 = vmatprep.subr.bf16.mxu0 0
  %1559 = vmatpush2.bf16.msra.mxu0 0
  %1560 = vmatprep.subr.bf16.mxu0 0
  %1561 = vmatpush2.bf16.msra.mxu0 0
  %1562 = vmatprep.subr.bf16.mxu0 0
  %1563 = vmatpush2.bf16.msra.mxu0 0
  %1564 = vmatprep.subr.bf16.mxu0 0
  %1565 = vmatpush2.bf16.msra.mxu0 0
  %1566 = vmatprep.mubr.bf16.mxu0 0
  %1567 = vmatmul.mubr.bf16.gmra.mxu0 0
  %v1568 = vpop.f32.mrf.mxu0
  %v1569 = vadd.f32 0.0, %v1568
  %v1570 = vpop.f32.mrf.mxu0
  %v1571 = vadd.f32 0.0, %v1570
  %v1572 = vpop.f32.mrf.mxu0
  %v1573 = vpop.f32.mrf.mxu0
  %1574 = vdwg.mxu0
  %v1575 = vadd.f32 %v1297, %v1528
  %v1576 = vadd.f32 %v1298, %v1530
  %v1577 = vadd.f32 %v1299, %v1569
  %v1578 = vadd.f32 %v1300, %v1571
  %v1579 = vxor.u32 %v1291, 2147483648
  %v1580 = vxor.u32 %v1292, 2147483648
  %v1581 = vxor.u32 %v1293, 2147483648
  %v1582 = vmul.f32 %v1579, 1.442695
  %v1583 = vpow.pop %v1582
  %v1584 = vmul.f32 %v1580, 1.442695
  %v1585 = vpow.pop %v1584
  %v1586 = vmul.f32 %v1581, 1.442695
  %v1587 = vpow.pop %v1586
  %v1588 = vadd.f32 %v1583, 1.0
  %v1589 = vadd.f32 %v1585, 1.0
  %v1590 = vadd.f32 %v1587, 1.0
  %v1591 = vrcp.pop %v1588
  %v1592 = vmul.f32 1.0, %v1591
  %v1593 = vrcp.pop %v1589
  %v1594 = vmul.f32 1.0, %v1593
  %v1595 = vrcp.pop %v1590
  %v1596 = vmul.f32 1.0, %v1595
  %v1597 = vtanh.pop %v1294
  %v1598 = vmul.f32 %v1594, 0.0
  %v1599 = vmul.f32 %v1592, %v1597
  %v1600 = vadd.f32 %v1598, %v1599
  %v1601 = vtanh.pop %v1600
  %v1602 = vmul.f32 %v1596, %v1601
  %v1603 = vxor.u32 %v1575, 2147483648
  %v1604 = vxor.u32 %v1576, 2147483648
  %v1605 = vxor.u32 %v1577, 2147483648
  %v1606 = vmul.f32 %v1603, 1.442695
  %v1607 = vpow.pop %v1606
  %v1608 = vmul.f32 %v1604, 1.442695
  %v1609 = vpow.pop %v1608
  %v1610 = vmul.f32 %v1605, 1.442695
  %v1611 = vpow.pop %v1610
  %v1612 = vadd.f32 %v1607, 1.0
  %v1613 = vadd.f32 %v1609, 1.0
  %v1614 = vadd.f32 %v1611, 1.0
  %v1615 = vrcp.pop %v1612
  %v1616 = vmul.f32 1.0, %v1615
  %v1617 = vrcp.pop %v1613
  %v1618 = vmul.f32 1.0, %v1617
  %v1619 = vrcp.pop %v1614
  %v1620 = vmul.f32 1.0, %v1619
  %v1621 = vtanh.pop %v1578
  %v1622 = vmul.f32 %v1618, 0.0
  %v1623 = vmul.f32 %v1616, %v1621
  %v1624 = vadd.f32 %v1622, %v1623
  %v1625 = vtanh.pop %v1624
  %v1626 = vmul.f32 %v1620, %v1625
  %vm1627 = vcmp.gt.s32.totalorder %v1010, 0
  %vm1628 = vcmp.gt.s32.totalorder %v1010, 7
  %v1629 = vsel %vm1627, 1, 0
  %1630 = vset.pattern.permute.xlu0 0
  %1631 = vperm.xlu0 %1630, %v1629
  %v1632 = vpop.permute.xlu0 %1631
  %vm1633 = vcmp.eq.s32.totalorder %v1632, 1
  %v1634 = vsel %vm1633, %v1602, 0.0
  %v1635 = vsel %vm1633, %v1600, 0.0
  %v1636 = vsel %vm1628, 1, 0
  %1637 = vset.pattern.permute.xlu0 0
  %1638 = vperm.xlu0 %1637, %v1636
  %v1639 = vpop.permute.xlu0 %1638
  %vm1640 = vcmp.eq.s32.totalorder %v1639, 1
  %v1641 = vsel %vm1640, %v1626, 0.0
  %v1642 = vsel %vm1640, %v1624, 0.0
  %v1643 = vpack.c.bf16 %v1634, %v1634
  %1644 = vst [vmem:[#allocation3] sm:$0xf] %v1643
  %v1645 = vpack.c.bf16 %v1641, %v1641
  %1646 = vst [vmem:[#allocation3 + $0x3c] sm:$0xf] %v1645
  %v1647 = vld [vmem:[#allocation2 + $0x20] sm:$0xff]
  %v1648 = vld [vmem:[#allocation2 + $0x28] sm:$0xff]
  %v1649 = vunpack.c.l.bf16 %v1647
  %v1650 = vunpack.c.h.bf16 %v1647
  %v1651 = vunpack.c.l.bf16 %v1648
  %v1652 = vunpack.c.h.bf16 %v1648
  %v1653 = vld [vmem:[%s4] sm:$0xff]
  %v1654 = vld [vmem:[%s4 + $0x8] sm:$0xff]
  %v1655 = vld [vmem:[%s4 + $0x10] sm:$0xff]
  %v1656 = vld [vmem:[%s4 + $0x18] sm:$0xff]
  %v1657 = vld [vmem:[%s4 + $0x20] sm:$0xff]
  %v1658 = vld [vmem:[%s4 + $0x28] sm:$0xff]
  %v1659 = vld [vmem:[%s4 + $0x30] sm:$0xff]
  %v1660 = vld [vmem:[%s4 + $0x38] sm:$0xff]
  %v1661 = vld [vmem:[%s4 + $0x40] sm:$0xff]
  %v1662 = vld [vmem:[%s4 + $0x48] sm:$0xff]
  %v1663 = vld [vmem:[%s4 + $0x50] sm:$0xff]
  %v1664 = vld [vmem:[%s4 + $0x58] sm:$0xff]
  %v1665 = vld [vmem:[%s4 + $0x60] sm:$0xff]
  %v1666 = vld [vmem:[%s4 + $0x68] sm:$0xff]
  %v1667 = vld [vmem:[%s4 + $0x70] sm:$0xff]
  %v1668 = vld [vmem:[%s4 + $0x78] sm:$0xff]
  %v1669 = vld [vmem:[%s4 + $0x80] sm:$0xff]
  %v1670 = vld [vmem:[%s4 + $0x88] sm:$0xff]
  %v1671 = vld [vmem:[%s4 + $0x90] sm:$0xff]
  %v1672 = vld [vmem:[%s4 + $0x98] sm:$0xff]
  %v1673 = vld [vmem:[%s4 + $0xa0] sm:$0xff]
  %v1674 = vld [vmem:[%s4 + $0xa8] sm:$0xff]
  %v1675 = vld [vmem:[%s4 + $0xb0] sm:$0xff]
  %v1676 = vld [vmem:[%s4 + $0xb8] sm:$0xff]
  %v1677 = vld [vmem:[%s4 + $0xc0] sm:$0xff]
  %v1678 = vld [vmem:[%s4 + $0xc8] sm:$0xff]
  %v1679 = vld [vmem:[%s4 + $0xd0] sm:$0xff]
  %v1680 = vld [vmem:[%s4 + $0xd8] sm:$0xff]
  %v1681 = vld [vmem:[%s4 + $0xe0] sm:$0xff]
  %v1682 = vld [vmem:[%s4 + $0xe8] sm:$0xff]
  %v1683 = vld [vmem:[%s4 + $0xf0] sm:$0xff]
  %v1684 = vld [vmem:[%s4 + $0xf8] sm:$0xff]
  %v1717 = vunpack.c.l.b16 %v1653
  %v1718 = vunpack.c.h.b16 %v1653
  %v1719 = vunpack.c.l.b16 %v1654
  %v1720 = vunpack.c.h.b16 %v1654
  %v1721 = vunpack.c.l.b16 %v1655
  %v1722 = vunpack.c.h.b16 %v1655
  %v1723 = vunpack.c.l.b16 %v1656
  %v1724 = vunpack.c.h.b16 %v1656
  %v1725 = vunpack.c.l.b16 %v1657
  %v1726 = vunpack.c.h.b16 %v1657
  %v1727 = vunpack.c.l.b16 %v1658
  %v1728 = vunpack.c.h.b16 %v1658
  %v1729 = vunpack.c.l.b16 %v1659
  %v1730 = vunpack.c.h.b16 %v1659
  %v1731 = vunpack.c.l.b16 %v1660
  %v1732 = vunpack.c.h.b16 %v1660
  %v1733 = vunpack.c.l.b16 %v1661
  %v1734 = vunpack.c.h.b16 %v1661
  %v1735 = vunpack.c.l.b16 %v1662
  %v1736 = vunpack.c.h.b16 %v1662
  %v1737 = vunpack.c.l.b16 %v1663
  %v1738 = vunpack.c.h.b16 %v1663
  %v1739 = vunpack.c.l.b16 %v1664
  %v1740 = vunpack.c.h.b16 %v1664
  %v1741 = vunpack.c.l.b16 %v1665
  %v1742 = vunpack.c.h.b16 %v1665
  %v1743 = vunpack.c.l.b16 %v1666
  %v1744 = vunpack.c.h.b16 %v1666
  %v1745 = vunpack.c.l.b16 %v1667
  %v1746 = vunpack.c.h.b16 %v1667
  %v1747 = vunpack.c.l.b16 %v1668
  %v1748 = vunpack.c.h.b16 %v1668
  %v1749 = vunpack.c.l.b16 %v1669
  %v1750 = vunpack.c.h.b16 %v1669
  %v1751 = vunpack.c.l.b16 %v1670
  %v1752 = vunpack.c.h.b16 %v1670
  %v1753 = vunpack.c.l.b16 %v1671
  %v1754 = vunpack.c.h.b16 %v1671
  %v1755 = vunpack.c.l.b16 %v1672
  %v1756 = vunpack.c.h.b16 %v1672
  %v1757 = vunpack.c.l.b16 %v1673
  %v1758 = vunpack.c.h.b16 %v1673
  %v1759 = vunpack.c.l.b16 %v1674
  %v1760 = vunpack.c.h.b16 %v1674
  %v1761 = vunpack.c.l.b16 %v1675
  %v1762 = vunpack.c.h.b16 %v1675
  %v1763 = vunpack.c.l.b16 %v1676
  %v1764 = vunpack.c.h.b16 %v1676
  %v1765 = vunpack.c.l.b16 %v1677
  %v1766 = vunpack.c.h.b16 %v1677
  %v1767 = vunpack.c.l.b16 %v1678
  %v1768 = vunpack.c.h.b16 %v1678
  %v1769 = vunpack.c.l.b16 %v1679
  %v1770 = vunpack.c.h.b16 %v1679
  %v1771 = vunpack.c.l.b16 %v1680
  %v1772 = vunpack.c.h.b16 %v1680
  %v1773 = vunpack.c.l.b16 %v1681
  %v1774 = vunpack.c.h.b16 %v1681
  %v1775 = vunpack.c.l.b16 %v1682
  %v1776 = vunpack.c.h.b16 %v1682
  %v1777 = vunpack.c.l.b16 %v1683
  %v1778 = vunpack.c.h.b16 %v1683
  %v1779 = vunpack.c.l.b16 %v1684
  %v1780 = vunpack.c.h.b16 %v1684
  %v1781 = vpack.c.b16 %v1721, %v1717
  %v1782 = vpack.c.b16 %v1722, %v1718
  %v1783 = vpack.c.b16 %v1723, %v1719
  %v1784 = vpack.c.b16 %v1724, %v1720
  %v1785 = vpack.c.b16 %v1729, %v1725
  %v1786 = vpack.c.b16 %v1730, %v1726
  %v1787 = vpack.c.b16 %v1731, %v1727
  %v1788 = vpack.c.b16 %v1732, %v1728
  %v1789 = vpack.c.b16 %v1737, %v1733
  %v1790 = vpack.c.b16 %v1738, %v1734
  %v1791 = vpack.c.b16 %v1739, %v1735
  %v1792 = vpack.c.b16 %v1740, %v1736
  %v1793 = vpack.c.b16 %v1745, %v1741
  %v1794 = vpack.c.b16 %v1746, %v1742
  %v1795 = vpack.c.b16 %v1747, %v1743
  %v1796 = vpack.c.b16 %v1748, %v1744
  %v1797 = vpack.c.b16 %v1753, %v1749
  %v1798 = vpack.c.b16 %v1754, %v1750
  %v1799 = vpack.c.b16 %v1755, %v1751
  %v1800 = vpack.c.b16 %v1756, %v1752
  %v1801 = vpack.c.b16 %v1761, %v1757
  %v1802 = vpack.c.b16 %v1762, %v1758
  %v1803 = vpack.c.b16 %v1763, %v1759
  %v1804 = vpack.c.b16 %v1764, %v1760
  %v1805 = vpack.c.b16 %v1769, %v1765
  %v1806 = vpack.c.b16 %v1770, %v1766
  %v1807 = vpack.c.b16 %v1771, %v1767
  %v1808 = vpack.c.b16 %v1772, %v1768
  %v1809 = vpack.c.b16 %v1777, %v1773
  %v1810 = vpack.c.b16 %v1778, %v1774
  %v1811 = vpack.c.b16 %v1779, %v1775
  %v1812 = vpack.c.b16 %v1780, %v1776
  %1845 = vmatprep.subr.bf16.mxu0 %v1810
  %1846 = vmatpush1.bf16.msra.mxu0 %v1809
  %1847 = vmatprep.subr.bf16.mxu0 %v1806
  %1848 = vmatpush1.bf16.msra.mxu0 %v1805
  %1849 = vmatprep.subr.bf16.mxu0 %v1802
  %1850 = vmatpush1.bf16.msra.mxu0 %v1801
  %1851 = vmatprep.subr.bf16.mxu0 %v1798
  %1852 = vmatpush1.bf16.msra.mxu0 %v1797
  %1853 = vmatprep.subr.bf16.mxu0 %v1794
  %1854 = vmatpush1.bf16.msra.mxu0 %v1793
  %1855 = vmatprep.subr.bf16.mxu0 %v1790
  %1856 = vmatpush1.bf16.msra.mxu0 %v1789
  %1857 = vmatprep.subr.bf16.mxu0 %v1786
  %1858 = vmatpush1.bf16.msra.mxu0 %v1785
  %1859 = vmatprep.subr.bf16.mxu0 %v1782
  %1860 = vmatpush1.bf16.msra.mxu0 %v1781
  %1861 = vmatprep.subr.bf16.mxu0 0
  %1862 = vmatpush2.bf16.msra.mxu0 0
  %1863 = vmatprep.subr.bf16.mxu0 0
  %1864 = vmatpush2.bf16.msra.mxu0 0
  %1865 = vmatprep.subr.bf16.mxu0 0
  %1866 = vmatpush2.bf16.msra.mxu0 0
  %1867 = vmatprep.subr.bf16.mxu0 0
  %1868 = vmatpush2.bf16.msra.mxu0 0
  %1869 = vmatprep.subr.bf16.mxu0 0
  %1870 = vmatpush2.bf16.msra.mxu0 0
  %1871 = vmatprep.subr.bf16.mxu0 0
  %1872 = vmatpush2.bf16.msra.mxu0 0
  %1873 = vmatprep.subr.bf16.mxu0 0
  %1874 = vmatpush2.bf16.msra.mxu0 0
  %1875 = vmatprep.subr.bf16.mxu0 0
  %1876 = vmatpush2.bf16.msra.mxu0 0
  %1877 = vmatprep.mubr.bf16.mxu0 0
  %1878 = vmatmul.mubr.bf16.gmra.mxu0 %v1643
  %v1879 = vpop.f32.mrf.mxu0
  %v1880 = vadd.f32 0.0, %v1879
  %v1881 = vpop.f32.mrf.mxu0
  %v1882 = vadd.f32 0.0, %v1881
  %v1883 = vpop.f32.mrf.mxu0
  %v1884 = vpop.f32.mrf.mxu0
  %1885 = vdwg.mxu0
  %1886 = vmatprep.subr.bf16.mxu0 %v1812
  %1887 = vmatpush1.bf16.msra.mxu0 %v1811
  %1888 = vmatprep.subr.bf16.mxu0 %v1808
  %1889 = vmatpush1.bf16.msra.mxu0 %v1807
  %1890 = vmatprep.subr.bf16.mxu0 %v1804
  %1891 = vmatpush1.bf16.msra.mxu0 %v1803
  %1892 = vmatprep.subr.bf16.mxu0 %v1800
  %1893 = vmatpush1.bf16.msra.mxu0 %v1799
  %1894 = vmatprep.subr.bf16.mxu0 %v1796
  %1895 = vmatpush1.bf16.msra.mxu0 %v1795
  %1896 = vmatprep.subr.bf16.mxu0 %v1792
  %1897 = vmatpush1.bf16.msra.mxu0 %v1791
  %1898 = vmatprep.subr.bf16.mxu0 %v1788
  %1899 = vmatpush1.bf16.msra.mxu0 %v1787
  %1900 = vmatprep.subr.bf16.mxu0 %v1784
  %1901 = vmatpush1.bf16.msra.mxu0 %v1783
  %1902 = vmatprep.subr.bf16.mxu0 0
  %1903 = vmatpush2.bf16.msra.mxu0 0
  %1904 = vmatprep.subr.bf16.mxu0 0
  %1905 = vmatpush2.bf16.msra.mxu0 0
  %1906 = vmatprep.subr.bf16.mxu0 0
  %1907 = vmatpush2.bf16.msra.mxu0 0
  %1908 = vmatprep.subr.bf16.mxu0 0
  %1909 = vmatpush2.bf16.msra.mxu0 0
  %1910 = vmatprep.subr.bf16.mxu0 0
  %1911 = vmatpush2.bf16.msra.mxu0 0
  %1912 = vmatprep.subr.bf16.mxu0 0
  %1913 = vmatpush2.bf16.msra.mxu0 0
  %1914 = vmatprep.subr.bf16.mxu0 0
  %1915 = vmatpush2.bf16.msra.mxu0 0
  %1916 = vmatprep.subr.bf16.mxu0 0
  %1917 = vmatpush2.bf16.msra.mxu0 0
  %1918 = vmatprep.mubr.bf16.mxu0 0
  %1919 = vmatmul.mubr.bf16.gmra.mxu0 %v1643
  %v1920 = vpop.f32.mrf.mxu0
  %v1921 = vadd.f32 0.0, %v1920
  %v1922 = vpop.f32.mrf.mxu0
  %v1923 = vadd.f32 0.0, %v1922
  %v1924 = vpop.f32.mrf.mxu0
  %v1925 = vpop.f32.mrf.mxu0
  %1926 = vdwg.mxu0
  %v1927 = vadd.f32 %v1649, %v1880
  %v1928 = vadd.f32 %v1650, %v1882
  %v1929 = vadd.f32 %v1651, %v1921
  %v1930 = vadd.f32 %v1652, %v1923
  %v1931 = vld [vmem:[#allocation2 + $0xd0] sm:$0xff]
  %v1932 = vld [vmem:[#allocation2 + $0xd8] sm:$0xff]
  %v1933 = vunpack.c.l.bf16 %v1931
  %v1934 = vunpack.c.h.bf16 %v1931
  %v1935 = vunpack.c.l.bf16 %v1932
  %v1936 = vunpack.c.h.bf16 %v1932
  %v1937 = vld [vmem:[%s5] sm:$0xff]
  %v1938 = vld [vmem:[%s5 + $0x8] sm:$0xff]
  %v1939 = vld [vmem:[%s5 + $0x10] sm:$0xff]
  %v1940 = vld [vmem:[%s5 + $0x18] sm:$0xff]
  %v1941 = vld [vmem:[%s5 + $0x20] sm:$0xff]
  %v1942 = vld [vmem:[%s5 + $0x28] sm:$0xff]
  %v1943 = vld [vmem:[%s5 + $0x30] sm:$0xff]
  %v1944 = vld [vmem:[%s5 + $0x38] sm:$0xff]
  %v1945 = vld [vmem:[%s5 + $0x40] sm:$0xff]
  %v1946 = vld [vmem:[%s5 + $0x48] sm:$0xff]
  %v1947 = vld [vmem:[%s5 + $0x50] sm:$0xff]
  %v1948 = vld [vmem:[%s5 + $0x58] sm:$0xff]
  %v1949 = vld [vmem:[%s5 + $0x60] sm:$0xff]
  %v1950 = vld [vmem:[%s5 + $0x68] sm:$0xff]
  %v1951 = vld [vmem:[%s5 + $0x70] sm:$0xff]
  %v1952 = vld [vmem:[%s5 + $0x78] sm:$0xff]
  %v1953 = vld [vmem:[%s5 + $0x80] sm:$0xff]
  %v1954 = vld [vmem:[%s5 + $0x88] sm:$0xff]
  %v1955 = vld [vmem:[%s5 + $0x90] sm:$0xff]
  %v1956 = vld [vmem:[%s5 + $0x98] sm:$0xff]
  %v1957 = vld [vmem:[%s5 + $0xa0] sm:$0xff]
  %v1958 = vld [vmem:[%s5 + $0xa8] sm:$0xff]
  %v1959 = vld [vmem:[%s5 + $0xb0] sm:$0xff]
  %v1960 = vld [vmem:[%s5 + $0xb8] sm:$0xff]
  %v1961 = vld [vmem:[%s5 + $0xc0] sm:$0xff]
  %v1962 = vld [vmem:[%s5 + $0xc8] sm:$0xff]
  %v1963 = vld [vmem:[%s5 + $0xd0] sm:$0xff]
  %v1964 = vld [vmem:[%s5 + $0xd8] sm:$0xff]
  %v1965 = vld [vmem:[%s5 + $0xe0] sm:$0xff]
  %v1966 = vld [vmem:[%s5 + $0xe8] sm:$0xff]
  %v1967 = vld [vmem:[%s5 + $0xf0] sm:$0xff]
  %v1968 = vld [vmem:[%s5 + $0xf8] sm:$0xff]
  %v2001 = vunpack.c.l.b16 %v1937
  %v2002 = vunpack.c.h.b16 %v1937
  %v2003 = vunpack.c.l.b16 %v1938
  %v2004 = vunpack.c.h.b16 %v1938
  %v2005 = vunpack.c.l.b16 %v1939
  %v2006 = vunpack.c.h.b16 %v1939
  %v2007 = vunpack.c.l.b16 %v1940
  %v2008 = vunpack.c.h.b16 %v1940
  %v2009 = vunpack.c.l.b16 %v1941
  %v2010 = vunpack.c.h.b16 %v1941
  %v2011 = vunpack.c.l.b16 %v1942
  %v2012 = vunpack.c.h.b16 %v1942
  %v2013 = vunpack.c.l.b16 %v1943
  %v2014 = vunpack.c.h.b16 %v1943
  %v2015 = vunpack.c.l.b16 %v1944
  %v2016 = vunpack.c.h.b16 %v1944
  %v2017 = vunpack.c.l.b16 %v1945
  %v2018 = vunpack.c.h.b16 %v1945
  %v2019 = vunpack.c.l.b16 %v1946
  %v2020 = vunpack.c.h.b16 %v1946
  %v2021 = vunpack.c.l.b16 %v1947
  %v2022 = vunpack.c.h.b16 %v1947
  %v2023 = vunpack.c.l.b16 %v1948
  %v2024 = vunpack.c.h.b16 %v1948
  %v2025 = vunpack.c.l.b16 %v1949
  %v2026 = vunpack.c.h.b16 %v1949
  %v2027 = vunpack.c.l.b16 %v1950
  %v2028 = vunpack.c.h.b16 %v1950
  %v2029 = vunpack.c.l.b16 %v1951
  %v2030 = vunpack.c.h.b16 %v1951
  %v2031 = vunpack.c.l.b16 %v1952
  %v2032 = vunpack.c.h.b16 %v1952
  %v2033 = vunpack.c.l.b16 %v1953
  %v2034 = vunpack.c.h.b16 %v1953
  %v2035 = vunpack.c.l.b16 %v1954
  %v2036 = vunpack.c.h.b16 %v1954
  %v2037 = vunpack.c.l.b16 %v1955
  %v2038 = vunpack.c.h.b16 %v1955
  %v2039 = vunpack.c.l.b16 %v1956
  %v2040 = vunpack.c.h.b16 %v1956
  %v2041 = vunpack.c.l.b16 %v1957
  %v2042 = vunpack.c.h.b16 %v1957
  %v2043 = vunpack.c.l.b16 %v1958
  %v2044 = vunpack.c.h.b16 %v1958
  %v2045 = vunpack.c.l.b16 %v1959
  %v2046 = vunpack.c.h.b16 %v1959
  %v2047 = vunpack.c.l.b16 %v1960
  %v2048 = vunpack.c.h.b16 %v1960
  %v2049 = vunpack.c.l.b16 %v1961
  %v2050 = vunpack.c.h.b16 %v1961
  %v2051 = vunpack.c.l.b16 %v1962
  %v2052 = vunpack.c.h.b16 %v1962
  %v2053 = vunpack.c.l.b16 %v1963
  %v2054 = vunpack.c.h.b16 %v1963
  %v2055 = vunpack.c.l.b16 %v1964
  %v2056 = vunpack.c.h.b16 %v1964
  %v2057 = vunpack.c.l.b16 %v1965
  %v2058 = vunpack.c.h.b16 %v1965
  %v2059 = vunpack.c.l.b16 %v1966
  %v2060 = vunpack.c.h.b16 %v1966
  %v2061 = vunpack.c.l.b16 %v1967
  %v2062 = vunpack.c.h.b16 %v1967
  %v2063 = vunpack.c.l.b16 %v1968
  %v2064 = vunpack.c.h.b16 %v1968
  %v2065 = vpack.c.b16 %v2005, %v2001
  %v2066 = vpack.c.b16 %v2006, %v2002
  %v2067 = vpack.c.b16 %v2007, %v2003
  %v2068 = vpack.c.b16 %v2008, %v2004
  %v2069 = vpack.c.b16 %v2013, %v2009
  %v2070 = vpack.c.b16 %v2014, %v2010
  %v2071 = vpack.c.b16 %v2015, %v2011
  %v2072 = vpack.c.b16 %v2016, %v2012
  %v2073 = vpack.c.b16 %v2021, %v2017
  %v2074 = vpack.c.b16 %v2022, %v2018
  %v2075 = vpack.c.b16 %v2023, %v2019
  %v2076 = vpack.c.b16 %v2024, %v2020
  %v2077 = vpack.c.b16 %v2029, %v2025
  %v2078 = vpack.c.b16 %v2030, %v2026
  %v2079 = vpack.c.b16 %v2031, %v2027
  %v2080 = vpack.c.b16 %v2032, %v2028
  %v2081 = vpack.c.b16 %v2037, %v2033
  %v2082 = vpack.c.b16 %v2038, %v2034
  %v2083 = vpack.c.b16 %v2039, %v2035
  %v2084 = vpack.c.b16 %v2040, %v2036
  %v2085 = vpack.c.b16 %v2045, %v2041
  %v2086 = vpack.c.b16 %v2046, %v2042
  %v2087 = vpack.c.b16 %v2047, %v2043
  %v2088 = vpack.c.b16 %v2048, %v2044
  %v2089 = vpack.c.b16 %v2053, %v2049
  %v2090 = vpack.c.b16 %v2054, %v2050
  %v2091 = vpack.c.b16 %v2055, %v2051
  %v2092 = vpack.c.b16 %v2056, %v2052
  %v2093 = vpack.c.b16 %v2061, %v2057
  %v2094 = vpack.c.b16 %v2062, %v2058
  %v2095 = vpack.c.b16 %v2063, %v2059
  %v2096 = vpack.c.b16 %v2064, %v2060
  %2129 = vmatprep.subr.bf16.mxu0 %v2094
  %2130 = vmatpush1.bf16.msra.mxu0 %v2093
  %2131 = vmatprep.subr.bf16.mxu0 %v2090
  %2132 = vmatpush1.bf16.msra.mxu0 %v2089
  %2133 = vmatprep.subr.bf16.mxu0 %v2086
  %2134 = vmatpush1.bf16.msra.mxu0 %v2085
  %2135 = vmatprep.subr.bf16.mxu0 %v2082
  %2136 = vmatpush1.bf16.msra.mxu0 %v2081
  %2137 = vmatprep.subr.bf16.mxu0 %v2078
  %2138 = vmatpush1.bf16.msra.mxu0 %v2077
  %2139 = vmatprep.subr.bf16.mxu0 %v2074
  %2140 = vmatpush1.bf16.msra.mxu0 %v2073
  %2141 = vmatprep.subr.bf16.mxu0 %v2070
  %2142 = vmatpush1.bf16.msra.mxu0 %v2069
  %2143 = vmatprep.subr.bf16.mxu0 %v2066
  %2144 = vmatpush1.bf16.msra.mxu0 %v2065
  %2145 = vmatprep.subr.bf16.mxu0 0
  %2146 = vmatpush2.bf16.msra.mxu0 0
  %2147 = vmatprep.subr.bf16.mxu0 0
  %2148 = vmatpush2.bf16.msra.mxu0 0
  %2149 = vmatprep.subr.bf16.mxu0 0
  %2150 = vmatpush2.bf16.msra.mxu0 0
  %2151 = vmatprep.subr.bf16.mxu0 0
  %2152 = vmatpush2.bf16.msra.mxu0 0
  %2153 = vmatprep.subr.bf16.mxu0 0
  %2154 = vmatpush2.bf16.msra.mxu0 0
  %2155 = vmatprep.subr.bf16.mxu0 0
  %2156 = vmatpush2.bf16.msra.mxu0 0
  %2157 = vmatprep.subr.bf16.mxu0 0
  %2158 = vmatpush2.bf16.msra.mxu0 0
  %2159 = vmatprep.subr.bf16.mxu0 0
  %2160 = vmatpush2.bf16.msra.mxu0 0
  %2161 = vmatprep.mubr.bf16.mxu0 0
  %2162 = vmatmul.mubr.bf16.gmra.mxu0 %v1645
  %v2163 = vpop.f32.mrf.mxu0
  %v2164 = vadd.f32 0.0, %v2163
  %v2165 = vpop.f32.mrf.mxu0
  %v2166 = vadd.f32 0.0, %v2165
  %v2167 = vpop.f32.mrf.mxu0
  %v2168 = vpop.f32.mrf.mxu0
  %2169 = vdwg.mxu0
  %2170 = vmatprep.subr.bf16.mxu0 %v2096
  %2171 = vmatpush1.bf16.msra.mxu0 %v2095
  %2172 = vmatprep.subr.bf16.mxu0 %v2092
  %2173 = vmatpush1.bf16.msra.mxu0 %v2091
  %2174 = vmatprep.subr.bf16.mxu0 %v2088
  %2175 = vmatpush1.bf16.msra.mxu0 %v2087
  %2176 = vmatprep.subr.bf16.mxu0 %v2084
  %2177 = vmatpush1.bf16.msra.mxu0 %v2083
  %2178 = vmatprep.subr.bf16.mxu0 %v2080
  %2179 = vmatpush1.bf16.msra.mxu0 %v2079
  %2180 = vmatprep.subr.bf16.mxu0 %v2076
  %2181 = vmatpush1.bf16.msra.mxu0 %v2075
  %2182 = vmatprep.subr.bf16.mxu0 %v2072
  %2183 = vmatpush1.bf16.msra.mxu0 %v2071
  %2184 = vmatprep.subr.bf16.mxu0 %v2068
  %2185 = vmatpush1.bf16.msra.mxu0 %v2067
  %2186 = vmatprep.subr.bf16.mxu0 0
  %2187 = vmatpush2.bf16.msra.mxu0 0
  %2188 = vmatprep.subr.bf16.mxu0 0
  %2189 = vmatpush2.bf16.msra.mxu0 0
  %2190 = vmatprep.subr.bf16.mxu0 0
  %2191 = vmatpush2.bf16.msra.mxu0 0
  %2192 = vmatprep.subr.bf16.mxu0 0
  %2193 = vmatpush2.bf16.msra.mxu0 0
  %2194 = vmatprep.subr.bf16.mxu0 0
  %2195 = vmatpush2.bf16.msra.mxu0 0
  %2196 = vmatprep.subr.bf16.mxu0 0
  %2197 = vmatpush2.bf16.msra.mxu0 0
  %2198 = vmatprep.subr.bf16.mxu0 0
  %2199 = vmatpush2.bf16.msra.mxu0 0
  %2200 = vmatprep.subr.bf16.mxu0 0
  %2201 = vmatpush2.bf16.msra.mxu0 0
  %2202 = vmatprep.mubr.bf16.mxu0 0
  %2203 = vmatmul.mubr.bf16.gmra.mxu0 %v1645
  %v2204 = vpop.f32.mrf.mxu0
  %v2205 = vadd.f32 0.0, %v2204
  %v2206 = vpop.f32.mrf.mxu0
  %v2207 = vadd.f32 0.0, %v2206
  %v2208 = vpop.f32.mrf.mxu0
  %v2209 = vpop.f32.mrf.mxu0
  %2210 = vdwg.mxu0
  %v2211 = vadd.f32 %v1933, %v2164
  %v2212 = vadd.f32 %v1934, %v2166
  %v2213 = vadd.f32 %v1935, %v2205
  %v2214 = vadd.f32 %v1936, %v2207
  %v2215 = vxor.u32 %v1927, 2147483648
  %v2216 = vxor.u32 %v1928, 2147483648
  %v2217 = vxor.u32 %v1929, 2147483648
  %v2218 = vmul.f32 %v2215, 1.442695
  %v2219 = vpow.pop %v2218
  %v2220 = vmul.f32 %v2216, 1.442695
  %v2221 = vpow.pop %v2220
  %v2222 = vmul.f32 %v2217, 1.442695
  %v2223 = vpow.pop %v2222
  %v2224 = vadd.f32 %v2219, 1.0
  %v2225 = vadd.f32 %v2221, 1.0
  %v2226 = vadd.f32 %v2223, 1.0
  %v2227 = vrcp.pop %v2224
  %v2228 = vmul.f32 1.0, %v2227
  %v2229 = vrcp.pop %v2225
  %v2230 = vmul.f32 1.0, %v2229
  %v2231 = vrcp.pop %v2226
  %v2232 = vmul.f32 1.0, %v2231
  %v2233 = vtanh.pop %v1930
  %v2234 = vmul.f32 %v2230, %v1635
  %v2235 = vmul.f32 %v2228, %v2233
  %v2236 = vadd.f32 %v2234, %v2235
  %v2237 = vtanh.pop %v2236
  %v2238 = vmul.f32 %v2232, %v2237
  %v2239 = vxor.u32 %v2211, 2147483648
  %v2240 = vxor.u32 %v2212, 2147483648
  %v2241 = vxor.u32 %v2213, 2147483648
  %v2242 = vmul.f32 %v2239, 1.442695
  %v2243 = vpow.pop %v2242
  %v2244 = vmul.f32 %v2240, 1.442695
  %v2245 = vpow.pop %v2244
  %v2246 = vmul.f32 %v2241, 1.442695
  %v2247 = vpow.pop %v2246
  %v2248 = vadd.f32 %v2243, 1.0
  %v2249 = vadd.f32 %v2245, 1.0
  %v2250 = vadd.f32 %v2247, 1.0
  %v2251 = vrcp.pop %v2248
  %v2252 = vmul.f32 1.0, %v2251
  %v2253 = vrcp.pop %v2249
  %v2254 = vmul.f32 1.0, %v2253
  %v2255 = vrcp.pop %v2250
  %v2256 = vmul.f32 1.0, %v2255
  %v2257 = vtanh.pop %v2214
  %v2258 = vmul.f32 %v2254, %v1642
  %v2259 = vmul.f32 %v2252, %v2257
  %v2260 = vadd.f32 %v2258, %v2259
  %v2261 = vtanh.pop %v2260
  %v2262 = vmul.f32 %v2256, %v2261
  %vm2263 = vcmp.gt.s32.totalorder %v1010, 1
  %vm2264 = vcmp.gt.s32.totalorder %v1010, 6
  %v2265 = vsel %vm2263, 1, 0
  %2266 = vset.pattern.permute.xlu0 0
  %2267 = vperm.xlu0 %2266, %v2265
  %v2268 = vpop.permute.xlu0 %2267
  %vm2269 = vcmp.eq.s32.totalorder %v2268, 1
  %v2270 = vsel %vm2269, %v2238, %v1634
  %v2271 = vsel %vm2269, %v2236, %v1635
  %v2272 = vsel %vm2264, 1, 0
  %2273 = vset.pattern.permute.xlu0 0
  %2274 = vperm.xlu0 %2273, %v2272
  %v2275 = vpop.permute.xlu0 %2274
  %vm2276 = vcmp.eq.s32.totalorder %v2275, 1
  %v2277 = vsel %vm2276, %v2262, %v1641
  %v2278 = vsel %vm2276, %v2260, %v1642
  %v2279 = vsel %vm2269, %v2238, 0.0
  %v2280 = vpack.c.bf16 %v2279, %v2279
  %2281 = vst [vmem:[#allocation3 + $0x8] sm:$0xf] %v2280
  %v2282 = vsel %vm2276, %v2262, 0.0
  %v2283 = vpack.c.bf16 %v2282, %v2282
  %2284 = vst [vmem:[#allocation3 + $0x34] sm:$0xf] %v2283
  %v2285 = vld [vmem:[#allocation2 + $0x40] sm:$0xff]
  %v2286 = vld [vmem:[#allocation2 + $0x48] sm:$0xff]
  %v2287 = vunpack.c.l.bf16 %v2285
  %v2288 = vunpack.c.h.bf16 %v2285
  %v2289 = vunpack.c.l.bf16 %v2286
  %v2290 = vunpack.c.h.bf16 %v2286
  %v2291 = vpack.c.bf16 %v2270, %v2270
  %v2292 = vld [vmem:[%s4] sm:$0xff]
  %v2293 = vld [vmem:[%s4 + $0x8] sm:$0xff]
  %v2294 = vld [vmem:[%s4 + $0x10] sm:$0xff]
  %v2295 = vld [vmem:[%s4 + $0x18] sm:$0xff]
  %v2296 = vld [vmem:[%s4 + $0x20] sm:$0xff]
  %v2297 = vld [vmem:[%s4 + $0x28] sm:$0xff]
  %v2298 = vld [vmem:[%s4 + $0x30] sm:$0xff]
  %v2299 = vld [vmem:[%s4 + $0x38] sm:$0xff]
  %v2300 = vld [vmem:[%s4 + $0x40] sm:$0xff]
  %v2301 = vld [vmem:[%s4 + $0x48] sm:$0xff]
  %v2302 = vld [vmem:[%s4 + $0x50] sm:$0xff]
  %v2303 = vld [vmem:[%s4 + $0x58] sm:$0xff]
  %v2304 = vld [vmem:[%s4 + $0x60] sm:$0xff]
  %v2305 = vld [vmem:[%s4 + $0x68] sm:$0xff]
  %v2306 = vld [vmem:[%s4 + $0x70] sm:$0xff]
  %v2307 = vld [vmem:[%s4 + $0x78] sm:$0xff]
  %v2308 = vld [vmem:[%s4 + $0x80] sm:$0xff]
  %v2309 = vld [vmem:[%s4 + $0x88] sm:$0xff]
  %v2310 = vld [vmem:[%s4 + $0x90] sm:$0xff]
  %v2311 = vld [vmem:[%s4 + $0x98] sm:$0xff]
  %v2312 = vld [vmem:[%s4 + $0xa0] sm:$0xff]
  %v2313 = vld [vmem:[%s4 + $0xa8] sm:$0xff]
  %v2314 = vld [vmem:[%s4 + $0xb0] sm:$0xff]
  %v2315 = vld [vmem:[%s4 + $0xb8] sm:$0xff]
  %v2316 = vld [vmem:[%s4 + $0xc0] sm:$0xff]
  %v2317 = vld [vmem:[%s4 + $0xc8] sm:$0xff]
  %v2318 = vld [vmem:[%s4 + $0xd0] sm:$0xff]
  %v2319 = vld [vmem:[%s4 + $0xd8] sm:$0xff]
  %v2320 = vld [vmem:[%s4 + $0xe0] sm:$0xff]
  %v2321 = vld [vmem:[%s4 + $0xe8] sm:$0xff]
  %v2322 = vld [vmem:[%s4 + $0xf0] sm:$0xff]
  %v2323 = vld [vmem:[%s4 + $0xf8] sm:$0xff]
  %v2356 = vunpack.c.l.b16 %v2292
  %v2357 = vunpack.c.h.b16 %v2292
  %v2358 = vunpack.c.l.b16 %v2293
  %v2359 = vunpack.c.h.b16 %v2293
  %v2360 = vunpack.c.l.b16 %v2294
  %v2361 = vunpack.c.h.b16 %v2294
  %v2362 = vunpack.c.l.b16 %v2295
  %v2363 = vunpack.c.h.b16 %v2295
  %v2364 = vunpack.c.l.b16 %v2296
  %v2365 = vunpack.c.h.b16 %v2296
  %v2366 = vunpack.c.l.b16 %v2297
  %v2367 = vunpack.c.h.b16 %v2297
  %v2368 = vunpack.c.l.b16 %v2298
  %v2369 = vunpack.c.h.b16 %v2298
  %v2370 = vunpack.c.l.b16 %v2299
  %v2371 = vunpack.c.h.b16 %v2299
  %v2372 = vunpack.c.l.b16 %v2300
  %v2373 = vunpack.c.h.b16 %v2300
  %v2374 = vunpack.c.l.b16 %v2301
  %v2375 = vunpack.c.h.b16 %v2301
  %v2376 = vunpack.c.l.b16 %v2302
  %v2377 = vunpack.c.h.b16 %v2302
  %v2378 = vunpack.c.l.b16 %v2303
  %v2379 = vunpack.c.h.b16 %v2303
  %v2380 = vunpack.c.l.b16 %v2304
  %v2381 = vunpack.c.h.b16 %v2304
  %v2382 = vunpack.c.l.b16 %v2305
  %v2383 = vunpack.c.h.b16 %v2305
  %v2384 = vunpack.c.l.b16 %v2306
  %v2385 = vunpack.c.h.b16 %v2306
  %v2386 = vunpack.c.l.b16 %v2307
  %v2387 = vunpack.c.h.b16 %v2307
  %v2388 = vunpack.c.l.b16 %v2308
  %v2389 = vunpack.c.h.b16 %v2308
  %v2390 = vunpack.c.l.b16 %v2309
  %v2391 = vunpack.c.h.b16 %v2309
  %v2392 = vunpack.c.l.b16 %v2310
  %v2393 = vunpack.c.h.b16 %v2310
  %v2394 = vunpack.c.l.b16 %v2311
  %v2395 = vunpack.c.h.b16 %v2311
  %v2396 = vunpack.c.l.b16 %v2312
  %v2397 = vunpack.c.h.b16 %v2312
  %v2398 = vunpack.c.l.b16 %v2313
  %v2399 = vunpack.c.h.b16 %v2313
  %v2400 = vunpack.c.l.b16 %v2314
  %v2401 = vunpack.c.h.b16 %v2314
  %v2402 = vunpack.c.l.b16 %v2315
  %v2403 = vunpack.c.h.b16 %v2315
  %v2404 = vunpack.c.l.b16 %v2316
  %v2405 = vunpack.c.h.b16 %v2316
  %v2406 = vunpack.c.l.b16 %v2317
  %v2407 = vunpack.c.h.b16 %v2317
  %v2408 = vunpack.c.l.b16 %v2318
  %v2409 = vunpack.c.h.b16 %v2318
  %v2410 = vunpack.c.l.b16 %v2319
  %v2411 = vunpack.c.h.b16 %v2319
  %v2412 = vunpack.c.l.b16 %v2320
  %v2413 = vunpack.c.h.b16 %v2320
  %v2414 = vunpack.c.l.b16 %v2321
  %v2415 = vunpack.c.h.b16 %v2321
  %v2416 = vunpack.c.l.b16 %v2322
  %v2417 = vunpack.c.h.b16 %v2322
  %v2418 = vunpack.c.l.b16 %v2323
  %v2419 = vunpack.c.h.b16 %v2323
  %v2420 = vpack.c.b16 %v2360, %v2356
  %v2421 = vpack.c.b16 %v2361, %v2357
  %v2422 = vpack.c.b16 %v2362, %v2358
  %v2423 = vpack.c.b16 %v2363, %v2359
  %v2424 = vpack.c.b16 %v2368, %v2364
  %v2425 = vpack.c.b16 %v2369, %v2365
  %v2426 = vpack.c.b16 %v2370, %v2366
  %v2427 = vpack.c.b16 %v2371, %v2367
  %v2428 = vpack.c.b16 %v2376, %v2372
  %v2429 = vpack.c.b16 %v2377, %v2373
  %v2430 = vpack.c.b16 %v2378, %v2374
  %v2431 = vpack.c.b16 %v2379, %v2375
  %v2432 = vpack.c.b16 %v2384, %v2380
  %v2433 = vpack.c.b16 %v2385, %v2381
  %v2434 = vpack.c.b16 %v2386, %v2382
  %v2435 = vpack.c.b16 %v2387, %v2383
  %v2436 = vpack.c.b16 %v2392, %v2388
  %v2437 = vpack.c.b16 %v2393, %v2389
  %v2438 = vpack.c.b16 %v2394, %v2390
  %v2439 = vpack.c.b16 %v2395, %v2391
  %v2440 = vpack.c.b16 %v2400, %v2396
  %v2441 = vpack.c.b16 %v2401, %v2397
  %v2442 = vpack.c.b16 %v2402, %v2398
  %v2443 = vpack.c.b16 %v2403, %v2399
  %v2444 = vpack.c.b16 %v2408, %v2404
  %v2445 = vpack.c.b16 %v2409, %v2405
  %v2446 = vpack.c.b16 %v2410, %v2406
  %v2447 = vpack.c.b16 %v2411, %v2407
  %v2448 = vpack.c.b16 %v2416, %v2412
  %v2449 = vpack.c.b16 %v2417, %v2413
  %v2450 = vpack.c.b16 %v2418, %v2414
  %v2451 = vpack.c.b16 %v2419, %v2415
  %2484 = vmatprep.subr.bf16.mxu0 %v2449
  %2485 = vmatpush1.bf16.msra.mxu0 %v2448
  %2486 = vmatprep.subr.bf16.mxu0 %v2445
  %2487 = vmatpush1.bf16.msra.mxu0 %v2444
  %2488 = vmatprep.subr.bf16.mxu0 %v2441
  %2489 = vmatpush1.bf16.msra.mxu0 %v2440
  %2490 = vmatprep.subr.bf16.mxu0 %v2437
  %2491 = vmatpush1.bf16.msra.mxu0 %v2436
  %2492 = vmatprep.subr.bf16.mxu0 %v2433
  %2493 = vmatpush1.bf16.msra.mxu0 %v2432
  %2494 = vmatprep.subr.bf16.mxu0 %v2429
  %2495 = vmatpush1.bf16.msra.mxu0 %v2428
  %2496 = vmatprep.subr.bf16.mxu0 %v2425
  %2497 = vmatpush1.bf16.msra.mxu0 %v2424
  %2498 = vmatprep.subr.bf16.mxu0 %v2421
  %2499 = vmatpush1.bf16.msra.mxu0 %v2420
  %2500 = vmatprep.subr.bf16.mxu0 0
  %2501 = vmatpush2.bf16.msra.mxu0 0
  %2502 = vmatprep.subr.bf16.mxu0 0
  %2503 = vmatpush2.bf16.msra.mxu0 0
  %2504 = vmatprep.subr.bf16.mxu0 0
  %2505 = vmatpush2.bf16.msra.mxu0 0
  %2506 = vmatprep.subr.bf16.mxu0 0
  %2507 = vmatpush2.bf16.msra.mxu0 0
  %2508 = vmatprep.subr.bf16.mxu0 0
  %2509 = vmatpush2.bf16.msra.mxu0 0
  %2510 = vmatprep.subr.bf16.mxu0 0
  %2511 = vmatpush2.bf16.msra.mxu0 0
  %2512 = vmatprep.subr.bf16.mxu0 0
  %2513 = vmatpush2.bf16.msra.mxu0 0
  %2514 = vmatprep.subr.bf16.mxu0 0
  %2515 = vmatpush2.bf16.msra.mxu0 0
  %2516 = vmatprep.mubr.bf16.mxu0 0
  %2517 = vmatmul.mubr.bf16.gmra.mxu0 %v2291
  %v2518 = vpop.f32.mrf.mxu0
  %v2519 = vadd.f32 0.0, %v2518
  %v2520 = vpop.f32.mrf.mxu0
  %v2521 = vadd.f32 0.0, %v2520
  %v2522 = vpop.f32.mrf.mxu0
  %v2523 = vpop.f32.mrf.mxu0
  %2524 = vdwg.mxu0
  %2525 = vmatprep.subr.bf16.mxu0 %v2451
  %2526 = vmatpush1.bf16.msra.mxu0 %v2450
  %2527 = vmatprep.subr.bf16.mxu0 %v2447
  %2528 = vmatpush1.bf16.msra.mxu0 %v2446
  %2529 = vmatprep.subr.bf16.mxu0 %v2443
  %2530 = vmatpush1.bf16.msra.mxu0 %v2442
  %2531 = vmatprep.subr.bf16.mxu0 %v2439
  %2532 = vmatpush1.bf16.msra.mxu0 %v2438
  %2533 = vmatprep.subr.bf16.mxu0 %v2435
  %2534 = vmatpush1.bf16.msra.mxu0 %v2434
  %2535 = vmatprep.subr.bf16.mxu0 %v2431
  %2536 = vmatpush1.bf16.msra.mxu0 %v2430
  %2537 = vmatprep.subr.bf16.mxu0 %v2427
  %2538 = vmatpush1.bf16.msra.mxu0 %v2426
  %2539 = vmatprep.subr.bf16.mxu0 %v2423
  %2540 = vmatpush1.bf16.msra.mxu0 %v2422
  %2541 = vmatprep.subr.bf16.mxu0 0
  %2542 = vmatpush2.bf16.msra.mxu0 0
  %2543 = vmatprep.subr.bf16.mxu0 0
  %2544 = vmatpush2.bf16.msra.mxu0 0
  %2545 = vmatprep.subr.bf16.mxu0 0
  %2546 = vmatpush2.bf16.msra.mxu0 0
  %2547 = vmatprep.subr.bf16.mxu0 0
  %2548 = vmatpush2.bf16.msra.mxu0 0
  %2549 = vmatprep.subr.bf16.mxu0 0
  %2550 = vmatpush2.bf16.msra.mxu0 0
  %2551 = vmatprep.subr.bf16.mxu0 0
  %2552 = vmatpush2.bf16.msra.mxu0 0
  %2553 = vmatprep.subr.bf16.mxu0 0
  %2554 = vmatpush2.bf16.msra.mxu0 0
  %2555 = vmatprep.subr.bf16.mxu0 0
  %2556 = vmatpush2.bf16.msra.mxu0 0
  %2557 = vmatprep.mubr.bf16.mxu0 0
  %2558 = vmatmul.mubr.bf16.gmra.mxu0 %v2291
  %v2559 = vpop.f32.mrf.mxu0
  %v2560 = vadd.f32 0.0, %v2559
  %v2561 = vpop.f32.mrf.mxu0
  %v2562 = vadd.f32 0.0, %v2561
  %v2563 = vpop.f32.mrf.mxu0
  %v2564 = vpop.f32.mrf.mxu0
  %2565 = vdwg.mxu0
  %v2566 = vadd.f32 %v2287, %v2519
  %v2567 = vadd.f32 %v2288, %v2521
  %v2568 = vadd.f32 %v2289, %v2560
  %v2569 = vadd.f32 %v2290, %v2562
  %v2570 = vld [vmem:[#allocation2 + $0xb0] sm:$0xff]
  %v2571 = vld [vmem:[#allocation2 + $0xb8] sm:$0xff]
  %v2572 = vunpack.c.l.bf16 %v2570
  %v2573 = vunpack.c.h.bf16 %v2570
  %v2574 = vunpack.c.l.bf16 %v2571
  %v2575 = vunpack.c.h.bf16 %v2571
  %v2576 = vpack.c.bf16 %v2277, %v2277
  %v2577 = vld [vmem:[%s5] sm:$0xff]
  %v2578 = vld [vmem:[%s5 + $0x8] sm:$0xff]
  %v2579 = vld [vmem:[%s5 + $0x10] sm:$0xff]
  %v2580 = vld [vmem:[%s5 + $0x18] sm:$0xff]
  %v2581 = vld [vmem:[%s5 + $0x20] sm:$0xff]
  %v2582 = vld [vmem:[%s5 + $0x28] sm:$0xff]
  %v2583 = vld [vmem:[%s5 + $0x30] sm:$0xff]
  %v2584 = vld [vmem:[%s5 + $0x38] sm:$0xff]
  %v2585 = vld [vmem:[%s5 + $0x40] sm:$0xff]
  %v2586 = vld [vmem:[%s5 + $0x48] sm:$0xff]
  %v2587 = vld [vmem:[%s5 + $0x50] sm:$0xff]
  %v2588 = vld [vmem:[%s5 + $0x58] sm:$0xff]
  %v2589 = vld [vmem:[%s5 + $0x60] sm:$0xff]
  %v2590 = vld [vmem:[%s5 + $0x68] sm:$0xff]
  %v2591 = vld [vmem:[%s5 + $0x70] sm:$0xff]
  %v2592 = vld [vmem:[%s5 + $0x78] sm:$0xff]
  %v2593 = vld [vmem:[%s5 + $0x80] sm:$0xff]
  %v2594 = vld [vmem:[%s5 + $0x88] sm:$0xff]
  %v2595 = vld [vmem:[%s5 + $0x90] sm:$0xff]
  %v2596 = vld [vmem:[%s5 + $0x98] sm:$0xff]
  %v2597 = vld [vmem:[%s5 + $0xa0] sm:$0xff]
  %v2598 = vld [vmem:[%s5 + $0xa8] sm:$0xff]
  %v2599 = vld [vmem:[%s5 + $0xb0] sm:$0xff]
  %v2600 = vld [vmem:[%s5 + $0xb8] sm:$0xff]
  %v2601 = vld [vmem:[%s5 + $0xc0] sm:$0xff]
  %v2602 = vld [vmem:[%s5 + $0xc8] sm:$0xff]
  %v2603 = vld [vmem:[%s5 + $0xd0] sm:$0xff]
  %v2604 = vld [vmem:[%s5 + $0xd8] sm:$0xff]
  %v2605 = vld [vmem:[%s5 + $0xe0] sm:$0xff]
  %v2606 = vld [vmem:[%s5 + $0xe8] sm:$0xff]
  %v2607 = vld [vmem:[%s5 + $0xf0] sm:$0xff]
  %v2608 = vld [vmem:[%s5 + $0xf8] sm:$0xff]
  %v2641 = vunpack.c.l.b16 %v2577
  %v2642 = vunpack.c.h.b16 %v2577
  %v2643 = vunpack.c.l.b16 %v2578
  %v2644 = vunpack.c.h.b16 %v2578
  %v2645 = vunpack.c.l.b16 %v2579
  %v2646 = vunpack.c.h.b16 %v2579
  %v2647 = vunpack.c.l.b16 %v2580
  %v2648 = vunpack.c.h.b16 %v2580
  %v2649 = vunpack.c.l.b16 %v2581
  %v2650 = vunpack.c.h.b16 %v2581
  %v2651 = vunpack.c.l.b16 %v2582
  %v2652 = vunpack.c.h.b16 %v2582
  %v2653 = vunpack.c.l.b16 %v2583
  %v2654 = vunpack.c.h.b16 %v2583
  %v2655 = vunpack.c.l.b16 %v2584
  %v2656 = vunpack.c.h.b16 %v2584
  %v2657 = vunpack.c.l.b16 %v2585
  %v2658 = vunpack.c.h.b16 %v2585
  %v2659 = vunpack.c.l.b16 %v2586
  %v2660 = vunpack.c.h.b16 %v2586
  %v2661 = vunpack.c.l.b16 %v2587
  %v2662 = vunpack.c.h.b16 %v2587
  %v2663 = vunpack.c.l.b16 %v2588
  %v2664 = vunpack.c.h.b16 %v2588
  %v2665 = vunpack.c.l.b16 %v2589
  %v2666 = vunpack.c.h.b16 %v2589
  %v2667 = vunpack.c.l.b16 %v2590
  %v2668 = vunpack.c.h.b16 %v2590
  %v2669 = vunpack.c.l.b16 %v2591
  %v2670 = vunpack.c.h.b16 %v2591
  %v2671 = vunpack.c.l.b16 %v2592
  %v2672 = vunpack.c.h.b16 %v2592
  %v2673 = vunpack.c.l.b16 %v2593
  %v2674 = vunpack.c.h.b16 %v2593
  %v2675 = vunpack.c.l.b16 %v2594
  %v2676 = vunpack.c.h.b16 %v2594
  %v2677 = vunpack.c.l.b16 %v2595
  %v2678 = vunpack.c.h.b16 %v2595
  %v2679 = vunpack.c.l.b16 %v2596
  %v2680 = vunpack.c.h.b16 %v2596
  %v2681 = vunpack.c.l.b16 %v2597
  %v2682 = vunpack.c.h.b16 %v2597
  %v2683 = vunpack.c.l.b16 %v2598
  %v2684 = vunpack.c.h.b16 %v2598
  %v2685 = vunpack.c.l.b16 %v2599
  %v2686 = vunpack.c.h.b16 %v2599
  %v2687 = vunpack.c.l.b16 %v2600
  %v2688 = vunpack.c.h.b16 %v2600
  %v2689 = vunpack.c.l.b16 %v2601
  %v2690 = vunpack.c.h.b16 %v2601
  %v2691 = vunpack.c.l.b16 %v2602
  %v2692 = vunpack.c.h.b16 %v2602
  %v2693 = vunpack.c.l.b16 %v2603
  %v2694 = vunpack.c.h.b16 %v2603
  %v2695 = vunpack.c.l.b16 %v2604
  %v2696 = vunpack.c.h.b16 %v2604
  %v2697 = vunpack.c.l.b16 %v2605
  %v2698 = vunpack.c.h.b16 %v2605
  %v2699 = vunpack.c.l.b16 %v2606
  %v2700 = vunpack.c.h.b16 %v2606
  %v2701 = vunpack.c.l.b16 %v2607
  %v2702 = vunpack.c.h.b16 %v2607
  %v2703 = vunpack.c.l.b16 %v2608
  %v2704 = vunpack.c.h.b16 %v2608
  %v2705 = vpack.c.b16 %v2645, %v2641
  %v2706 = vpack.c.b16 %v2646, %v2642
  %v2707 = vpack.c.b16 %v2647, %v2643
  %v2708 = vpack.c.b16 %v2648, %v2644
  %v2709 = vpack.c.b16 %v2653, %v2649
  %v2710 = vpack.c.b16 %v2654, %v2650
  %v2711 = vpack.c.b16 %v2655, %v2651
  %v2712 = vpack.c.b16 %v2656, %v2652
  %v2713 = vpack.c.b16 %v2661, %v2657
  %v2714 = vpack.c.b16 %v2662, %v2658
  %v2715 = vpack.c.b16 %v2663, %v2659
  %v2716 = vpack.c.b16 %v2664, %v2660
  %v2717 = vpack.c.b16 %v2669, %v2665
  %v2718 = vpack.c.b16 %v2670, %v2666
  %v2719 = vpack.c.b16 %v2671, %v2667
  %v2720 = vpack.c.b16 %v2672, %v2668
  %v2721 = vpack.c.b16 %v2677, %v2673
  %v2722 = vpack.c.b16 %v2678, %v2674
  %v2723 = vpack.c.b16 %v2679, %v2675
  %v2724 = vpack.c.b16 %v2680, %v2676
  %v2725 = vpack.c.b16 %v2685, %v2681
  %v2726 = vpack.c.b16 %v2686, %v2682
  %v2727 = vpack.c.b16 %v2687, %v2683
  %v2728 = vpack.c.b16 %v2688, %v2684
  %v2729 = vpack.c.b16 %v2693, %v2689
  %v2730 = vpack.c.b16 %v2694, %v2690
  %v2731 = vpack.c.b16 %v2695, %v2691
  %v2732 = vpack.c.b16 %v2696, %v2692
  %v2733 = vpack.c.b16 %v2701, %v2697
  %v2734 = vpack.c.b16 %v2702, %v2698
  %v2735 = vpack.c.b16 %v2703, %v2699
  %v2736 = vpack.c.b16 %v2704, %v2700
  %2769 = vmatprep.subr.bf16.mxu0 %v2734
  %2770 = vmatpush1.bf16.msra.mxu0 %v2733
  %2771 = vmatprep.subr.bf16.mxu0 %v2730
  %2772 = vmatpush1.bf16.msra.mxu0 %v2729
  %2773 = vmatprep.subr.bf16.mxu0 %v2726
  %2774 = vmatpush1.bf16.msra.mxu0 %v2725
  %2775 = vmatprep.subr.bf16.mxu0 %v2722
  %2776 = vmatpush1.bf16.msra.mxu0 %v2721
  %2777 = vmatprep.subr.bf16.mxu0 %v2718
  %2778 = vmatpush1.bf16.msra.mxu0 %v2717
  %2779 = vmatprep.subr.bf16.mxu0 %v2714
  %2780 = vmatpush1.bf16.msra.mxu0 %v2713
  %2781 = vmatprep.subr.bf16.mxu0 %v2710
  %2782 = vmatpush1.bf16.msra.mxu0 %v2709
  %2783 = vmatprep.subr.bf16.mxu0 %v2706
  %2784 = vmatpush1.bf16.msra.mxu0 %v2705
  %2785 = vmatprep.subr.bf16.mxu0 0
  %2786 = vmatpush2.bf16.msra.mxu0 0
  %2787 = vmatprep.subr.bf16.mxu0 0
  %2788 = vmatpush2.bf16.msra.mxu0 0
  %2789 = vmatprep.subr.bf16.mxu0 0
  %2790 = vmatpush2.bf16.msra.mxu0 0
  %2791 = vmatprep.subr.bf16.mxu0 0
  %2792 = vmatpush2.bf16.msra.mxu0 0
  %2793 = vmatprep.subr.bf16.mxu0 0
  %2794 = vmatpush2.bf16.msra.mxu0 0
  %2795 = vmatprep.subr.bf16.mxu0 0
  %2796 = vmatpush2.bf16.msra.mxu0 0
  %2797 = vmatprep.subr.bf16.mxu0 0
  %2798 = vmatpush2.bf16.msra.mxu0 0
  %2799 = vmatprep.subr.bf16.mxu0 0
  %2800 = vmatpush2.bf16.msra.mxu0 0
  %2801 = vmatprep.mubr.bf16.mxu0 0
  %2802 = vmatmul.mubr.bf16.gmra.mxu0 %v2576
  %v2803 = vpop.f32.mrf.mxu0
  %v2804 = vadd.f32 0.0, %v2803
  %v2805 = vpop.f32.mrf.mxu0
  %v2806 = vadd.f32 0.0, %v2805
  %v2807 = vpop.f32.mrf.mxu0
  %v2808 = vpop.f32.mrf.mxu0
  %2809 = vdwg.mxu0
  %2810 = vmatprep.subr.bf16.mxu0 %v2736
  %2811 = vmatpush1.bf16.msra.mxu0 %v2735
  %2812 = vmatprep.subr.bf16.mxu0 %v2732
  %2813 = vmatpush1.bf16.msra.mxu0 %v2731
  %2814 = vmatprep.subr.bf16.mxu0 %v2728
  %2815 = vmatpush1.bf16.msra.mxu0 %v2727
  %2816 = vmatprep.subr.bf16.mxu0 %v2724
  %2817 = vmatpush1.bf16.msra.mxu0 %v2723
  %2818 = vmatprep.subr.bf16.mxu0 %v2720
  %2819 = vmatpush1.bf16.msra.mxu0 %v2719
  %2820 = vmatprep.subr.bf16.mxu0 %v2716
  %2821 = vmatpush1.bf16.msra.mxu0 %v2715
  %2822 = vmatprep.subr.bf16.mxu0 %v2712
  %2823 = vmatpush1.bf16.msra.mxu0 %v2711
  %2824 = vmatprep.subr.bf16.mxu0 %v2708
  %2825 = vmatpush1.bf16.msra.mxu0 %v2707
  %2826 = vmatprep.subr.bf16.mxu0 0
  %2827 = vmatpush2.bf16.msra.mxu0 0
  %2828 = vmatprep.subr.bf16.mxu0 0
  %2829 = vmatpush2.bf16.msra.mxu0 0
  %2830 = vmatprep.subr.bf16.mxu0 0
  %2831 = vmatpush2.bf16.msra.mxu0 0
  %2832 = vmatprep.subr.bf16.mxu0 0
  %2833 = vmatpush2.bf16.msra.mxu0 0
  %2834 = vmatprep.subr.bf16.mxu0 0
  %2835 = vmatpush2.bf16.msra.mxu0 0
  %2836 = vmatprep.subr.bf16.mxu0 0
  %2837 = vmatpush2.bf16.msra.mxu0 0
  %2838 = vmatprep.subr.bf16.mxu0 0
  %2839 = vmatpush2.bf16.msra.mxu0 0
  %2840 = vmatprep.subr.bf16.mxu0 0
  %2841 = vmatpush2.bf16.msra.mxu0 0
  %2842 = vmatprep.mubr.bf16.mxu0 0
  %2843 = vmatmul.mubr.bf16.gmra.mxu0 %v2576
  %v2844 = vpop.f32.mrf.mxu0
  %v2845 = vadd.f32 0.0, %v2844
  %v2846 = vpop.f32.mrf.mxu0
  %v2847 = vadd.f32 0.0, %v2846
  %v2848 = vpop.f32.mrf.mxu0
  %v2849 = vpop.f32.mrf.mxu0
  %2850 = vdwg.mxu0
  %v2851 = vadd.f32 %v2572, %v2804
  %v2852 = vadd.f32 %v2573, %v2806
  %v2853 = vadd.f32 %v2574, %v2845
  %v2854 = vadd.f32 %v2575, %v2847
  %v2855 = vxor.u32 %v2566, 2147483648
  %v2856 = vxor.u32 %v2567, 2147483648
  %v2857 = vxor.u32 %v2568, 2147483648
  %v2858 = vmul.f32 %v2855, 1.442695
  %v2859 = vpow.pop %v2858
  %v2860 = vmul.f32 %v2856, 1.442695
  %v2861 = vpow.pop %v2860
  %v2862 = vmul.f32 %v2857, 1.442695
  %v2863 = vpow.pop %v2862
  %v2864 = vadd.f32 %v2859, 1.0
  %v2865 = vadd.f32 %v2861, 1.0
  %v2866 = vadd.f32 %v2863, 1.0
  %v2867 = vrcp.pop %v2864
  %v2868 = vmul.f32 1.0, %v2867
  %v2869 = vrcp.pop %v2865
  %v2870 = vmul.f32 1.0, %v2869
  %v2871 = vrcp.pop %v2866
  %v2872 = vmul.f32 1.0, %v2871
  %v2873 = vtanh.pop %v2569
  %v2874 = vmul.f32 %v2870, %v2271
  %v2875 = vmul.f32 %v2868, %v2873
  %v2876 = vadd.f32 %v2874, %v2875
  %v2877 = vtanh.pop %v2876
  %v2878 = vmul.f32 %v2872, %v2877
  %v2879 = vxor.u32 %v2851, 2147483648
  %v2880 = vxor.u32 %v2852, 2147483648
  %v2881 = vxor.u32 %v2853, 2147483648
  %v2882 = vmul.f32 %v2879, 1.442695
  %v2883 = vpow.pop %v2882
  %v2884 = vmul.f32 %v2880, 1.442695
  %v2885 = vpow.pop %v2884
  %v2886 = vmul.f32 %v2881, 1.442695
  %v2887 = vpow.pop %v2886
  %v2888 = vadd.f32 %v2883, 1.0
  %v2889 = vadd.f32 %v2885, 1.0
  %v2890 = vadd.f32 %v2887, 1.0
  %v2891 = vrcp.pop %v2888
  %v2892 = vmul.f32 1.0, %v2891
  %v2893 = vrcp.pop %v2889
  %v2894 = vmul.f32 1.0, %v2893
  %v2895 = vrcp.pop %v2890
  %v2896 = vmul.f32 1.0, %v2895
  %v2897 = vtanh.pop %v2854
  %v2898 = vmul.f32 %v2894, %v2278
  %v2899 = vmul.f32 %v2892, %v2897
  %v2900 = vadd.f32 %v2898, %v2899
  %v2901 = vtanh.pop %v2900
  %v2902 = vmul.f32 %v2896, %v2901
  %vm2903 = vcmp.gt.s32.totalorder %v1010, 2
  %vm2904 = vcmp.gt.s32.totalorder %v1010, 5
  %v2905 = vsel %vm2903, 1, 0
  %2906 = vset.pattern.permute.xlu0 0
  %2907 = vperm.xlu0 %2906, %v2905
  %v2908 = vpop.permute.xlu0 %2907
  %vm2909 = vcmp.eq.s32.totalorder %v2908, 1
  %v2910 = vsel %vm2909, %v2878, %v2270
  %v2911 = vsel %vm2909, %v2876, %v2271
  %v2912 = vsel %vm2904, 1, 0
  %2913 = vset.pattern.permute.xlu0 0
  %2914 = vperm.xlu0 %2913, %v2912
  %v2915 = vpop.permute.xlu0 %2914
  %vm2916 = vcmp.eq.s32.totalorder %v2915, 1
  %v2917 = vsel %vm2916, %v2902, %v2277
  %v2918 = vsel %vm2916, %v2900, %v2278
  %v2919 = vsel %vm2909, %v2878, 0.0
  %v2920 = vpack.c.bf16 %v2919, %v2919
  %2921 = vst [vmem:[#allocation3 + $0x10] sm:$0xf] %v2920
  %v2922 = vsel %vm2916, %v2902, 0.0
  %v2923 = vpack.c.bf16 %v2922, %v2922
  %2924 = vst [vmem:[#allocation3 + $0x2c] sm:$0xf] %v2923
  %v2925 = vld [vmem:[#allocation2 + $0x60] sm:$0xff]
  %v2926 = vld [vmem:[#allocation2 + $0x68] sm:$0xff]
  %v2927 = vunpack.c.l.bf16 %v2925
  %v2928 = vunpack.c.h.bf16 %v2925
  %v2929 = vunpack.c.l.bf16 %v2926
  %v2930 = vunpack.c.h.bf16 %v2926
  %v2931 = vpack.c.bf16 %v2910, %v2910
  %v2932 = vld [vmem:[%s4] sm:$0xff]
  %v2933 = vld [vmem:[%s4 + $0x8] sm:$0xff]
  %v2934 = vld [vmem:[%s4 + $0x10] sm:$0xff]
  %v2935 = vld [vmem:[%s4 + $0x18] sm:$0xff]
  %v2936 = vld [vmem:[%s4 + $0x20] sm:$0xff]
  %v2937 = vld [vmem:[%s4 + $0x28] sm:$0xff]
  %v2938 = vld [vmem:[%s4 + $0x30] sm:$0xff]
  %v2939 = vld [vmem:[%s4 + $0x38] sm:$0xff]
  %v2940 = vld [vmem:[%s4 + $0x40] sm:$0xff]
  %v2941 = vld [vmem:[%s4 + $0x48] sm:$0xff]
  %v2942 = vld [vmem:[%s4 + $0x50] sm:$0xff]
  %v2943 = vld [vmem:[%s4 + $0x58] sm:$0xff]
  %v2944 = vld [vmem:[%s4 + $0x60] sm:$0xff]
  %v2945 = vld [vmem:[%s4 + $0x68] sm:$0xff]
  %v2946 = vld [vmem:[%s4 + $0x70] sm:$0xff]
  %v2947 = vld [vmem:[%s4 + $0x78] sm:$0xff]
  %v2948 = vld [vmem:[%s4 + $0x80] sm:$0xff]
  %v2949 = vld [vmem:[%s4 + $0x88] sm:$0xff]
  %v2950 = vld [vmem:[%s4 + $0x90] sm:$0xff]
  %v2951 = vld [vmem:[%s4 + $0x98] sm:$0xff]
  %v2952 = vld [vmem:[%s4 + $0xa0] sm:$0xff]
  %v2953 = vld [vmem:[%s4 + $0xa8] sm:$0xff]
  %v2954 = vld [vmem:[%s4 + $0xb0] sm:$0xff]
  %v2955 = vld [vmem:[%s4 + $0xb8] sm:$0xff]
  %v2956 = vld [vmem:[%s4 + $0xc0] sm:$0xff]
  %v2957 = vld [vmem:[%s4 + $0xc8] sm:$0xff]
  %v2958 = vld [vmem:[%s4 + $0xd0] sm:$0xff]
  %v2959 = vld [vmem:[%s4 + $0xd8] sm:$0xff]
  %v2960 = vld [vmem:[%s4 + $0xe0] sm:$0xff]
  %v2961 = vld [vmem:[%s4 + $0xe8] sm:$0xff]
  %v2962 = vld [vmem:[%s4 + $0xf0] sm:$0xff]
  %v2963 = vld [vmem:[%s4 + $0xf8] sm:$0xff]
  %v2996 = vunpack.c.l.b16 %v2932
  %v2997 = vunpack.c.h.b16 %v2932
  %v2998 = vunpack.c.l.b16 %v2933
  %v2999 = vunpack.c.h.b16 %v2933
  %v3000 = vunpack.c.l.b16 %v2934
  %v3001 = vunpack.c.h.b16 %v2934
  %v3002 = vunpack.c.l.b16 %v2935
  %v3003 = vunpack.c.h.b16 %v2935
  %v3004 = vunpack.c.l.b16 %v2936
  %v3005 = vunpack.c.h.b16 %v2936
  %v3006 = vunpack.c.l.b16 %v2937
  %v3007 = vunpack.c.h.b16 %v2937
  %v3008 = vunpack.c.l.b16 %v2938
  %v3009 = vunpack.c.h.b16 %v2938
  %v3010 = vunpack.c.l.b16 %v2939
  %v3011 = vunpack.c.h.b16 %v2939
  %v3012 = vunpack.c.l.b16 %v2940
  %v3013 = vunpack.c.h.b16 %v2940
  %v3014 = vunpack.c.l.b16 %v2941
  %v3015 = vunpack.c.h.b16 %v2941
  %v3016 = vunpack.c.l.b16 %v2942
  %v3017 = vunpack.c.h.b16 %v2942
  %v3018 = vunpack.c.l.b16 %v2943
  %v3019 = vunpack.c.h.b16 %v2943
  %v3020 = vunpack.c.l.b16 %v2944
  %v3021 = vunpack.c.h.b16 %v2944
  %v3022 = vunpack.c.l.b16 %v2945
  %v3023 = vunpack.c.h.b16 %v2945
  %v3024 = vunpack.c.l.b16 %v2946
  %v3025 = vunpack.c.h.b16 %v2946
  %v3026 = vunpack.c.l.b16 %v2947
  %v3027 = vunpack.c.h.b16 %v2947
  %v3028 = vunpack.c.l.b16 %v2948
  %v3029 = vunpack.c.h.b16 %v2948
  %v3030 = vunpack.c.l.b16 %v2949
  %v3031 = vunpack.c.h.b16 %v2949
  %v3032 = vunpack.c.l.b16 %v2950
  %v3033 = vunpack.c.h.b16 %v2950
  %v3034 = vunpack.c.l.b16 %v2951
  %v3035 = vunpack.c.h.b16 %v2951
  %v3036 = vunpack.c.l.b16 %v2952
  %v3037 = vunpack.c.h.b16 %v2952
  %v3038 = vunpack.c.l.b16 %v2953
  %v3039 = vunpack.c.h.b16 %v2953
  %v3040 = vunpack.c.l.b16 %v2954
  %v3041 = vunpack.c.h.b16 %v2954
  %v3042 = vunpack.c.l.b16 %v2955
  %v3043 = vunpack.c.h.b16 %v2955
  %v3044 = vunpack.c.l.b16 %v2956
  %v3045 = vunpack.c.h.b16 %v2956
  %v3046 = vunpack.c.l.b16 %v2957
  %v3047 = vunpack.c.h.b16 %v2957
  %v3048 = vunpack.c.l.b16 %v2958
  %v3049 = vunpack.c.h.b16 %v2958
  %v3050 = vunpack.c.l.b16 %v2959
  %v3051 = vunpack.c.h.b16 %v2959
  %v3052 = vunpack.c.l.b16 %v2960
  %v3053 = vunpack.c.h.b16 %v2960
  %v3054 = vunpack.c.l.b16 %v2961
  %v3055 = vunpack.c.h.b16 %v2961
  %v3056 = vunpack.c.l.b16 %v2962
  %v3057 = vunpack.c.h.b16 %v2962
  %v3058 = vunpack.c.l.b16 %v2963
  %v3059 = vunpack.c.h.b16 %v2963
  %v3060 = vpack.c.b16 %v3000, %v2996
  %v3061 = vpack.c.b16 %v3001, %v2997
  %v3062 = vpack.c.b16 %v3002, %v2998
  %v3063 = vpack.c.b16 %v3003, %v2999
  %v3064 = vpack.c.b16 %v3008, %v3004
  %v3065 = vpack.c.b16 %v3009, %v3005
  %v3066 = vpack.c.b16 %v3010, %v3006
  %v3067 = vpack.c.b16 %v3011, %v3007
  %v3068 = vpack.c.b16 %v3016, %v3012
  %v3069 = vpack.c.b16 %v3017, %v3013
  %v3070 = vpack.c.b16 %v3018, %v3014
  %v3071 = vpack.c.b16 %v3019, %v3015
  %v3072 = vpack.c.b16 %v3024, %v3020
  %v3073 = vpack.c.b16 %v3025, %v3021
  %v3074 = vpack.c.b16 %v3026, %v3022
  %v3075 = vpack.c.b16 %v3027, %v3023
  %v3076 = vpack.c.b16 %v3032, %v3028
  %v3077 = vpack.c.b16 %v3033, %v3029
  %v3078 = vpack.c.b16 %v3034, %v3030
  %v3079 = vpack.c.b16 %v3035, %v3031
  %v3080 = vpack.c.b16 %v3040, %v3036
  %v3081 = vpack.c.b16 %v3041, %v3037
  %v3082 = vpack.c.b16 %v3042, %v3038
  %v3083 = vpack.c.b16 %v3043, %v3039
  %v3084 = vpack.c.b16 %v3048, %v3044
  %v3085 = vpack.c.b16 %v3049, %v3045
  %v3086 = vpack.c.b16 %v3050, %v3046
  %v3087 = vpack.c.b16 %v3051, %v3047
  %v3088 = vpack.c.b16 %v3056, %v3052
  %v3089 = vpack.c.b16 %v3057, %v3053
  %v3090 = vpack.c.b16 %v3058, %v3054
  %v3091 = vpack.c.b16 %v3059, %v3055
  %3124 = vmatprep.subr.bf16.mxu0 %v3089
  %3125 = vmatpush1.bf16.msra.mxu0 %v3088
  %3126 = vmatprep.subr.bf16.mxu0 %v3085
  %3127 = vmatpush1.bf16.msra.mxu0 %v3084
  %3128 = vmatprep.subr.bf16.mxu0 %v3081
  %3129 = vmatpush1.bf16.msra.mxu0 %v3080
  %3130 = vmatprep.subr.bf16.mxu0 %v3077
  %3131 = vmatpush1.bf16.msra.mxu0 %v3076
  %3132 = vmatprep.subr.bf16.mxu0 %v3073
  %3133 = vmatpush1.bf16.msra.mxu0 %v3072
  %3134 = vmatprep.subr.bf16.mxu0 %v3069
  %3135 = vmatpush1.bf16.msra.mxu0 %v3068
  %3136 = vmatprep.subr.bf16.mxu0 %v3065
  %3137 = vmatpush1.bf16.msra.mxu0 %v3064
  %3138 = vmatprep.subr.bf16.mxu0 %v3061
  %3139 = vmatpush1.bf16.msra.mxu0 %v3060
  %3140 = vmatprep.subr.bf16.mxu0 0
  %3141 = vmatpush2.bf16.msra.mxu0 0
  %3142 = vmatprep.subr.bf16.mxu0 0
  %3143 = vmatpush2.bf16.msra.mxu0 0
  %3144 = vmatprep.subr.bf16.mxu0 0
  %3145 = vmatpush2.bf16.msra.mxu0 0
  %3146 = vmatprep.subr.bf16.mxu0 0
  %3147 = vmatpush2.bf16.msra.mxu0 0
  %3148 = vmatprep.subr.bf16.mxu0 0
  %3149 = vmatpush2.bf16.msra.mxu0 0
  %3150 = vmatprep.subr.bf16.mxu0 0
  %3151 = vmatpush2.bf16.msra.mxu0 0
  %3152 = vmatprep.subr.bf16.mxu0 0
  %3153 = vmatpush2.bf16.msra.mxu0 0
  %3154 = vmatprep.subr.bf16.mxu0 0
  %3155 = vmatpush2.bf16.msra.mxu0 0
  %3156 = vmatprep.mubr.bf16.mxu0 0
  %3157 = vmatmul.mubr.bf16.gmra.mxu0 %v2931
  %v3158 = vpop.f32.mrf.mxu0
  %v3159 = vadd.f32 0.0, %v3158
  %v3160 = vpop.f32.mrf.mxu0
  %v3161 = vadd.f32 0.0, %v3160
  %v3162 = vpop.f32.mrf.mxu0
  %v3163 = vpop.f32.mrf.mxu0
  %3164 = vdwg.mxu0
  %3165 = vmatprep.subr.bf16.mxu0 %v3091
  %3166 = vmatpush1.bf16.msra.mxu0 %v3090
  %3167 = vmatprep.subr.bf16.mxu0 %v3087
  %3168 = vmatpush1.bf16.msra.mxu0 %v3086
  %3169 = vmatprep.subr.bf16.mxu0 %v3083
  %3170 = vmatpush1.bf16.msra.mxu0 %v3082
  %3171 = vmatprep.subr.bf16.mxu0 %v3079
  %3172 = vmatpush1.bf16.msra.mxu0 %v3078
  %3173 = vmatprep.subr.bf16.mxu0 %v3075
  %3174 = vmatpush1.bf16.msra.mxu0 %v3074
  %3175 = vmatprep.subr.bf16.mxu0 %v3071
  %3176 = vmatpush1.bf16.msra.mxu0 %v3070
  %3177 = vmatprep.subr.bf16.mxu0 %v3067
  %3178 = vmatpush1.bf16.msra.mxu0 %v3066
  %3179 = vmatprep.subr.bf16.mxu0 %v3063
  %3180 = vmatpush1.bf16.msra.mxu0 %v3062
  %3181 = vmatprep.subr.bf16.mxu0 0
  %3182 = vmatpush2.bf16.msra.mxu0 0
  %3183 = vmatprep.subr.bf16.mxu0 0
  %3184 = vmatpush2.bf16.msra.mxu0 0
  %3185 = vmatprep.subr.bf16.mxu0 0
  %3186 = vmatpush2.bf16.msra.mxu0 0
  %3187 = vmatprep.subr.bf16.mxu0 0
  %3188 = vmatpush2.bf16.msra.mxu0 0
  %3189 = vmatprep.subr.bf16.mxu0 0
  %3190 = vmatpush2.bf16.msra.mxu0 0
  %3191 = vmatprep.subr.bf16.mxu0 0
  %3192 = vmatpush2.bf16.msra.mxu0 0
  %3193 = vmatprep.subr.bf16.mxu0 0
  %3194 = vmatpush2.bf16.msra.mxu0 0
  %3195 = vmatprep.subr.bf16.mxu0 0
  %3196 = vmatpush2.bf16.msra.mxu0 0
  %3197 = vmatprep.mubr.bf16.mxu0 0
  %3198 = vmatmul.mubr.bf16.gmra.mxu0 %v2931
  %v3199 = vpop.f32.mrf.mxu0
  %v3200 = vadd.f32 0.0, %v3199
  %v3201 = vpop.f32.mrf.mxu0
  %v3202 = vadd.f32 0.0, %v3201
  %v3203 = vpop.f32.mrf.mxu0
  %v3204 = vpop.f32.mrf.mxu0
  %3205 = vdwg.mxu0
  %v3206 = vadd.f32 %v2927, %v3159
  %v3207 = vadd.f32 %v2928, %v3161
  %v3208 = vadd.f32 %v2929, %v3200
  %v3209 = vadd.f32 %v2930, %v3202
  %v3210 = vld [vmem:[#allocation2 + $0x90] sm:$0xff]
  %v3211 = vld [vmem:[#allocation2 + $0x98] sm:$0xff]
  %v3212 = vunpack.c.l.bf16 %v3210
  %v3213 = vunpack.c.h.bf16 %v3210
  %v3214 = vunpack.c.l.bf16 %v3211
  %v3215 = vunpack.c.h.bf16 %v3211
  %v3216 = vpack.c.bf16 %v2917, %v2917
  %v3217 = vld [vmem:[%s5] sm:$0xff]
  %v3218 = vld [vmem:[%s5 + $0x8] sm:$0xff]
  %v3219 = vld [vmem:[%s5 + $0x10] sm:$0xff]
  %v3220 = vld [vmem:[%s5 + $0x18] sm:$0xff]
  %v3221 = vld [vmem:[%s5 + $0x20] sm:$0xff]
  %v3222 = vld [vmem:[%s5 + $0x28] sm:$0xff]
  %v3223 = vld [vmem:[%s5 + $0x30] sm:$0xff]
  %v3224 = vld [vmem:[%s5 + $0x38] sm:$0xff]
  %v3225 = vld [vmem:[%s5 + $0x40] sm:$0xff]
  %v3226 = vld [vmem:[%s5 + $0x48] sm:$0xff]
  %v3227 = vld [vmem:[%s5 + $0x50] sm:$0xff]
  %v3228 = vld [vmem:[%s5 + $0x58] sm:$0xff]
  %v3229 = vld [vmem:[%s5 + $0x60] sm:$0xff]
  %v3230 = vld [vmem:[%s5 + $0x68] sm:$0xff]
  %v3231 = vld [vmem:[%s5 + $0x70] sm:$0xff]
  %v3232 = vld [vmem:[%s5 + $0x78] sm:$0xff]
  %v3233 = vld [vmem:[%s5 + $0x80] sm:$0xff]
  %v3234 = vld [vmem:[%s5 + $0x88] sm:$0xff]
  %v3235 = vld [vmem:[%s5 + $0x90] sm:$0xff]
  %v3236 = vld [vmem:[%s5 + $0x98] sm:$0xff]
  %v3237 = vld [vmem:[%s5 + $0xa0] sm:$0xff]
  %v3238 = vld [vmem:[%s5 + $0xa8] sm:$0xff]
  %v3239 = vld [vmem:[%s5 + $0xb0] sm:$0xff]
  %v3240 = vld [vmem:[%s5 + $0xb8] sm:$0xff]
  %v3241 = vld [vmem:[%s5 + $0xc0] sm:$0xff]
  %v3242 = vld [vmem:[%s5 + $0xc8] sm:$0xff]
  %v3243 = vld [vmem:[%s5 + $0xd0] sm:$0xff]
  %v3244 = vld [vmem:[%s5 + $0xd8] sm:$0xff]
  %v3245 = vld [vmem:[%s5 + $0xe0] sm:$0xff]
  %v3246 = vld [vmem:[%s5 + $0xe8] sm:$0xff]
  %v3247 = vld [vmem:[%s5 + $0xf0] sm:$0xff]
  %v3248 = vld [vmem:[%s5 + $0xf8] sm:$0xff]
  %v3281 = vunpack.c.l.b16 %v3217
  %v3282 = vunpack.c.h.b16 %v3217
  %v3283 = vunpack.c.l.b16 %v3218
  %v3284 = vunpack.c.h.b16 %v3218
  %v3285 = vunpack.c.l.b16 %v3219
  %v3286 = vunpack.c.h.b16 %v3219
  %v3287 = vunpack.c.l.b16 %v3220
  %v3288 = vunpack.c.h.b16 %v3220
  %v3289 = vunpack.c.l.b16 %v3221
  %v3290 = vunpack.c.h.b16 %v3221
  %v3291 = vunpack.c.l.b16 %v3222
  %v3292 = vunpack.c.h.b16 %v3222
  %v3293 = vunpack.c.l.b16 %v3223
  %v3294 = vunpack.c.h.b16 %v3223
  %v3295 = vunpack.c.l.b16 %v3224
  %v3296 = vunpack.c.h.b16 %v3224
  %v3297 = vunpack.c.l.b16 %v3225
  %v3298 = vunpack.c.h.b16 %v3225
  %v3299 = vunpack.c.l.b16 %v3226
  %v3300 = vunpack.c.h.b16 %v3226
  %v3301 = vunpack.c.l.b16 %v3227
  %v3302 = vunpack.c.h.b16 %v3227
  %v3303 = vunpack.c.l.b16 %v3228
  %v3304 = vunpack.c.h.b16 %v3228
  %v3305 = vunpack.c.l.b16 %v3229
  %v3306 = vunpack.c.h.b16 %v3229
  %v3307 = vunpack.c.l.b16 %v3230
  %v3308 = vunpack.c.h.b16 %v3230
  %v3309 = vunpack.c.l.b16 %v3231
  %v3310 = vunpack.c.h.b16 %v3231
  %v3311 = vunpack.c.l.b16 %v3232
  %v3312 = vunpack.c.h.b16 %v3232
  %v3313 = vunpack.c.l.b16 %v3233
  %v3314 = vunpack.c.h.b16 %v3233
  %v3315 = vunpack.c.l.b16 %v3234
  %v3316 = vunpack.c.h.b16 %v3234
  %v3317 = vunpack.c.l.b16 %v3235
  %v3318 = vunpack.c.h.b16 %v3235
  %v3319 = vunpack.c.l.b16 %v3236
  %v3320 = vunpack.c.h.b16 %v3236
  %v3321 = vunpack.c.l.b16 %v3237
  %v3322 = vunpack.c.h.b16 %v3237
  %v3323 = vunpack.c.l.b16 %v3238
  %v3324 = vunpack.c.h.b16 %v3238
  %v3325 = vunpack.c.l.b16 %v3239
  %v3326 = vunpack.c.h.b16 %v3239
  %v3327 = vunpack.c.l.b16 %v3240
  %v3328 = vunpack.c.h.b16 %v3240
  %v3329 = vunpack.c.l.b16 %v3241
  %v3330 = vunpack.c.h.b16 %v3241
  %v3331 = vunpack.c.l.b16 %v3242
  %v3332 = vunpack.c.h.b16 %v3242
  %v3333 = vunpack.c.l.b16 %v3243
  %v3334 = vunpack.c.h.b16 %v3243
  %v3335 = vunpack.c.l.b16 %v3244
  %v3336 = vunpack.c.h.b16 %v3244
  %v3337 = vunpack.c.l.b16 %v3245
  %v3338 = vunpack.c.h.b16 %v3245
  %v3339 = vunpack.c.l.b16 %v3246
  %v3340 = vunpack.c.h.b16 %v3246
  %v3341 = vunpack.c.l.b16 %v3247
  %v3342 = vunpack.c.h.b16 %v3247
  %v3343 = vunpack.c.l.b16 %v3248
  %v3344 = vunpack.c.h.b16 %v3248
  %v3345 = vpack.c.b16 %v3285, %v3281
  %v3346 = vpack.c.b16 %v3286, %v3282
  %v3347 = vpack.c.b16 %v3287, %v3283
  %v3348 = vpack.c.b16 %v3288, %v3284
  %v3349 = vpack.c.b16 %v3293, %v3289
  %v3350 = vpack.c.b16 %v3294, %v3290
  %v3351 = vpack.c.b16 %v3295, %v3291
  %v3352 = vpack.c.b16 %v3296, %v3292
  %v3353 = vpack.c.b16 %v3301, %v3297
  %v3354 = vpack.c.b16 %v3302, %v3298
  %v3355 = vpack.c.b16 %v3303, %v3299
  %v3356 = vpack.c.b16 %v3304, %v3300
  %v3357 = vpack.c.b16 %v3309, %v3305
  %v3358 = vpack.c.b16 %v3310, %v3306
  %v3359 = vpack.c.b16 %v3311, %v3307
  %v3360 = vpack.c.b16 %v3312, %v3308
  %v3361 = vpack.c.b16 %v3317, %v3313
  %v3362 = vpack.c.b16 %v3318, %v3314
  %v3363 = vpack.c.b16 %v3319, %v3315
  %v3364 = vpack.c.b16 %v3320, %v3316
  %v3365 = vpack.c.b16 %v3325, %v3321
  %v3366 = vpack.c.b16 %v3326, %v3322
  %v3367 = vpack.c.b16 %v3327, %v3323
  %v3368 = vpack.c.b16 %v3328, %v3324
  %v3369 = vpack.c.b16 %v3333, %v3329
  %v3370 = vpack.c.b16 %v3334, %v3330
  %v3371 = vpack.c.b16 %v3335, %v3331
  %v3372 = vpack.c.b16 %v3336, %v3332
  %v3373 = vpack.c.b16 %v3341, %v3337
  %v3374 = vpack.c.b16 %v3342, %v3338
  %v3375 = vpack.c.b16 %v3343, %v3339
  %v3376 = vpack.c.b16 %v3344, %v3340
  %3409 = vmatprep.subr.bf16.mxu0 %v3374
  %3410 = vmatpush1.bf16.msra.mxu0 %v3373
  %3411 = vmatprep.subr.bf16.mxu0 %v3370
  %3412 = vmatpush1.bf16.msra.mxu0 %v3369
  %3413 = vmatprep.subr.bf16.mxu0 %v3366
  %3414 = vmatpush1.bf16.msra.mxu0 %v3365
  %3415 = vmatprep.subr.bf16.mxu0 %v3362
  %3416 = vmatpush1.bf16.msra.mxu0 %v3361
  %3417 = vmatprep.subr.bf16.mxu0 %v3358
  %3418 = vmatpush1.bf16.msra.mxu0 %v3357
  %3419 = vmatprep.subr.bf16.mxu0 %v3354
  %3420 = vmatpush1.bf16.msra.mxu0 %v3353
  %3421 = vmatprep.subr.bf16.mxu0 %v3350
  %3422 = vmatpush1.bf16.msra.mxu0 %v3349
  %3423 = vmatprep.subr.bf16.mxu0 %v3346
  %3424 = vmatpush1.bf16.msra.mxu0 %v3345
  %3425 = vmatprep.subr.bf16.mxu0 0
  %3426 = vmatpush2.bf16.msra.mxu0 0
  %3427 = vmatprep.subr.bf16.mxu0 0
  %3428 = vmatpush2.bf16.msra.mxu0 0
  %3429 = vmatprep.subr.bf16.mxu0 0
  %3430 = vmatpush2.bf16.msra.mxu0 0
  %3431 = vmatprep.subr.bf16.mxu0 0
  %3432 = vmatpush2.bf16.msra.mxu0 0
  %3433 = vmatprep.subr.bf16.mxu0 0
  %3434 = vmatpush2.bf16.msra.mxu0 0
  %3435 = vmatprep.subr.bf16.mxu0 0
  %3436 = vmatpush2.bf16.msra.mxu0 0
  %3437 = vmatprep.subr.bf16.mxu0 0
  %3438 = vmatpush2.bf16.msra.mxu0 0
  %3439 = vmatprep.subr.bf16.mxu0 0
  %3440 = vmatpush2.bf16.msra.mxu0 0
  %3441 = vmatprep.mubr.bf16.mxu0 0
  %3442 = vmatmul.mubr.bf16.gmra.mxu0 %v3216
  %v3443 = vpop.f32.mrf.mxu0
  %v3444 = vadd.f32 0.0, %v3443
  %v3445 = vpop.f32.mrf.mxu0
  %v3446 = vadd.f32 0.0, %v3445
  %v3447 = vpop.f32.mrf.mxu0
  %v3448 = vpop.f32.mrf.mxu0
  %3449 = vdwg.mxu0
  %3450 = vmatprep.subr.bf16.mxu0 %v3376
  %3451 = vmatpush1.bf16.msra.mxu0 %v3375
  %3452 = vmatprep.subr.bf16.mxu0 %v3372
  %3453 = vmatpush1.bf16.msra.mxu0 %v3371
  %3454 = vmatprep.subr.bf16.mxu0 %v3368
  %3455 = vmatpush1.bf16.msra.mxu0 %v3367
  %3456 = vmatprep.subr.bf16.mxu0 %v3364
  %3457 = vmatpush1.bf16.msra.mxu0 %v3363
  %3458 = vmatprep.subr.bf16.mxu0 %v3360
  %3459 = vmatpush1.bf16.msra.mxu0 %v3359
  %3460 = vmatprep.subr.bf16.mxu0 %v3356
  %3461 = vmatpush1.bf16.msra.mxu0 %v3355
  %3462 = vmatprep.subr.bf16.mxu0 %v3352
  %3463 = vmatpush1.bf16.msra.mxu0 %v3351
  %3464 = vmatprep.subr.bf16.mxu0 %v3348
  %3465 = vmatpush1.bf16.msra.mxu0 %v3347
  %3466 = vmatprep.subr.bf16.mxu0 0
  %3467 = vmatpush2.bf16.msra.mxu0 0
  %3468 = vmatprep.subr.bf16.mxu0 0
  %3469 = vmatpush2.bf16.msra.mxu0 0
  %3470 = vmatprep.subr.bf16.mxu0 0
  %3471 = vmatpush2.bf16.msra.mxu0 0
  %3472 = vmatprep.subr.bf16.mxu0 0
  %3473 = vmatpush2.bf16.msra.mxu0 0
  %3474 = vmatprep.subr.bf16.mxu0 0
  %3475 = vmatpush2.bf16.msra.mxu0 0
  %3476 = vmatprep.subr.bf16.mxu0 0
  %3477 = vmatpush2.bf16.msra.mxu0 0
  %3478 = vmatprep.subr.bf16.mxu0 0
  %3479 = vmatpush2.bf16.msra.mxu0 0
  %3480 = vmatprep.subr.bf16.mxu0 0
  %3481 = vmatpush2.bf16.msra.mxu0 0
  %3482 = vmatprep.mubr.bf16.mxu0 0
  %3483 = vmatmul.mubr.bf16.gmra.mxu0 %v3216
  %v3484 = vpop.f32.mrf.mxu0
  %v3485 = vadd.f32 0.0, %v3484
  %v3486 = vpop.f32.mrf.mxu0
  %v3487 = vadd.f32 0.0, %v3486
  %v3488 = vpop.f32.mrf.mxu0
  %v3489 = vpop.f32.mrf.mxu0
  %3490 = vdwg.mxu0
  %v3491 = vadd.f32 %v3212, %v3444
  %v3492 = vadd.f32 %v3213, %v3446
  %v3493 = vadd.f32 %v3214, %v3485
  %v3494 = vadd.f32 %v3215, %v3487
  %v3495 = vxor.u32 %v3206, 2147483648
  %v3496 = vxor.u32 %v3207, 2147483648
  %v3497 = vxor.u32 %v3208, 2147483648
  %v3498 = vmul.f32 %v3495, 1.442695
  %v3499 = vpow.pop %v3498
  %v3500 = vmul.f32 %v3496, 1.442695
  %v3501 = vpow.pop %v3500
  %v3502 = vmul.f32 %v3497, 1.442695
  %v3503 = vpow.pop %v3502
  %v3504 = vadd.f32 %v3499, 1.0
  %v3505 = vadd.f32 %v3501, 1.0
  %v3506 = vadd.f32 %v3503, 1.0
  %v3507 = vrcp.pop %v3504
  %v3508 = vmul.f32 1.0, %v3507
  %v3509 = vrcp.pop %v3505
  %v3510 = vmul.f32 1.0, %v3509
  %v3511 = vrcp.pop %v3506
  %v3512 = vmul.f32 1.0, %v3511
  %v3513 = vtanh.pop %v3209
  %v3514 = vmul.f32 %v3510, %v2911
  %v3515 = vmul.f32 %v3508, %v3513
  %v3516 = vadd.f32 %v3514, %v3515
  %v3517 = vtanh.pop %v3516
  %v3518 = vmul.f32 %v3512, %v3517
  %v3519 = vxor.u32 %v3491, 2147483648
  %v3520 = vxor.u32 %v3492, 2147483648
  %v3521 = vxor.u32 %v3493, 2147483648
  %v3522 = vmul.f32 %v3519, 1.442695
  %v3523 = vpow.pop %v3522
  %v3524 = vmul.f32 %v3520, 1.442695
  %v3525 = vpow.pop %v3524
  %v3526 = vmul.f32 %v3521, 1.442695
  %v3527 = vpow.pop %v3526
  %v3528 = vadd.f32 %v3523, 1.0
  %v3529 = vadd.f32 %v3525, 1.0
  %v3530 = vadd.f32 %v3527, 1.0
  %v3531 = vrcp.pop %v3528
  %v3532 = vmul.f32 1.0, %v3531
  %v3533 = vrcp.pop %v3529
  %v3534 = vmul.f32 1.0, %v3533
  %v3535 = vrcp.pop %v3530
  %v3536 = vmul.f32 1.0, %v3535
  %v3537 = vtanh.pop %v3494
  %v3538 = vmul.f32 %v3534, %v2918
  %v3539 = vmul.f32 %v3532, %v3537
  %v3540 = vadd.f32 %v3538, %v3539
  %v3541 = vtanh.pop %v3540
  %v3542 = vmul.f32 %v3536, %v3541
  %vm3543 = vcmp.gt.s32.totalorder %v1010, 3
  %vm3544 = vcmp.gt.s32.totalorder %v1010, 4
  %v3545 = vsel %vm3543, 1, 0
  %3546 = vset.pattern.permute.xlu0 0
  %3547 = vperm.xlu0 %3546, %v3545
  %v3548 = vpop.permute.xlu0 %3547
  %vm3549 = vcmp.eq.s32.totalorder %v3548, 1
  %v3550 = vsel %vm3549, %v3518, %v2910
  %v3551 = vsel %vm3549, %v3516, %v2911
  %v3552 = vsel %vm3544, 1, 0
  %3553 = vset.pattern.permute.xlu0 0
  %3554 = vperm.xlu0 %3553, %v3552
  %v3555 = vpop.permute.xlu0 %3554
  %vm3556 = vcmp.eq.s32.totalorder %v3555, 1
  %v3557 = vsel %vm3556, %v3542, %v2917
  %v3558 = vsel %vm3556, %v3540, %v2918
  %v3559 = vsel %vm3549, %v3518, 0.0
  %v3560 = vpack.c.bf16 %v3559, %v3559
  %3561 = vst [vmem:[#allocation3 + $0x18] sm:$0xf] %v3560
  %v3562 = vsel %vm3556, %v3542, 0.0
  %v3563 = vpack.c.bf16 %v3562, %v3562
  %3564 = vst [vmem:[#allocation3 + $0x24] sm:$0xf] %v3563
  %v3565 = vld [vmem:[#allocation2 + $0x80] sm:$0xff]
  %v3566 = vld [vmem:[#allocation2 + $0x88] sm:$0xff]
  %v3567 = vunpack.c.l.bf16 %v3565
  %v3568 = vunpack.c.h.bf16 %v3565
  %v3569 = vunpack.c.l.bf16 %v3566
  %v3570 = vunpack.c.h.bf16 %v3566
  %v3571 = vpack.c.bf16 %v3550, %v3550
  %v3572 = vld [vmem:[%s4] sm:$0xff]
  %v3573 = vld [vmem:[%s4 + $0x8] sm:$0xff]
  %v3574 = vld [vmem:[%s4 + $0x10] sm:$0xff]
  %v3575 = vld [vmem:[%s4 + $0x18] sm:$0xff]
  %v3576 = vld [vmem:[%s4 + $0x20] sm:$0xff]
  %v3577 = vld [vmem:[%s4 + $0x28] sm:$0xff]
  %v3578 = vld [vmem:[%s4 + $0x30] sm:$0xff]
  %v3579 = vld [vmem:[%s4 + $0x38] sm:$0xff]
  %v3580 = vld [vmem:[%s4 + $0x40] sm:$0xff]
  %v3581 = vld [vmem:[%s4 + $0x48] sm:$0xff]
  %v3582 = vld [vmem:[%s4 + $0x50] sm:$0xff]
  %v3583 = vld [vmem:[%s4 + $0x58] sm:$0xff]
  %v3584 = vld [vmem:[%s4 + $0x60] sm:$0xff]
  %v3585 = vld [vmem:[%s4 + $0x68] sm:$0xff]
  %v3586 = vld [vmem:[%s4 + $0x70] sm:$0xff]
  %v3587 = vld [vmem:[%s4 + $0x78] sm:$0xff]
  %v3588 = vld [vmem:[%s4 + $0x80] sm:$0xff]
  %v3589 = vld [vmem:[%s4 + $0x88] sm:$0xff]
  %v3590 = vld [vmem:[%s4 + $0x90] sm:$0xff]
  %v3591 = vld [vmem:[%s4 + $0x98] sm:$0xff]
  %v3592 = vld [vmem:[%s4 + $0xa0] sm:$0xff]
  %v3593 = vld [vmem:[%s4 + $0xa8] sm:$0xff]
  %v3594 = vld [vmem:[%s4 + $0xb0] sm:$0xff]
  %v3595 = vld [vmem:[%s4 + $0xb8] sm:$0xff]
  %v3596 = vld [vmem:[%s4 + $0xc0] sm:$0xff]
  %v3597 = vld [vmem:[%s4 + $0xc8] sm:$0xff]
  %v3598 = vld [vmem:[%s4 + $0xd0] sm:$0xff]
  %v3599 = vld [vmem:[%s4 + $0xd8] sm:$0xff]
  %v3600 = vld [vmem:[%s4 + $0xe0] sm:$0xff]
  %v3601 = vld [vmem:[%s4 + $0xe8] sm:$0xff]
  %v3602 = vld [vmem:[%s4 + $0xf0] sm:$0xff]
  %v3603 = vld [vmem:[%s4 + $0xf8] sm:$0xff]
  %v3636 = vunpack.c.l.b16 %v3572
  %v3637 = vunpack.c.h.b16 %v3572
  %v3638 = vunpack.c.l.b16 %v3573
  %v3639 = vunpack.c.h.b16 %v3573
  %v3640 = vunpack.c.l.b16 %v3574
  %v3641 = vunpack.c.h.b16 %v3574
  %v3642 = vunpack.c.l.b16 %v3575
  %v3643 = vunpack.c.h.b16 %v3575
  %v3644 = vunpack.c.l.b16 %v3576
  %v3645 = vunpack.c.h.b16 %v3576
  %v3646 = vunpack.c.l.b16 %v3577
  %v3647 = vunpack.c.h.b16 %v3577
  %v3648 = vunpack.c.l.b16 %v3578
  %v3649 = vunpack.c.h.b16 %v3578
  %v3650 = vunpack.c.l.b16 %v3579
  %v3651 = vunpack.c.h.b16 %v3579
  %v3652 = vunpack.c.l.b16 %v3580
  %v3653 = vunpack.c.h.b16 %v3580
  %v3654 = vunpack.c.l.b16 %v3581
  %v3655 = vunpack.c.h.b16 %v3581
  %v3656 = vunpack.c.l.b16 %v3582
  %v3657 = vunpack.c.h.b16 %v3582
  %v3658 = vunpack.c.l.b16 %v3583
  %v3659 = vunpack.c.h.b16 %v3583
  %v3660 = vunpack.c.l.b16 %v3584
  %v3661 = vunpack.c.h.b16 %v3584
  %v3662 = vunpack.c.l.b16 %v3585
  %v3663 = vunpack.c.h.b16 %v3585
  %v3664 = vunpack.c.l.b16 %v3586
  %v3665 = vunpack.c.h.b16 %v3586
  %v3666 = vunpack.c.l.b16 %v3587
  %v3667 = vunpack.c.h.b16 %v3587
  %v3668 = vunpack.c.l.b16 %v3588
  %v3669 = vunpack.c.h.b16 %v3588
  %v3670 = vunpack.c.l.b16 %v3589
  %v3671 = vunpack.c.h.b16 %v3589
  %v3672 = vunpack.c.l.b16 %v3590
  %v3673 = vunpack.c.h.b16 %v3590
  %v3674 = vunpack.c.l.b16 %v3591
  %v3675 = vunpack.c.h.b16 %v3591
  %v3676 = vunpack.c.l.b16 %v3592
  %v3677 = vunpack.c.h.b16 %v3592
  %v3678 = vunpack.c.l.b16 %v3593
  %v3679 = vunpack.c.h.b16 %v3593
  %v3680 = vunpack.c.l.b16 %v3594
  %v3681 = vunpack.c.h.b16 %v3594
  %v3682 = vunpack.c.l.b16 %v3595
  %v3683 = vunpack.c.h.b16 %v3595
  %v3684 = vunpack.c.l.b16 %v3596
  %v3685 = vunpack.c.h.b16 %v3596
  %v3686 = vunpack.c.l.b16 %v3597
  %v3687 = vunpack.c.h.b16 %v3597
  %v3688 = vunpack.c.l.b16 %v3598
  %v3689 = vunpack.c.h.b16 %v3598
  %v3690 = vunpack.c.l.b16 %v3599
  %v3691 = vunpack.c.h.b16 %v3599
  %v3692 = vunpack.c.l.b16 %v3600
  %v3693 = vunpack.c.h.b16 %v3600
  %v3694 = vunpack.c.l.b16 %v3601
  %v3695 = vunpack.c.h.b16 %v3601
  %v3696 = vunpack.c.l.b16 %v3602
  %v3697 = vunpack.c.h.b16 %v3602
  %v3698 = vunpack.c.l.b16 %v3603
  %v3699 = vunpack.c.h.b16 %v3603
  %v3700 = vpack.c.b16 %v3640, %v3636
  %v3701 = vpack.c.b16 %v3641, %v3637
  %v3702 = vpack.c.b16 %v3642, %v3638
  %v3703 = vpack.c.b16 %v3643, %v3639
  %v3704 = vpack.c.b16 %v3648, %v3644
  %v3705 = vpack.c.b16 %v3649, %v3645
  %v3706 = vpack.c.b16 %v3650, %v3646
  %v3707 = vpack.c.b16 %v3651, %v3647
  %v3708 = vpack.c.b16 %v3656, %v3652
  %v3709 = vpack.c.b16 %v3657, %v3653
  %v3710 = vpack.c.b16 %v3658, %v3654
  %v3711 = vpack.c.b16 %v3659, %v3655
  %v3712 = vpack.c.b16 %v3664, %v3660
  %v3713 = vpack.c.b16 %v3665, %v3661
  %v3714 = vpack.c.b16 %v3666, %v3662
  %v3715 = vpack.c.b16 %v3667, %v3663
  %v3716 = vpack.c.b16 %v3672, %v3668
  %v3717 = vpack.c.b16 %v3673, %v3669
  %v3718 = vpack.c.b16 %v3674, %v3670
  %v3719 = vpack.c.b16 %v3675, %v3671
  %v3720 = vpack.c.b16 %v3680, %v3676
  %v3721 = vpack.c.b16 %v3681, %v3677
  %v3722 = vpack.c.b16 %v3682, %v3678
  %v3723 = vpack.c.b16 %v3683, %v3679
  %v3724 = vpack.c.b16 %v3688, %v3684
  %v3725 = vpack.c.b16 %v3689, %v3685
  %v3726 = vpack.c.b16 %v3690, %v3686
  %v3727 = vpack.c.b16 %v3691, %v3687
  %v3728 = vpack.c.b16 %v3696, %v3692
  %v3729 = vpack.c.b16 %v3697, %v3693
  %v3730 = vpack.c.b16 %v3698, %v3694
  %v3731 = vpack.c.b16 %v3699, %v3695
  %3764 = vmatprep.subr.bf16.mxu0 %v3729
  %3765 = vmatpush1.bf16.msra.mxu0 %v3728
  %3766 = vmatprep.subr.bf16.mxu0 %v3725
  %3767 = vmatpush1.bf16.msra.mxu0 %v3724
  %3768 = vmatprep.subr.bf16.mxu0 %v3721
  %3769 = vmatpush1.bf16.msra.mxu0 %v3720
  %3770 = vmatprep.subr.bf16.mxu0 %v3717
  %3771 = vmatpush1.bf16.msra.mxu0 %v3716
  %3772 = vmatprep.subr.bf16.mxu0 %v3713
  %3773 = vmatpush1.bf16.msra.mxu0 %v3712
  %3774 = vmatprep.subr.bf16.mxu0 %v3709
  %3775 = vmatpush1.bf16.msra.mxu0 %v3708
  %3776 = vmatprep.subr.bf16.mxu0 %v3705
  %3777 = vmatpush1.bf16.msra.mxu0 %v3704
  %3778 = vmatprep.subr.bf16.mxu0 %v3701
  %3779 = vmatpush1.bf16.msra.mxu0 %v3700
  %3780 = vmatprep.subr.bf16.mxu0 0
  %3781 = vmatpush2.bf16.msra.mxu0 0
  %3782 = vmatprep.subr.bf16.mxu0 0
  %3783 = vmatpush2.bf16.msra.mxu0 0
  %3784 = vmatprep.subr.bf16.mxu0 0
  %3785 = vmatpush2.bf16.msra.mxu0 0
  %3786 = vmatprep.subr.bf16.mxu0 0
  %3787 = vmatpush2.bf16.msra.mxu0 0
  %3788 = vmatprep.subr.bf16.mxu0 0
  %3789 = vmatpush2.bf16.msra.mxu0 0
  %3790 = vmatprep.subr.bf16.mxu0 0
  %3791 = vmatpush2.bf16.msra.mxu0 0
  %3792 = vmatprep.subr.bf16.mxu0 0
  %3793 = vmatpush2.bf16.msra.mxu0 0
  %3794 = vmatprep.subr.bf16.mxu0 0
  %3795 = vmatpush2.bf16.msra.mxu0 0
  %3796 = vmatprep.mubr.bf16.mxu0 0
  %3797 = vmatmul.mubr.bf16.gmra.mxu0 %v3571
  %v3798 = vpop.f32.mrf.mxu0
  %v3799 = vadd.f32 0.0, %v3798
  %v3800 = vpop.f32.mrf.mxu0
  %v3801 = vadd.f32 0.0, %v3800
  %v3802 = vpop.f32.mrf.mxu0
  %v3803 = vpop.f32.mrf.mxu0
  %3804 = vdwg.mxu0
  %3805 = vmatprep.subr.bf16.mxu0 %v3731
  %3806 = vmatpush1.bf16.msra.mxu0 %v3730
  %3807 = vmatprep.subr.bf16.mxu0 %v3727
  %3808 = vmatpush1.bf16.msra.mxu0 %v3726
  %3809 = vmatprep.subr.bf16.mxu0 %v3723
  %3810 = vmatpush1.bf16.msra.mxu0 %v3722
  %3811 = vmatprep.subr.bf16.mxu0 %v3719
  %3812 = vmatpush1.bf16.msra.mxu0 %v3718
  %3813 = vmatprep.subr.bf16.mxu0 %v3715
  %3814 = vmatpush1.bf16.msra.mxu0 %v3714
  %3815 = vmatprep.subr.bf16.mxu0 %v3711
  %3816 = vmatpush1.bf16.msra.mxu0 %v3710
  %3817 = vmatprep.subr.bf16.mxu0 %v3707
  %3818 = vmatpush1.bf16.msra.mxu0 %v3706
  %3819 = vmatprep.subr.bf16.mxu0 %v3703
  %3820 = vmatpush1.bf16.msra.mxu0 %v3702
  %3821 = vmatprep.subr.bf16.mxu0 0
  %3822 = vmatpush2.bf16.msra.mxu0 0
  %3823 = vmatprep.subr.bf16.mxu0 0
  %3824 = vmatpush2.bf16.msra.mxu0 0
  %3825 = vmatprep.subr.bf16.mxu0 0
  %3826 = vmatpush2.bf16.msra.mxu0 0
  %3827 = vmatprep.subr.bf16.mxu0 0
  %3828 = vmatpush2.bf16.msra.mxu0 0
  %3829 = vmatprep.subr.bf16.mxu0 0
  %3830 = vmatpush2.bf16.msra.mxu0 0
  %3831 = vmatprep.subr.bf16.mxu0 0
  %3832 = vmatpush2.bf16.msra.mxu0 0
  %3833 = vmatprep.subr.bf16.mxu0 0
  %3834 = vmatpush2.bf16.msra.mxu0 0
  %3835 = vmatprep.subr.bf16.mxu0 0
  %3836 = vmatpush2.bf16.msra.mxu0 0
  %3837 = vmatprep.mubr.bf16.mxu0 0
  %3838 = vmatmul.mubr.bf16.gmra.mxu0 %v3571
  %v3839 = vpop.f32.mrf.mxu0
  %v3840 = vadd.f32 0.0, %v3839
  %v3841 = vpop.f32.mrf.mxu0
  %v3842 = vadd.f32 0.0, %v3841
  %v3843 = vpop.f32.mrf.mxu0
  %v3844 = vpop.f32.mrf.mxu0
  %3845 = vdwg.mxu0
  %v3846 = vadd.f32 %v3567, %v3799
  %v3847 = vadd.f32 %v3568, %v3801
  %v3848 = vadd.f32 %v3569, %v3840
  %v3849 = vadd.f32 %v3570, %v3842
  %v3850 = vld [vmem:[#allocation2 + $0x70] sm:$0xff]
  %v3851 = vld [vmem:[#allocation2 + $0x78] sm:$0xff]
  %v3852 = vunpack.c.l.bf16 %v3850
  %v3853 = vunpack.c.h.bf16 %v3850
  %v3854 = vunpack.c.l.bf16 %v3851
  %v3855 = vunpack.c.h.bf16 %v3851
  %v3856 = vpack.c.bf16 %v3557, %v3557
  %v3857 = vld [vmem:[%s5] sm:$0xff]
  %v3858 = vld [vmem:[%s5 + $0x8] sm:$0xff]
  %v3859 = vld [vmem:[%s5 + $0x10] sm:$0xff]
  %v3860 = vld [vmem:[%s5 + $0x18] sm:$0xff]
  %v3861 = vld [vmem:[%s5 + $0x20] sm:$0xff]
  %v3862 = vld [vmem:[%s5 + $0x28] sm:$0xff]
  %v3863 = vld [vmem:[%s5 + $0x30] sm:$0xff]
  %v3864 = vld [vmem:[%s5 + $0x38] sm:$0xff]
  %v3865 = vld [vmem:[%s5 + $0x40] sm:$0xff]
  %v3866 = vld [vmem:[%s5 + $0x48] sm:$0xff]
  %v3867 = vld [vmem:[%s5 + $0x50] sm:$0xff]
  %v3868 = vld [vmem:[%s5 + $0x58] sm:$0xff]
  %v3869 = vld [vmem:[%s5 + $0x60] sm:$0xff]
  %v3870 = vld [vmem:[%s5 + $0x68] sm:$0xff]
  %v3871 = vld [vmem:[%s5 + $0x70] sm:$0xff]
  %v3872 = vld [vmem:[%s5 + $0x78] sm:$0xff]
  %v3873 = vld [vmem:[%s5 + $0x80] sm:$0xff]
  %v3874 = vld [vmem:[%s5 + $0x88] sm:$0xff]
  %v3875 = vld [vmem:[%s5 + $0x90] sm:$0xff]
  %v3876 = vld [vmem:[%s5 + $0x98] sm:$0xff]
  %v3877 = vld [vmem:[%s5 + $0xa0] sm:$0xff]
  %v3878 = vld [vmem:[%s5 + $0xa8] sm:$0xff]
  %v3879 = vld [vmem:[%s5 + $0xb0] sm:$0xff]
  %v3880 = vld [vmem:[%s5 + $0xb8] sm:$0xff]
  %v3881 = vld [vmem:[%s5 + $0xc0] sm:$0xff]
  %v3882 = vld [vmem:[%s5 + $0xc8] sm:$0xff]
  %v3883 = vld [vmem:[%s5 + $0xd0] sm:$0xff]
  %v3884 = vld [vmem:[%s5 + $0xd8] sm:$0xff]
  %v3885 = vld [vmem:[%s5 + $0xe0] sm:$0xff]
  %v3886 = vld [vmem:[%s5 + $0xe8] sm:$0xff]
  %v3887 = vld [vmem:[%s5 + $0xf0] sm:$0xff]
  %v3888 = vld [vmem:[%s5 + $0xf8] sm:$0xff]
  %v3921 = vunpack.c.l.b16 %v3857
  %v3922 = vunpack.c.h.b16 %v3857
  %v3923 = vunpack.c.l.b16 %v3858
  %v3924 = vunpack.c.h.b16 %v3858
  %v3925 = vunpack.c.l.b16 %v3859
  %v3926 = vunpack.c.h.b16 %v3859
  %v3927 = vunpack.c.l.b16 %v3860
  %v3928 = vunpack.c.h.b16 %v3860
  %v3929 = vunpack.c.l.b16 %v3861
  %v3930 = vunpack.c.h.b16 %v3861
  %v3931 = vunpack.c.l.b16 %v3862
  %v3932 = vunpack.c.h.b16 %v3862
  %v3933 = vunpack.c.l.b16 %v3863
  %v3934 = vunpack.c.h.b16 %v3863
  %v3935 = vunpack.c.l.b16 %v3864
  %v3936 = vunpack.c.h.b16 %v3864
  %v3937 = vunpack.c.l.b16 %v3865
  %v3938 = vunpack.c.h.b16 %v3865
  %v3939 = vunpack.c.l.b16 %v3866
  %v3940 = vunpack.c.h.b16 %v3866
  %v3941 = vunpack.c.l.b16 %v3867
  %v3942 = vunpack.c.h.b16 %v3867
  %v3943 = vunpack.c.l.b16 %v3868
  %v3944 = vunpack.c.h.b16 %v3868
  %v3945 = vunpack.c.l.b16 %v3869
  %v3946 = vunpack.c.h.b16 %v3869
  %v3947 = vunpack.c.l.b16 %v3870
  %v3948 = vunpack.c.h.b16 %v3870
  %v3949 = vunpack.c.l.b16 %v3871
  %v3950 = vunpack.c.h.b16 %v3871
  %v3951 = vunpack.c.l.b16 %v3872
  %v3952 = vunpack.c.h.b16 %v3872
  %v3953 = vunpack.c.l.b16 %v3873
  %v3954 = vunpack.c.h.b16 %v3873
  %v3955 = vunpack.c.l.b16 %v3874
  %v3956 = vunpack.c.h.b16 %v3874
  %v3957 = vunpack.c.l.b16 %v3875
  %v3958 = vunpack.c.h.b16 %v3875
  %v3959 = vunpack.c.l.b16 %v3876
  %v3960 = vunpack.c.h.b16 %v3876
  %v3961 = vunpack.c.l.b16 %v3877
  %v3962 = vunpack.c.h.b16 %v3877
  %v3963 = vunpack.c.l.b16 %v3878
  %v3964 = vunpack.c.h.b16 %v3878
  %v3965 = vunpack.c.l.b16 %v3879
  %v3966 = vunpack.c.h.b16 %v3879
  %v3967 = vunpack.c.l.b16 %v3880
  %v3968 = vunpack.c.h.b16 %v3880
  %v3969 = vunpack.c.l.b16 %v3881
  %v3970 = vunpack.c.h.b16 %v3881
  %v3971 = vunpack.c.l.b16 %v3882
  %v3972 = vunpack.c.h.b16 %v3882
  %v3973 = vunpack.c.l.b16 %v3883
  %v3974 = vunpack.c.h.b16 %v3883
  %v3975 = vunpack.c.l.b16 %v3884
  %v3976 = vunpack.c.h.b16 %v3884
  %v3977 = vunpack.c.l.b16 %v3885
  %v3978 = vunpack.c.h.b16 %v3885
  %v3979 = vunpack.c.l.b16 %v3886
  %v3980 = vunpack.c.h.b16 %v3886
  %v3981 = vunpack.c.l.b16 %v3887
  %v3982 = vunpack.c.h.b16 %v3887
  %v3983 = vunpack.c.l.b16 %v3888
  %v3984 = vunpack.c.h.b16 %v3888
  %v3985 = vpack.c.b16 %v3925, %v3921
  %v3986 = vpack.c.b16 %v3926, %v3922
  %v3987 = vpack.c.b16 %v3927, %v3923
  %v3988 = vpack.c.b16 %v3928, %v3924
  %v3989 = vpack.c.b16 %v3933, %v3929
  %v3990 = vpack.c.b16 %v3934, %v3930
  %v3991 = vpack.c.b16 %v3935, %v3931
  %v3992 = vpack.c.b16 %v3936, %v3932
  %v3993 = vpack.c.b16 %v3941, %v3937
  %v3994 = vpack.c.b16 %v3942, %v3938
  %v3995 = vpack.c.b16 %v3943, %v3939
  %v3996 = vpack.c.b16 %v3944, %v3940
  %v3997 = vpack.c.b16 %v3949, %v3945
  %v3998 = vpack.c.b16 %v3950, %v3946
  %v3999 = vpack.c.b16 %v3951, %v3947
  %v4000 = vpack.c.b16 %v3952, %v3948
  %v4001 = vpack.c.b16 %v3957, %v3953
  %v4002 = vpack.c.b16 %v3958, %v3954
  %v4003 = vpack.c.b16 %v3959, %v3955
  %v4004 = vpack.c.b16 %v3960, %v3956
  %v4005 = vpack.c.b16 %v3965, %v3961
  %v4006 = vpack.c.b16 %v3966, %v3962
  %v4007 = vpack.c.b16 %v3967, %v3963
  %v4008 = vpack.c.b16 %v3968, %v3964
  %v4009 = vpack.c.b16 %v3973, %v3969
  %v4010 = vpack.c.b16 %v3974, %v3970
  %v4011 = vpack.c.b16 %v3975, %v3971
  %v4012 = vpack.c.b16 %v3976, %v3972
  %v4013 = vpack.c.b16 %v3981, %v3977
  %v4014 = vpack.c.b16 %v3982, %v3978
  %v4015 = vpack.c.b16 %v3983, %v3979
  %v4016 = vpack.c.b16 %v3984, %v3980
  %4049 = vmatprep.subr.bf16.mxu0 %v4014
  %4050 = vmatpush1.bf16.msra.mxu0 %v4013
  %4051 = vmatprep.subr.bf16.mxu0 %v4010
  %4052 = vmatpush1.bf16.msra.mxu0 %v4009
  %4053 = vmatprep.subr.bf16.mxu0 %v4006
  %4054 = vmatpush1.bf16.msra.mxu0 %v4005
  %4055 = vmatprep.subr.bf16.mxu0 %v4002
  %4056 = vmatpush1.bf16.msra.mxu0 %v4001
  %4057 = vmatprep.subr.bf16.mxu0 %v3998
  %4058 = vmatpush1.bf16.msra.mxu0 %v3997
  %4059 = vmatprep.subr.bf16.mxu0 %v3994
  %4060 = vmatpush1.bf16.msra.mxu0 %v3993
  %4061 = vmatprep.subr.bf16.mxu0 %v3990
  %4062 = vmatpush1.bf16.msra.mxu0 %v3989
  %4063 = vmatprep.subr.bf16.mxu0 %v3986
  %4064 = vmatpush1.bf16.msra.mxu0 %v3985
  %4065 = vmatprep.subr.bf16.mxu0 0
  %4066 = vmatpush2.bf16.msra.mxu0 0
  %4067 = vmatprep.subr.bf16.mxu0 0
  %4068 = vmatpush2.bf16.msra.mxu0 0
  %4069 = vmatprep.subr.bf16.mxu0 0
  %4070 = vmatpush2.bf16.msra.mxu0 0
  %4071 = vmatprep.subr.bf16.mxu0 0
  %4072 = vmatpush2.bf16.msra.mxu0 0
  %4073 = vmatprep.subr.bf16.mxu0 0
  %4074 = vmatpush2.bf16.msra.mxu0 0
  %4075 = vmatprep.subr.bf16.mxu0 0
  %4076 = vmatpush2.bf16.msra.mxu0 0
  %4077 = vmatprep.subr.bf16.mxu0 0
  %4078 = vmatpush2.bf16.msra.mxu0 0
  %4079 = vmatprep.subr.bf16.mxu0 0
  %4080 = vmatpush2.bf16.msra.mxu0 0
  %4081 = vmatprep.mubr.bf16.mxu0 0
  %4082 = vmatmul.mubr.bf16.gmra.mxu0 %v3856
  %v4083 = vpop.f32.mrf.mxu0
  %v4084 = vadd.f32 0.0, %v4083
  %v4085 = vpop.f32.mrf.mxu0
  %v4086 = vadd.f32 0.0, %v4085
  %v4087 = vpop.f32.mrf.mxu0
  %v4088 = vpop.f32.mrf.mxu0
  %4089 = vdwg.mxu0
  %4090 = vmatprep.subr.bf16.mxu0 %v4016
  %4091 = vmatpush1.bf16.msra.mxu0 %v4015
  %4092 = vmatprep.subr.bf16.mxu0 %v4012
  %4093 = vmatpush1.bf16.msra.mxu0 %v4011
  %4094 = vmatprep.subr.bf16.mxu0 %v4008
  %4095 = vmatpush1.bf16.msra.mxu0 %v4007
  %4096 = vmatprep.subr.bf16.mxu0 %v4004
  %4097 = vmatpush1.bf16.msra.mxu0 %v4003
  %4098 = vmatprep.subr.bf16.mxu0 %v4000
  %4099 = vmatpush1.bf16.msra.mxu0 %v3999
  %4100 = vmatprep.subr.bf16.mxu0 %v3996
  %4101 = vmatpush1.bf16.msra.mxu0 %v3995
  %4102 = vmatprep.subr.bf16.mxu0 %v3992
  %4103 = vmatpush1.bf16.msra.mxu0 %v3991
  %4104 = vmatprep.subr.bf16.mxu0 %v3988
  %4105 = vmatpush1.bf16.msra.mxu0 %v3987
  %4106 = vmatprep.subr.bf16.mxu0 0
  %4107 = vmatpush2.bf16.msra.mxu0 0
  %4108 = vmatprep.subr.bf16.mxu0 0
  %4109 = vmatpush2.bf16.msra.mxu0 0
  %4110 = vmatprep.subr.bf16.mxu0 0
  %4111 = vmatpush2.bf16.msra.mxu0 0
  %4112 = vmatprep.subr.bf16.mxu0 0
  %4113 = vmatpush2.bf16.msra.mxu0 0
  %4114 = vmatprep.subr.bf16.mxu0 0
  %4115 = vmatpush2.bf16.msra.mxu0 0
  %4116 = vmatprep.subr.bf16.mxu0 0
  %4117 = vmatpush2.bf16.msra.mxu0 0
  %4118 = vmatprep.subr.bf16.mxu0 0
  %4119 = vmatpush2.bf16.msra.mxu0 0
  %4120 = vmatprep.subr.bf16.mxu0 0
  %4121 = vmatpush2.bf16.msra.mxu0 0
  %4122 = vmatprep.mubr.bf16.mxu0 0
  %4123 = vmatmul.mubr.bf16.gmra.mxu0 %v3856
  %v4124 = vpop.f32.mrf.mxu0
  %v4125 = vadd.f32 0.0, %v4124
  %v4126 = vpop.f32.mrf.mxu0
  %v4127 = vadd.f32 0.0, %v4126
  %v4128 = vpop.f32.mrf.mxu0
  %v4129 = vpop.f32.mrf.mxu0
  %4130 = vdwg.mxu0
  %v4131 = vadd.f32 %v3852, %v4084
  %v4132 = vadd.f32 %v3853, %v4086
  %v4133 = vadd.f32 %v3854, %v4125
  %v4134 = vadd.f32 %v3855, %v4127
  %v4135 = vxor.u32 %v3846, 2147483648
  %v4136 = vxor.u32 %v3847, 2147483648
  %v4137 = vxor.u32 %v3848, 2147483648
  %v4138 = vmul.f32 %v4135, 1.442695
  %v4139 = vpow.pop %v4138
  %v4140 = vmul.f32 %v4136, 1.442695
  %v4141 = vpow.pop %v4140
  %v4142 = vmul.f32 %v4137, 1.442695
  %v4143 = vpow.pop %v4142
  %v4144 = vadd.f32 %v4139, 1.0
  %v4145 = vadd.f32 %v4141, 1.0
  %v4146 = vadd.f32 %v4143, 1.0
  %v4147 = vrcp.pop %v4144
  %v4148 = vmul.f32 1.0, %v4147
  %v4149 = vrcp.pop %v4145
  %v4150 = vmul.f32 1.0, %v4149
  %v4151 = vrcp.pop %v4146
  %v4152 = vmul.f32 1.0, %v4151
  %v4153 = vtanh.pop %v3849
  %v4154 = vmul.f32 %v4150, %v3551
  %v4155 = vmul.f32 %v4148, %v4153
  %v4156 = vadd.f32 %v4154, %v4155
  %v4157 = vtanh.pop %v4156
  %v4158 = vmul.f32 %v4152, %v4157
  %v4159 = vxor.u32 %v4131, 2147483648
  %v4160 = vxor.u32 %v4132, 2147483648
  %v4161 = vxor.u32 %v4133, 2147483648
  %v4162 = vmul.f32 %v4159, 1.442695
  %v4163 = vpow.pop %v4162
  %v4164 = vmul.f32 %v4160, 1.442695
  %v4165 = vpow.pop %v4164
  %v4166 = vmul.f32 %v4161, 1.442695
  %v4167 = vpow.pop %v4166
  %v4168 = vadd.f32 %v4163, 1.0
  %v4169 = vadd.f32 %v4165, 1.0
  %v4170 = vadd.f32 %v4167, 1.0
  %v4171 = vrcp.pop %v4168
  %v4172 = vmul.f32 1.0, %v4171
  %v4173 = vrcp.pop %v4169
  %v4174 = vmul.f32 1.0, %v4173
  %v4175 = vrcp.pop %v4170
  %v4176 = vmul.f32 1.0, %v4175
  %v4177 = vtanh.pop %v4134
  %v4178 = vmul.f32 %v4174, %v3558
  %v4179 = vmul.f32 %v4172, %v4177
  %v4180 = vadd.f32 %v4178, %v4179
  %v4181 = vtanh.pop %v4180
  %v4182 = vmul.f32 %v4176, %v4181
  %v4183 = vsel %vm3556, %v4158, %v3550
  %v4184 = vsel %vm3556, %v4156, %v3551
  %v4185 = vsel %vm3549, %v4182, %v3557
  %v4186 = vsel %vm3549, %v4180, %v3558
  %v4187 = vsel %vm3556, %v4158, 0.0
  %v4188 = vpack.c.bf16 %v4187, %v4187
  %4189 = vst [vmem:[#allocation3 + $0x20] sm:$0xf] %v4188
  %v4190 = vsel %vm3549, %v4182, 0.0
  %v4191 = vpack.c.bf16 %v4190, %v4190
  %4192 = vst [vmem:[#allocation3 + $0x1c] sm:$0xf] %v4191
  %v4193 = vld [vmem:[#allocation2 + $0xa0] sm:$0xff]
  %v4194 = vld [vmem:[#allocation2 + $0xa8] sm:$0xff]
  %v4195 = vunpack.c.l.bf16 %v4193
  %v4196 = vunpack.c.h.bf16 %v4193
  %v4197 = vunpack.c.l.bf16 %v4194
  %v4198 = vunpack.c.h.bf16 %v4194
  %v4199 = vpack.c.bf16 %v4183, %v4183
  %v4200 = vld [vmem:[%s4] sm:$0xff]
  %v4201 = vld [vmem:[%s4 + $0x8] sm:$0xff]
  %v4202 = vld [vmem:[%s4 + $0x10] sm:$0xff]
  %v4203 = vld [vmem:[%s4 + $0x18] sm:$0xff]
  %v4204 = vld [vmem:[%s4 + $0x20] sm:$0xff]
  %v4205 = vld [vmem:[%s4 + $0x28] sm:$0xff]
  %v4206 = vld [vmem:[%s4 + $0x30] sm:$0xff]
  %v4207 = vld [vmem:[%s4 + $0x38] sm:$0xff]
  %v4208 = vld [vmem:[%s4 + $0x40] sm:$0xff]
  %v4209 = vld [vmem:[%s4 + $0x48] sm:$0xff]
  %v4210 = vld [vmem:[%s4 + $0x50] sm:$0xff]
  %v4211 = vld [vmem:[%s4 + $0x58] sm:$0xff]
  %v4212 = vld [vmem:[%s4 + $0x60] sm:$0xff]
  %v4213 = vld [vmem:[%s4 + $0x68] sm:$0xff]
  %v4214 = vld [vmem:[%s4 + $0x70] sm:$0xff]
  %v4215 = vld [vmem:[%s4 + $0x78] sm:$0xff]
  %v4216 = vld [vmem:[%s4 + $0x80] sm:$0xff]
  %v4217 = vld [vmem:[%s4 + $0x88] sm:$0xff]
  %v4218 = vld [vmem:[%s4 + $0x90] sm:$0xff]
  %v4219 = vld [vmem:[%s4 + $0x98] sm:$0xff]
  %v4220 = vld [vmem:[%s4 + $0xa0] sm:$0xff]
  %v4221 = vld [vmem:[%s4 + $0xa8] sm:$0xff]
  %v4222 = vld [vmem:[%s4 + $0xb0] sm:$0xff]
  %v4223 = vld [vmem:[%s4 + $0xb8] sm:$0xff]
  %v4224 = vld [vmem:[%s4 + $0xc0] sm:$0xff]
  %v4225 = vld [vmem:[%s4 + $0xc8] sm:$0xff]
  %v4226 = vld [vmem:[%s4 + $0xd0] sm:$0xff]
  %v4227 = vld [vmem:[%s4 + $0xd8] sm:$0xff]
  %v4228 = vld [vmem:[%s4 + $0xe0] sm:$0xff]
  %v4229 = vld [vmem:[%s4 + $0xe8] sm:$0xff]
  %v4230 = vld [vmem:[%s4 + $0xf0] sm:$0xff]
  %v4231 = vld [vmem:[%s4 + $0xf8] sm:$0xff]
  %v4264 = vunpack.c.l.b16 %v4200
  %v4265 = vunpack.c.h.b16 %v4200
  %v4266 = vunpack.c.l.b16 %v4201
  %v4267 = vunpack.c.h.b16 %v4201
  %v4268 = vunpack.c.l.b16 %v4202
  %v4269 = vunpack.c.h.b16 %v4202
  %v4270 = vunpack.c.l.b16 %v4203
  %v4271 = vunpack.c.h.b16 %v4203
  %v4272 = vunpack.c.l.b16 %v4204
  %v4273 = vunpack.c.h.b16 %v4204
  %v4274 = vunpack.c.l.b16 %v4205
  %v4275 = vunpack.c.h.b16 %v4205
  %v4276 = vunpack.c.l.b16 %v4206
  %v4277 = vunpack.c.h.b16 %v4206
  %v4278 = vunpack.c.l.b16 %v4207
  %v4279 = vunpack.c.h.b16 %v4207
  %v4280 = vunpack.c.l.b16 %v4208
  %v4281 = vunpack.c.h.b16 %v4208
  %v4282 = vunpack.c.l.b16 %v4209
  %v4283 = vunpack.c.h.b16 %v4209
  %v4284 = vunpack.c.l.b16 %v4210
  %v4285 = vunpack.c.h.b16 %v4210
  %v4286 = vunpack.c.l.b16 %v4211
  %v4287 = vunpack.c.h.b16 %v4211
  %v4288 = vunpack.c.l.b16 %v4212
  %v4289 = vunpack.c.h.b16 %v4212
  %v4290 = vunpack.c.l.b16 %v4213
  %v4291 = vunpack.c.h.b16 %v4213
  %v4292 = vunpack.c.l.b16 %v4214
  %v4293 = vunpack.c.h.b16 %v4214
  %v4294 = vunpack.c.l.b16 %v4215
  %v4295 = vunpack.c.h.b16 %v4215
  %v4296 = vunpack.c.l.b16 %v4216
  %v4297 = vunpack.c.h.b16 %v4216
  %v4298 = vunpack.c.l.b16 %v4217
  %v4299 = vunpack.c.h.b16 %v4217
  %v4300 = vunpack.c.l.b16 %v4218
  %v4301 = vunpack.c.h.b16 %v4218
  %v4302 = vunpack.c.l.b16 %v4219
  %v4303 = vunpack.c.h.b16 %v4219
  %v4304 = vunpack.c.l.b16 %v4220
  %v4305 = vunpack.c.h.b16 %v4220
  %v4306 = vunpack.c.l.b16 %v4221
  %v4307 = vunpack.c.h.b16 %v4221
  %v4308 = vunpack.c.l.b16 %v4222
  %v4309 = vunpack.c.h.b16 %v4222
  %v4310 = vunpack.c.l.b16 %v4223
  %v4311 = vunpack.c.h.b16 %v4223
  %v4312 = vunpack.c.l.b16 %v4224
  %v4313 = vunpack.c.h.b16 %v4224
  %v4314 = vunpack.c.l.b16 %v4225
  %v4315 = vunpack.c.h.b16 %v4225
  %v4316 = vunpack.c.l.b16 %v4226
  %v4317 = vunpack.c.h.b16 %v4226
  %v4318 = vunpack.c.l.b16 %v4227
  %v4319 = vunpack.c.h.b16 %v4227
  %v4320 = vunpack.c.l.b16 %v4228
  %v4321 = vunpack.c.h.b16 %v4228
  %v4322 = vunpack.c.l.b16 %v4229
  %v4323 = vunpack.c.h.b16 %v4229
  %v4324 = vunpack.c.l.b16 %v4230
  %v4325 = vunpack.c.h.b16 %v4230
  %v4326 = vunpack.c.l.b16 %v4231
  %v4327 = vunpack.c.h.b16 %v4231
  %v4328 = vpack.c.b16 %v4268, %v4264
  %v4329 = vpack.c.b16 %v4269, %v4265
  %v4330 = vpack.c.b16 %v4270, %v4266
  %v4331 = vpack.c.b16 %v4271, %v4267
  %v4332 = vpack.c.b16 %v4276, %v4272
  %v4333 = vpack.c.b16 %v4277, %v4273
  %v4334 = vpack.c.b16 %v4278, %v4274
  %v4335 = vpack.c.b16 %v4279, %v4275
  %v4336 = vpack.c.b16 %v4284, %v4280
  %v4337 = vpack.c.b16 %v4285, %v4281
  %v4338 = vpack.c.b16 %v4286, %v4282
  %v4339 = vpack.c.b16 %v4287, %v4283
  %v4340 = vpack.c.b16 %v4292, %v4288
  %v4341 = vpack.c.b16 %v4293, %v4289
  %v4342 = vpack.c.b16 %v4294, %v4290
  %v4343 = vpack.c.b16 %v4295, %v4291
  %v4344 = vpack.c.b16 %v4300, %v4296
  %v4345 = vpack.c.b16 %v4301, %v4297
  %v4346 = vpack.c.b16 %v4302, %v4298
  %v4347 = vpack.c.b16 %v4303, %v4299
  %v4348 = vpack.c.b16 %v4308, %v4304
  %v4349 = vpack.c.b16 %v4309, %v4305
  %v4350 = vpack.c.b16 %v4310, %v4306
  %v4351 = vpack.c.b16 %v4311, %v4307
  %v4352 = vpack.c.b16 %v4316, %v4312
  %v4353 = vpack.c.b16 %v4317, %v4313
  %v4354 = vpack.c.b16 %v4318, %v4314
  %v4355 = vpack.c.b16 %v4319, %v4315
  %v4356 = vpack.c.b16 %v4324, %v4320
  %v4357 = vpack.c.b16 %v4325, %v4321
  %v4358 = vpack.c.b16 %v4326, %v4322
  %v4359 = vpack.c.b16 %v4327, %v4323
  %4392 = vmatprep.subr.bf16.mxu0 %v4357
  %4393 = vmatpush1.bf16.msra.mxu0 %v4356
  %4394 = vmatprep.subr.bf16.mxu0 %v4353
  %4395 = vmatpush1.bf16.msra.mxu0 %v4352
  %4396 = vmatprep.subr.bf16.mxu0 %v4349
  %4397 = vmatpush1.bf16.msra.mxu0 %v4348
  %4398 = vmatprep.subr.bf16.mxu0 %v4345
  %4399 = vmatpush1.bf16.msra.mxu0 %v4344
  %4400 = vmatprep.subr.bf16.mxu0 %v4341
  %4401 = vmatpush1.bf16.msra.mxu0 %v4340
  %4402 = vmatprep.subr.bf16.mxu0 %v4337
  %4403 = vmatpush1.bf16.msra.mxu0 %v4336
  %4404 = vmatprep.subr.bf16.mxu0 %v4333
  %4405 = vmatpush1.bf16.msra.mxu0 %v4332
  %4406 = vmatprep.subr.bf16.mxu0 %v4329
  %4407 = vmatpush1.bf16.msra.mxu0 %v4328
  %4408 = vmatprep.subr.bf16.mxu0 0
  %4409 = vmatpush2.bf16.msra.mxu0 0
  %4410 = vmatprep.subr.bf16.mxu0 0
  %4411 = vmatpush2.bf16.msra.mxu0 0
  %4412 = vmatprep.subr.bf16.mxu0 0
  %4413 = vmatpush2.bf16.msra.mxu0 0
  %4414 = vmatprep.subr.bf16.mxu0 0
  %4415 = vmatpush2.bf16.msra.mxu0 0
  %4416 = vmatprep.subr.bf16.mxu0 0
  %4417 = vmatpush2.bf16.msra.mxu0 0
  %4418 = vmatprep.subr.bf16.mxu0 0
  %4419 = vmatpush2.bf16.msra.mxu0 0
  %4420 = vmatprep.subr.bf16.mxu0 0
  %4421 = vmatpush2.bf16.msra.mxu0 0
  %4422 = vmatprep.subr.bf16.mxu0 0
  %4423 = vmatpush2.bf16.msra.mxu0 0
  %4424 = vmatprep.mubr.bf16.mxu0 0
  %4425 = vmatmul.mubr.bf16.gmra.mxu0 %v4199
  %v4426 = vpop.f32.mrf.mxu0
  %v4427 = vadd.f32 0.0, %v4426
  %v4428 = vpop.f32.mrf.mxu0
  %v4429 = vadd.f32 0.0, %v4428
  %v4430 = vpop.f32.mrf.mxu0
  %v4431 = vpop.f32.mrf.mxu0
  %4432 = vdwg.mxu0
  %4433 = vmatprep.subr.bf16.mxu0 %v4359
  %4434 = vmatpush1.bf16.msra.mxu0 %v4358
  %4435 = vmatprep.subr.bf16.mxu0 %v4355
  %4436 = vmatpush1.bf16.msra.mxu0 %v4354
  %4437 = vmatprep.subr.bf16.mxu0 %v4351
  %4438 = vmatpush1.bf16.msra.mxu0 %v4350
  %4439 = vmatprep.subr.bf16.mxu0 %v4347
  %4440 = vmatpush1.bf16.msra.mxu0 %v4346
  %4441 = vmatprep.subr.bf16.mxu0 %v4343
  %4442 = vmatpush1.bf16.msra.mxu0 %v4342
  %4443 = vmatprep.subr.bf16.mxu0 %v4339
  %4444 = vmatpush1.bf16.msra.mxu0 %v4338
  %4445 = vmatprep.subr.bf16.mxu0 %v4335
  %4446 = vmatpush1.bf16.msra.mxu0 %v4334
  %4447 = vmatprep.subr.bf16.mxu0 %v4331
  %4448 = vmatpush1.bf16.msra.mxu0 %v4330
  %4449 = vmatprep.subr.bf16.mxu0 0
  %4450 = vmatpush2.bf16.msra.mxu0 0
  %4451 = vmatprep.subr.bf16.mxu0 0
  %4452 = vmatpush2.bf16.msra.mxu0 0
  %4453 = vmatprep.subr.bf16.mxu0 0
  %4454 = vmatpush2.bf16.msra.mxu0 0
  %4455 = vmatprep.subr.bf16.mxu0 0
  %4456 = vmatpush2.bf16.msra.mxu0 0
  %4457 = vmatprep.subr.bf16.mxu0 0
  %4458 = vmatpush2.bf16.msra.mxu0 0
  %4459 = vmatprep.subr.bf16.mxu0 0
  %4460 = vmatpush2.bf16.msra.mxu0 0
  %4461 = vmatprep.subr.bf16.mxu0 0
  %4462 = vmatpush2.bf16.msra.mxu0 0
  %4463 = vmatprep.subr.bf16.mxu0 0
  %4464 = vmatpush2.bf16.msra.mxu0 0
  %4465 = vmatprep.mubr.bf16.mxu0 0
  %4466 = vmatmul.mubr.bf16.gmra.mxu0 %v4199
  %v4467 = vpop.f32.mrf.mxu0
  %v4468 = vadd.f32 0.0, %v4467
  %v4469 = vpop.f32.mrf.mxu0
  %v4470 = vadd.f32 0.0, %v4469
  %v4471 = vpop.f32.mrf.mxu0
  %v4472 = vpop.f32.mrf.mxu0
  %4473 = vdwg.mxu0
  %v4474 = vadd.f32 %v4195, %v4427
  %v4475 = vadd.f32 %v4196, %v4429
  %v4476 = vadd.f32 %v4197, %v4468
  %v4477 = vadd.f32 %v4198, %v4470
  %v4478 = vld [vmem:[#allocation2 + $0x50] sm:$0xff]
  %v4479 = vld [vmem:[#allocation2 + $0x58] sm:$0xff]
  %v4480 = vunpack.c.l.bf16 %v4478
  %v4481 = vunpack.c.h.bf16 %v4478
  %v4482 = vunpack.c.l.bf16 %v4479
  %v4483 = vunpack.c.h.bf16 %v4479
  %v4484 = vpack.c.bf16 %v4185, %v4185
  %v4485 = vld [vmem:[%s5] sm:$0xff]
  %v4486 = vld [vmem:[%s5 + $0x8] sm:$0xff]
  %v4487 = vld [vmem:[%s5 + $0x10] sm:$0xff]
  %v4488 = vld [vmem:[%s5 + $0x18] sm:$0xff]
  %v4489 = vld [vmem:[%s5 + $0x20] sm:$0xff]
  %v4490 = vld [vmem:[%s5 + $0x28] sm:$0xff]
  %v4491 = vld [vmem:[%s5 + $0x30] sm:$0xff]
  %v4492 = vld [vmem:[%s5 + $0x38] sm:$0xff]
  %v4493 = vld [vmem:[%s5 + $0x40] sm:$0xff]
  %v4494 = vld [vmem:[%s5 + $0x48] sm:$0xff]
  %v4495 = vld [vmem:[%s5 + $0x50] sm:$0xff]
  %v4496 = vld [vmem:[%s5 + $0x58] sm:$0xff]
  %v4497 = vld [vmem:[%s5 + $0x60] sm:$0xff]
  %v4498 = vld [vmem:[%s5 + $0x68] sm:$0xff]
  %v4499 = vld [vmem:[%s5 + $0x70] sm:$0xff]
  %v4500 = vld [vmem:[%s5 + $0x78] sm:$0xff]
  %v4501 = vld [vmem:[%s5 + $0x80] sm:$0xff]
  %v4502 = vld [vmem:[%s5 + $0x88] sm:$0xff]
  %v4503 = vld [vmem:[%s5 + $0x90] sm:$0xff]
  %v4504 = vld [vmem:[%s5 + $0x98] sm:$0xff]
  %v4505 = vld [vmem:[%s5 + $0xa0] sm:$0xff]
  %v4506 = vld [vmem:[%s5 + $0xa8] sm:$0xff]
  %v4507 = vld [vmem:[%s5 + $0xb0] sm:$0xff]
  %v4508 = vld [vmem:[%s5 + $0xb8] sm:$0xff]
  %v4509 = vld [vmem:[%s5 + $0xc0] sm:$0xff]
  %v4510 = vld [vmem:[%s5 + $0xc8] sm:$0xff]
  %v4511 = vld [vmem:[%s5 + $0xd0] sm:$0xff]
  %v4512 = vld [vmem:[%s5 + $0xd8] sm:$0xff]
  %v4513 = vld [vmem:[%s5 + $0xe0] sm:$0xff]
  %v4514 = vld [vmem:[%s5 + $0xe8] sm:$0xff]
  %v4515 = vld [vmem:[%s5 + $0xf0] sm:$0xff]
  %v4516 = vld [vmem:[%s5 + $0xf8] sm:$0xff]
  %v4549 = vunpack.c.l.b16 %v4485
  %v4550 = vunpack.c.h.b16 %v4485
  %v4551 = vunpack.c.l.b16 %v4486
  %v4552 = vunpack.c.h.b16 %v4486
  %v4553 = vunpack.c.l.b16 %v4487
  %v4554 = vunpack.c.h.b16 %v4487
  %v4555 = vunpack.c.l.b16 %v4488
  %v4556 = vunpack.c.h.b16 %v4488
  %v4557 = vunpack.c.l.b16 %v4489
  %v4558 = vunpack.c.h.b16 %v4489
  %v4559 = vunpack.c.l.b16 %v4490
  %v4560 = vunpack.c.h.b16 %v4490
  %v4561 = vunpack.c.l.b16 %v4491
  %v4562 = vunpack.c.h.b16 %v4491
  %v4563 = vunpack.c.l.b16 %v4492
  %v4564 = vunpack.c.h.b16 %v4492
  %v4565 = vunpack.c.l.b16 %v4493
  %v4566 = vunpack.c.h.b16 %v4493
  %v4567 = vunpack.c.l.b16 %v4494
  %v4568 = vunpack.c.h.b16 %v4494
  %v4569 = vunpack.c.l.b16 %v4495
  %v4570 = vunpack.c.h.b16 %v4495
  %v4571 = vunpack.c.l.b16 %v4496
  %v4572 = vunpack.c.h.b16 %v4496
  %v4573 = vunpack.c.l.b16 %v4497
  %v4574 = vunpack.c.h.b16 %v4497
  %v4575 = vunpack.c.l.b16 %v4498
  %v4576 = vunpack.c.h.b16 %v4498
  %v4577 = vunpack.c.l.b16 %v4499
  %v4578 = vunpack.c.h.b16 %v4499
  %v4579 = vunpack.c.l.b16 %v4500
  %v4580 = vunpack.c.h.b16 %v4500
  %v4581 = vunpack.c.l.b16 %v4501
  %v4582 = vunpack.c.h.b16 %v4501
  %v4583 = vunpack.c.l.b16 %v4502
  %v4584 = vunpack.c.h.b16 %v4502
  %v4585 = vunpack.c.l.b16 %v4503
  %v4586 = vunpack.c.h.b16 %v4503
  %v4587 = vunpack.c.l.b16 %v4504
  %v4588 = vunpack.c.h.b16 %v4504
  %v4589 = vunpack.c.l.b16 %v4505
  %v4590 = vunpack.c.h.b16 %v4505
  %v4591 = vunpack.c.l.b16 %v4506
  %v4592 = vunpack.c.h.b16 %v4506
  %v4593 = vunpack.c.l.b16 %v4507
  %v4594 = vunpack.c.h.b16 %v4507
  %v4595 = vunpack.c.l.b16 %v4508
  %v4596 = vunpack.c.h.b16 %v4508
  %v4597 = vunpack.c.l.b16 %v4509
  %v4598 = vunpack.c.h.b16 %v4509
  %v4599 = vunpack.c.l.b16 %v4510
  %v4600 = vunpack.c.h.b16 %v4510
  %v4601 = vunpack.c.l.b16 %v4511
  %v4602 = vunpack.c.h.b16 %v4511
  %v4603 = vunpack.c.l.b16 %v4512
  %v4604 = vunpack.c.h.b16 %v4512
  %v4605 = vunpack.c.l.b16 %v4513
  %v4606 = vunpack.c.h.b16 %v4513
  %v4607 = vunpack.c.l.b16 %v4514
  %v4608 = vunpack.c.h.b16 %v4514
  %v4609 = vunpack.c.l.b16 %v4515
  %v4610 = vunpack.c.h.b16 %v4515
  %v4611 = vunpack.c.l.b16 %v4516
  %v4612 = vunpack.c.h.b16 %v4516
  %v4613 = vpack.c.b16 %v4553, %v4549
  %v4614 = vpack.c.b16 %v4554, %v4550
  %v4615 = vpack.c.b16 %v4555, %v4551
  %v4616 = vpack.c.b16 %v4556, %v4552
  %v4617 = vpack.c.b16 %v4561, %v4557
  %v4618 = vpack.c.b16 %v4562, %v4558
  %v4619 = vpack.c.b16 %v4563, %v4559
  %v4620 = vpack.c.b16 %v4564, %v4560
  %v4621 = vpack.c.b16 %v4569, %v4565
  %v4622 = vpack.c.b16 %v4570, %v4566
  %v4623 = vpack.c.b16 %v4571, %v4567
  %v4624 = vpack.c.b16 %v4572, %v4568
  %v4625 = vpack.c.b16 %v4577, %v4573
  %v4626 = vpack.c.b16 %v4578, %v4574
  %v4627 = vpack.c.b16 %v4579, %v4575
  %v4628 = vpack.c.b16 %v4580, %v4576
  %v4629 = vpack.c.b16 %v4585, %v4581
  %v4630 = vpack.c.b16 %v4586, %v4582
  %v4631 = vpack.c.b16 %v4587, %v4583
  %v4632 = vpack.c.b16 %v4588, %v4584
  %v4633 = vpack.c.b16 %v4593, %v4589
  %v4634 = vpack.c.b16 %v4594, %v4590
  %v4635 = vpack.c.b16 %v4595, %v4591
  %v4636 = vpack.c.b16 %v4596, %v4592
  %v4637 = vpack.c.b16 %v4601, %v4597
  %v4638 = vpack.c.b16 %v4602, %v4598
  %v4639 = vpack.c.b16 %v4603, %v4599
  %v4640 = vpack.c.b16 %v4604, %v4600
  %v4641 = vpack.c.b16 %v4609, %v4605
  %v4642 = vpack.c.b16 %v4610, %v4606
  %v4643 = vpack.c.b16 %v4611, %v4607
  %v4644 = vpack.c.b16 %v4612, %v4608
  %4677 = vmatprep.subr.bf16.mxu0 %v4642
  %4678 = vmatpush1.bf16.msra.mxu0 %v4641
  %4679 = vmatprep.subr.bf16.mxu0 %v4638
  %4680 = vmatpush1.bf16.msra.mxu0 %v4637
  %4681 = vmatprep.subr.bf16.mxu0 %v4634
  %4682 = vmatpush1.bf16.msra.mxu0 %v4633
  %4683 = vmatprep.subr.bf16.mxu0 %v4630
  %4684 = vmatpush1.bf16.msra.mxu0 %v4629
  %4685 = vmatprep.subr.bf16.mxu0 %v4626
  %4686 = vmatpush1.bf16.msra.mxu0 %v4625
  %4687 = vmatprep.subr.bf16.mxu0 %v4622
  %4688 = vmatpush1.bf16.msra.mxu0 %v4621
  %4689 = vmatprep.subr.bf16.mxu0 %v4618
  %4690 = vmatpush1.bf16.msra.mxu0 %v4617
  %4691 = vmatprep.subr.bf16.mxu0 %v4614
  %4692 = vmatpush1.bf16.msra.mxu0 %v4613
  %4693 = vmatprep.subr.bf16.mxu0 0
  %4694 = vmatpush2.bf16.msra.mxu0 0
  %4695 = vmatprep.subr.bf16.mxu0 0
  %4696 = vmatpush2.bf16.msra.mxu0 0
  %4697 = vmatprep.subr.bf16.mxu0 0
  %4698 = vmatpush2.bf16.msra.mxu0 0
  %4699 = vmatprep.subr.bf16.mxu0 0
  %4700 = vmatpush2.bf16.msra.mxu0 0
  %4701 = vmatprep.subr.bf16.mxu0 0
  %4702 = vmatpush2.bf16.msra.mxu0 0
  %4703 = vmatprep.subr.bf16.mxu0 0
  %4704 = vmatpush2.bf16.msra.mxu0 0
  %4705 = vmatprep.subr.bf16.mxu0 0
  %4706 = vmatpush2.bf16.msra.mxu0 0
  %4707 = vmatprep.subr.bf16.mxu0 0
  %4708 = vmatpush2.bf16.msra.mxu0 0
  %4709 = vmatprep.mubr.bf16.mxu0 0
  %4710 = vmatmul.mubr.bf16.gmra.mxu0 %v4484
  %v4711 = vpop.f32.mrf.mxu0
  %v4712 = vadd.f32 0.0, %v4711
  %v4713 = vpop.f32.mrf.mxu0
  %v4714 = vadd.f32 0.0, %v4713
  %v4715 = vpop.f32.mrf.mxu0
  %v4716 = vpop.f32.mrf.mxu0
  %4717 = vdwg.mxu0
  %4718 = vmatprep.subr.bf16.mxu0 %v4644
  %4719 = vmatpush1.bf16.msra.mxu0 %v4643
  %4720 = vmatprep.subr.bf16.mxu0 %v4640
  %4721 = vmatpush1.bf16.msra.mxu0 %v4639
  %4722 = vmatprep.subr.bf16.mxu0 %v4636
  %4723 = vmatpush1.bf16.msra.mxu0 %v4635
  %4724 = vmatprep.subr.bf16.mxu0 %v4632
  %4725 = vmatpush1.bf16.msra.mxu0 %v4631
  %4726 = vmatprep.subr.bf16.mxu0 %v4628
  %4727 = vmatpush1.bf16.msra.mxu0 %v4627
  %4728 = vmatprep.subr.bf16.mxu0 %v4624
  %4729 = vmatpush1.bf16.msra.mxu0 %v4623
  %4730 = vmatprep.subr.bf16.mxu0 %v4620
  %4731 = vmatpush1.bf16.msra.mxu0 %v4619
  %4732 = vmatprep.subr.bf16.mxu0 %v4616
  %4733 = vmatpush1.bf16.msra.mxu0 %v4615
  %4734 = vmatprep.subr.bf16.mxu0 0
  %4735 = vmatpush2.bf16.msra.mxu0 0
  %4736 = vmatprep.subr.bf16.mxu0 0
  %4737 = vmatpush2.bf16.msra.mxu0 0
  %4738 = vmatprep.subr.bf16.mxu0 0
  %4739 = vmatpush2.bf16.msra.mxu0 0
  %4740 = vmatprep.subr.bf16.mxu0 0
  %4741 = vmatpush2.bf16.msra.mxu0 0
  %4742 = vmatprep.subr.bf16.mxu0 0
  %4743 = vmatpush2.bf16.msra.mxu0 0
  %4744 = vmatprep.subr.bf16.mxu0 0
  %4745 = vmatpush2.bf16.msra.mxu0 0
  %4746 = vmatprep.subr.bf16.mxu0 0
  %4747 = vmatpush2.bf16.msra.mxu0 0
  %4748 = vmatprep.subr.bf16.mxu0 0
  %4749 = vmatpush2.bf16.msra.mxu0 0
  %4750 = vmatprep.mubr.bf16.mxu0 0
  %4751 = vmatmul.mubr.bf16.gmra.mxu0 %v4484
  %v4752 = vpop.f32.mrf.mxu0
  %v4753 = vadd.f32 0.0, %v4752
  %v4754 = vpop.f32.mrf.mxu0
  %v4755 = vadd.f32 0.0, %v4754
  %v4756 = vpop.f32.mrf.mxu0
  %v4757 = vpop.f32.mrf.mxu0
  %4758 = vdwg.mxu0
  %v4759 = vadd.f32 %v4480, %v4712
  %v4760 = vadd.f32 %v4481, %v4714
  %v4761 = vadd.f32 %v4482, %v4753
  %v4762 = vadd.f32 %v4483, %v4755
  %v4763 = vxor.u32 %v4474, 2147483648
  %v4764 = vxor.u32 %v4475, 2147483648
  %v4765 = vxor.u32 %v4476, 2147483648
  %v4766 = vmul.f32 %v4763, 1.442695
  %v4767 = vpow.pop %v4766
  %v4768 = vmul.f32 %v4764, 1.442695
  %v4769 = vpow.pop %v4768
  %v4770 = vmul.f32 %v4765, 1.442695
  %v4771 = vpow.pop %v4770
  %v4772 = vadd.f32 %v4767, 1.0
  %v4773 = vadd.f32 %v4769, 1.0
  %v4774 = vadd.f32 %v4771, 1.0
  %v4775 = vrcp.pop %v4772
  %v4776 = vmul.f32 1.0, %v4775
  %v4777 = vrcp.pop %v4773
  %v4778 = vmul.f32 1.0, %v4777
  %v4779 = vrcp.pop %v4774
  %v4780 = vmul.f32 1.0, %v4779
  %v4781 = vtanh.pop %v4477
  %v4782 = vmul.f32 %v4778, %v4184
  %v4783 = vmul.f32 %v4776, %v4781
  %v4784 = vadd.f32 %v4782, %v4783
  %v4785 = vtanh.pop %v4784
  %v4786 = vmul.f32 %v4780, %v4785
  %v4787 = vxor.u32 %v4759, 2147483648
  %v4788 = vxor.u32 %v4760, 2147483648
  %v4789 = vxor.u32 %v4761, 2147483648
  %v4790 = vmul.f32 %v4787, 1.442695
  %v4791 = vpow.pop %v4790
  %v4792 = vmul.f32 %v4788, 1.442695
  %v4793 = vpow.pop %v4792
  %v4794 = vmul.f32 %v4789, 1.442695
  %v4795 = vpow.pop %v4794
  %v4796 = vadd.f32 %v4791, 1.0
  %v4797 = vadd.f32 %v4793, 1.0
  %v4798 = vadd.f32 %v4795, 1.0
  %v4799 = vrcp.pop %v4796
  %v4800 = vmul.f32 1.0, %v4799
  %v4801 = vrcp.pop %v4797
  %v4802 = vmul.f32 1.0, %v4801
  %v4803 = vrcp.pop %v4798
  %v4804 = vmul.f32 1.0, %v4803
  %v4805 = vtanh.pop %v4762
  %v4806 = vmul.f32 %v4802, %v4186
  %v4807 = vmul.f32 %v4800, %v4805
  %v4808 = vadd.f32 %v4806, %v4807
  %v4809 = vtanh.pop %v4808
  %v4810 = vmul.f32 %v4804, %v4809
  %v4811 = vsel %vm2916, %v4786, %v4183
  %v4812 = vsel %vm2916, %v4784, %v4184
  %v4813 = vsel %vm2909, %v4810, %v4185
  %v4814 = vsel %vm2909, %v4808, %v4186
  %v4815 = vsel %vm2916, %v4786, 0.0
  %v4816 = vpack.c.bf16 %v4815, %v4815
  %4817 = vst [vmem:[#allocation3 + $0x28] sm:$0xf] %v4816
  %v4818 = vsel %vm2909, %v4810, 0.0
  %v4819 = vpack.c.bf16 %v4818, %v4818
  %4820 = vst [vmem:[#allocation3 + $0x14] sm:$0xf] %v4819
  %v4821 = vld [vmem:[#allocation2 + $0xc0] sm:$0xff]
  %v4822 = vld [vmem:[#allocation2 + $0xc8] sm:$0xff]
  %v4823 = vunpack.c.l.bf16 %v4821
  %v4824 = vunpack.c.h.bf16 %v4821
  %v4825 = vunpack.c.l.bf16 %v4822
  %v4826 = vunpack.c.h.bf16 %v4822
  %v4827 = vpack.c.bf16 %v4811, %v4811
  %v4828 = vld [vmem:[%s4] sm:$0xff]
  %v4829 = vld [vmem:[%s4 + $0x8] sm:$0xff]
  %v4830 = vld [vmem:[%s4 + $0x10] sm:$0xff]
  %v4831 = vld [vmem:[%s4 + $0x18] sm:$0xff]
  %v4832 = vld [vmem:[%s4 + $0x20] sm:$0xff]
  %v4833 = vld [vmem:[%s4 + $0x28] sm:$0xff]
  %v4834 = vld [vmem:[%s4 + $0x30] sm:$0xff]
  %v4835 = vld [vmem:[%s4 + $0x38] sm:$0xff]
  %v4836 = vld [vmem:[%s4 + $0x40] sm:$0xff]
  %v4837 = vld [vmem:[%s4 + $0x48] sm:$0xff]
  %v4838 = vld [vmem:[%s4 + $0x50] sm:$0xff]
  %v4839 = vld [vmem:[%s4 + $0x58] sm:$0xff]
  %v4840 = vld [vmem:[%s4 + $0x60] sm:$0xff]
  %v4841 = vld [vmem:[%s4 + $0x68] sm:$0xff]
  %v4842 = vld [vmem:[%s4 + $0x70] sm:$0xff]
  %v4843 = vld [vmem:[%s4 + $0x78] sm:$0xff]
  %v4844 = vld [vmem:[%s4 + $0x80] sm:$0xff]
  %v4845 = vld [vmem:[%s4 + $0x88] sm:$0xff]
  %v4846 = vld [vmem:[%s4 + $0x90] sm:$0xff]
  %v4847 = vld [vmem:[%s4 + $0x98] sm:$0xff]
  %v4848 = vld [vmem:[%s4 + $0xa0] sm:$0xff]
  %v4849 = vld [vmem:[%s4 + $0xa8] sm:$0xff]
  %v4850 = vld [vmem:[%s4 + $0xb0] sm:$0xff]
  %v4851 = vld [vmem:[%s4 + $0xb8] sm:$0xff]
  %v4852 = vld [vmem:[%s4 + $0xc0] sm:$0xff]
  %v4853 = vld [vmem:[%s4 + $0xc8] sm:$0xff]
  %v4854 = vld [vmem:[%s4 + $0xd0] sm:$0xff]
  %v4855 = vld [vmem:[%s4 + $0xd8] sm:$0xff]
  %v4856 = vld [vmem:[%s4 + $0xe0] sm:$0xff]
  %v4857 = vld [vmem:[%s4 + $0xe8] sm:$0xff]
  %v4858 = vld [vmem:[%s4 + $0xf0] sm:$0xff]
  %v4859 = vld [vmem:[%s4 + $0xf8] sm:$0xff]
  %v4892 = vunpack.c.l.b16 %v4828
  %v4893 = vunpack.c.h.b16 %v4828
  %v4894 = vunpack.c.l.b16 %v4829
  %v4895 = vunpack.c.h.b16 %v4829
  %v4896 = vunpack.c.l.b16 %v4830
  %v4897 = vunpack.c.h.b16 %v4830
  %v4898 = vunpack.c.l.b16 %v4831
  %v4899 = vunpack.c.h.b16 %v4831
  %v4900 = vunpack.c.l.b16 %v4832
  %v4901 = vunpack.c.h.b16 %v4832
  %v4902 = vunpack.c.l.b16 %v4833
  %v4903 = vunpack.c.h.b16 %v4833
  %v4904 = vunpack.c.l.b16 %v4834
  %v4905 = vunpack.c.h.b16 %v4834
  %v4906 = vunpack.c.l.b16 %v4835
  %v4907 = vunpack.c.h.b16 %v4835
  %v4908 = vunpack.c.l.b16 %v4836
  %v4909 = vunpack.c.h.b16 %v4836
  %v4910 = vunpack.c.l.b16 %v4837
  %v4911 = vunpack.c.h.b16 %v4837
  %v4912 = vunpack.c.l.b16 %v4838
  %v4913 = vunpack.c.h.b16 %v4838
  %v4914 = vunpack.c.l.b16 %v4839
  %v4915 = vunpack.c.h.b16 %v4839
  %v4916 = vunpack.c.l.b16 %v4840
  %v4917 = vunpack.c.h.b16 %v4840
  %v4918 = vunpack.c.l.b16 %v4841
  %v4919 = vunpack.c.h.b16 %v4841
  %v4920 = vunpack.c.l.b16 %v4842
  %v4921 = vunpack.c.h.b16 %v4842
  %v4922 = vunpack.c.l.b16 %v4843
  %v4923 = vunpack.c.h.b16 %v4843
  %v4924 = vunpack.c.l.b16 %v4844
  %v4925 = vunpack.c.h.b16 %v4844
  %v4926 = vunpack.c.l.b16 %v4845
  %v4927 = vunpack.c.h.b16 %v4845
  %v4928 = vunpack.c.l.b16 %v4846
  %v4929 = vunpack.c.h.b16 %v4846
  %v4930 = vunpack.c.l.b16 %v4847
  %v4931 = vunpack.c.h.b16 %v4847
  %v4932 = vunpack.c.l.b16 %v4848
  %v4933 = vunpack.c.h.b16 %v4848
  %v4934 = vunpack.c.l.b16 %v4849
  %v4935 = vunpack.c.h.b16 %v4849
  %v4936 = vunpack.c.l.b16 %v4850
  %v4937 = vunpack.c.h.b16 %v4850
  %v4938 = vunpack.c.l.b16 %v4851
  %v4939 = vunpack.c.h.b16 %v4851
  %v4940 = vunpack.c.l.b16 %v4852
  %v4941 = vunpack.c.h.b16 %v4852
  %v4942 = vunpack.c.l.b16 %v4853
  %v4943 = vunpack.c.h.b16 %v4853
  %v4944 = vunpack.c.l.b16 %v4854
  %v4945 = vunpack.c.h.b16 %v4854
  %v4946 = vunpack.c.l.b16 %v4855
  %v4947 = vunpack.c.h.b16 %v4855
  %v4948 = vunpack.c.l.b16 %v4856
  %v4949 = vunpack.c.h.b16 %v4856
  %v4950 = vunpack.c.l.b16 %v4857
  %v4951 = vunpack.c.h.b16 %v4857
  %v4952 = vunpack.c.l.b16 %v4858
  %v4953 = vunpack.c.h.b16 %v4858
  %v4954 = vunpack.c.l.b16 %v4859
  %v4955 = vunpack.c.h.b16 %v4859
  %v4956 = vpack.c.b16 %v4896, %v4892
  %v4957 = vpack.c.b16 %v4897, %v4893
  %v4958 = vpack.c.b16 %v4898, %v4894
  %v4959 = vpack.c.b16 %v4899, %v4895
  %v4960 = vpack.c.b16 %v4904, %v4900
  %v4961 = vpack.c.b16 %v4905, %v4901
  %v4962 = vpack.c.b16 %v4906, %v4902
  %v4963 = vpack.c.b16 %v4907, %v4903
  %v4964 = vpack.c.b16 %v4912, %v4908
  %v4965 = vpack.c.b16 %v4913, %v4909
  %v4966 = vpack.c.b16 %v4914, %v4910
  %v4967 = vpack.c.b16 %v4915, %v4911
  %v4968 = vpack.c.b16 %v4920, %v4916
  %v4969 = vpack.c.b16 %v4921, %v4917
  %v4970 = vpack.c.b16 %v4922, %v4918
  %v4971 = vpack.c.b16 %v4923, %v4919
  %v4972 = vpack.c.b16 %v4928, %v4924
  %v4973 = vpack.c.b16 %v4929, %v4925
  %v4974 = vpack.c.b16 %v4930, %v4926
  %v4975 = vpack.c.b16 %v4931, %v4927
  %v4976 = vpack.c.b16 %v4936, %v4932
  %v4977 = vpack.c.b16 %v4937, %v4933
  %v4978 = vpack.c.b16 %v4938, %v4934
  %v4979 = vpack.c.b16 %v4939, %v4935
  %v4980 = vpack.c.b16 %v4944, %v4940
  %v4981 = vpack.c.b16 %v4945, %v4941
  %v4982 = vpack.c.b16 %v4946, %v4942
  %v4983 = vpack.c.b16 %v4947, %v4943
  %v4984 = vpack.c.b16 %v4952, %v4948
  %v4985 = vpack.c.b16 %v4953, %v4949
  %v4986 = vpack.c.b16 %v4954, %v4950
  %v4987 = vpack.c.b16 %v4955, %v4951
  %5020 = vmatprep.subr.bf16.mxu0 %v4985
  %5021 = vmatpush1.bf16.msra.mxu0 %v4984
  %5022 = vmatprep.subr.bf16.mxu0 %v4981
  %5023 = vmatpush1.bf16.msra.mxu0 %v4980
  %5024 = vmatprep.subr.bf16.mxu0 %v4977
  %5025 = vmatpush1.bf16.msra.mxu0 %v4976
  %5026 = vmatprep.subr.bf16.mxu0 %v4973
  %5027 = vmatpush1.bf16.msra.mxu0 %v4972
  %5028 = vmatprep.subr.bf16.mxu0 %v4969
  %5029 = vmatpush1.bf16.msra.mxu0 %v4968
  %5030 = vmatprep.subr.bf16.mxu0 %v4965
  %5031 = vmatpush1.bf16.msra.mxu0 %v4964
  %5032 = vmatprep.subr.bf16.mxu0 %v4961
  %5033 = vmatpush1.bf16.msra.mxu0 %v4960
  %5034 = vmatprep.subr.bf16.mxu0 %v4957
  %5035 = vmatpush1.bf16.msra.mxu0 %v4956
  %5036 = vmatprep.subr.bf16.mxu0 0
  %5037 = vmatpush2.bf16.msra.mxu0 0
  %5038 = vmatprep.subr.bf16.mxu0 0
  %5039 = vmatpush2.bf16.msra.mxu0 0
  %5040 = vmatprep.subr.bf16.mxu0 0
  %5041 = vmatpush2.bf16.msra.mxu0 0
  %5042 = vmatprep.subr.bf16.mxu0 0
  %5043 = vmatpush2.bf16.msra.mxu0 0
  %5044 = vmatprep.subr.bf16.mxu0 0
  %5045 = vmatpush2.bf16.msra.mxu0 0
  %5046 = vmatprep.subr.bf16.mxu0 0
  %5047 = vmatpush2.bf16.msra.mxu0 0
  %5048 = vmatprep.subr.bf16.mxu0 0
  %5049 = vmatpush2.bf16.msra.mxu0 0
  %5050 = vmatprep.subr.bf16.mxu0 0
  %5051 = vmatpush2.bf16.msra.mxu0 0
  %5052 = vmatprep.mubr.bf16.mxu0 0
  %5053 = vmatmul.mubr.bf16.gmra.mxu0 %v4827
  %v5054 = vpop.f32.mrf.mxu0
  %v5055 = vadd.f32 0.0, %v5054
  %v5056 = vpop.f32.mrf.mxu0
  %v5057 = vadd.f32 0.0, %v5056
  %v5058 = vpop.f32.mrf.mxu0
  %v5059 = vpop.f32.mrf.mxu0
  %5060 = vdwg.mxu0
  %5061 = vmatprep.subr.bf16.mxu0 %v4987
  %5062 = vmatpush1.bf16.msra.mxu0 %v4986
  %5063 = vmatprep.subr.bf16.mxu0 %v4983
  %5064 = vmatpush1.bf16.msra.mxu0 %v4982
  %5065 = vmatprep.subr.bf16.mxu0 %v4979
  %5066 = vmatpush1.bf16.msra.mxu0 %v4978
  %5067 = vmatprep.subr.bf16.mxu0 %v4975
  %5068 = vmatpush1.bf16.msra.mxu0 %v4974
  %5069 = vmatprep.subr.bf16.mxu0 %v4971
  %5070 = vmatpush1.bf16.msra.mxu0 %v4970
  %5071 = vmatprep.subr.bf16.mxu0 %v4967
  %5072 = vmatpush1.bf16.msra.mxu0 %v4966
  %5073 = vmatprep.subr.bf16.mxu0 %v4963
  %5074 = vmatpush1.bf16.msra.mxu0 %v4962
  %5075 = vmatprep.subr.bf16.mxu0 %v4959
  %5076 = vmatpush1.bf16.msra.mxu0 %v4958
  %5077 = vmatprep.subr.bf16.mxu0 0
  %5078 = vmatpush2.bf16.msra.mxu0 0
  %5079 = vmatprep.subr.bf16.mxu0 0
  %5080 = vmatpush2.bf16.msra.mxu0 0
  %5081 = vmatprep.subr.bf16.mxu0 0
  %5082 = vmatpush2.bf16.msra.mxu0 0
  %5083 = vmatprep.subr.bf16.mxu0 0
  %5084 = vmatpush2.bf16.msra.mxu0 0
  %5085 = vmatprep.subr.bf16.mxu0 0
  %5086 = vmatpush2.bf16.msra.mxu0 0
  %5087 = vmatprep.subr.bf16.mxu0 0
  %5088 = vmatpush2.bf16.msra.mxu0 0
  %5089 = vmatprep.subr.bf16.mxu0 0
  %5090 = vmatpush2.bf16.msra.mxu0 0
  %5091 = vmatprep.subr.bf16.mxu0 0
  %5092 = vmatpush2.bf16.msra.mxu0 0
  %5093 = vmatprep.mubr.bf16.mxu0 0
  %5094 = vmatmul.mubr.bf16.gmra.mxu0 %v4827
  %v5095 = vpop.f32.mrf.mxu0
  %v5096 = vadd.f32 0.0, %v5095
  %v5097 = vpop.f32.mrf.mxu0
  %v5098 = vadd.f32 0.0, %v5097
  %v5099 = vpop.f32.mrf.mxu0
  %v5100 = vpop.f32.mrf.mxu0
  %5101 = vdwg.mxu0
  %v5102 = vadd.f32 %v4823, %v5055
  %v5103 = vadd.f32 %v4824, %v5057
  %v5104 = vadd.f32 %v4825, %v5096
  %v5105 = vadd.f32 %v4826, %v5098
  %v5106 = vld [vmem:[#allocation2 + $0x30] sm:$0xff]
  %v5107 = vld [vmem:[#allocation2 + $0x38] sm:$0xff]
  %v5108 = vunpack.c.l.bf16 %v5106
  %v5109 = vunpack.c.h.bf16 %v5106
  %v5110 = vunpack.c.l.bf16 %v5107
  %v5111 = vunpack.c.h.bf16 %v5107
  %v5112 = vpack.c.bf16 %v4813, %v4813
  %v5113 = vld [vmem:[%s5] sm:$0xff]
  %v5114 = vld [vmem:[%s5 + $0x8] sm:$0xff]
  %v5115 = vld [vmem:[%s5 + $0x10] sm:$0xff]
  %v5116 = vld [vmem:[%s5 + $0x18] sm:$0xff]
  %v5117 = vld [vmem:[%s5 + $0x20] sm:$0xff]
  %v5118 = vld [vmem:[%s5 + $0x28] sm:$0xff]
  %v5119 = vld [vmem:[%s5 + $0x30] sm:$0xff]
  %v5120 = vld [vmem:[%s5 + $0x38] sm:$0xff]
  %v5121 = vld [vmem:[%s5 + $0x40] sm:$0xff]
  %v5122 = vld [vmem:[%s5 + $0x48] sm:$0xff]
  %v5123 = vld [vmem:[%s5 + $0x50] sm:$0xff]
  %v5124 = vld [vmem:[%s5 + $0x58] sm:$0xff]
  %v5125 = vld [vmem:[%s5 + $0x60] sm:$0xff]
  %v5126 = vld [vmem:[%s5 + $0x68] sm:$0xff]
  %v5127 = vld [vmem:[%s5 + $0x70] sm:$0xff]
  %v5128 = vld [vmem:[%s5 + $0x78] sm:$0xff]
  %v5129 = vld [vmem:[%s5 + $0x80] sm:$0xff]
  %v5130 = vld [vmem:[%s5 + $0x88] sm:$0xff]
  %v5131 = vld [vmem:[%s5 + $0x90] sm:$0xff]
  %v5132 = vld [vmem:[%s5 + $0x98] sm:$0xff]
  %v5133 = vld [vmem:[%s5 + $0xa0] sm:$0xff]
  %v5134 = vld [vmem:[%s5 + $0xa8] sm:$0xff]
  %v5135 = vld [vmem:[%s5 + $0xb0] sm:$0xff]
  %v5136 = vld [vmem:[%s5 + $0xb8] sm:$0xff]
  %v5137 = vld [vmem:[%s5 + $0xc0] sm:$0xff]
  %v5138 = vld [vmem:[%s5 + $0xc8] sm:$0xff]
  %v5139 = vld [vmem:[%s5 + $0xd0] sm:$0xff]
  %v5140 = vld [vmem:[%s5 + $0xd8] sm:$0xff]
  %v5141 = vld [vmem:[%s5 + $0xe0] sm:$0xff]
  %v5142 = vld [vmem:[%s5 + $0xe8] sm:$0xff]
  %v5143 = vld [vmem:[%s5 + $0xf0] sm:$0xff]
  %v5144 = vld [vmem:[%s5 + $0xf8] sm:$0xff]
  %v5177 = vunpack.c.l.b16 %v5113
  %v5178 = vunpack.c.h.b16 %v5113
  %v5179 = vunpack.c.l.b16 %v5114
  %v5180 = vunpack.c.h.b16 %v5114
  %v5181 = vunpack.c.l.b16 %v5115
  %v5182 = vunpack.c.h.b16 %v5115
  %v5183 = vunpack.c.l.b16 %v5116
  %v5184 = vunpack.c.h.b16 %v5116
  %v5185 = vunpack.c.l.b16 %v5117
  %v5186 = vunpack.c.h.b16 %v5117
  %v5187 = vunpack.c.l.b16 %v5118
  %v5188 = vunpack.c.h.b16 %v5118
  %v5189 = vunpack.c.l.b16 %v5119
  %v5190 = vunpack.c.h.b16 %v5119
  %v5191 = vunpack.c.l.b16 %v5120
  %v5192 = vunpack.c.h.b16 %v5120
  %v5193 = vunpack.c.l.b16 %v5121
  %v5194 = vunpack.c.h.b16 %v5121
  %v5195 = vunpack.c.l.b16 %v5122
  %v5196 = vunpack.c.h.b16 %v5122
  %v5197 = vunpack.c.l.b16 %v5123
  %v5198 = vunpack.c.h.b16 %v5123
  %v5199 = vunpack.c.l.b16 %v5124
  %v5200 = vunpack.c.h.b16 %v5124
  %v5201 = vunpack.c.l.b16 %v5125
  %v5202 = vunpack.c.h.b16 %v5125
  %v5203 = vunpack.c.l.b16 %v5126
  %v5204 = vunpack.c.h.b16 %v5126
  %v5205 = vunpack.c.l.b16 %v5127
  %v5206 = vunpack.c.h.b16 %v5127
  %v5207 = vunpack.c.l.b16 %v5128
  %v5208 = vunpack.c.h.b16 %v5128
  %v5209 = vunpack.c.l.b16 %v5129
  %v5210 = vunpack.c.h.b16 %v5129
  %v5211 = vunpack.c.l.b16 %v5130
  %v5212 = vunpack.c.h.b16 %v5130
  %v5213 = vunpack.c.l.b16 %v5131
  %v5214 = vunpack.c.h.b16 %v5131
  %v5215 = vunpack.c.l.b16 %v5132
  %v5216 = vunpack.c.h.b16 %v5132
  %v5217 = vunpack.c.l.b16 %v5133
  %v5218 = vunpack.c.h.b16 %v5133
  %v5219 = vunpack.c.l.b16 %v5134
  %v5220 = vunpack.c.h.b16 %v5134
  %v5221 = vunpack.c.l.b16 %v5135
  %v5222 = vunpack.c.h.b16 %v5135
  %v5223 = vunpack.c.l.b16 %v5136
  %v5224 = vunpack.c.h.b16 %v5136
  %v5225 = vunpack.c.l.b16 %v5137
  %v5226 = vunpack.c.h.b16 %v5137
  %v5227 = vunpack.c.l.b16 %v5138
  %v5228 = vunpack.c.h.b16 %v5138
  %v5229 = vunpack.c.l.b16 %v5139
  %v5230 = vunpack.c.h.b16 %v5139
  %v5231 = vunpack.c.l.b16 %v5140
  %v5232 = vunpack.c.h.b16 %v5140
  %v5233 = vunpack.c.l.b16 %v5141
  %v5234 = vunpack.c.h.b16 %v5141
  %v5235 = vunpack.c.l.b16 %v5142
  %v5236 = vunpack.c.h.b16 %v5142
  %v5237 = vunpack.c.l.b16 %v5143
  %v5238 = vunpack.c.h.b16 %v5143
  %v5239 = vunpack.c.l.b16 %v5144
  %v5240 = vunpack.c.h.b16 %v5144
  %v5241 = vpack.c.b16 %v5181, %v5177
  %v5242 = vpack.c.b16 %v5182, %v5178
  %v5243 = vpack.c.b16 %v5183, %v5179
  %v5244 = vpack.c.b16 %v5184, %v5180
  %v5245 = vpack.c.b16 %v5189, %v5185
  %v5246 = vpack.c.b16 %v5190, %v5186
  %v5247 = vpack.c.b16 %v5191, %v5187
  %v5248 = vpack.c.b16 %v5192, %v5188
  %v5249 = vpack.c.b16 %v5197, %v5193
  %v5250 = vpack.c.b16 %v5198, %v5194
  %v5251 = vpack.c.b16 %v5199, %v5195
  %v5252 = vpack.c.b16 %v5200, %v5196
  %v5253 = vpack.c.b16 %v5205, %v5201
  %v5254 = vpack.c.b16 %v5206, %v5202
  %v5255 = vpack.c.b16 %v5207, %v5203
  %v5256 = vpack.c.b16 %v5208, %v5204
  %v5257 = vpack.c.b16 %v5213, %v5209
  %v5258 = vpack.c.b16 %v5214, %v5210
  %v5259 = vpack.c.b16 %v5215, %v5211
  %v5260 = vpack.c.b16 %v5216, %v5212
  %v5261 = vpack.c.b16 %v5221, %v5217
  %v5262 = vpack.c.b16 %v5222, %v5218
  %v5263 = vpack.c.b16 %v5223, %v5219
  %v5264 = vpack.c.b16 %v5224, %v5220
  %v5265 = vpack.c.b16 %v5229, %v5225
  %v5266 = vpack.c.b16 %v5230, %v5226
  %v5267 = vpack.c.b16 %v5231, %v5227
  %v5268 = vpack.c.b16 %v5232, %v5228
  %v5269 = vpack.c.b16 %v5237, %v5233
  %v5270 = vpack.c.b16 %v5238, %v5234
  %v5271 = vpack.c.b16 %v5239, %v5235
  %v5272 = vpack.c.b16 %v5240, %v5236
  %5305 = vmatprep.subr.bf16.mxu0 %v5270
  %5306 = vmatpush1.bf16.msra.mxu0 %v5269
  %5307 = vmatprep.subr.bf16.mxu0 %v5266
  %5308 = vmatpush1.bf16.msra.mxu0 %v5265
  %5309 = vmatprep.subr.bf16.mxu0 %v5262
  %5310 = vmatpush1.bf16.msra.mxu0 %v5261
  %5311 = vmatprep.subr.bf16.mxu0 %v5258
  %5312 = vmatpush1.bf16.msra.mxu0 %v5257
  %5313 = vmatprep.subr.bf16.mxu0 %v5254
  %5314 = vmatpush1.bf16.msra.mxu0 %v5253
  %5315 = vmatprep.subr.bf16.mxu0 %v5250
  %5316 = vmatpush1.bf16.msra.mxu0 %v5249
  %5317 = vmatprep.subr.bf16.mxu0 %v5246
  %5318 = vmatpush1.bf16.msra.mxu0 %v5245
  %5319 = vmatprep.subr.bf16.mxu0 %v5242
  %5320 = vmatpush1.bf16.msra.mxu0 %v5241
  %5321 = vmatprep.subr.bf16.mxu0 0
  %5322 = vmatpush2.bf16.msra.mxu0 0
  %5323 = vmatprep.subr.bf16.mxu0 0
  %5324 = vmatpush2.bf16.msra.mxu0 0
  %5325 = vmatprep.subr.bf16.mxu0 0
  %5326 = vmatpush2.bf16.msra.mxu0 0
  %5327 = vmatprep.subr.bf16.mxu0 0
  %5328 = vmatpush2.bf16.msra.mxu0 0
  %5329 = vmatprep.subr.bf16.mxu0 0
  %5330 = vmatpush2.bf16.msra.mxu0 0
  %5331 = vmatprep.subr.bf16.mxu0 0
  %5332 = vmatpush2.bf16.msra.mxu0 0
  %5333 = vmatprep.subr.bf16.mxu0 0
  %5334 = vmatpush2.bf16.msra.mxu0 0
  %5335 = vmatprep.subr.bf16.mxu0 0
  %5336 = vmatpush2.bf16.msra.mxu0 0
  %5337 = vmatprep.mubr.bf16.mxu0 0
  %5338 = vmatmul.mubr.bf16.gmra.mxu0 %v5112
  %v5339 = vpop.f32.mrf.mxu0
  %v5340 = vadd.f32 0.0, %v5339
  %v5341 = vpop.f32.mrf.mxu0
  %v5342 = vadd.f32 0.0, %v5341
  %v5343 = vpop.f32.mrf.mxu0
  %v5344 = vpop.f32.mrf.mxu0
  %5345 = vdwg.mxu0
  %5346 = vmatprep.subr.bf16.mxu0 %v5272
  %5347 = vmatpush1.bf16.msra.mxu0 %v5271
  %5348 = vmatprep.subr.bf16.mxu0 %v5268
  %5349 = vmatpush1.bf16.msra.mxu0 %v5267
  %5350 = vmatprep.subr.bf16.mxu0 %v5264
  %5351 = vmatpush1.bf16.msra.mxu0 %v5263
  %5352 = vmatprep.subr.bf16.mxu0 %v5260
  %5353 = vmatpush1.bf16.msra.mxu0 %v5259
  %5354 = vmatprep.subr.bf16.mxu0 %v5256
  %5355 = vmatpush1.bf16.msra.mxu0 %v5255
  %5356 = vmatprep.subr.bf16.mxu0 %v5252
  %5357 = vmatpush1.bf16.msra.mxu0 %v5251
  %5358 = vmatprep.subr.bf16.mxu0 %v5248
  %5359 = vmatpush1.bf16.msra.mxu0 %v5247
  %5360 = vmatprep.subr.bf16.mxu0 %v5244
  %5361 = vmatpush1.bf16.msra.mxu0 %v5243
  %5362 = vmatprep.subr.bf16.mxu0 0
  %5363 = vmatpush2.bf16.msra.mxu0 0
  %5364 = vmatprep.subr.bf16.mxu0 0
  %5365 = vmatpush2.bf16.msra.mxu0 0
  %5366 = vmatprep.subr.bf16.mxu0 0
  %5367 = vmatpush2.bf16.msra.mxu0 0
  %5368 = vmatprep.subr.bf16.mxu0 0
  %5369 = vmatpush2.bf16.msra.mxu0 0
  %5370 = vmatprep.subr.bf16.mxu0 0
  %5371 = vmatpush2.bf16.msra.mxu0 0
  %5372 = vmatprep.subr.bf16.mxu0 0
  %5373 = vmatpush2.bf16.msra.mxu0 0
  %5374 = vmatprep.subr.bf16.mxu0 0
  %5375 = vmatpush2.bf16.msra.mxu0 0
  %5376 = vmatprep.subr.bf16.mxu0 0
  %5377 = vmatpush2.bf16.msra.mxu0 0
  %5378 = vmatprep.mubr.bf16.mxu0 0
  %5379 = vmatmul.mubr.bf16.gmra.mxu0 %v5112
  %v5380 = vpop.f32.mrf.mxu0
  %v5381 = vadd.f32 0.0, %v5380
  %v5382 = vpop.f32.mrf.mxu0
  %v5383 = vadd.f32 0.0, %v5382
  %v5384 = vpop.f32.mrf.mxu0
  %v5385 = vpop.f32.mrf.mxu0
  %5386 = vdwg.mxu0
  %v5387 = vadd.f32 %v5108, %v5340
  %v5388 = vadd.f32 %v5109, %v5342
  %v5389 = vadd.f32 %v5110, %v5381
  %v5390 = vadd.f32 %v5111, %v5383
  %v5391 = vxor.u32 %v5102, 2147483648
  %v5392 = vxor.u32 %v5103, 2147483648
  %v5393 = vxor.u32 %v5104, 2147483648
  %v5394 = vmul.f32 %v5391, 1.442695
  %v5395 = vpow.pop %v5394
  %v5396 = vmul.f32 %v5392, 1.442695
  %v5397 = vpow.pop %v5396
  %v5398 = vmul.f32 %v5393, 1.442695
  %v5399 = vpow.pop %v5398
  %v5400 = vadd.f32 %v5395, 1.0
  %v5401 = vadd.f32 %v5397, 1.0
  %v5402 = vadd.f32 %v5399, 1.0
  %v5403 = vrcp.pop %v5400
  %v5404 = vmul.f32 1.0, %v5403
  %v5405 = vrcp.pop %v5401
  %v5406 = vmul.f32 1.0, %v5405
  %v5407 = vrcp.pop %v5402
  %v5408 = vmul.f32 1.0, %v5407
  %v5409 = vtanh.pop %v5105
  %v5410 = vmul.f32 %v5406, %v4812
  %v5411 = vmul.f32 %v5404, %v5409
  %v5412 = vadd.f32 %v5410, %v5411
  %v5413 = vtanh.pop %v5412
  %v5414 = vmul.f32 %v5408, %v5413
  %v5415 = vxor.u32 %v5387, 2147483648
  %v5416 = vxor.u32 %v5388, 2147483648
  %v5417 = vxor.u32 %v5389, 2147483648
  %v5418 = vmul.f32 %v5415, 1.442695
  %v5419 = vpow.pop %v5418
  %v5420 = vmul.f32 %v5416, 1.442695
  %v5421 = vpow.pop %v5420
  %v5422 = vmul.f32 %v5417, 1.442695
  %v5423 = vpow.pop %v5422
  %v5424 = vadd.f32 %v5419, 1.0
  %v5425 = vadd.f32 %v5421, 1.0
  %v5426 = vadd.f32 %v5423, 1.0
  %v5427 = vrcp.pop %v5424
  %v5428 = vmul.f32 1.0, %v5427
  %v5429 = vrcp.pop %v5425
  %v5430 = vmul.f32 1.0, %v5429
  %v5431 = vrcp.pop %v5426
  %v5432 = vmul.f32 1.0, %v5431
  %v5433 = vtanh.pop %v5390
  %v5434 = vmul.f32 %v5430, %v4814
  %v5435 = vmul.f32 %v5428, %v5433
  %v5436 = vadd.f32 %v5434, %v5435
  %v5437 = vtanh.pop %v5436
  %v5438 = vmul.f32 %v5432, %v5437
  %v5439 = vsel %vm2276, %v5414, %v4811
  %v5440 = vsel %vm2276, %v5412, %v4812
  %v5441 = vsel %vm2269, %v5438, %v4813
  %v5442 = vsel %vm2269, %v5436, %v4814
  %v5443 = vsel %vm2276, %v5414, 0.0
  %v5444 = vpack.c.bf16 %v5443, %v5443
  %5445 = vst [vmem:[#allocation3 + $0x30] sm:$0xf] %v5444
  %v5446 = vsel %vm2269, %v5438, 0.0
  %v5447 = vpack.c.bf16 %v5446, %v5446
  %5448 = vst [vmem:[#allocation3 + $0xc] sm:$0xf] %v5447
  %v5449 = vld [vmem:[#allocation2 + $0xe0] sm:$0xff]
  %v5450 = vld [vmem:[#allocation2 + $0xe8] sm:$0xff]
  %v5451 = vunpack.c.l.bf16 %v5449
  %v5452 = vunpack.c.h.bf16 %v5449
  %v5453 = vunpack.c.l.bf16 %v5450
  %v5454 = vunpack.c.h.bf16 %v5450
  %v5455 = vpack.c.bf16 %v5439, %v5439
  %v5456 = vld [vmem:[%s4] sm:$0xff]
  %v5457 = vld [vmem:[%s4 + $0x8] sm:$0xff]
  %v5458 = vld [vmem:[%s4 + $0x10] sm:$0xff]
  %v5459 = vld [vmem:[%s4 + $0x18] sm:$0xff]
  %v5460 = vld [vmem:[%s4 + $0x20] sm:$0xff]
  %v5461 = vld [vmem:[%s4 + $0x28] sm:$0xff]
  %v5462 = vld [vmem:[%s4 + $0x30] sm:$0xff]
  %v5463 = vld [vmem:[%s4 + $0x38] sm:$0xff]
  %v5464 = vld [vmem:[%s4 + $0x40] sm:$0xff]
  %v5465 = vld [vmem:[%s4 + $0x48] sm:$0xff]
  %v5466 = vld [vmem:[%s4 + $0x50] sm:$0xff]
  %v5467 = vld [vmem:[%s4 + $0x58] sm:$0xff]
  %v5468 = vld [vmem:[%s4 + $0x60] sm:$0xff]
  %v5469 = vld [vmem:[%s4 + $0x68] sm:$0xff]
  %v5470 = vld [vmem:[%s4 + $0x70] sm:$0xff]
  %v5471 = vld [vmem:[%s4 + $0x78] sm:$0xff]
  %v5472 = vld [vmem:[%s4 + $0x80] sm:$0xff]
  %v5473 = vld [vmem:[%s4 + $0x88] sm:$0xff]
  %v5474 = vld [vmem:[%s4 + $0x90] sm:$0xff]
  %v5475 = vld [vmem:[%s4 + $0x98] sm:$0xff]
  %v5476 = vld [vmem:[%s4 + $0xa0] sm:$0xff]
  %v5477 = vld [vmem:[%s4 + $0xa8] sm:$0xff]
  %v5478 = vld [vmem:[%s4 + $0xb0] sm:$0xff]
  %v5479 = vld [vmem:[%s4 + $0xb8] sm:$0xff]
  %v5480 = vld [vmem:[%s4 + $0xc0] sm:$0xff]
  %v5481 = vld [vmem:[%s4 + $0xc8] sm:$0xff]
  %v5482 = vld [vmem:[%s4 + $0xd0] sm:$0xff]
  %v5483 = vld [vmem:[%s4 + $0xd8] sm:$0xff]
  %v5484 = vld [vmem:[%s4 + $0xe0] sm:$0xff]
  %v5485 = vld [vmem:[%s4 + $0xe8] sm:$0xff]
  %v5486 = vld [vmem:[%s4 + $0xf0] sm:$0xff]
  %v5487 = vld [vmem:[%s4 + $0xf8] sm:$0xff]
  %v5520 = vunpack.c.l.b16 %v5456
  %v5521 = vunpack.c.h.b16 %v5456
  %v5522 = vunpack.c.l.b16 %v5457
  %v5523 = vunpack.c.h.b16 %v5457
  %v5524 = vunpack.c.l.b16 %v5458
  %v5525 = vunpack.c.h.b16 %v5458
  %v5526 = vunpack.c.l.b16 %v5459
  %v5527 = vunpack.c.h.b16 %v5459
  %v5528 = vunpack.c.l.b16 %v5460
  %v5529 = vunpack.c.h.b16 %v5460
  %v5530 = vunpack.c.l.b16 %v5461
  %v5531 = vunpack.c.h.b16 %v5461
  %v5532 = vunpack.c.l.b16 %v5462
  %v5533 = vunpack.c.h.b16 %v5462
  %v5534 = vunpack.c.l.b16 %v5463
  %v5535 = vunpack.c.h.b16 %v5463
  %v5536 = vunpack.c.l.b16 %v5464
  %v5537 = vunpack.c.h.b16 %v5464
  %v5538 = vunpack.c.l.b16 %v5465
  %v5539 = vunpack.c.h.b16 %v5465
  %v5540 = vunpack.c.l.b16 %v5466
  %v5541 = vunpack.c.h.b16 %v5466
  %v5542 = vunpack.c.l.b16 %v5467
  %v5543 = vunpack.c.h.b16 %v5467
  %v5544 = vunpack.c.l.b16 %v5468
  %v5545 = vunpack.c.h.b16 %v5468
  %v5546 = vunpack.c.l.b16 %v5469
  %v5547 = vunpack.c.h.b16 %v5469
  %v5548 = vunpack.c.l.b16 %v5470
  %v5549 = vunpack.c.h.b16 %v5470
  %v5550 = vunpack.c.l.b16 %v5471
  %v5551 = vunpack.c.h.b16 %v5471
  %v5552 = vunpack.c.l.b16 %v5472
  %v5553 = vunpack.c.h.b16 %v5472
  %v5554 = vunpack.c.l.b16 %v5473
  %v5555 = vunpack.c.h.b16 %v5473
  %v5556 = vunpack.c.l.b16 %v5474
  %v5557 = vunpack.c.h.b16 %v5474
  %v5558 = vunpack.c.l.b16 %v5475
  %v5559 = vunpack.c.h.b16 %v5475
  %v5560 = vunpack.c.l.b16 %v5476
  %v5561 = vunpack.c.h.b16 %v5476
  %v5562 = vunpack.c.l.b16 %v5477
  %v5563 = vunpack.c.h.b16 %v5477
  %v5564 = vunpack.c.l.b16 %v5478
  %v5565 = vunpack.c.h.b16 %v5478
  %v5566 = vunpack.c.l.b16 %v5479
  %v5567 = vunpack.c.h.b16 %v5479
  %v5568 = vunpack.c.l.b16 %v5480
  %v5569 = vunpack.c.h.b16 %v5480
  %v5570 = vunpack.c.l.b16 %v5481
  %v5571 = vunpack.c.h.b16 %v5481
  %v5572 = vunpack.c.l.b16 %v5482
  %v5573 = vunpack.c.h.b16 %v5482
  %v5574 = vunpack.c.l.b16 %v5483
  %v5575 = vunpack.c.h.b16 %v5483
  %v5576 = vunpack.c.l.b16 %v5484
  %v5577 = vunpack.c.h.b16 %v5484
  %v5578 = vunpack.c.l.b16 %v5485
  %v5579 = vunpack.c.h.b16 %v5485
  %v5580 = vunpack.c.l.b16 %v5486
  %v5581 = vunpack.c.h.b16 %v5486
  %v5582 = vunpack.c.l.b16 %v5487
  %v5583 = vunpack.c.h.b16 %v5487
  %v5584 = vpack.c.b16 %v5524, %v5520
  %v5585 = vpack.c.b16 %v5525, %v5521
  %v5586 = vpack.c.b16 %v5526, %v5522
  %v5587 = vpack.c.b16 %v5527, %v5523
  %v5588 = vpack.c.b16 %v5532, %v5528
  %v5589 = vpack.c.b16 %v5533, %v5529
  %v5590 = vpack.c.b16 %v5534, %v5530
  %v5591 = vpack.c.b16 %v5535, %v5531
  %v5592 = vpack.c.b16 %v5540, %v5536
  %v5593 = vpack.c.b16 %v5541, %v5537
  %v5594 = vpack.c.b16 %v5542, %v5538
  %v5595 = vpack.c.b16 %v5543, %v5539
  %v5596 = vpack.c.b16 %v5548, %v5544
  %v5597 = vpack.c.b16 %v5549, %v5545
  %v5598 = vpack.c.b16 %v5550, %v5546
  %v5599 = vpack.c.b16 %v5551, %v5547
  %v5600 = vpack.c.b16 %v5556, %v5552
  %v5601 = vpack.c.b16 %v5557, %v5553
  %v5602 = vpack.c.b16 %v5558, %v5554
  %v5603 = vpack.c.b16 %v5559, %v5555
  %v5604 = vpack.c.b16 %v5564, %v5560
  %v5605 = vpack.c.b16 %v5565, %v5561
  %v5606 = vpack.c.b16 %v5566, %v5562
  %v5607 = vpack.c.b16 %v5567, %v5563
  %v5608 = vpack.c.b16 %v5572, %v5568
  %v5609 = vpack.c.b16 %v5573, %v5569
  %v5610 = vpack.c.b16 %v5574, %v5570
  %v5611 = vpack.c.b16 %v5575, %v5571
  %v5612 = vpack.c.b16 %v5580, %v5576
  %v5613 = vpack.c.b16 %v5581, %v5577
  %v5614 = vpack.c.b16 %v5582, %v5578
  %v5615 = vpack.c.b16 %v5583, %v5579
  %5648 = vmatprep.subr.bf16.mxu0 %v5613
  %5649 = vmatpush1.bf16.msra.mxu0 %v5612
  %5650 = vmatprep.subr.bf16.mxu0 %v5609
  %5651 = vmatpush1.bf16.msra.mxu0 %v5608
  %5652 = vmatprep.subr.bf16.mxu0 %v5605
  %5653 = vmatpush1.bf16.msra.mxu0 %v5604
  %5654 = vmatprep.subr.bf16.mxu0 %v5601
  %5655 = vmatpush1.bf16.msra.mxu0 %v5600
  %5656 = vmatprep.subr.bf16.mxu0 %v5597
  %5657 = vmatpush1.bf16.msra.mxu0 %v5596
  %5658 = vmatprep.subr.bf16.mxu0 %v5593
  %5659 = vmatpush1.bf16.msra.mxu0 %v5592
  %5660 = vmatprep.subr.bf16.mxu0 %v5589
  %5661 = vmatpush1.bf16.msra.mxu0 %v5588
  %5662 = vmatprep.subr.bf16.mxu0 %v5585
  %5663 = vmatpush1.bf16.msra.mxu0 %v5584
  %5664 = vmatprep.subr.bf16.mxu0 0
  %5665 = vmatpush2.bf16.msra.mxu0 0
  %5666 = vmatprep.subr.bf16.mxu0 0
  %5667 = vmatpush2.bf16.msra.mxu0 0
  %5668 = vmatprep.subr.bf16.mxu0 0
  %5669 = vmatpush2.bf16.msra.mxu0 0
  %5670 = vmatprep.subr.bf16.mxu0 0
  %5671 = vmatpush2.bf16.msra.mxu0 0
  %5672 = vmatprep.subr.bf16.mxu0 0
  %5673 = vmatpush2.bf16.msra.mxu0 0
  %5674 = vmatprep.subr.bf16.mxu0 0
  %5675 = vmatpush2.bf16.msra.mxu0 0
  %5676 = vmatprep.subr.bf16.mxu0 0
  %5677 = vmatpush2.bf16.msra.mxu0 0
  %5678 = vmatprep.subr.bf16.mxu0 0
  %5679 = vmatpush2.bf16.msra.mxu0 0
  %5680 = vmatprep.mubr.bf16.mxu0 0
  %5681 = vmatmul.mubr.bf16.gmra.mxu0 %v5455
  %v5682 = vpop.f32.mrf.mxu0
  %v5683 = vadd.f32 0.0, %v5682
  %v5684 = vpop.f32.mrf.mxu0
  %v5685 = vadd.f32 0.0, %v5684
  %v5686 = vpop.f32.mrf.mxu0
  %v5687 = vpop.f32.mrf.mxu0
  %5688 = vdwg.mxu0
  %5689 = vmatprep.subr.bf16.mxu0 %v5615
  %5690 = vmatpush1.bf16.msra.mxu0 %v5614
  %5691 = vmatprep.subr.bf16.mxu0 %v5611
  %5692 = vmatpush1.bf16.msra.mxu0 %v5610
  %5693 = vmatprep.subr.bf16.mxu0 %v5607
  %5694 = vmatpush1.bf16.msra.mxu0 %v5606
  %5695 = vmatprep.subr.bf16.mxu0 %v5603
  %5696 = vmatpush1.bf16.msra.mxu0 %v5602
  %5697 = vmatprep.subr.bf16.mxu0 %v5599
  %5698 = vmatpush1.bf16.msra.mxu0 %v5598
  %5699 = vmatprep.subr.bf16.mxu0 %v5595
  %5700 = vmatpush1.bf16.msra.mxu0 %v5594
  %5701 = vmatprep.subr.bf16.mxu0 %v5591
  %5702 = vmatpush1.bf16.msra.mxu0 %v5590
  %5703 = vmatprep.subr.bf16.mxu0 %v5587
  %5704 = vmatpush1.bf16.msra.mxu0 %v5586
  %5705 = vmatprep.subr.bf16.mxu0 0
  %5706 = vmatpush2.bf16.msra.mxu0 0
  %5707 = vmatprep.subr.bf16.mxu0 0
  %5708 = vmatpush2.bf16.msra.mxu0 0
  %5709 = vmatprep.subr.bf16.mxu0 0
  %5710 = vmatpush2.bf16.msra.mxu0 0
  %5711 = vmatprep.subr.bf16.mxu0 0
  %5712 = vmatpush2.bf16.msra.mxu0 0
  %5713 = vmatprep.subr.bf16.mxu0 0
  %5714 = vmatpush2.bf16.msra.mxu0 0
  %5715 = vmatprep.subr.bf16.mxu0 0
  %5716 = vmatpush2.bf16.msra.mxu0 0
  %5717 = vmatprep.subr.bf16.mxu0 0
  %5718 = vmatpush2.bf16.msra.mxu0 0
  %5719 = vmatprep.subr.bf16.mxu0 0
  %5720 = vmatpush2.bf16.msra.mxu0 0
  %5721 = vmatprep.mubr.bf16.mxu0 0
  %5722 = vmatmul.mubr.bf16.gmra.mxu0 %v5455
  %v5723 = vpop.f32.mrf.mxu0
  %v5724 = vadd.f32 0.0, %v5723
  %v5725 = vpop.f32.mrf.mxu0
  %v5726 = vadd.f32 0.0, %v5725
  %v5727 = vpop.f32.mrf.mxu0
  %v5728 = vpop.f32.mrf.mxu0
  %5729 = vdwg.mxu0
  %v5730 = vadd.f32 %v5451, %v5683
  %v5731 = vadd.f32 %v5452, %v5685
  %v5732 = vadd.f32 %v5453, %v5724
  %v5733 = vadd.f32 %v5454, %v5726
  %v5734 = vld [vmem:[#allocation2 + $0x10] sm:$0xff]
  %v5735 = vld [vmem:[#allocation2 + $0x18] sm:$0xff]
  %v5736 = vunpack.c.l.bf16 %v5734
  %v5737 = vunpack.c.h.bf16 %v5734
  %v5738 = vunpack.c.l.bf16 %v5735
  %v5739 = vunpack.c.h.bf16 %v5735
  %v5740 = vpack.c.bf16 %v5441, %v5441
  %v5741 = vld [vmem:[%s5] sm:$0xff]
  %v5742 = vld [vmem:[%s5 + $0x8] sm:$0xff]
  %v5743 = vld [vmem:[%s5 + $0x10] sm:$0xff]
  %v5744 = vld [vmem:[%s5 + $0x18] sm:$0xff]
  %v5745 = vld [vmem:[%s5 + $0x20] sm:$0xff]
  %v5746 = vld [vmem:[%s5 + $0x28] sm:$0xff]
  %v5747 = vld [vmem:[%s5 + $0x30] sm:$0xff]
  %v5748 = vld [vmem:[%s5 + $0x38] sm:$0xff]
  %v5749 = vld [vmem:[%s5 + $0x40] sm:$0xff]
  %v5750 = vld [vmem:[%s5 + $0x48] sm:$0xff]
  %v5751 = vld [vmem:[%s5 + $0x50] sm:$0xff]
  %v5752 = vld [vmem:[%s5 + $0x58] sm:$0xff]
  %v5753 = vld [vmem:[%s5 + $0x60] sm:$0xff]
  %v5754 = vld [vmem:[%s5 + $0x68] sm:$0xff]
  %v5755 = vld [vmem:[%s5 + $0x70] sm:$0xff]
  %v5756 = vld [vmem:[%s5 + $0x78] sm:$0xff]
  %v5757 = vld [vmem:[%s5 + $0x80] sm:$0xff]
  %v5758 = vld [vmem:[%s5 + $0x88] sm:$0xff]
  %v5759 = vld [vmem:[%s5 + $0x90] sm:$0xff]
  %v5760 = vld [vmem:[%s5 + $0x98] sm:$0xff]
  %v5761 = vld [vmem:[%s5 + $0xa0] sm:$0xff]
  %v5762 = vld [vmem:[%s5 + $0xa8] sm:$0xff]
  %v5763 = vld [vmem:[%s5 + $0xb0] sm:$0xff]
  %v5764 = vld [vmem:[%s5 + $0xb8] sm:$0xff]
  %v5765 = vld [vmem:[%s5 + $0xc0] sm:$0xff]
  %v5766 = vld [vmem:[%s5 + $0xc8] sm:$0xff]
  %v5767 = vld [vmem:[%s5 + $0xd0] sm:$0xff]
  %v5768 = vld [vmem:[%s5 + $0xd8] sm:$0xff]
  %v5769 = vld [vmem:[%s5 + $0xe0] sm:$0xff]
  %v5770 = vld [vmem:[%s5 + $0xe8] sm:$0xff]
  %v5771 = vld [vmem:[%s5 + $0xf0] sm:$0xff]
  %v5772 = vld [vmem:[%s5 + $0xf8] sm:$0xff]
  %v5805 = vunpack.c.l.b16 %v5741
  %v5806 = vunpack.c.h.b16 %v5741
  %v5807 = vunpack.c.l.b16 %v5742
  %v5808 = vunpack.c.h.b16 %v5742
  %v5809 = vunpack.c.l.b16 %v5743
  %v5810 = vunpack.c.h.b16 %v5743
  %v5811 = vunpack.c.l.b16 %v5744
  %v5812 = vunpack.c.h.b16 %v5744
  %v5813 = vunpack.c.l.b16 %v5745
  %v5814 = vunpack.c.h.b16 %v5745
  %v5815 = vunpack.c.l.b16 %v5746
  %v5816 = vunpack.c.h.b16 %v5746
  %v5817 = vunpack.c.l.b16 %v5747
  %v5818 = vunpack.c.h.b16 %v5747
  %v5819 = vunpack.c.l.b16 %v5748
  %v5820 = vunpack.c.h.b16 %v5748
  %v5821 = vunpack.c.l.b16 %v5749
  %v5822 = vunpack.c.h.b16 %v5749
  %v5823 = vunpack.c.l.b16 %v5750
  %v5824 = vunpack.c.h.b16 %v5750
  %v5825 = vunpack.c.l.b16 %v5751
  %v5826 = vunpack.c.h.b16 %v5751
  %v5827 = vunpack.c.l.b16 %v5752
  %v5828 = vunpack.c.h.b16 %v5752
  %v5829 = vunpack.c.l.b16 %v5753
  %v5830 = vunpack.c.h.b16 %v5753
  %v5831 = vunpack.c.l.b16 %v5754
  %v5832 = vunpack.c.h.b16 %v5754
  %v5833 = vunpack.c.l.b16 %v5755
  %v5834 = vunpack.c.h.b16 %v5755
  %v5835 = vunpack.c.l.b16 %v5756
  %v5836 = vunpack.c.h.b16 %v5756
  %v5837 = vunpack.c.l.b16 %v5757
  %v5838 = vunpack.c.h.b16 %v5757
  %v5839 = vunpack.c.l.b16 %v5758
  %v5840 = vunpack.c.h.b16 %v5758
  %v5841 = vunpack.c.l.b16 %v5759
  %v5842 = vunpack.c.h.b16 %v5759
  %v5843 = vunpack.c.l.b16 %v5760
  %v5844 = vunpack.c.h.b16 %v5760
  %v5845 = vunpack.c.l.b16 %v5761
  %v5846 = vunpack.c.h.b16 %v5761
  %v5847 = vunpack.c.l.b16 %v5762
  %v5848 = vunpack.c.h.b16 %v5762
  %v5849 = vunpack.c.l.b16 %v5763
  %v5850 = vunpack.c.h.b16 %v5763
  %v5851 = vunpack.c.l.b16 %v5764
  %v5852 = vunpack.c.h.b16 %v5764
  %v5853 = vunpack.c.l.b16 %v5765
  %v5854 = vunpack.c.h.b16 %v5765
  %v5855 = vunpack.c.l.b16 %v5766
  %v5856 = vunpack.c.h.b16 %v5766
  %v5857 = vunpack.c.l.b16 %v5767
  %v5858 = vunpack.c.h.b16 %v5767
  %v5859 = vunpack.c.l.b16 %v5768
  %v5860 = vunpack.c.h.b16 %v5768
  %v5861 = vunpack.c.l.b16 %v5769
  %v5862 = vunpack.c.h.b16 %v5769
  %v5863 = vunpack.c.l.b16 %v5770
  %v5864 = vunpack.c.h.b16 %v5770
  %v5865 = vunpack.c.l.b16 %v5771
  %v5866 = vunpack.c.h.b16 %v5771
  %v5867 = vunpack.c.l.b16 %v5772
  %v5868 = vunpack.c.h.b16 %v5772
  %v5869 = vpack.c.b16 %v5809, %v5805
  %v5870 = vpack.c.b16 %v5810, %v5806
  %v5871 = vpack.c.b16 %v5811, %v5807
  %v5872 = vpack.c.b16 %v5812, %v5808
  %v5873 = vpack.c.b16 %v5817, %v5813
  %v5874 = vpack.c.b16 %v5818, %v5814
  %v5875 = vpack.c.b16 %v5819, %v5815
  %v5876 = vpack.c.b16 %v5820, %v5816
  %v5877 = vpack.c.b16 %v5825, %v5821
  %v5878 = vpack.c.b16 %v5826, %v5822
  %v5879 = vpack.c.b16 %v5827, %v5823
  %v5880 = vpack.c.b16 %v5828, %v5824
  %v5881 = vpack.c.b16 %v5833, %v5829
  %v5882 = vpack.c.b16 %v5834, %v5830
  %v5883 = vpack.c.b16 %v5835, %v5831
  %v5884 = vpack.c.b16 %v5836, %v5832
  %v5885 = vpack.c.b16 %v5841, %v5837
  %v5886 = vpack.c.b16 %v5842, %v5838
  %v5887 = vpack.c.b16 %v5843, %v5839
  %v5888 = vpack.c.b16 %v5844, %v5840
  %v5889 = vpack.c.b16 %v5849, %v5845
  %v5890 = vpack.c.b16 %v5850, %v5846
  %v5891 = vpack.c.b16 %v5851, %v5847
  %v5892 = vpack.c.b16 %v5852, %v5848
  %v5893 = vpack.c.b16 %v5857, %v5853
  %v5894 = vpack.c.b16 %v5858, %v5854
  %v5895 = vpack.c.b16 %v5859, %v5855
  %v5896 = vpack.c.b16 %v5860, %v5856
  %v5897 = vpack.c.b16 %v5865, %v5861
  %v5898 = vpack.c.b16 %v5866, %v5862
  %v5899 = vpack.c.b16 %v5867, %v5863
  %v5900 = vpack.c.b16 %v5868, %v5864
  %5933 = vmatprep.subr.bf16.mxu0 %v5898
  %5934 = vmatpush1.bf16.msra.mxu0 %v5897
  %5935 = vmatprep.subr.bf16.mxu0 %v5894
  %5936 = vmatpush1.bf16.msra.mxu0 %v5893
  %5937 = vmatprep.subr.bf16.mxu0 %v5890
  %5938 = vmatpush1.bf16.msra.mxu0 %v5889
  %5939 = vmatprep.subr.bf16.mxu0 %v5886
  %5940 = vmatpush1.bf16.msra.mxu0 %v5885
  %5941 = vmatprep.subr.bf16.mxu0 %v5882
  %5942 = vmatpush1.bf16.msra.mxu0 %v5881
  %5943 = vmatprep.subr.bf16.mxu0 %v5878
  %5944 = vmatpush1.bf16.msra.mxu0 %v5877
  %5945 = vmatprep.subr.bf16.mxu0 %v5874
  %5946 = vmatpush1.bf16.msra.mxu0 %v5873
  %5947 = vmatprep.subr.bf16.mxu0 %v5870
  %5948 = vmatpush1.bf16.msra.mxu0 %v5869
  %5949 = vmatprep.subr.bf16.mxu0 0
  %5950 = vmatpush2.bf16.msra.mxu0 0
  %5951 = vmatprep.subr.bf16.mxu0 0
  %5952 = vmatpush2.bf16.msra.mxu0 0
  %5953 = vmatprep.subr.bf16.mxu0 0
  %5954 = vmatpush2.bf16.msra.mxu0 0
  %5955 = vmatprep.subr.bf16.mxu0 0
  %5956 = vmatpush2.bf16.msra.mxu0 0
  %5957 = vmatprep.subr.bf16.mxu0 0
  %5958 = vmatpush2.bf16.msra.mxu0 0
  %5959 = vmatprep.subr.bf16.mxu0 0
  %5960 = vmatpush2.bf16.msra.mxu0 0
  %5961 = vmatprep.subr.bf16.mxu0 0
  %5962 = vmatpush2.bf16.msra.mxu0 0
  %5963 = vmatprep.subr.bf16.mxu0 0
  %5964 = vmatpush2.bf16.msra.mxu0 0
  %5965 = vmatprep.mubr.bf16.mxu0 0
  %5966 = vmatmul.mubr.bf16.gmra.mxu0 %v5740
  %v5967 = vpop.f32.mrf.mxu0
  %v5968 = vadd.f32 0.0, %v5967
  %v5969 = vpop.f32.mrf.mxu0
  %v5970 = vadd.f32 0.0, %v5969
  %v5971 = vpop.f32.mrf.mxu0
  %v5972 = vpop.f32.mrf.mxu0
  %5973 = vdwg.mxu0
  %5974 = vmatprep.subr.bf16.mxu0 %v5900
  %5975 = vmatpush1.bf16.msra.mxu0 %v5899
  %5976 = vmatprep.subr.bf16.mxu0 %v5896
  %5977 = vmatpush1.bf16.msra.mxu0 %v5895
  %5978 = vmatprep.subr.bf16.mxu0 %v5892
  %5979 = vmatpush1.bf16.msra.mxu0 %v5891
  %5980 = vmatprep.subr.bf16.mxu0 %v5888
  %5981 = vmatpush1.bf16.msra.mxu0 %v5887
  %5982 = vmatprep.subr.bf16.mxu0 %v5884
  %5983 = vmatpush1.bf16.msra.mxu0 %v5883
  %5984 = vmatprep.subr.bf16.mxu0 %v5880
  %5985 = vmatpush1.bf16.msra.mxu0 %v5879
  %5986 = vmatprep.subr.bf16.mxu0 %v5876
  %5987 = vmatpush1.bf16.msra.mxu0 %v5875
  %5988 = vmatprep.subr.bf16.mxu0 %v5872
  %5989 = vmatpush1.bf16.msra.mxu0 %v5871
  %5990 = vmatprep.subr.bf16.mxu0 0
  %5991 = vmatpush2.bf16.msra.mxu0 0
  %5992 = vmatprep.subr.bf16.mxu0 0
  %5993 = vmatpush2.bf16.msra.mxu0 0
  %5994 = vmatprep.subr.bf16.mxu0 0
  %5995 = vmatpush2.bf16.msra.mxu0 0
  %5996 = vmatprep.subr.bf16.mxu0 0
  %5997 = vmatpush2.bf16.msra.mxu0 0
  %5998 = vmatprep.subr.bf16.mxu0 0
  %5999 = vmatpush2.bf16.msra.mxu0 0
  %6000 = vmatprep.subr.bf16.mxu0 0
  %6001 = vmatpush2.bf16.msra.mxu0 0
  %6002 = vmatprep.subr.bf16.mxu0 0
  %6003 = vmatpush2.bf16.msra.mxu0 0
  %6004 = vmatprep.subr.bf16.mxu0 0
  %6005 = vmatpush2.bf16.msra.mxu0 0
  %6006 = vmatprep.mubr.bf16.mxu0 0
  %6007 = vmatmul.mubr.bf16.gmra.mxu0 %v5740
  %v6008 = vpop.f32.mrf.mxu0
  %v6009 = vadd.f32 0.0, %v6008
  %v6010 = vpop.f32.mrf.mxu0
  %v6011 = vadd.f32 0.0, %v6010
  %v6012 = vpop.f32.mrf.mxu0
  %v6013 = vpop.f32.mrf.mxu0
  %6014 = vdwg.mxu0
  %v6015 = vadd.f32 %v5736, %v5968
  %v6016 = vadd.f32 %v5737, %v5970
  %v6017 = vadd.f32 %v5738, %v6009
  %v6018 = vadd.f32 %v5739, %v6011
  %v6019 = vxor.u32 %v5730, 2147483648
  %v6020 = vxor.u32 %v5731, 2147483648
  %v6021 = vxor.u32 %v5732, 2147483648
  %v6022 = vmul.f32 %v6019, 1.442695
  %v6023 = vpow.pop %v6022
  %v6024 = vmul.f32 %v6020, 1.442695
  %v6025 = vpow.pop %v6024
  %v6026 = vmul.f32 %v6021, 1.442695
  %v6027 = vpow.pop %v6026
  %v6028 = vadd.f32 %v6023, 1.0
  %v6029 = vadd.f32 %v6025, 1.0
  %v6030 = vadd.f32 %v6027, 1.0
  %v6031 = vrcp.pop %v6028
  %v6032 = vmul.f32 1.0, %v6031
  %v6033 = vrcp.pop %v6029
  %v6034 = vmul.f32 1.0, %v6033
  %v6035 = vrcp.pop %v6030
  %v6036 = vmul.f32 1.0, %v6035
  %v6037 = vtanh.pop %v5733
  %v6038 = vmul.f32 %v6034, %v5440
  %v6039 = vmul.f32 %v6032, %v6037
  %v6040 = vadd.f32 %v6038, %v6039
  %v6041 = vtanh.pop %v6040
  %v6042 = vmul.f32 %v6036, %v6041
  %v6043 = vxor.u32 %v6015, 2147483648
  %v6044 = vxor.u32 %v6016, 2147483648
  %v6045 = vxor.u32 %v6017, 2147483648
  %v6046 = vmul.f32 %v6043, 1.442695
  %v6047 = vpow.pop %v6046
  %v6048 = vmul.f32 %v6044, 1.442695
  %v6049 = vpow.pop %v6048
  %v6050 = vmul.f32 %v6045, 1.442695
  %v6051 = vpow.pop %v6050
  %v6052 = vadd.f32 %v6047, 1.0
  %v6053 = vadd.f32 %v6049, 1.0
  %v6054 = vadd.f32 %v6051, 1.0
  %v6055 = vrcp.pop %v6052
  %v6056 = vmul.f32 1.0, %v6055
  %v6057 = vrcp.pop %v6053
  %v6058 = vmul.f32 1.0, %v6057
  %v6059 = vrcp.pop %v6054
  %v6060 = vmul.f32 1.0, %v6059
  %v6061 = vtanh.pop %v6018
  %v6062 = vmul.f32 %v6058, %v5442
  %v6063 = vmul.f32 %v6056, %v6061
  %v6064 = vadd.f32 %v6062, %v6063
  %v6065 = vtanh.pop %v6064
  %v6066 = vmul.f32 %v6060, %v6065
  %v6067 = vsel %vm1640, %v6042, 0.0
  %v6068 = vpack.c.bf16 %v6067, %v6067
  %6069 = vst [vmem:[#allocation3 + $0x38] sm:$0xf] %v6068
  %v6070 = vsel %vm1633, %v6066, 0.0
  %v6071 = vpack.c.bf16 %v6070, %v6070
  %6072 = vst [vmem:[#allocation3 + $0x4] sm:$0xf] %v6071
  %v6073 = vld [vmem:[#allocation3] sm:$0xff]
  %v6074 = vld [vmem:[#allocation3 + $0x8] sm:$0xff]
  %v6075 = vld [vmem:[#allocation3 + $0x10] sm:$0xff]
  %v6076 = vld [vmem:[#allocation3 + $0x18] sm:$0xff]
  %v6077 = vld [vmem:[#allocation3 + $0x20] sm:$0xff]
  %v6078 = vld [vmem:[#allocation3 + $0x28] sm:$0xff]
  %v6079 = vld [vmem:[#allocation3 + $0x30] sm:$0xff]
  %v6080 = vld [vmem:[#allocation3 + $0x38] sm:$0xff]
  %v6081 = vunpack.c.l.bf16 %v6073
  %v6082 = vunpack.c.h.bf16 %v6073
  %v6083 = vunpack.c.l.bf16 %v6074
  %v6084 = vunpack.c.h.bf16 %v6074
  %v6085 = vunpack.c.l.bf16 %v6075
  %v6086 = vunpack.c.h.bf16 %v6075
  %v6087 = vunpack.c.l.bf16 %v6076
  %v6088 = vunpack.c.h.bf16 %v6076
  %v6089 = vunpack.c.l.bf16 %v6077
  %v6090 = vunpack.c.h.bf16 %v6077
  %v6091 = vunpack.c.l.bf16 %v6078
  %v6092 = vunpack.c.h.bf16 %v6078
  %v6093 = vunpack.c.l.bf16 %v6079
  %v6094 = vunpack.c.h.bf16 %v6079
  %v6095 = vunpack.c.l.bf16 %v6080
  %v6096 = vunpack.c.h.bf16 %v6080
  %v6097 = vadd.f32 %v6081, %v6082
  %6098 = vadd.xlane.f32.xlu0 %v6097
  %v6099 = vpop.xlane.xlu0 %6098
  %v6100 = vadd.f32 %v6083, %v6084
  %6101 = vadd.xlane.f32.xlu0 %v6100
  %v6102 = vpop.xlane.xlu0 %6101
  %v6103 = vadd.f32 %v6085, %v6086
  %6104 = vadd.xlane.f32.xlu0 %v6103
  %v6105 = vpop.xlane.xlu0 %6104
  %v6106 = vadd.f32 %v6087, %v6088
  %6107 = vadd.xlane.f32.xlu0 %v6106
  %v6108 = vpop.xlane.xlu0 %6107
  %v6109 = vadd.f32 %v6089, %v6090
  %6110 = vadd.xlane.f32.xlu0 %v6109
  %v6111 = vpop.xlane.xlu0 %6110
  %v6112 = vadd.f32 %v6091, %v6092
  %6113 = vadd.xlane.f32.xlu0 %v6112
  %v6114 = vpop.xlane.xlu0 %6113
  %v6115 = vadd.f32 %v6093, %v6094
  %6116 = vadd.xlane.f32.xlu0 %v6115
  %v6117 = vpop.xlane.xlu0 %6116
  %v6118 = vadd.f32 %v6095, %v6096
  %6119 = vadd.xlane.f32.xlu0 %v6118
  %v6120 = vpop.xlane.xlu0 %6119
  %v6121 = vmul.f32 %v6099, 0.015625
  %v6122 = vmul.f32 %v6102, 0.015625
  %v6123 = vmul.f32 %v6105, 0.015625
  %v6124 = vmul.f32 %v6108, 0.015625
  %v6125 = vmul.f32 %v6111, 0.015625
  %v6126 = vmul.f32 %v6114, 0.015625
  %v6127 = vmul.f32 %v6117, 0.015625
  %v6128 = vmul.f32 %v6120, 0.015625
  %v6129 = vmul.f32 %v6081, %v6081
  %v6130 = vmul.f32 %v6082, %v6082
  %v6131 = vmul.f32 %v6083, %v6083
  %v6132 = vmul.f32 %v6084, %v6084
  %v6133 = vmul.f32 %v6085, %v6085
  %v6134 = vmul.f32 %v6086, %v6086
  %v6135 = vmul.f32 %v6087, %v6087
  %v6136 = vmul.f32 %v6088, %v6088
  %v6137 = vmul.f32 %v6089, %v6089
  %v6138 = vmul.f32 %v6090, %v6090
  %v6139 = vmul.f32 %v6091, %v6091
  %v6140 = vmul.f32 %v6092, %v6092
  %v6141 = vmul.f32 %v6093, %v6093
  %v6142 = vmul.f32 %v6094, %v6094
  %v6143 = vmul.f32 %v6095, %v6095
  %v6144 = vmul.f32 %v6096, %v6096
  %v6145 = vadd.f32 %v6129, %v6130
  %6146 = vadd.xlane.f32.xlu0 %v6145
  %v6147 = vpop.xlane.xlu0 %6146
  %v6148 = vadd.f32 %v6131, %v6132
  %6149 = vadd.xlane.f32.xlu0 %v6148
  %v6150 = vpop.xlane.xlu0 %6149
  %v6151 = vadd.f32 %v6133, %v6134
  %6152 = vadd.xlane.f32.xlu0 %v6151
  %v6153 = vpop.xlane.xlu0 %6152
  %v6154 = vadd.f32 %v6135, %v6136
  %6155 = vadd.xlane.f32.xlu0 %v6154
  %v6156 = vpop.xlane.xlu0 %6155
  %v6157 = vadd.f32 %v6137, %v6138
  %6158 = vadd.xlane.f32.xlu0 %v6157
  %v6159 = vpop.xlane.xlu0 %6158
  %v6160 = vadd.f32 %v6139, %v6140
  %6161 = vadd.xlane.f32.xlu0 %v6160
  %v6162 = vpop.xlane.xlu0 %6161
  %v6163 = vadd.f32 %v6141, %v6142
  %6164 = vadd.xlane.f32.xlu0 %v6163
  %v6165 = vpop.xlane.xlu0 %6164
  %v6166 = vadd.f32 %v6143, %v6144
  %6167 = vadd.xlane.f32.xlu0 %v6166
  %v6168 = vpop.xlane.xlu0 %6167
  %v6169 = vmul.f32 %v6147, 0.015625
  %v6170 = vmul.f32 %v6150, 0.015625
  %v6171 = vmul.f32 %v6153, 0.015625
  %v6172 = vmul.f32 %v6156, 0.015625
  %v6173 = vmul.f32 %v6159, 0.015625
  %v6174 = vmul.f32 %v6162, 0.015625
  %v6175 = vmul.f32 %v6165, 0.015625
  %v6176 = vmul.f32 %v6168, 0.015625
  %v6177 = vmul.f32 %v6121, %v6121
  %v6178 = vmul.f32 %v6122, %v6122
  %v6179 = vmul.f32 %v6123, %v6123
  %v6180 = vmul.f32 %v6124, %v6124
  %v6181 = vmul.f32 %v6125, %v6125
  %v6182 = vmul.f32 %v6126, %v6126
  %v6183 = vmul.f32 %v6127, %v6127
  %v6184 = vmul.f32 %v6128, %v6128
  %v6185 = vsub.f32 %v6169, %v6177
  %v6186 = vsub.f32 %v6170, %v6178
  %v6187 = vsub.f32 %v6171, %v6179
  %v6188 = vsub.f32 %v6172, %v6180
  %v6189 = vsub.f32 %v6173, %v6181
  %v6190 = vsub.f32 %v6174, %v6182
  %v6191 = vsub.f32 %v6175, %v6183
  %v6192 = vsub.f32 %v6176, %v6184
  %v6193 = vmax.f32 %v6185, 0.0
  %v6194 = vmax.f32 %v6186, 0.0
  %v6195 = vmax.f32 %v6187, 0.0
  %v6196 = vmax.f32 %v6188, 0.0
  %v6197 = vmax.f32 %v6189, 0.0
  %v6198 = vmax.f32 %v6190, 0.0
  %v6199 = vmax.f32 %v6191, 0.0
  %v6200 = vmax.f32 %v6192, 0.0
  %v6201 = vsub.f32 %v6081, %v6121
  %v6202 = vsub.f32 %v6082, %v6121
  %v6203 = vsub.f32 %v6083, %v6122
  %v6204 = vsub.f32 %v6084, %v6122
  %v6205 = vsub.f32 %v6085, %v6123
  %v6206 = vsub.f32 %v6086, %v6123
  %v6207 = vsub.f32 %v6087, %v6124
  %v6208 = vsub.f32 %v6088, %v6124
  %v6209 = vsub.f32 %v6089, %v6125
  %v6210 = vsub.f32 %v6090, %v6125
  %v6211 = vsub.f32 %v6091, %v6126
  %v6212 = vsub.f32 %v6092, %v6126
  %v6213 = vsub.f32 %v6093, %v6127
  %v6214 = vsub.f32 %v6094, %v6127
  %v6215 = vsub.f32 %v6095, %v6128
  %v6216 = vsub.f32 %v6096, %v6128
  %v6217 = vadd.f32 %v6193, 1e-05
  %v6218 = vadd.f32 %v6194, 1e-05
  %v6219 = vadd.f32 %v6195, 1e-05
  %v6220 = vadd.f32 %v6196, 1e-05
  %v6221 = vadd.f32 %v6197, 1e-05
  %v6222 = vadd.f32 %v6198, 1e-05
  %v6223 = vadd.f32 %v6199, 1e-05
  %v6224 = vadd.f32 %v6200, 1e-05
  %v6225 = vrsqrt.pop %v6217
  %v6226 = vrsqrt.pop %v6218
  %v6227 = vrsqrt.pop %v6219
  %v6228 = vrsqrt.pop %v6220
  %v6229 = vrsqrt.pop %v6221
  %v6230 = vrsqrt.pop %v6222
  %v6231 = vrsqrt.pop %v6223
  %v6232 = vrsqrt.pop %v6224
  %v6233 = vmul.f32 %v6201, %v6225
  %v6234 = vmul.f32 %v6202, %v6225
  %v6235 = vmul.f32 %v6203, %v6226
  %v6236 = vmul.f32 %v6204, %v6226
  %v6237 = vmul.f32 %v6205, %v6227
  %v6238 = vmul.f32 %v6206, %v6227
  %v6239 = vmul.f32 %v6207, %v6228
  %v6240 = vmul.f32 %v6208, %v6228
  %v6241 = vmul.f32 %v6209, %v6229
  %v6242 = vmul.f32 %v6210, %v6229
  %v6243 = vmul.f32 %v6211, %v6230
  %v6244 = vmul.f32 %v6212, %v6230
  %v6245 = vmul.f32 %v6213, %v6231
  %v6246 = vmul.f32 %v6214, %v6231
  %v6247 = vmul.f32 %v6215, %v6232
  %v6248 = vmul.f32 %v6216, %v6232
  %v6249 = vld [vmem:[%s6] sm:$0x3]
  %v6251 = vlaneseq
  %v6252 = vshrl.u32 %v6251, 7
  %v6253 = vsub.s32 0, %v6252
  %v6254 = vrot.slane %v6249, %v6253
  %v6255 = vlaneseq
  %v6256 = vshrl.u32 %v6255, 7
  %v6257 = vsub.s32 1, %v6256
  %v6258 = vrot.slane %v6249, %v6257
  %v6261 = vmul.f32 %v6233, %v6254
  %v6262 = vmul.f32 %v6234, %v6258
  %v6263 = vmul.f32 %v6235, %v6254
  %v6264 = vmul.f32 %v6236, %v6258
  %v6265 = vmul.f32 %v6237, %v6254
  %v6266 = vmul.f32 %v6238, %v6258
  %v6267 = vmul.f32 %v6239, %v6254
  %v6268 = vmul.f32 %v6240, %v6258
  %v6269 = vmul.f32 %v6241, %v6254
  %v6270 = vmul.f32 %v6242, %v6258
  %v6271 = vmul.f32 %v6243, %v6254
  %v6272 = vmul.f32 %v6244, %v6258
  %v6273 = vmul.f32 %v6245, %v6254
  %v6274 = vmul.f32 %v6246, %v6258
  %v6275 = vmul.f32 %v6247, %v6254
  %v6276 = vmul.f32 %v6248, %v6258
  %v6277 = vld [vmem:[%s7] sm:$0x3]
  %v6279 = vlaneseq
  %v6280 = vshrl.u32 %v6279, 7
  %v6281 = vsub.s32 0, %v6280
  %v6282 = vrot.slane %v6277, %v6281
  %v6283 = vlaneseq
  %v6284 = vshrl.u32 %v6283, 7
  %v6285 = vsub.s32 1, %v6284
  %v6286 = vrot.slane %v6277, %v6285
  %v6289 = vadd.f32 %v6261, %v6282
  %v6290 = vadd.f32 %v6262, %v6286
  %v6291 = vadd.f32 %v6263, %v6282
  %v6292 = vadd.f32 %v6264, %v6286
  %v6293 = vadd.f32 %v6265, %v6282
  %v6294 = vadd.f32 %v6266, %v6286
  %v6295 = vadd.f32 %v6267, %v6282
  %v6296 = vadd.f32 %v6268, %v6286
  %v6297 = vadd.f32 %v6269, %v6282
  %v6298 = vadd.f32 %v6270, %v6286
  %v6299 = vadd.f32 %v6271, %v6282
  %v6300 = vadd.f32 %v6272, %v6286
  %v6301 = vadd.f32 %v6273, %v6282
  %v6302 = vadd.f32 %v6274, %v6286
  %v6303 = vadd.f32 %v6275, %v6282
  %v6304 = vadd.f32 %v6276, %v6286
  %v6305 = vpack.c.bf16 %v6291, %v6289
  %v6306 = vpack.c.bf16 %v6292, %v6290
  %v6307 = vpack.c.bf16 %v6295, %v6293
  %v6308 = vpack.c.bf16 %v6296, %v6294
  %v6309 = vpack.c.bf16 %v6299, %v6297
  %v6310 = vpack.c.bf16 %v6300, %v6298
  %v6311 = vpack.c.bf16 %v6303, %v6301
  %v6312 = vpack.c.bf16 %v6304, %v6302
  %v6313 = vld [vmem:[%s8] sm:$0xf]
  %v6314 = vld [vmem:[%s8 + $0x4] sm:$0xf]
  %v6315 = vld [vmem:[%s8 + $0x8] sm:$0xf]
  %v6316 = vld [vmem:[%s8 + $0xc] sm:$0xf]
  %v6317 = vld [vmem:[%s8 + $0x10] sm:$0xf]
  %v6318 = vld [vmem:[%s8 + $0x14] sm:$0xf]
  %v6319 = vld [vmem:[%s8 + $0x18] sm:$0xf]
  %v6320 = vld [vmem:[%s8 + $0x1c] sm:$0xf]
  %v6321 = vld [vmem:[%s8 + $0x20] sm:$0xf]
  %v6322 = vld [vmem:[%s8 + $0x24] sm:$0xf]
  %v6323 = vld [vmem:[%s8 + $0x28] sm:$0xf]
  %v6324 = vld [vmem:[%s8 + $0x2c] sm:$0xf]
  %v6325 = vld [vmem:[%s8 + $0x30] sm:$0xf]
  %v6326 = vld [vmem:[%s8 + $0x34] sm:$0xf]
  %v6327 = vld [vmem:[%s8 + $0x38] sm:$0xf]
  %v6328 = vld [vmem:[%s8 + $0x3c] sm:$0xf]
  %v6329 = vld [vmem:[%s8 + $0x40] sm:$0xf]
  %v6330 = vld [vmem:[%s8 + $0x44] sm:$0xf]
  %v6331 = vld [vmem:[%s8 + $0x48] sm:$0xf]
  %v6332 = vld [vmem:[%s8 + $0x4c] sm:$0xf]
  %v6333 = vld [vmem:[%s8 + $0x50] sm:$0xf]
  %v6334 = vld [vmem:[%s8 + $0x54] sm:$0xf]
  %v6335 = vld [vmem:[%s8 + $0x58] sm:$0xf]
  %v6336 = vld [vmem:[%s8 + $0x5c] sm:$0xf]
  %v6337 = vld [vmem:[%s8 + $0x60] sm:$0xf]
  %v6338 = vld [vmem:[%s8 + $0x64] sm:$0xf]
  %v6339 = vld [vmem:[%s8 + $0x68] sm:$0xf]
  %v6340 = vld [vmem:[%s8 + $0x6c] sm:$0xf]
  %v6341 = vld [vmem:[%s8 + $0x70] sm:$0xf]
  %v6342 = vld [vmem:[%s8 + $0x74] sm:$0xf]
  %v6343 = vld [vmem:[%s8 + $0x78] sm:$0xf]
  %v6344 = vld [vmem:[%s8 + $0x7c] sm:$0xf]
  %v6345 = vld [vmem:[%s9] sm:$0x1]
  %v6347 = vlaneseq
  %v6348 = vshrl.u32 %v6347, 7
  %v6349 = vsub.s32 0, %v6348
  %v6350 = vrot.slane %v6345, %v6349
  %v6384 = vunpack.c.l.b16 %v6313
  %v6385 = vunpack.c.l.b16 %v6314
  %v6386 = vunpack.c.l.b16 %v6315
  %v6387 = vunpack.c.l.b16 %v6316
  %v6388 = vunpack.c.l.b16 %v6317
  %v6389 = vunpack.c.l.b16 %v6318
  %v6390 = vunpack.c.l.b16 %v6319
  %v6391 = vunpack.c.l.b16 %v6320
  %v6392 = vunpack.c.l.b16 %v6321
  %v6393 = vunpack.c.l.b16 %v6322
  %v6394 = vunpack.c.l.b16 %v6323
  %v6395 = vunpack.c.l.b16 %v6324
  %v6396 = vunpack.c.l.b16 %v6325
  %v6397 = vunpack.c.l.b16 %v6326
  %v6398 = vunpack.c.l.b16 %v6327
  %v6399 = vunpack.c.l.b16 %v6328
  %v6400 = vunpack.c.l.b16 %v6329
  %v6401 = vunpack.c.l.b16 %v6330
  %v6402 = vunpack.c.l.b16 %v6331
  %v6403 = vunpack.c.l.b16 %v6332
  %v6404 = vunpack.c.l.b16 %v6333
  %v6405 = vunpack.c.l.b16 %v6334
  %v6406 = vunpack.c.l.b16 %v6335
  %v6407 = vunpack.c.l.b16 %v6336
  %v6408 = vunpack.c.l.b16 %v6337
  %v6409 = vunpack.c.l.b16 %v6338
  %v6410 = vunpack.c.l.b16 %v6339
  %v6411 = vunpack.c.l.b16 %v6340
  %v6412 = vunpack.c.l.b16 %v6341
  %v6413 = vunpack.c.l.b16 %v6342
  %v6414 = vunpack.c.l.b16 %v6343
  %v6415 = vunpack.c.l.b16 %v6344
  %v6416 = vpack.c.b16 %v6385, %v6384
  %v6417 = vpack.c.b16 %v6387, %v6386
  %v6418 = vpack.c.b16 %v6389, %v6388
  %v6419 = vpack.c.b16 %v6391, %v6390
  %v6420 = vpack.c.b16 %v6393, %v6392
  %v6421 = vpack.c.b16 %v6395, %v6394
  %v6422 = vpack.c.b16 %v6397, %v6396
  %v6423 = vpack.c.b16 %v6399, %v6398
  %v6424 = vpack.c.b16 %v6401, %v6400
  %v6425 = vpack.c.b16 %v6403, %v6402
  %v6426 = vpack.c.b16 %v6405, %v6404
  %v6427 = vpack.c.b16 %v6407, %v6406
  %v6428 = vpack.c.b16 %v6409, %v6408
  %v6429 = vpack.c.b16 %v6411, %v6410
  %v6430 = vpack.c.b16 %v6413, %v6412
  %v6431 = vpack.c.b16 %v6415, %v6414
  %6448 = vmatprep.subr.bf16.mxu0 0
  %6449 = vmatpush1.bf16.msra.mxu0 %v6423
  %6450 = vmatprep.subr.bf16.mxu0 0
  %6451 = vmatpush1.bf16.msra.mxu0 %v6422
  %6452 = vmatprep.subr.bf16.mxu0 0
  %6453 = vmatpush1.bf16.msra.mxu0 %v6421
  %6454 = vmatprep.subr.bf16.mxu0 0
  %6455 = vmatpush1.bf16.msra.mxu0 %v6420
  %6456 = vmatprep.subr.bf16.mxu0 0
  %6457 = vmatpush1.bf16.msra.mxu0 %v6419
  %6458 = vmatprep.subr.bf16.mxu0 0
  %6459 = vmatpush1.bf16.msra.mxu0 %v6418
  %6460 = vmatprep.subr.bf16.mxu0 0
  %6461 = vmatpush1.bf16.msra.mxu0 %v6417
  %6462 = vmatprep.subr.bf16.mxu0 0
  %6463 = vmatpush1.bf16.msra.mxu0 %v6416
  %6464 = vmatprep.subr.bf16.mxu0 0
  %6465 = vmatpush2.bf16.msra.mxu0 %v6431
  %6466 = vmatprep.subr.bf16.mxu0 0
  %6467 = vmatpush2.bf16.msra.mxu0 %v6430
  %6468 = vmatprep.subr.bf16.mxu0 0
  %6469 = vmatpush2.bf16.msra.mxu0 %v6429
  %6470 = vmatprep.subr.bf16.mxu0 0
  %6471 = vmatpush2.bf16.msra.mxu0 %v6428
  %6472 = vmatprep.subr.bf16.mxu0 0
  %6473 = vmatpush2.bf16.msra.mxu0 %v6427
  %6474 = vmatprep.subr.bf16.mxu0 0
  %6475 = vmatpush2.bf16.msra.mxu0 %v6426
  %6476 = vmatprep.subr.bf16.mxu0 0
  %6477 = vmatpush2.bf16.msra.mxu0 %v6425
  %6478 = vmatprep.subr.bf16.mxu0 0
  %6479 = vmatpush2.bf16.msra.mxu0 %v6424
  %6480 = vmatprep.mubr.bf16.mxu0 %v6306
  %6481 = vmatmul.mubr.bf16.gmra.mxu0 %v6305
  %v6482 = vpop.f32.mrf.mxu0
  %v6483 = vadd.f32 %v6350, %v6482
  %v6484 = vpop.f32.mrf.mxu0
  %v6485 = vpop.f32.mrf.mxu0
  %v6486 = vadd.f32 %v6350, %v6485
  %v6487 = vpop.f32.mrf.mxu0
  %6488 = vmatprep.mubr.bf16.mxu0 %v6308
  %6489 = vmatmul.mubr.bf16.gmra.mxu0 %v6307
  %v6490 = vpop.f32.mrf.mxu0
  %v6491 = vadd.f32 %v6350, %v6490
  %v6492 = vpop.f32.mrf.mxu0
  %v6493 = vpop.f32.mrf.mxu0
  %v6494 = vadd.f32 %v6350, %v6493
  %v6495 = vpop.f32.mrf.mxu0
  %6496 = vmatprep.mubr.bf16.mxu0 %v6310
  %6497 = vmatmul.mubr.bf16.gmra.mxu0 %v6309
  %v6498 = vpop.f32.mrf.mxu0
  %v6499 = vadd.f32 %v6350, %v6498
  %v6500 = vpop.f32.mrf.mxu0
  %v6501 = vpop.f32.mrf.mxu0
  %v6502 = vadd.f32 %v6350, %v6501
  %v6503 = vpop.f32.mrf.mxu0
  %6504 = vmatprep.mubr.bf16.mxu0 %v6312
  %6505 = vmatmul.mubr.bf16.gmra.mxu0 %v6311
  %v6506 = vpop.f32.mrf.mxu0
  %v6507 = vadd.f32 %v6350, %v6506
  %v6508 = vpop.f32.mrf.mxu0
  %v6509 = vpop.f32.mrf.mxu0
  %v6510 = vadd.f32 %v6350, %v6509
  %v6511 = vpop.f32.mrf.mxu0
  %6512 = vdwg.mxu0
  %6513 = vst [vmem:[%s10] sm:$0xff] %v6483
  %6514 = vst [vmem:[%s10 + $0x8] sm:$0xff] %v6486
  %6515 = vst [vmem:[%s10 + $0x10] sm:$0xff] %v6491
  %6516 = vst [vmem:[%s10 + $0x18] sm:$0xff] %v6494
  %6517 = vst [vmem:[%s10 + $0x20] sm:$0xff] %v6499
  %6518 = vst [vmem:[%s10 + $0x28] sm:$0xff] %v6502
  %6519 = vst [vmem:[%s10 + $0x30] sm:$0xff] %v6507
  %6520 = vst [vmem:[%s10 + $0x38] sm:$0xff] %v6510
  // Predicated region
  $region42: #{rnn_forward.1} parent=0 // pred_check
    _
  $region43: #{rnn_forward.1} parent=0 // pred_check_branch
    %6522 = sbr.rel (0) target = $region45
  $region44: #{rnn_forward.1} parent=0 // pred_region
    _
  $region45: #{rnn_forward.1} parent=0 // pred_fallthru
    _
  // Predicated region
  $region46: #{rnn_forward.1} parent=0 // pred_check
    _
  $region47: #{rnn_forward.1} parent=0 // pred_check_branch
    %6524 = sbr.rel (0) target = $region49
  $region48: #{rnn_forward.1} parent=0 // pred_region
    _
  $region49: #{rnn_forward.1} parent=0 // pred_fallthru
    _

</llo_original>
